<compile_context>
chip_gen: v7x
topology: tpu7x:2x2x1
jax: 0.10.0
libtpu: 0.0.40
codegen_flags: <defaults>
</compile_context>

<pallas_src>
import jax
import jax.numpy as jnp
import numpy as np
from jax import lax
from jax.experimental import pallas as pl
from jax.experimental.pallas import tpu as pltpu

EPS = 1e-5


# --------------------------- generation-aware config ---------------------------

def _vmem_limit_bytes():
    cap = 64 * 1024 * 1024
    try:
        info = pltpu.get_tpu_info()
        cap = int(getattr(info, "vmem_capacity_bytes", cap))
    except Exception:
        pass
    # ~48 MiB on v7x (64 MiB physical), ~96 MiB on v5e/v6e (128 MiB physical).
    return max((cap * 3) // 4, 32 * 1024 * 1024)


_VMEM_LIMIT = _vmem_limit_bytes()


def _cparams(*sem):
    return pltpu.CompilerParams(dimension_semantics=sem,
                                vmem_limit_bytes=_VMEM_LIMIT)


def _pick_tile(m, bytes_per_row, min_steps=2):
    """Largest divisor of m whose double-buffered working set fits the VMEM budget,
    preferring at least `min_steps` grid steps so the DMA pipeline can overlap."""
    budget = max(_VMEM_LIMIT // 3, 1 << 20)
    cands = [t for t in (8192, 4096, 2048, 1024, 512, 256, 128, 64, 32, 16, 8, 4, 2, 1)
             if m % t == 0]
    fitting = [t for t in cands if 2 * t * bytes_per_row <= budget]
    for t in fitting:
        if m // t >= min_steps:
            return t
    return fitting[0] if fitting else cands[-1]


# ------------------------------- kernel helpers -------------------------------

def _partial_stats(y):
    """Per-sublane partial sum / sum-of-squares of an (rows, n) f32 value -> (8, n).

    Keeps the cross-sublane reduction off the hot path (VPU-only vreg adds);
    the final (8 -> 1) reduce happens once at the XLA level.
    """
    n = y.shape[-1]
    if y.shape[0] % 8 == 0:
        yr = y.reshape(-1, 8, n)
        return jnp.sum(yr, axis=0), jnp.sum(yr * yr, axis=0)
    z = jnp.zeros((7, n), y.dtype)
    return (jnp.concatenate([jnp.sum(y, axis=0, keepdims=True), z], axis=0),
            jnp.concatenate([jnp.sum(y * y, axis=0, keepdims=True), z], axis=0))


def _bn_scale_shift(ssum, ssq, m, gamma, beta):
    """Fold batch stats + affine params into y*scale + shift."""
    s = jnp.sum(ssum, axis=(0, 1))
    q = jnp.sum(ssq, axis=(0, 1))
    mean = s / m
    var = jnp.maximum(q / m - mean * mean, 0.0)
    inv = lax.rsqrt(var + EPS)
    g = gamma.reshape(-1)
    b = beta.reshape(-1)
    scale = g * inv
    shift = b - mean * scale
    return (scale.reshape(1, -1).astype(jnp.float32),
            shift.reshape(1, -1).astype(jnp.float32))


# ---------------------------------- kernels ----------------------------------

def _fused_in_kernel(x_ref, w0_ref, w1_ref, ws_ref,
                     a0_ref, x1_ref, ys_ref,
                     s0s_ref, s0q_ref, s1s_ref, s1q_ref):
    """x read once: branch0 1x1, branch1 1x1, shortcut 1x1 + BN partial stats."""
    x = x_ref[...]                                                  # bf16 tile
    y0 = jnp.dot(x, w0_ref[...], preferred_element_type=jnp.float32)
    y1 = jnp.dot(x, w1_ref[...], preferred_element_type=jnp.float32)
    ys = jnp.dot(x, ws_ref[...], preferred_element_type=jnp.float32)
    a0_ref[...] = y0.astype(a0_ref.dtype)
    x1_ref[...] = y1.astype(x1_ref.dtype)
    ys_ref[...] = ys.astype(ys_ref.dtype)
    s, q = _partial_stats(y0)
    s0s_ref[...] = s[None]
    s0q_ref[...] = q[None]
    s, q = _partial_stats(y1)
    s1s_ref[...] = s[None]
    s1q_ref[...] = q[None]


def _conv_tap_kernel(x_ref, scale_ref, shift_ref, w_ref, y_ref, ss_ref, sq_ref):
    """Fused (input BN+ReLU) -> 7-tap conv along axis 1 -> BN partial stats.

    Works for both block ranks:
      (1,7) conv:  block (gt, W, cin)        - conv axis is the sublane dim
      (7,1) conv:  block (gt, H, W, cin)     - conv axis is a major dim
    The zero padding / shifted taps are built in-register (no im2col slab).
    """
    shp = x_ref.shape
    cin = shp[-1]
    L = shp[1]
    taps = w_ref.shape[0]
    cout = w_ref.shape[-1]
    pad = (taps - 1) // 2

    x = x_ref[...].astype(jnp.float32)
    sc = scale_ref[...].reshape((1,) * (len(shp) - 1) + (cin,))
    sh = shift_ref[...].reshape((1,) * (len(shp) - 1) + (cin,))
    x = jnp.maximum(x * sc + sh, 0.0)                # producer's BatchNorm + ReLU

    zeros = jnp.zeros(shp[:1] + (pad,) + shp[2:], jnp.float32)
    xp = jnp.concatenate([zeros, x, zeros], axis=1)  # zero pad along conv axis

    rows = int(np.prod(shp[:-1]))
    w_all = w_ref[...].astype(jnp.float32)
    acc = jnp.zeros((rows, cout), jnp.float32)
    for k in range(taps):                            # 7 shifted taps, accumulated
        tap = xp[:, k:k + L].reshape(rows, cin)
        acc = acc + jnp.dot(tap, w_all[k], preferred_element_type=jnp.float32)

    y_ref[...] = acc.reshape(shp[:-1] + (cout,)).astype(y_ref.dtype)
    s, q = _partial_stats(acc)
    ss_ref[...] = s[None]
    sq_ref[...] = q[None]


def _out_combine_kernel(x0_ref, x1_ref, ys_ref, sc0_ref, sh0_ref, sc1_ref, sh1_ref,
                        wr0_ref, wr1_ref, cb_ref, y_ref, ss_ref, sq_ref):
    """BN+ReLU(x0), BN+ReLU(x1) in-kernel; reduction(cat)*0.1 + shortcut + stats."""
    x0 = jnp.maximum(x0_ref[...].astype(jnp.float32) * sc0_ref[...] + sh0_ref[...], 0.0)
    x1 = jnp.maximum(x1_ref[...].astype(jnp.float32) * sc1_ref[...] + sh1_ref[...], 0.0)
    r = (jnp.dot(x0, wr0_ref[...], preferred_element_type=jnp.float32)
         + jnp.dot(x1, wr1_ref[...], preferred_element_type=jnp.float32))
    y = 0.1 * r + ys_ref[...].astype(jnp.float32) + cb_ref[...]
    y_ref[...] = y.astype(y_ref.dtype)
    s, q = _partial_stats(y)
    ss_ref[...] = s[None]
    sq_ref[...] = q[None]


def _bn_relu_kernel(y_ref, scale_ref, shift_ref, o_ref):
    y = y_ref[...].astype(jnp.float32)
    o_ref[...] = jnp.maximum(y * scale_ref[...] + shift_ref[...], 0.0).astype(o_ref.dtype)


# --------------------------------- wrappers ---------------------------------

def fused_in(x2, w0, w1, ws):
    M, C = x2.shape
    c0a = w0.shape[1]
    c1 = w1.shape[1]
    nout = c0a + c1 + C
    bpr = 2 * C + 2 * nout + 4 * nout
    mt = _pick_tile(M, bpr)
    nt = M // mt
    sspec = lambda n: pl.BlockSpec((1, 8, n), lambda i: (i, 0, 0))
    flops = int(2 * M * C * nout)
    bytes_acc = int(x2.size * 2 + (w0.size + w1.size + ws.size) * 2 + M * nout * 2)
    return pl.pallas_call(
        _fused_in_kernel,
        out_shape=(jax.ShapeDtypeStruct((M, c0a), jnp.bfloat16),
                   jax.ShapeDtypeStruct((M, c1), jnp.bfloat16),
                   jax.ShapeDtypeStruct((M, C), jnp.bfloat16),
                   jax.ShapeDtypeStruct((nt, 8, c0a), jnp.float32),
                   jax.ShapeDtypeStruct((nt, 8, c0a), jnp.float32),
                   jax.ShapeDtypeStruct((nt, 8, c1), jnp.float32),
                   jax.ShapeDtypeStruct((nt, 8, c1), jnp.float32)),
        grid=(nt,),
        in_specs=[pl.BlockSpec((mt, C), lambda i: (i, 0)),
                  pl.BlockSpec((C, c0a), lambda i: (0, 0)),
                  pl.BlockSpec((C, c1), lambda i: (0, 0)),
                  pl.BlockSpec((C, C), lambda i: (0, 0))],
        out_specs=(pl.BlockSpec((mt, c0a), lambda i: (i, 0)),
                   pl.BlockSpec((mt, c1), lambda i: (i, 0)),
                   pl.BlockSpec((mt, C), lambda i: (i, 0)),
                   sspec(c0a), sspec(c0a), sspec(c1), sspec(c1)),
        compiler_params=_cparams("parallel"),
        cost_estimate=pl.CostEstimate(flops=flops, transcendentals=0,
                                      bytes_accessed=bytes_acc),
    )(x2, w0, w1, ws)


def conv_taps(x, scale, shift, w):
    """x: (G, L, ..., cin) raw pre-BN activation; 7-tap conv along axis 1 (pad 3),
    with the producer's BatchNorm+ReLU fused in front of the conv."""
    shape = x.shape
    G = shape[0]
    cin = shape[-1]
    taps = w.shape[0]
    cout = w.shape[-1]
    ndim = len(shape)
    rows_per_g = int(np.prod(shape[1:-1]))
    bpr = rows_per_g * (2 * cin + 2 * cout + 4 * (cin + cout))
    gt = _pick_tile(G, bpr)
    ng = G // gt
    in_block = (gt,) + shape[1:]
    out_block = (gt,) + shape[1:-1] + (cout,)
    zeros_idx = (0,) * (ndim - 1)

    def imap(i):
        return (i,) + zeros_idx

    flops = int(2 * G * rows_per_g * taps * cin * cout)
    bytes_acc = int(x.size * 2 + w.size * 4 + G * rows_per_g * cout * 2)
    return pl.pallas_call(
        _conv_tap_kernel,
        out_shape=(jax.ShapeDtypeStruct(shape[:-1] + (cout,), jnp.bfloat16),
                   jax.ShapeDtypeStruct((ng, 8, cout), jnp.float32),
                   jax.ShapeDtypeStruct((ng, 8, cout), jnp.float32)),
        grid=(ng,),
        in_specs=[pl.BlockSpec(in_block, imap),
                  pl.BlockSpec((1, cin), lambda i: (0, 0)),
                  pl.BlockSpec((1, cin), lambda i: (0, 0)),
                  pl.BlockSpec((taps, cin, cout), lambda i: (0, 0, 0))],
        out_specs=(pl.BlockSpec(out_block, imap),
                   pl.BlockSpec((1, 8, cout), lambda i: (i, 0, 0)),
                   pl.BlockSpec((1, 8, cout), lambda i: (i, 0, 0))),
        compiler_params=_cparams("parallel"),
        cost_estimate=pl.CostEstimate(flops=flops, transcendentals=0,
                                      bytes_accessed=bytes_acc),
    )(x, scale, shift, w)


def out_combine(x0, x1, ys, sc0, sh0, sc1, sh1, wr0, wr1, cbias):
    M, c0c = x0.shape
    c1 = x1.shape[1]
    C = ys.shape[1]
    bpr = 2 * (c0c + c1 + C) + 2 * C + 4 * (c0c + c1 + 2 * C)
    mt = _pick_tile(M, bpr)
    nt = M // mt
    vec = lambda n: pl.BlockSpec((1, n), lambda i: (0, 0))
    flops = int(2 * M * (c0c + c1) * C)
    bytes_acc = int((x0.size + x1.size + ys.size) * 2 + M * C * 2
                    + (wr0.size + wr1.size) * 4)
    return pl.pallas_call(
        _out_combine_kernel,
        out_shape=(jax.ShapeDtypeStruct((M, C), jnp.bfloat16),
                   jax.ShapeDtypeStruct((nt, 8, C), jnp.float32),
                   jax.ShapeDtypeStruct((nt, 8, C), jnp.float32)),
        grid=(nt,),
        in_specs=[pl.BlockSpec((mt, c0c), lambda i: (i, 0)),
                  pl.BlockSpec((mt, c1), lambda i: (i, 0)),
                  pl.BlockSpec((mt, C), lambda i: (i, 0)),
                  vec(c0c), vec(c0c), vec(c1), vec(c1),
                  pl.BlockSpec((c0c, C), lambda i: (0, 0)),
                  pl.BlockSpec((c1, C), lambda i: (0, 0)),
                  vec(C)],
        out_specs=(pl.BlockSpec((mt, C), lambda i: (i, 0)),
                   pl.BlockSpec((1, 8, C), lambda i: (i, 0, 0)),
                   pl.BlockSpec((1, 8, C), lambda i: (i, 0, 0))),
        compiler_params=_cparams("parallel"),
        cost_estimate=pl.CostEstimate(flops=flops, transcendentals=0,
                                      bytes_accessed=bytes_acc),
    )(x0, x1, ys, sc0, sh0, sc1, sh1, wr0, wr1, cbias)


def bn_relu_apply(y, scale, shift, out_dtype=jnp.float32):
    M, N = y.shape
    osz = np.dtype(out_dtype).itemsize
    bpr = 2 * N + osz * N + 4 * N
    mt = _pick_tile(M, bpr)
    nt = M // mt
    return pl.pallas_call(
        _bn_relu_kernel,
        out_shape=jax.ShapeDtypeStruct((M, N), out_dtype),
        grid=(nt,),
        in_specs=[pl.BlockSpec((mt, N), lambda i: (i, 0)),
                  pl.BlockSpec((1, N), lambda i: (0, 0)),
                  pl.BlockSpec((1, N), lambda i: (0, 0))],
        out_specs=pl.BlockSpec((mt, N), lambda i: (i, 0)),
        compiler_params=_cparams("parallel"),
        cost_estimate=pl.CostEstimate(flops=int(3 * M * N), transcendentals=0,
                                      bytes_accessed=int(M * N * (2 + osz))),
    )(y, scale, shift)


# ------------------------------- model wrapper -------------------------------

def init_params(key, C):
    c0a, c0b, c0c = C // 8, C // 6, C // 4
    miss = abs(C // 2 - 2 * (C // 4))
    c1 = miss + C // 4
    keys = iter(jax.random.split(key, 20))
    nrm = lambda shape, s=0.1: s * jax.random.normal(next(keys), shape, jnp.float32)
    gam = lambda n: 1.0 + 0.1 * jax.random.normal(next(keys), (1, n), jnp.float32)
    bet = lambda n: 0.1 * jax.random.normal(next(keys), (1, n), jnp.float32)
    return {
        # branch0: 1x1 -> (1,7) -> (7,1)   (conv weights stored channels-last)
        "w0a": nrm((C, c0a)), "g0a": gam(c0a), "b0a": bet(c0a),
        "w0b": nrm((7, c0a, c0b)), "g0b": gam(c0b), "b0b": bet(c0b),   # (tap,in,out)
        "w0c": nrm((7, c0b, c0c)), "g0c": gam(c0c), "b0c": bet(c0c),   # (tap,in,out)
        # branch1: 1x1
        "w1": nrm((C, c1)), "g1": gam(c1), "b1": bet(c1),
        # reduction / shortcut (1x1 convs with bias)
        "wr": nrm((C // 2, C)), "br": nrm((1, C)),
        "ws": nrm((C, C)), "bs": nrm((1, C)),
        # final BatchNorm
        "g_out": gam(C), "b_out": bet(C),
    }


def inception_resnet_b_pallas(x_nchw, p):
    B, C, H, W = x_nchw.shape
    c0a = p["w0a"].shape[1]
    c0b = p["w0b"].shape[2]
    c0c = p["w0c"].shape[2]
    c1 = p["w1"].shape[1]
    M = B * H * W

    # NCHW -> channels-last (M, C); MXU / HBM activations in bf16.
    x2 = jnp.transpose(x_nchw, (0, 2, 3, 1)).reshape(M, C).astype(jnp.bfloat16)

    # ---- one pass over x: branch0 1x1 | branch1 1x1 | shortcut 1x1 (+ stats) ----
    a0_raw, x1_raw, ys_raw, s0s, s0q, s1s, s1q = fused_in(
        x2, p["w0a"].astype(jnp.bfloat16), p["w1"].astype(jnp.bfloat16),
        p["ws"].astype(jnp.bfloat16))
    sc0a, sh0a = _bn_scale_shift(s0s, s0q, M, p["g0a"], p["b0a"])
    sc1, sh1 = _bn_scale_shift(s1s, s1q, M, p["g1"], p["b1"])

    # ---- (1,7) conv along W, with a0's BN+ReLU fused in front ----
    a0b_raw, sbs, sbq = conv_taps(a0_raw.reshape(B * H, W, c0a), sc0a, sh0a,
                                  p["w0b"].astype(jnp.float32))
    scb, shb = _bn_scale_shift(sbs, sbq, M, p["g0b"], p["b0b"])

    # ---- (7,1) conv along H, with the (1,7) output's BN+ReLU fused in front ----
    x0_raw, scs, scq = conv_taps(a0b_raw.reshape(B, H, W, c0b), scb, shb,
                                 p["w0c"].astype(jnp.float32))
    scc, shc = _bn_scale_shift(scs, scq, M, p["g0c"], p["b0c"])

    # ---- BN(x0), BN(x1) in-kernel; reduction(cat)*0.1 + shortcut (+ stats) ----
    wr0 = p["wr"][:c0c].astype(jnp.float32)
    wr1 = p["wr"][c0c:].astype(jnp.float32)
    cbias = (0.1 * p["br"] + p["bs"]).astype(jnp.float32)     # folded biases (1, C)
    yout, sos, soq = out_combine(x0_raw.reshape(M, c0c), x1_raw, ys_raw,
                                 scc, shc, sc1, sh1, wr0, wr1, cbias)
    sco, sho = _bn_scale_shift(sos, soq, M, p["g_out"], p["b_out"])

    # ---- final BN + ReLU ----
    out2 = bn_relu_apply(yout, sco, sho, jnp.float32)
    return jnp.transpose(out2.reshape(B, H, W, C), (0, 3, 1, 2))       # NCHW


# ------------------------------ pure-JAX reference ------------------------------

def _conv_ref(x, w_oihw, bias=None, padding=((0, 0), (0, 0))):
    y = lax.conv_general_dilated(x, w_oihw, (1, 1), padding,
                                 dimension_numbers=("NCHW", "OIHW", "NCHW"),
                                 precision=lax.Precision.HIGHEST)
    if bias is not None:
        y = y + bias.reshape(1, -1, 1, 1)
    return y


def _bn_relu_ref(x, g, b):
    mean = jnp.mean(x, axis=(0, 2, 3), keepdims=True)
    var = jnp.mean((x - mean) ** 2, axis=(0, 2, 3), keepdims=True)
    y = (x - mean) * lax.rsqrt(var + EPS) * g.reshape(1, -1, 1, 1) + b.reshape(1, -1, 1, 1)
    return jnp.maximum(y, 0.0)


def inception_resnet_b_ref(x, p):
    w11 = lambda w: jnp.transpose(w)[:, :, None, None]                # (Cin,Cout)->OIHW
    w0b = jnp.transpose(p["w0b"], (2, 1, 0))[:, :, None, :]           # (c0b,c0a,1,7)
    w0c = jnp.transpose(p["w0c"], (2, 1, 0))[:, :, :, None]           # (c0c,c0b,7,1)
    y = _bn_relu_ref(_conv_ref(x, w11(p["w0a"])), p["g0a"].ravel(), p["b0a"].ravel())
    y = _bn_relu_ref(_conv_ref(y, w0b, padding=((0, 0), (3, 3))),
                     p["g0b"].ravel(), p["b0b"].ravel())
    x0 = _bn_relu_ref(_conv_ref(y, w0c, padding=((3, 3), (0, 0))),
                      p["g0c"].ravel(), p["b0c"].ravel())
    x1 = _bn_relu_ref(_conv_ref(x, w11(p["w1"])), p["g1"].ravel(), p["b1"].ravel())
    cat = jnp.concatenate([x0, x1], axis=1)
    r = _conv_ref(cat, w11(p["wr"]), p["br"].ravel()) * 0.1
    s = _conv_ref(x, w11(p["ws"]), p["bs"].ravel())
    return _bn_relu_ref(r + s, p["g_out"].ravel(), p["b_out"].ravel())


# ------------------------------------ main ------------------------------------

if __name__ == "__main__":
    # inCh must be >= 8 so that inCh//8 >= 1 (as in the PyTorch module).
    B, C, H, W = 2, 16, 16, 16
    key = jax.random.PRNGKey(0)
    kx, kp = jax.random.split(key)
    x = jax.random.normal(kx, (B, C, H, W), jnp.float32)
    params = init_params(kp, C)

    out = jax.block_until_ready(jax.jit(inception_resnet_b_pallas)(x, params))
    ref = jax.block_until_ready(inception_resnet_b_ref(x, params))

    assert out.shape == (B, C, H, W)
    # Tolerance accounts for bf16 matmul operands and bf16 intermediate storage.
    np.testing.assert_allclose(np.asarray(out), np.asarray(ref), atol=5e-2, rtol=5e-2)
    print("KERNEL_OK")
</pallas_src>

<mosaic_0001>
module attributes {stable_mosaic.version = 11 : i64} {
  func.func @_fused_in_kernel(%arg0: i32, %arg1: memref<256x16xbf16, #tpu.memory_space<vmem>>, %arg2: memref<16x2xbf16, #tpu.memory_space<vmem>>, %arg3: memref<16x4xbf16, #tpu.memory_space<vmem>>, %arg4: memref<16x16xbf16, #tpu.memory_space<vmem>>, %arg5: memref<256x2xbf16, #tpu.memory_space<vmem>>, %arg6: memref<256x4xbf16, #tpu.memory_space<vmem>>, %arg7: memref<256x16xbf16, #tpu.memory_space<vmem>>, %arg8: memref<1x8x2xf32, #tpu.memory_space<vmem>>, %arg9: memref<1x8x2xf32, #tpu.memory_space<vmem>>, %arg10: memref<1x8x4xf32, #tpu.memory_space<vmem>>, %arg11: memref<1x8x4xf32, #tpu.memory_space<vmem>>) attributes {dimension_semantics = [#tpu.dimension_semantics<parallel>], iteration_bounds = array<i64: 2>, scalar_prefetch = 0 : i64, scratch_operands = 0 : i64, tpu.core_type = #tpu.core_type<tc>, window_params = [{transform_indices = @transform_0, window_bounds = array<i64: 256, 16>}, {pipeline_mode = #tpu.pipeline_mode<synchronous>, transform_indices = @transform_1, window_bounds = array<i64: 16, 2>}, {pipeline_mode = #tpu.pipeline_mode<synchronous>, transform_indices = @transform_2, window_bounds = array<i64: 16, 4>}, {pipeline_mode = #tpu.pipeline_mode<synchronous>, transform_indices = @transform_3, window_bounds = array<i64: 16, 16>}, {transform_indices = @transform_4, window_bounds = array<i64: 256, 2>}, {transform_indices = @transform_5, window_bounds = array<i64: 256, 4>}, {transform_indices = @transform_6, window_bounds = array<i64: 256, 16>}, {transform_indices = @transform_7, window_bounds = array<i64: 1, 8, 2>}, {transform_indices = @transform_8, window_bounds = array<i64: 1, 8, 2>}, {transform_indices = @transform_9, window_bounds = array<i64: 1, 8, 4>}, {transform_indices = @transform_10, window_bounds = array<i64: 1, 8, 4>}]} {
    %c0 = arith.constant 0 : index
    %c0_0 = arith.constant 0 : index
    %0 = vector.load %arg1[%c0, %c0_0] : memref<256x16xbf16, #tpu.memory_space<vmem>>, vector<256x16xbf16>
    %c0_1 = arith.constant 0 : index
    %c0_2 = arith.constant 0 : index
    %1 = vector.load %arg2[%c0_1, %c0_2] : memref<16x2xbf16, #tpu.memory_space<vmem>>, vector<16x2xbf16>
    %cst = arith.constant dense<0.000000e+00> : vector<256x2xf32>
    %2 = tpu.matmul %0, %1, %cst {dimension_numbers = #tpu.dot_dimension_numbers<[1], [0], [0], [1], [0, 0, 1, 1], [], []>} : vector<256x16xbf16>, vector<16x2xbf16>, vector<256x2xf32> -> vector<256x2xf32>
    %c0_3 = arith.constant 0 : index
    %c0_4 = arith.constant 0 : index
    %3 = vector.load %arg3[%c0_3, %c0_4] : memref<16x4xbf16, #tpu.memory_space<vmem>>, vector<16x4xbf16>
    %cst_5 = arith.constant dense<0.000000e+00> : vector<256x4xf32>
    %4 = tpu.matmul %0, %3, %cst_5 {dimension_numbers = #tpu.dot_dimension_numbers<[1], [0], [0], [1], [0, 0, 1, 1], [], []>} : vector<256x16xbf16>, vector<16x4xbf16>, vector<256x4xf32> -> vector<256x4xf32>
    %c0_6 = arith.constant 0 : index
    %c0_7 = arith.constant 0 : index
    %5 = vector.load %arg4[%c0_6, %c0_7] : memref<16x16xbf16, #tpu.memory_space<vmem>>, vector<16x16xbf16>
    %cst_8 = arith.constant dense<0.000000e+00> : vector<256x16xf32>
    %6 = tpu.matmul %0, %5, %cst_8 {dimension_numbers = #tpu.dot_dimension_numbers<[1], [0], [0], [1], [0, 0, 1, 1], [], []>} : vector<256x16xbf16>, vector<16x16xbf16>, vector<256x16xf32> -> vector<256x16xf32>
    %7 = arith.truncf %2 : vector<256x2xf32> to vector<256x2xbf16>
    %c0_9 = arith.constant 0 : index
    %c0_10 = arith.constant 0 : index
    %8 = vector.load %arg5[%c0_9, %c0_10] : memref<256x2xbf16, #tpu.memory_space<vmem>>, vector<256x2xbf16>
    tpu.vector_store %arg5[%c0_9, %c0_10], %7 {strides = array<i32>} : memref<256x2xbf16, #tpu.memory_space<vmem>>, vector<256x2xbf16>,
    %9 = arith.truncf %4 : vector<256x4xf32> to vector<256x4xbf16>
    %c0_11 = arith.constant 0 : index
    %c0_12 = arith.constant 0 : index
    %10 = vector.load %arg6[%c0_11, %c0_12] : memref<256x4xbf16, #tpu.memory_space<vmem>>, vector<256x4xbf16>
    tpu.vector_store %arg6[%c0_11, %c0_12], %9 {strides = array<i32>} : memref<256x4xbf16, #tpu.memory_space<vmem>>, vector<256x4xbf16>,
    %11 = arith.truncf %6 : vector<256x16xf32> to vector<256x16xbf16>
    %c0_13 = arith.constant 0 : index
    %c0_14 = arith.constant 0 : index
    %12 = vector.load %arg7[%c0_13, %c0_14] : memref<256x16xbf16, #tpu.memory_space<vmem>>, vector<256x16xbf16>
    tpu.vector_store %arg7[%c0_13, %c0_14], %11 {strides = array<i32>} : memref<256x16xbf16, #tpu.memory_space<vmem>>, vector<256x16xbf16>,
    %13 = vector.shape_cast %2 : vector<256x2xf32> to vector<32x8x2xf32>
    %cst_15 = arith.constant dense<0.000000e+00> : vector<8x2xf32>
    %14 = vector.multi_reduction <add>, %13, %cst_15 [0] : vector<32x8x2xf32> to vector<8x2xf32>
    %15 = arith.mulf %13, %13 : vector<32x8x2xf32>
    %cst_16 = arith.constant dense<0.000000e+00> : vector<8x2xf32>
    %16 = vector.multi_reduction <add>, %15, %cst_16 [0] : vector<32x8x2xf32> to vector<8x2xf32>
    %17 = vector.shape_cast %14 : vector<8x2xf32> to vector<1x8x2xf32>
    %c0_17 = arith.constant 0 : index
    %c0_18 = arith.constant 0 : index
    %c0_19 = arith.constant 0 : index
    %18 = vector.load %arg8[%c0_17, %c0_18, %c0_19] : memref<1x8x2xf32, #tpu.memory_space<vmem>>, vector<1x8x2xf32>
    tpu.vector_store %arg8[%c0_17, %c0_18, %c0_19], %17 {strides = array<i32>} : memref<1x8x2xf32, #tpu.memory_space<vmem>>, vector<1x8x2xf32>,
    %19 = vector.shape_cast %16 : vector<8x2xf32> to vector<1x8x2xf32>
    %c0_20 = arith.constant 0 : index
    %c0_21 = arith.constant 0 : index
    %c0_22 = arith.constant 0 : index
    %20 = vector.load %arg9[%c0_20, %c0_21, %c0_22] : memref<1x8x2xf32, #tpu.memory_space<vmem>>, vector<1x8x2xf32>
    tpu.vector_store %arg9[%c0_20, %c0_21, %c0_22], %19 {strides = array<i32>} : memref<1x8x2xf32, #tpu.memory_space<vmem>>, vector<1x8x2xf32>,
    %21 = vector.shape_cast %4 : vector<256x4xf32> to vector<32x8x4xf32>
    %cst_23 = arith.constant dense<0.000000e+00> : vector<8x4xf32>
    %22 = vector.multi_reduction <add>, %21, %cst_23 [0] : vector<32x8x4xf32> to vector<8x4xf32>
    %23 = arith.mulf %21, %21 : vector<32x8x4xf32>
    %cst_24 = arith.constant dense<0.000000e+00> : vector<8x4xf32>
    %24 = vector.multi_reduction <add>, %23, %cst_24 [0] : vector<32x8x4xf32> to vector<8x4xf32>
    %25 = vector.shape_cast %22 : vector<8x4xf32> to vector<1x8x4xf32>
    %c0_25 = arith.constant 0 : index
    %c0_26 = arith.constant 0 : index
    %c0_27 = arith.constant 0 : index
    %26 = vector.load %arg10[%c0_25, %c0_26, %c0_27] : memref<1x8x4xf32, #tpu.memory_space<vmem>>, vector<1x8x4xf32>
    tpu.vector_store %arg10[%c0_25, %c0_26, %c0_27], %25 {strides = array<i32>} : memref<1x8x4xf32, #tpu.memory_space<vmem>>, vector<1x8x4xf32>,
    %27 = vector.shape_cast %24 : vector<8x4xf32> to vector<1x8x4xf32>
    %c0_28 = arith.constant 0 : index
    %c0_29 = arith.constant 0 : index
    %c0_30 = arith.constant 0 : index
    %28 = vector.load %arg11[%c0_28, %c0_29, %c0_30] : memref<1x8x4xf32, #tpu.memory_space<vmem>>, vector<1x8x4xf32>
    tpu.vector_store %arg11[%c0_28, %c0_29, %c0_30], %27 {strides = array<i32>} : memref<1x8x4xf32, #tpu.memory_space<vmem>>, vector<1x8x4xf32>,
    return
  }
  func.func @transform_0(%arg0: i32) -> (i32, i32) {
    %c0_i32 = arith.constant 0 : i32
    %c0_i32_0 = arith.constant 0 : i32
    return %arg0, %c0_i32 : i32, i32
  }
  func.func @transform_1(%arg0: i32) -> (i32, i32) {
    %c0_i32 = arith.constant 0 : i32
    %c0_i32_0 = arith.constant 0 : i32
    %c0_i32_1 = arith.constant 0 : i32
    return %c0_i32, %c0_i32_0 : i32, i32
  }
  func.func @transform_2(%arg0: i32) -> (i32, i32) {
    %c0_i32 = arith.constant 0 : i32
    %c0_i32_0 = arith.constant 0 : i32
    %c0_i32_1 = arith.constant 0 : i32
    return %c0_i32, %c0_i32_0 : i32, i32
  }
  func.func @transform_3(%arg0: i32) -> (i32, i32) {
    %c0_i32 = arith.constant 0 : i32
    %c0_i32_0 = arith.constant 0 : i32
    %c0_i32_1 = arith.constant 0 : i32
    return %c0_i32, %c0_i32_0 : i32, i32
  }
  func.func @transform_4(%arg0: i32) -> (i32, i32) {
    %c0_i32 = arith.constant 0 : i32
    %c0_i32_0 = arith.constant 0 : i32
    return %arg0, %c0_i32 : i32, i32
  }
  func.func @transform_5(%arg0: i32) -> (i32, i32) {
    %c0_i32 = arith.constant 0 : i32
    %c0_i32_0 = arith.constant 0 : i32
    return %arg0, %c0_i32 : i32, i32
  }
  func.func @transform_6(%arg0: i32) -> (i32, i32) {
    %c0_i32 = arith.constant 0 : i32
    %c0_i32_0 = arith.constant 0 : i32
    return %arg0, %c0_i32 : i32, i32
  }
  func.func @transform_7(%arg0: i32) -> (i32, i32, i32) {
    %c0_i32 = arith.constant 0 : i32
    %c0_i32_0 = arith.constant 0 : i32
    %c0_i32_1 = arith.constant 0 : i32
    return %arg0, %c0_i32, %c0_i32_0 : i32, i32, i32
  }
  func.func @transform_8(%arg0: i32) -> (i32, i32, i32) {
    %c0_i32 = arith.constant 0 : i32
    %c0_i32_0 = arith.constant 0 : i32
    %c0_i32_1 = arith.constant 0 : i32
    return %arg0, %c0_i32, %c0_i32_0 : i32, i32, i32
  }
  func.func @transform_9(%arg0: i32) -> (i32, i32, i32) {
    %c0_i32 = arith.constant 0 : i32
    %c0_i32_0 = arith.constant 0 : i32
    %c0_i32_1 = arith.constant 0 : i32
    return %arg0, %c0_i32, %c0_i32_0 : i32, i32, i32
  }
  func.func @transform_10(%arg0: i32) -> (i32, i32, i32) {
    %c0_i32 = arith.constant 0 : i32
    %c0_i32_0 = arith.constant 0 : i32
    %c0_i32_1 = arith.constant 0 : i32
    return %arg0, %c0_i32, %c0_i32_0 : i32, i32, i32
  }
}

module attributes {stable_mosaic.version = 11 : i64} {
  func.func @_conv_tap_kernel(%arg0: i32, %arg1: memref<16x16x2xbf16, #tpu.memory_space<vmem>>, %arg2: memref<1x2xf32, #tpu.memory_space<vmem>>, %arg3: memref<1x2xf32, #tpu.memory_space<vmem>>, %arg4: memref<7x2x2xf32, #tpu.memory_space<vmem>>, %arg5: memref<16x16x2xbf16, #tpu.memory_space<vmem>>, %arg6: memref<1x8x2xf32, #tpu.memory_space<vmem>>, %arg7: memref<1x8x2xf32, #tpu.memory_space<vmem>>) attributes {dimension_semantics = [#tpu.dimension_semantics<parallel>], iteration_bounds = array<i64: 2>, scalar_prefetch = 0 : i64, scratch_operands = 0 : i64, tpu.core_type = #tpu.core_type<tc>, window_params = [{transform_indices = @transform_0, window_bounds = array<i64: 16, 16, 2>}, {pipeline_mode = #tpu.pipeline_mode<synchronous>, transform_indices = @transform_1, window_bounds = array<i64: 1, 2>}, {pipeline_mode = #tpu.pipeline_mode<synchronous>, transform_indices = @transform_2, window_bounds = array<i64: 1, 2>}, {pipeline_mode = #tpu.pipeline_mode<synchronous>, transform_indices = @transform_3, window_bounds = array<i64: 7, 2, 2>}, {transform_indices = @transform_4, window_bounds = array<i64: 16, 16, 2>}, {transform_indices = @transform_5, window_bounds = array<i64: 1, 8, 2>}, {transform_indices = @transform_6, window_bounds = array<i64: 1, 8, 2>}]} {
    %c0 = arith.constant 0 : index
    %c0_0 = arith.constant 0 : index
    %c0_1 = arith.constant 0 : index
    %0 = vector.load %arg1[%c0, %c0_0, %c0_1] : memref<16x16x2xbf16, #tpu.memory_space<vmem>>, vector<16x16x2xbf16>
    %1 = arith.extf %0 : vector<16x16x2xbf16> to vector<16x16x2xf32>
    %c0_2 = arith.constant 0 : index
    %c0_3 = arith.constant 0 : index
    %2 = vector.load %arg2[%c0_2, %c0_3] : memref<1x2xf32, #tpu.memory_space<vmem>>, vector<1x2xf32>
    %3 = vector.shape_cast %2 : vector<1x2xf32> to vector<1x1x2xf32>
    %c0_4 = arith.constant 0 : index
    %c0_5 = arith.constant 0 : index
    %4 = vector.load %arg3[%c0_4, %c0_5] : memref<1x2xf32, #tpu.memory_space<vmem>>, vector<1x2xf32>
    %5 = vector.shape_cast %4 : vector<1x2xf32> to vector<1x1x2xf32>
    %6 = vector.broadcast %3 : vector<1x1x2xf32> to vector<16x16x2xf32>
    %7 = arith.mulf %1, %6 : vector<16x16x2xf32>
    %8 = vector.broadcast %5 : vector<1x1x2xf32> to vector<16x16x2xf32>
    %9 = arith.addf %7, %8 : vector<16x16x2xf32>
    %cst = arith.constant 0.000000e+00 : f32
    %10 = vector.broadcast %cst : f32 to vector<16x16x2xf32>
    %11 = arith.maximumf %9, %10 : vector<16x16x2xf32>
    %cst_6 = arith.constant 0.000000e+00 : f32
    %12 = vector.broadcast %cst_6 : f32 to vector<16x3x2xf32>
    %13 = tpu.concatenate %12, %11, %12 in 1 : vector<16x3x2xf32>, vector<16x16x2xf32>, vector<16x3x2xf32> -> vector<16x22x2xf32>
    %c0_7 = arith.constant 0 : index
    %c0_8 = arith.constant 0 : index
    %c0_9 = arith.constant 0 : index
    %14 = vector.load %arg4[%c0_7, %c0_8, %c0_9] : memref<7x2x2xf32, #tpu.memory_space<vmem>>, vector<7x2x2xf32>
    %cst_10 = arith.constant 0.000000e+00 : f32
    %15 = vector.broadcast %cst_10 : f32 to vector<256x2xf32>
    %16 = vector.extract_strided_slice %13 {offsets = [0, 0, 0], sizes = [16, 16, 2], strides = [1, 1, 1]} : vector<16x22x2xf32> to vector<16x16x2xf32>
    %17 = vector.shape_cast %16 : vector<16x16x2xf32> to vector<256x2xf32>
    %18 = vector.extract_strided_slice %14 {offsets = [0, 0, 0], sizes = [1, 2, 2], strides = [1, 1, 1]} : vector<7x2x2xf32> to vector<1x2x2xf32>
    %19 = vector.shape_cast %18 : vector<1x2x2xf32> to vector<2x2xf32>
    %cst_11 = arith.constant dense<0.000000e+00> : vector<256x2xf32>
    %20 = tpu.matmul %17, %19, %cst_11 {dimension_numbers = #tpu.dot_dimension_numbers<[1], [0], [0], [1], [0, 0, 1, 1], [], []>} : vector<256x2xf32>, vector<2x2xf32>, vector<256x2xf32> -> vector<256x2xf32>
    %21 = arith.addf %15, %20 : vector<256x2xf32>
    %22 = vector.extract_strided_slice %13 {offsets = [0, 1, 0], sizes = [16, 16, 2], strides = [1, 1, 1]} : vector<16x22x2xf32> to vector<16x16x2xf32>
    %23 = vector.shape_cast %22 : vector<16x16x2xf32> to vector<256x2xf32>
    %24 = vector.extract_strided_slice %14 {offsets = [1, 0, 0], sizes = [1, 2, 2], strides = [1, 1, 1]} : vector<7x2x2xf32> to vector<1x2x2xf32>
    %25 = vector.shape_cast %24 : vector<1x2x2xf32> to vector<2x2xf32>
    %cst_12 = arith.constant dense<0.000000e+00> : vector<256x2xf32>
    %26 = tpu.matmul %23, %25, %cst_12 {dimension_numbers = #tpu.dot_dimension_numbers<[1], [0], [0], [1], [0, 0, 1, 1], [], []>} : vector<256x2xf32>, vector<2x2xf32>, vector<256x2xf32> -> vector<256x2xf32>
    %27 = arith.addf %21, %26 : vector<256x2xf32>
    %28 = vector.extract_strided_slice %13 {offsets = [0, 2, 0], sizes = [16, 16, 2], strides = [1, 1, 1]} : vector<16x22x2xf32> to vector<16x16x2xf32>
    %29 = vector.shape_cast %28 : vector<16x16x2xf32> to vector<256x2xf32>
    %30 = vector.extract_strided_slice %14 {offsets = [2, 0, 0], sizes = [1, 2, 2], strides = [1, 1, 1]} : vector<7x2x2xf32> to vector<1x2x2xf32>
    %31 = vector.shape_cast %30 : vector<1x2x2xf32> to vector<2x2xf32>
    %cst_13 = arith.constant dense<0.000000e+00> : vector<256x2xf32>
    %32 = tpu.matmul %29, %31, %cst_13 {dimension_numbers = #tpu.dot_dimension_numbers<[1], [0], [0], [1], [0, 0, 1, 1], [], []>} : vector<256x2xf32>, vector<2x2xf32>, vector<256x2xf32> -> vector<256x2xf32>
    %33 = arith.addf %27, %32 : vector<256x2xf32>
    %34 = vector.extract_strided_slice %13 {offsets = [0, 3, 0], sizes = [16, 16, 2], strides = [1, 1, 1]} : vector<16x22x2xf32> to vector<16x16x2xf32>
    %35 = vector.shape_cast %34 : vector<16x16x2xf32> to vector<256x2xf32>
    %36 = vector.extract_strided_slice %14 {offsets = [3, 0, 0], sizes = [1, 2, 2], strides = [1, 1, 1]} : vector<7x2x2xf32> to vector<1x2x2xf32>
    %37 = vector.shape_cast %36 : vector<1x2x2xf32> to vector<2x2xf32>
    %cst_14 = arith.constant dense<0.000000e+00> : vector<256x2xf32>
    %38 = tpu.matmul %35, %37, %cst_14 {dimension_numbers = #tpu.dot_dimension_numbers<[1], [0], [0], [1], [0, 0, 1, 1], [], []>} : vector<256x2xf32>, vector<2x2xf32>, vector<256x2xf32> -> vector<256x2xf32>
    %39 = arith.addf %33, %38 : vector<256x2xf32>
    %40 = vector.extract_strided_slice %13 {offsets = [0, 4, 0], sizes = [16, 16, 2], strides = [1, 1, 1]} : vector<16x22x2xf32> to vector<16x16x2xf32>
    %41 = vector.shape_cast %40 : vector<16x16x2xf32> to vector<256x2xf32>
    %42 = vector.extract_strided_slice %14 {offsets = [4, 0, 0], sizes = [1, 2, 2], strides = [1, 1, 1]} : vector<7x2x2xf32> to vector<1x2x2xf32>
    %43 = vector.shape_cast %42 : vector<1x2x2xf32> to vector<2x2xf32>
    %cst_15 = arith.constant dense<0.000000e+00> : vector<256x2xf32>
    %44 = tpu.matmul %41, %43, %cst_15 {dimension_numbers = #tpu.dot_dimension_numbers<[1], [0], [0], [1], [0, 0, 1, 1], [], []>} : vector<256x2xf32>, vector<2x2xf32>, vector<256x2xf32> -> vector<256x2xf32>
    %45 = arith.addf %39, %44 : vector<256x2xf32>
    %46 = vector.extract_strided_slice %13 {offsets = [0, 5, 0], sizes = [16, 16, 2], strides = [1, 1, 1]} : vector<16x22x2xf32> to vector<16x16x2xf32>
    %47 = vector.shape_cast %46 : vector<16x16x2xf32> to vector<256x2xf32>
    %48 = vector.extract_strided_slice %14 {offsets = [5, 0, 0], sizes = [1, 2, 2], strides = [1, 1, 1]} : vector<7x2x2xf32> to vector<1x2x2xf32>
    %49 = vector.shape_cast %48 : vector<1x2x2xf32> to vector<2x2xf32>
    %cst_16 = arith.constant dense<0.000000e+00> : vector<256x2xf32>
    %50 = tpu.matmul %47, %49, %cst_16 {dimension_numbers = #tpu.dot_dimension_numbers<[1], [0], [0], [1], [0, 0, 1, 1], [], []>} : vector<256x2xf32>, vector<2x2xf32>, vector<256x2xf32> -> vector<256x2xf32>
    %51 = arith.addf %45, %50 : vector<256x2xf32>
    %52 = vector.extract_strided_slice %13 {offsets = [0, 6, 0], sizes = [16, 16, 2], strides = [1, 1, 1]} : vector<16x22x2xf32> to vector<16x16x2xf32>
    %53 = vector.shape_cast %52 : vector<16x16x2xf32> to vector<256x2xf32>
    %54 = vector.extract_strided_slice %14 {offsets = [6, 0, 0], sizes = [1, 2, 2], strides = [1, 1, 1]} : vector<7x2x2xf32> to vector<1x2x2xf32>
    %55 = vector.shape_cast %54 : vector<1x2x2xf32> to vector<2x2xf32>
    %cst_17 = arith.constant dense<0.000000e+00> : vector<256x2xf32>
    %56 = tpu.matmul %53, %55, %cst_17 {dimension_numbers = #tpu.dot_dimension_numbers<[1], [0], [0], [1], [0, 0, 1, 1], [], []>} : vector<256x2xf32>, vector<2x2xf32>, vector<256x2xf32> -> vector<256x2xf32>
    %57 = arith.addf %51, %56 : vector<256x2xf32>
    %58 = vector.shape_cast %57 : vector<256x2xf32> to vector<16x16x2xf32>
    %59 = arith.truncf %58 : vector<16x16x2xf32> to vector<16x16x2xbf16>
    %c0_18 = arith.constant 0 : index
    %c0_19 = arith.constant 0 : index
    %c0_20 = arith.constant 0 : index
    %60 = vector.load %arg5[%c0_18, %c0_19, %c0_20] : memref<16x16x2xbf16, #tpu.memory_space<vmem>>, vector<16x16x2xbf16>
    tpu.vector_store %arg5[%c0_18, %c0_19, %c0_20], %59 {strides = array<i32>} : memref<16x16x2xbf16, #tpu.memory_space<vmem>>, vector<16x16x2xbf16>,
    %61 = vector.shape_cast %57 : vector<256x2xf32> to vector<32x8x2xf32>
    %cst_21 = arith.constant dense<0.000000e+00> : vector<8x2xf32>
    %62 = vector.multi_reduction <add>, %61, %cst_21 [0] : vector<32x8x2xf32> to vector<8x2xf32>
    %63 = arith.mulf %61, %61 : vector<32x8x2xf32>
    %cst_22 = arith.constant dense<0.000000e+00> : vector<8x2xf32>
    %64 = vector.multi_reduction <add>, %63, %cst_22 [0] : vector<32x8x2xf32> to vector<8x2xf32>
    %65 = vector.shape_cast %62 : vector<8x2xf32> to vector<1x8x2xf32>
    %c0_23 = arith.constant 0 : index
    %c0_24 = arith.constant 0 : index
    %c0_25 = arith.constant 0 : index
    %66 = vector.load %arg6[%c0_23, %c0_24, %c0_25] : memref<1x8x2xf32, #tpu.memory_space<vmem>>, vector<1x8x2xf32>
    tpu.vector_store %arg6[%c0_23, %c0_24, %c0_25], %65 {strides = array<i32>} : memref<1x8x2xf32, #tpu.memory_space<vmem>>, vector<1x8x2xf32>,
    %67 = vector.shape_cast %64 : vector<8x2xf32> to vector<1x8x2xf32>
    %c0_26 = arith.constant 0 : index
    %c0_27 = arith.constant 0 : index
    %c0_28 = arith.constant 0 : index
    %68 = vector.load %arg7[%c0_26, %c0_27, %c0_28] : memref<1x8x2xf32, #tpu.memory_space<vmem>>, vector<1x8x2xf32>
    tpu.vector_store %arg7[%c0_26, %c0_27, %c0_28], %67 {strides = array<i32>} : memref<1x8x2xf32, #tpu.memory_space<vmem>>, vector<1x8x2xf32>,
    return
  }
  func.func @transform_0(%arg0: i32) -> (i32, i32, i32) {
    %c0_i32 = arith.constant 0 : i32
    %c0_i32_0 = arith.constant 0 : i32
    %c0_i32_1 = arith.constant 0 : i32
    return %arg0, %c0_i32, %c0_i32_0 : i32, i32, i32
  }
  func.func @transform_1(%arg0: i32) -> (i32, i32) {
    %c0_i32 = arith.constant 0 : i32
    %c0_i32_0 = arith.constant 0 : i32
    %c0_i32_1 = arith.constant 0 : i32
    return %c0_i32, %c0_i32_0 : i32, i32
  }
  func.func @transform_2(%arg0: i32) -> (i32, i32) {
    %c0_i32 = arith.constant 0 : i32
    %c0_i32_0 = arith.constant 0 : i32
    %c0_i32_1 = arith.constant 0 : i32
    return %c0_i32, %c0_i32_0 : i32, i32
  }
  func.func @transform_3(%arg0: i32) -> (i32, i32, i32) {
    %c0_i32 = arith.constant 0 : i32
    %c0_i32_0 = arith.constant 0 : i32
    %c0_i32_1 = arith.constant 0 : i32
    %c0_i32_2 = arith.constant 0 : i32
    return %c0_i32, %c0_i32_0, %c0_i32_1 : i32, i32, i32
  }
  func.func @transform_4(%arg0: i32) -> (i32, i32, i32) {
    %c0_i32 = arith.constant 0 : i32
    %c0_i32_0 = arith.constant 0 : i32
    %c0_i32_1 = arith.constant 0 : i32
    return %arg0, %c0_i32, %c0_i32_0 : i32, i32, i32
  }
  func.func @transform_5(%arg0: i32) -> (i32, i32, i32) {
    %c0_i32 = arith.constant 0 : i32
    %c0_i32_0 = arith.constant 0 : i32
    %c0_i32_1 = arith.constant 0 : i32
    return %arg0, %c0_i32, %c0_i32_0 : i32, i32, i32
  }
  func.func @transform_6(%arg0: i32) -> (i32, i32, i32) {
    %c0_i32 = arith.constant 0 : i32
    %c0_i32_0 = arith.constant 0 : i32
    %c0_i32_1 = arith.constant 0 : i32
    return %arg0, %c0_i32, %c0_i32_0 : i32, i32, i32
  }
}

module attributes {stable_mosaic.version = 11 : i64} {
  func.func @_conv_tap_kernel(%arg0: i32, %arg1: memref<1x16x16x2xbf16, #tpu.memory_space<vmem>>, %arg2: memref<1x2xf32, #tpu.memory_space<vmem>>, %arg3: memref<1x2xf32, #tpu.memory_space<vmem>>, %arg4: memref<7x2x4xf32, #tpu.memory_space<vmem>>, %arg5: memref<1x16x16x4xbf16, #tpu.memory_space<vmem>>, %arg6: memref<1x8x4xf32, #tpu.memory_space<vmem>>, %arg7: memref<1x8x4xf32, #tpu.memory_space<vmem>>) attributes {dimension_semantics = [#tpu.dimension_semantics<parallel>], iteration_bounds = array<i64: 2>, scalar_prefetch = 0 : i64, scratch_operands = 0 : i64, tpu.core_type = #tpu.core_type<tc>, window_params = [{transform_indices = @transform_0, window_bounds = array<i64: 1, 16, 16, 2>}, {pipeline_mode = #tpu.pipeline_mode<synchronous>, transform_indices = @transform_1, window_bounds = array<i64: 1, 2>}, {pipeline_mode = #tpu.pipeline_mode<synchronous>, transform_indices = @transform_2, window_bounds = array<i64: 1, 2>}, {pipeline_mode = #tpu.pipeline_mode<synchronous>, transform_indices = @transform_3, window_bounds = array<i64: 7, 2, 4>}, {transform_indices = @transform_4, window_bounds = array<i64: 1, 16, 16, 4>}, {transform_indices = @transform_5, window_bounds = array<i64: 1, 8, 4>}, {transform_indices = @transform_6, window_bounds = array<i64: 1, 8, 4>}]} {
    %c0 = arith.constant 0 : index
    %c0_0 = arith.constant 0 : index
    %c0_1 = arith.constant 0 : index
    %c0_2 = arith.constant 0 : index
    %0 = vector.load %arg1[%c0, %c0_0, %c0_1, %c0_2] : memref<1x16x16x2xbf16, #tpu.memory_space<vmem>>, vector<1x16x16x2xbf16>
    %1 = arith.extf %0 : vector<1x16x16x2xbf16> to vector<1x16x16x2xf32>
    %c0_3 = arith.constant 0 : index
    %c0_4 = arith.constant 0 : index
    %2 = vector.load %arg2[%c0_3, %c0_4] : memref<1x2xf32, #tpu.memory_space<vmem>>, vector<1x2xf32>
    %3 = vector.shape_cast %2 : vector<1x2xf32> to vector<1x1x1x2xf32>
    %c0_5 = arith.constant 0 : index
    %c0_6 = arith.constant 0 : index
    %4 = vector.load %arg3[%c0_5, %c0_6] : memref<1x2xf32, #tpu.memory_space<vmem>>, vector<1x2xf32>
    %5 = vector.shape_cast %4 : vector<1x2xf32> to vector<1x1x1x2xf32>
    %6 = vector.broadcast %3 : vector<1x1x1x2xf32> to vector<1x16x16x2xf32>
    %7 = arith.mulf %1, %6 : vector<1x16x16x2xf32>
    %8 = vector.broadcast %5 : vector<1x1x1x2xf32> to vector<1x16x16x2xf32>
    %9 = arith.addf %7, %8 : vector<1x16x16x2xf32>
    %cst = arith.constant 0.000000e+00 : f32
    %10 = vector.broadcast %cst : f32 to vector<1x16x16x2xf32>
    %11 = arith.maximumf %9, %10 : vector<1x16x16x2xf32>
    %cst_7 = arith.constant 0.000000e+00 : f32
    %12 = vector.broadcast %cst_7 : f32 to vector<1x3x16x2xf32>
    %13 = tpu.concatenate %12, %11, %12 in 1 : vector<1x3x16x2xf32>, vector<1x16x16x2xf32>, vector<1x3x16x2xf32> -> vector<1x22x16x2xf32>
    %c0_8 = arith.constant 0 : index
    %c0_9 = arith.constant 0 : index
    %c0_10 = arith.constant 0 : index
    %14 = vector.load %arg4[%c0_8, %c0_9, %c0_10] : memref<7x2x4xf32, #tpu.memory_space<vmem>>, vector<7x2x4xf32>
    %cst_11 = arith.constant 0.000000e+00 : f32
    %15 = vector.broadcast %cst_11 : f32 to vector<256x4xf32>
    %16 = vector.extract_strided_slice %13 {offsets = [0, 0, 0, 0], sizes = [1, 16, 16, 2], strides = [1, 1, 1, 1]} : vector<1x22x16x2xf32> to vector<1x16x16x2xf32>
    %17 = vector.shape_cast %16 : vector<1x16x16x2xf32> to vector<256x2xf32>
    %18 = vector.extract_strided_slice %14 {offsets = [0, 0, 0], sizes = [1, 2, 4], strides = [1, 1, 1]} : vector<7x2x4xf32> to vector<1x2x4xf32>
    %19 = vector.shape_cast %18 : vector<1x2x4xf32> to vector<2x4xf32>
    %cst_12 = arith.constant dense<0.000000e+00> : vector<256x4xf32>
    %20 = tpu.matmul %17, %19, %cst_12 {dimension_numbers = #tpu.dot_dimension_numbers<[1], [0], [0], [1], [0, 0, 1, 1], [], []>} : vector<256x2xf32>, vector<2x4xf32>, vector<256x4xf32> -> vector<256x4xf32>
    %21 = arith.addf %15, %20 : vector<256x4xf32>
    %22 = vector.extract_strided_slice %13 {offsets = [0, 1, 0, 0], sizes = [1, 16, 16, 2], strides = [1, 1, 1, 1]} : vector<1x22x16x2xf32> to vector<1x16x16x2xf32>
    %23 = vector.shape_cast %22 : vector<1x16x16x2xf32> to vector<256x2xf32>
    %24 = vector.extract_strided_slice %14 {offsets = [1, 0, 0], sizes = [1, 2, 4], strides = [1, 1, 1]} : vector<7x2x4xf32> to vector<1x2x4xf32>
    %25 = vector.shape_cast %24 : vector<1x2x4xf32> to vector<2x4xf32>
    %cst_13 = arith.constant dense<0.000000e+00> : vector<256x4xf32>
    %26 = tpu.matmul %23, %25, %cst_13 {dimension_numbers = #tpu.dot_dimension_numbers<[1], [0], [0], [1], [0, 0, 1, 1], [], []>} : vector<256x2xf32>, vector<2x4xf32>, vector<256x4xf32> -> vector<256x4xf32>
    %27 = arith.addf %21, %26 : vector<256x4xf32>
    %28 = vector.extract_strided_slice %13 {offsets = [0, 2, 0, 0], sizes = [1, 16, 16, 2], strides = [1, 1, 1, 1]} : vector<1x22x16x2xf32> to vector<1x16x16x2xf32>
    %29 = vector.shape_cast %28 : vector<1x16x16x2xf32> to vector<256x2xf32>
    %30 = vector.extract_strided_slice %14 {offsets = [2, 0, 0], sizes = [1, 2, 4], strides = [1, 1, 1]} : vector<7x2x4xf32> to vector<1x2x4xf32>
    %31 = vector.shape_cast %30 : vector<1x2x4xf32> to vector<2x4xf32>
    %cst_14 = arith.constant dense<0.000000e+00> : vector<256x4xf32>
    %32 = tpu.matmul %29, %31, %cst_14 {dimension_numbers = #tpu.dot_dimension_numbers<[1], [0], [0], [1], [0, 0, 1, 1], [], []>} : vector<256x2xf32>, vector<2x4xf32>, vector<256x4xf32> -> vector<256x4xf32>
    %33 = arith.addf %27, %32 : vector<256x4xf32>
    %34 = vector.extract_strided_slice %13 {offsets = [0, 3, 0, 0], sizes = [1, 16, 16, 2], strides = [1, 1, 1, 1]} : vector<1x22x16x2xf32> to vector<1x16x16x2xf32>
    %35 = vector.shape_cast %34 : vector<1x16x16x2xf32> to vector<256x2xf32>
    %36 = vector.extract_strided_slice %14 {offsets = [3, 0, 0], sizes = [1, 2, 4], strides = [1, 1, 1]} : vector<7x2x4xf32> to vector<1x2x4xf32>
    %37 = vector.shape_cast %36 : vector<1x2x4xf32> to vector<2x4xf32>
    %cst_15 = arith.constant dense<0.000000e+00> : vector<256x4xf32>
    %38 = tpu.matmul %35, %37, %cst_15 {dimension_numbers = #tpu.dot_dimension_numbers<[1], [0], [0], [1], [0, 0, 1, 1], [], []>} : vector<256x2xf32>, vector<2x4xf32>, vector<256x4xf32> -> vector<256x4xf32>
    %39 = arith.addf %33, %38 : vector<256x4xf32>
    %40 = vector.extract_strided_slice %13 {offsets = [0, 4, 0, 0], sizes = [1, 16, 16, 2], strides = [1, 1, 1, 1]} : vector<1x22x16x2xf32> to vector<1x16x16x2xf32>
    %41 = vector.shape_cast %40 : vector<1x16x16x2xf32> to vector<256x2xf32>
    %42 = vector.extract_strided_slice %14 {offsets = [4, 0, 0], sizes = [1, 2, 4], strides = [1, 1, 1]} : vector<7x2x4xf32> to vector<1x2x4xf32>
    %43 = vector.shape_cast %42 : vector<1x2x4xf32> to vector<2x4xf32>
    %cst_16 = arith.constant dense<0.000000e+00> : vector<256x4xf32>
    %44 = tpu.matmul %41, %43, %cst_16 {dimension_numbers = #tpu.dot_dimension_numbers<[1], [0], [0], [1], [0, 0, 1, 1], [], []>} : vector<256x2xf32>, vector<2x4xf32>, vector<256x4xf32> -> vector<256x4xf32>
    %45 = arith.addf %39, %44 : vector<256x4xf32>
    %46 = vector.extract_strided_slice %13 {offsets = [0, 5, 0, 0], sizes = [1, 16, 16, 2], strides = [1, 1, 1, 1]} : vector<1x22x16x2xf32> to vector<1x16x16x2xf32>
    %47 = vector.shape_cast %46 : vector<1x16x16x2xf32> to vector<256x2xf32>
    %48 = vector.extract_strided_slice %14 {offsets = [5, 0, 0], sizes = [1, 2, 4], strides = [1, 1, 1]} : vector<7x2x4xf32> to vector<1x2x4xf32>
    %49 = vector.shape_cast %48 : vector<1x2x4xf32> to vector<2x4xf32>
    %cst_17 = arith.constant dense<0.000000e+00> : vector<256x4xf32>
    %50 = tpu.matmul %47, %49, %cst_17 {dimension_numbers = #tpu.dot_dimension_numbers<[1], [0], [0], [1], [0, 0, 1, 1], [], []>} : vector<256x2xf32>, vector<2x4xf32>, vector<256x4xf32> -> vector<256x4xf32>
    %51 = arith.addf %45, %50 : vector<256x4xf32>
    %52 = vector.extract_strided_slice %13 {offsets = [0, 6, 0, 0], sizes = [1, 16, 16, 2], strides = [1, 1, 1, 1]} : vector<1x22x16x2xf32> to vector<1x16x16x2xf32>
    %53 = vector.shape_cast %52 : vector<1x16x16x2xf32> to vector<256x2xf32>
    %54 = vector.extract_strided_slice %14 {offsets = [6, 0, 0], sizes = [1, 2, 4], strides = [1, 1, 1]} : vector<7x2x4xf32> to vector<1x2x4xf32>
    %55 = vector.shape_cast %54 : vector<1x2x4xf32> to vector<2x4xf32>
    %cst_18 = arith.constant dense<0.000000e+00> : vector<256x4xf32>
    %56 = tpu.matmul %53, %55, %cst_18 {dimension_numbers = #tpu.dot_dimension_numbers<[1], [0], [0], [1], [0, 0, 1, 1], [], []>} : vector<256x2xf32>, vector<2x4xf32>, vector<256x4xf32> -> vector<256x4xf32>
    %57 = arith.addf %51, %56 : vector<256x4xf32>
    %58 = vector.shape_cast %57 : vector<256x4xf32> to vector<1x16x16x4xf32>
    %59 = arith.truncf %58 : vector<1x16x16x4xf32> to vector<1x16x16x4xbf16>
    %c0_19 = arith.constant 0 : index
    %c0_20 = arith.constant 0 : index
    %c0_21 = arith.constant 0 : index
    %c0_22 = arith.constant 0 : index
    %60 = vector.load %arg5[%c0_19, %c0_20, %c0_21, %c0_22] : memref<1x16x16x4xbf16, #tpu.memory_space<vmem>>, vector<1x16x16x4xbf16>
    tpu.vector_store %arg5[%c0_19, %c0_20, %c0_21, %c0_22], %59 {strides = array<i32>} : memref<1x16x16x4xbf16, #tpu.memory_space<vmem>>, vector<1x16x16x4xbf16>,
    %61 = vector.shape_cast %57 : vector<256x4xf32> to vector<32x8x4xf32>
    %cst_23 = arith.constant dense<0.000000e+00> : vector<8x4xf32>
    %62 = vector.multi_reduction <add>, %61, %cst_23 [0] : vector<32x8x4xf32> to vector<8x4xf32>
    %63 = arith.mulf %61, %61 : vector<32x8x4xf32>
    %cst_24 = arith.constant dense<0.000000e+00> : vector<8x4xf32>
    %64 = vector.multi_reduction <add>, %63, %cst_24 [0] : vector<32x8x4xf32> to vector<8x4xf32>
    %65 = vector.shape_cast %62 : vector<8x4xf32> to vector<1x8x4xf32>
    %c0_25 = arith.constant 0 : index
    %c0_26 = arith.constant 0 : index
    %c0_27 = arith.constant 0 : index
    %66 = vector.load %arg6[%c0_25, %c0_26, %c0_27] : memref<1x8x4xf32, #tpu.memory_space<vmem>>, vector<1x8x4xf32>
    tpu.vector_store %arg6[%c0_25, %c0_26, %c0_27], %65 {strides = array<i32>} : memref<1x8x4xf32, #tpu.memory_space<vmem>>, vector<1x8x4xf32>,
    %67 = vector.shape_cast %64 : vector<8x4xf32> to vector<1x8x4xf32>
    %c0_28 = arith.constant 0 : index
    %c0_29 = arith.constant 0 : index
    %c0_30 = arith.constant 0 : index
    %68 = vector.load %arg7[%c0_28, %c0_29, %c0_30] : memref<1x8x4xf32, #tpu.memory_space<vmem>>, vector<1x8x4xf32>
    tpu.vector_store %arg7[%c0_28, %c0_29, %c0_30], %67 {strides = array<i32>} : memref<1x8x4xf32, #tpu.memory_space<vmem>>, vector<1x8x4xf32>,
    return
  }
  func.func @transform_0(%arg0: i32) -> (i32, i32, i32, i32) {
    %c0_i32 = arith.constant 0 : i32
    %c0_i32_0 = arith.constant 0 : i32
    %c0_i32_1 = arith.constant 0 : i32
    %c0_i32_2 = arith.constant 0 : i32
    return %arg0, %c0_i32, %c0_i32_0, %c0_i32_1 : i32, i32, i32, i32
  }
  func.func @transform_1(%arg0: i32) -> (i32, i32) {
    %c0_i32 = arith.constant 0 : i32
    %c0_i32_0 = arith.constant 0 : i32
    %c0_i32_1 = arith.constant 0 : i32
    return %c0_i32, %c0_i32_0 : i32, i32
  }
  func.func @transform_2(%arg0: i32) -> (i32, i32) {
    %c0_i32 = arith.constant 0 : i32
    %c0_i32_0 = arith.constant 0 : i32
    %c0_i32_1 = arith.constant 0 : i32
    return %c0_i32, %c0_i32_0 : i32, i32
  }
  func.func @transform_3(%arg0: i32) -> (i32, i32, i32) {
    %c0_i32 = arith.constant 0 : i32
    %c0_i32_0 = arith.constant 0 : i32
    %c0_i32_1 = arith.constant 0 : i32
    %c0_i32_2 = arith.constant 0 : i32
    return %c0_i32, %c0_i32_0, %c0_i32_1 : i32, i32, i32
  }
  func.func @transform_4(%arg0: i32) -> (i32, i32, i32, i32) {
    %c0_i32 = arith.constant 0 : i32
    %c0_i32_0 = arith.constant 0 : i32
    %c0_i32_1 = arith.constant 0 : i32
    %c0_i32_2 = arith.constant 0 : i32
    return %arg0, %c0_i32, %c0_i32_0, %c0_i32_1 : i32, i32, i32, i32
  }
  func.func @transform_5(%arg0: i32) -> (i32, i32, i32) {
    %c0_i32 = arith.constant 0 : i32
    %c0_i32_0 = arith.constant 0 : i32
    %c0_i32_1 = arith.constant 0 : i32
    return %arg0, %c0_i32, %c0_i32_0 : i32, i32, i32
  }
  func.func @transform_6(%arg0: i32) -> (i32, i32, i32) {
    %c0_i32 = arith.constant 0 : i32
    %c0_i32_0 = arith.constant 0 : i32
    %c0_i32_1 = arith.constant 0 : i32
    return %arg0, %c0_i32, %c0_i32_0 : i32, i32, i32
  }
}

module attributes {stable_mosaic.version = 11 : i64} {
  func.func @_out_combine_kernel(%arg0: i32, %arg1: memref<256x4xbf16, #tpu.memory_space<vmem>>, %arg2: memref<256x4xbf16, #tpu.memory_space<vmem>>, %arg3: memref<256x16xbf16, #tpu.memory_space<vmem>>, %arg4: memref<1x4xf32, #tpu.memory_space<vmem>>, %arg5: memref<1x4xf32, #tpu.memory_space<vmem>>, %arg6: memref<1x4xf32, #tpu.memory_space<vmem>>, %arg7: memref<1x4xf32, #tpu.memory_space<vmem>>, %arg8: memref<4x16xf32, #tpu.memory_space<vmem>>, %arg9: memref<4x16xf32, #tpu.memory_space<vmem>>, %arg10: memref<1x16xf32, #tpu.memory_space<vmem>>, %arg11: memref<256x16xbf16, #tpu.memory_space<vmem>>, %arg12: memref<1x8x16xf32, #tpu.memory_space<vmem>>, %arg13: memref<1x8x16xf32, #tpu.memory_space<vmem>>) attributes {dimension_semantics = [#tpu.dimension_semantics<parallel>], iteration_bounds = array<i64: 2>, scalar_prefetch = 0 : i64, scratch_operands = 0 : i64, tpu.core_type = #tpu.core_type<tc>, window_params = [{transform_indices = @transform_0, window_bounds = array<i64: 256, 4>}, {transform_indices = @transform_1, window_bounds = array<i64: 256, 4>}, {transform_indices = @transform_2, window_bounds = array<i64: 256, 16>}, {pipeline_mode = #tpu.pipeline_mode<synchronous>, transform_indices = @transform_3, window_bounds = array<i64: 1, 4>}, {pipeline_mode = #tpu.pipeline_mode<synchronous>, transform_indices = @transform_4, window_bounds = array<i64: 1, 4>}, {pipeline_mode = #tpu.pipeline_mode<synchronous>, transform_indices = @transform_5, window_bounds = array<i64: 1, 4>}, {pipeline_mode = #tpu.pipeline_mode<synchronous>, transform_indices = @transform_6, window_bounds = array<i64: 1, 4>}, {pipeline_mode = #tpu.pipeline_mode<synchronous>, transform_indices = @transform_7, window_bounds = array<i64: 4, 16>}, {pipeline_mode = #tpu.pipeline_mode<synchronous>, transform_indices = @transform_8, window_bounds = array<i64: 4, 16>}, {pipeline_mode = #tpu.pipeline_mode<synchronous>, transform_indices = @transform_9, window_bounds = array<i64: 1, 16>}, {transform_indices = @transform_10, window_bounds = array<i64: 256, 16>}, {transform_indices = @transform_11, window_bounds = array<i64: 1, 8, 16>}, {transform_indices = @transform_12, window_bounds = array<i64: 1, 8, 16>}]} {
    %c0 = arith.constant 0 : index
    %c0_0 = arith.constant 0 : index
    %0 = vector.load %arg1[%c0, %c0_0] : memref<256x4xbf16, #tpu.memory_space<vmem>>, vector<256x4xbf16>
    %1 = arith.extf %0 : vector<256x4xbf16> to vector<256x4xf32>
    %c0_1 = arith.constant 0 : index
    %c0_2 = arith.constant 0 : index
    %2 = vector.load %arg4[%c0_1, %c0_2] : memref<1x4xf32, #tpu.memory_space<vmem>>, vector<1x4xf32>
    %3 = vector.broadcast %2 : vector<1x4xf32> to vector<256x4xf32>
    %4 = arith.mulf %1, %3 : vector<256x4xf32>
    %c0_3 = arith.constant 0 : index
    %c0_4 = arith.constant 0 : index
    %5 = vector.load %arg5[%c0_3, %c0_4] : memref<1x4xf32, #tpu.memory_space<vmem>>, vector<1x4xf32>
    %6 = vector.broadcast %5 : vector<1x4xf32> to vector<256x4xf32>
    %7 = arith.addf %4, %6 : vector<256x4xf32>
    %cst = arith.constant 0.000000e+00 : f32
    %8 = vector.broadcast %cst : f32 to vector<256x4xf32>
    %9 = arith.maximumf %7, %8 : vector<256x4xf32>
    %c0_5 = arith.constant 0 : index
    %c0_6 = arith.constant 0 : index
    %10 = vector.load %arg2[%c0_5, %c0_6] : memref<256x4xbf16, #tpu.memory_space<vmem>>, vector<256x4xbf16>
    %11 = arith.extf %10 : vector<256x4xbf16> to vector<256x4xf32>
    %c0_7 = arith.constant 0 : index
    %c0_8 = arith.constant 0 : index
    %12 = vector.load %arg6[%c0_7, %c0_8] : memref<1x4xf32, #tpu.memory_space<vmem>>, vector<1x4xf32>
    %13 = vector.broadcast %12 : vector<1x4xf32> to vector<256x4xf32>
    %14 = arith.mulf %11, %13 : vector<256x4xf32>
    %c0_9 = arith.constant 0 : index
    %c0_10 = arith.constant 0 : index
    %15 = vector.load %arg7[%c0_9, %c0_10] : memref<1x4xf32, #tpu.memory_space<vmem>>, vector<1x4xf32>
    %16 = vector.broadcast %15 : vector<1x4xf32> to vector<256x4xf32>
    %17 = arith.addf %14, %16 : vector<256x4xf32>
    %cst_11 = arith.constant 0.000000e+00 : f32
    %18 = vector.broadcast %cst_11 : f32 to vector<256x4xf32>
    %19 = arith.maximumf %17, %18 : vector<256x4xf32>
    %c0_12 = arith.constant 0 : index
    %c0_13 = arith.constant 0 : index
    %20 = vector.load %arg8[%c0_12, %c0_13] : memref<4x16xf32, #tpu.memory_space<vmem>>, vector<4x16xf32>
    %cst_14 = arith.constant dense<0.000000e+00> : vector<256x16xf32>
    %21 = tpu.matmul %9, %20, %cst_14 {dimension_numbers = #tpu.dot_dimension_numbers<[1], [0], [0], [1], [0, 0, 1, 1], [], []>} : vector<256x4xf32>, vector<4x16xf32>, vector<256x16xf32> -> vector<256x16xf32>
    %c0_15 = arith.constant 0 : index
    %c0_16 = arith.constant 0 : index
    %22 = vector.load %arg9[%c0_15, %c0_16] : memref<4x16xf32, #tpu.memory_space<vmem>>, vector<4x16xf32>
    %cst_17 = arith.constant dense<0.000000e+00> : vector<256x16xf32>
    %23 = tpu.matmul %19, %22, %cst_17 {dimension_numbers = #tpu.dot_dimension_numbers<[1], [0], [0], [1], [0, 0, 1, 1], [], []>} : vector<256x4xf32>, vector<4x16xf32>, vector<256x16xf32> -> vector<256x16xf32>
    %24 = arith.addf %21, %23 : vector<256x16xf32>
    %cst_18 = arith.constant 1.000000e-01 : f32
    %25 = vector.broadcast %cst_18 : f32 to vector<256x16xf32>
    %26 = arith.mulf %25, %24 : vector<256x16xf32>
    %c0_19 = arith.constant 0 : index
    %c0_20 = arith.constant 0 : index
    %27 = vector.load %arg3[%c0_19, %c0_20] : memref<256x16xbf16, #tpu.memory_space<vmem>>, vector<256x16xbf16>
    %28 = arith.extf %27 : vector<256x16xbf16> to vector<256x16xf32>
    %29 = arith.addf %26, %28 : vector<256x16xf32>
    %c0_21 = arith.constant 0 : index
    %c0_22 = arith.constant 0 : index
    %30 = vector.load %arg10[%c0_21, %c0_22] : memref<1x16xf32, #tpu.memory_space<vmem>>, vector<1x16xf32>
    %31 = vector.broadcast %30 : vector<1x16xf32> to vector<256x16xf32>
    %32 = arith.addf %29, %31 : vector<256x16xf32>
    %33 = arith.truncf %32 : vector<256x16xf32> to vector<256x16xbf16>
    %c0_23 = arith.constant 0 : index
    %c0_24 = arith.constant 0 : index
    %34 = vector.load %arg11[%c0_23, %c0_24] : memref<256x16xbf16, #tpu.memory_space<vmem>>, vector<256x16xbf16>
    tpu.vector_store %arg11[%c0_23, %c0_24], %33 {strides = array<i32>} : memref<256x16xbf16, #tpu.memory_space<vmem>>, vector<256x16xbf16>,
    %35 = vector.shape_cast %32 : vector<256x16xf32> to vector<32x8x16xf32>
    %cst_25 = arith.constant dense<0.000000e+00> : vector<8x16xf32>
    %36 = vector.multi_reduction <add>, %35, %cst_25 [0] : vector<32x8x16xf32> to vector<8x16xf32>
    %37 = arith.mulf %35, %35 : vector<32x8x16xf32>
    %cst_26 = arith.constant dense<0.000000e+00> : vector<8x16xf32>
    %38 = vector.multi_reduction <add>, %37, %cst_26 [0] : vector<32x8x16xf32> to vector<8x16xf32>
    %39 = vector.shape_cast %36 : vector<8x16xf32> to vector<1x8x16xf32>
    %c0_27 = arith.constant 0 : index
    %c0_28 = arith.constant 0 : index
    %c0_29 = arith.constant 0 : index
    %40 = vector.load %arg12[%c0_27, %c0_28, %c0_29] : memref<1x8x16xf32, #tpu.memory_space<vmem>>, vector<1x8x16xf32>
    tpu.vector_store %arg12[%c0_27, %c0_28, %c0_29], %39 {strides = array<i32>} : memref<1x8x16xf32, #tpu.memory_space<vmem>>, vector<1x8x16xf32>,
    %41 = vector.shape_cast %38 : vector<8x16xf32> to vector<1x8x16xf32>
    %c0_30 = arith.constant 0 : index
    %c0_31 = arith.constant 0 : index
    %c0_32 = arith.constant 0 : index
    %42 = vector.load %arg13[%c0_30, %c0_31, %c0_32] : memref<1x8x16xf32, #tpu.memory_space<vmem>>, vector<1x8x16xf32>
    tpu.vector_store %arg13[%c0_30, %c0_31, %c0_32], %41 {strides = array<i32>} : memref<1x8x16xf32, #tpu.memory_space<vmem>>, vector<1x8x16xf32>,
    return
  }
  func.func @transform_0(%arg0: i32) -> (i32, i32) {
    %c0_i32 = arith.constant 0 : i32
    %c0_i32_0 = arith.constant 0 : i32
    return %arg0, %c0_i32 : i32, i32
  }
  func.func @transform_1(%arg0: i32) -> (i32, i32) {
    %c0_i32 = arith.constant 0 : i32
    %c0_i32_0 = arith.constant 0 : i32
    return %arg0, %c0_i32 : i32, i32
  }
  func.func @transform_2(%arg0: i32) -> (i32, i32) {
    %c0_i32 = arith.constant 0 : i32
    %c0_i32_0 = arith.constant 0 : i32
    return %arg0, %c0_i32 : i32, i32
  }
  func.func @transform_3(%arg0: i32) -> (i32, i32) {
    %c0_i32 = arith.constant 0 : i32
    %c0_i32_0 = arith.constant 0 : i32
    %c0_i32_1 = arith.constant 0 : i32
    return %c0_i32, %c0_i32_0 : i32, i32
  }
  func.func @transform_4(%arg0: i32) -> (i32, i32) {
    %c0_i32 = arith.constant 0 : i32
    %c0_i32_0 = arith.constant 0 : i32
    %c0_i32_1 = arith.constant 0 : i32
    return %c0_i32, %c0_i32_0 : i32, i32
  }
  func.func @transform_5(%arg0: i32) -> (i32, i32) {
    %c0_i32 = arith.constant 0 : i32
    %c0_i32_0 = arith.constant 0 : i32
    %c0_i32_1 = arith.constant 0 : i32
    return %c0_i32, %c0_i32_0 : i32, i32
  }
  func.func @transform_6(%arg0: i32) -> (i32, i32) {
    %c0_i32 = arith.constant 0 : i32
    %c0_i32_0 = arith.constant 0 : i32
    %c0_i32_1 = arith.constant 0 : i32
    return %c0_i32, %c0_i32_0 : i32, i32
  }
  func.func @transform_7(%arg0: i32) -> (i32, i32) {
    %c0_i32 = arith.constant 0 : i32
    %c0_i32_0 = arith.constant 0 : i32
    %c0_i32_1 = arith.constant 0 : i32
    return %c0_i32, %c0_i32_0 : i32, i32
  }
  func.func @transform_8(%arg0: i32) -> (i32, i32) {
    %c0_i32 = arith.constant 0 : i32
    %c0_i32_0 = arith.constant 0 : i32
    %c0_i32_1 = arith.constant 0 : i32
    return %c0_i32, %c0_i32_0 : i32, i32
  }
  func.func @transform_9(%arg0: i32) -> (i32, i32) {
    %c0_i32 = arith.constant 0 : i32
    %c0_i32_0 = arith.constant 0 : i32
    %c0_i32_1 = arith.constant 0 : i32
    return %c0_i32, %c0_i32_0 : i32, i32
  }
  func.func @transform_10(%arg0: i32) -> (i32, i32) {
    %c0_i32 = arith.constant 0 : i32
    %c0_i32_0 = arith.constant 0 : i32
    return %arg0, %c0_i32 : i32, i32
  }
  func.func @transform_11(%arg0: i32) -> (i32, i32, i32) {
    %c0_i32 = arith.constant 0 : i32
    %c0_i32_0 = arith.constant 0 : i32
    %c0_i32_1 = arith.constant 0 : i32
    return %arg0, %c0_i32, %c0_i32_0 : i32, i32, i32
  }
  func.func @transform_12(%arg0: i32) -> (i32, i32, i32) {
    %c0_i32 = arith.constant 0 : i32
    %c0_i32_0 = arith.constant 0 : i32
    %c0_i32_1 = arith.constant 0 : i32
    return %arg0, %c0_i32, %c0_i32_0 : i32, i32, i32
  }
}

module attributes {stable_mosaic.version = 11 : i64} {
  func.func @_bn_relu_kernel(%arg0: i32, %arg1: memref<256x16xbf16, #tpu.memory_space<vmem>>, %arg2: memref<1x16xf32, #tpu.memory_space<vmem>>, %arg3: memref<1x16xf32, #tpu.memory_space<vmem>>, %arg4: memref<256x16xf32, #tpu.memory_space<vmem>>) attributes {dimension_semantics = [#tpu.dimension_semantics<parallel>], iteration_bounds = array<i64: 2>, scalar_prefetch = 0 : i64, scratch_operands = 0 : i64, tpu.core_type = #tpu.core_type<tc>, window_params = [{transform_indices = @transform_0, window_bounds = array<i64: 256, 16>}, {pipeline_mode = #tpu.pipeline_mode<synchronous>, transform_indices = @transform_1, window_bounds = array<i64: 1, 16>}, {pipeline_mode = #tpu.pipeline_mode<synchronous>, transform_indices = @transform_2, window_bounds = array<i64: 1, 16>}, {transform_indices = @transform_3, window_bounds = array<i64: 256, 16>}]} {
    %c0 = arith.constant 0 : index
    %c0_0 = arith.constant 0 : index
    %0 = vector.load %arg1[%c0, %c0_0] : memref<256x16xbf16, #tpu.memory_space<vmem>>, vector<256x16xbf16>
    %1 = arith.extf %0 : vector<256x16xbf16> to vector<256x16xf32>
    %c0_1 = arith.constant 0 : index
    %c0_2 = arith.constant 0 : index
    %2 = vector.load %arg2[%c0_1, %c0_2] : memref<1x16xf32, #tpu.memory_space<vmem>>, vector<1x16xf32>
    %3 = vector.broadcast %2 : vector<1x16xf32> to vector<256x16xf32>
    %4 = arith.mulf %1, %3 : vector<256x16xf32>
    %c0_3 = arith.constant 0 : index
    %c0_4 = arith.constant 0 : index
    %5 = vector.load %arg3[%c0_3, %c0_4] : memref<1x16xf32, #tpu.memory_space<vmem>>, vector<1x16xf32>
    %6 = vector.broadcast %5 : vector<1x16xf32> to vector<256x16xf32>
    %7 = arith.addf %4, %6 : vector<256x16xf32>
    %cst = arith.constant 0.000000e+00 : f32
    %8 = vector.broadcast %cst : f32 to vector<256x16xf32>
    %9 = arith.maximumf %7, %8 : vector<256x16xf32>
    %c0_5 = arith.constant 0 : index
    %c0_6 = arith.constant 0 : index
    %10 = vector.load %arg4[%c0_5, %c0_6] : memref<256x16xf32, #tpu.memory_space<vmem>>, vector<256x16xf32>
    tpu.vector_store %arg4[%c0_5, %c0_6], %9 {strides = array<i32>} : memref<256x16xf32, #tpu.memory_space<vmem>>, vector<256x16xf32>,
    return
  }
  func.func @transform_0(%arg0: i32) -> (i32, i32) {
    %c0_i32 = arith.constant 0 : i32
    %c0_i32_0 = arith.constant 0 : i32
    return %arg0, %c0_i32 : i32, i32
  }
  func.func @transform_1(%arg0: i32) -> (i32, i32) {
    %c0_i32 = arith.constant 0 : i32
    %c0_i32_0 = arith.constant 0 : i32
    %c0_i32_1 = arith.constant 0 : i32
    return %c0_i32, %c0_i32_0 : i32, i32
  }
  func.func @transform_2(%arg0: i32) -> (i32, i32) {
    %c0_i32 = arith.constant 0 : i32
    %c0_i32_0 = arith.constant 0 : i32
    %c0_i32_1 = arith.constant 0 : i32
    return %c0_i32, %c0_i32_0 : i32, i32
  }
  func.func @transform_3(%arg0: i32) -> (i32, i32) {
    %c0_i32 = arith.constant 0 : i32
    %c0_i32_0 = arith.constant 0 : i32
    return %arg0, %c0_i32 : i32, i32
  }
}

</mosaic_0001>

<llo_original>
// kernel: inception_resnet_b_pallas.5
$region0: #{inception_resnet_b_pallas.5}
  #allocation0 [shape = 'u32[]', space=smem, size = 0x4, offset = 0x4, fixed_abs, tag = 'smem constant byte address 0x4 - core index']
  #allocation1 [shape = 'u32[144,128]{1,0:T(1,128)}', space=vmem, size = 0x12000, scoped, tag = 'internal scratch']
  %s0 = inlined_call_operand.vmem [shape: bf16[512,16], index: 0, kind: input, shape index: {}]
  %s1 = inlined_call_operand.vmem [shape: bf16[16,2], index: 1, kind: input, shape index: {}]
  %s2 = inlined_call_operand.vmem [shape: bf16[16,4], index: 2, kind: input, shape index: {}]
  %s3 = inlined_call_operand.vmem [shape: bf16[16,16], index: 3, kind: input, shape index: {}]
  %s4 = inlined_call_operand.vmem [shape: bf16[512,2], index: 4, kind: output, shape index: {0}]
  %s5 = inlined_call_operand.vmem [shape: bf16[512,4], index: 5, kind: output, shape index: {1}]
  %s6 = inlined_call_operand.vmem [shape: bf16[512,16], index: 6, kind: output, shape index: {2}]
  %s7 = inlined_call_operand.vmem [shape: f32[2,8,2], index: 7, kind: output, shape index: {3}]
  %s8 = inlined_call_operand.vmem [shape: f32[2,8,2], index: 8, kind: output, shape index: {4}]
  %s9 = inlined_call_operand.vmem [shape: f32[2,8,4], index: 9, kind: output, shape index: {5}]
  %s10 = inlined_call_operand.vmem [shape: f32[2,8,4], index: 10, kind: output, shape index: {6}]
  %11 = xla_tuple %s4, %s5, %s6, %s7, %s8, %s9, %s10
  %s12 = sld [smem:[#allocation0]]
  $region97: #{inception_resnet_b_pallas.5} parent=0
    _
  %s14 = ssub.s32 1, %s12
  %s15 = scalar_select 0, %s14, %s12
  loop: start=0, step=1, limit=4
  $region2: #{inception_resnet_b_pallas.5} parent=0 // loop_pre_header
    _
  $region3: #{inception_resnet_b_pallas.5} parent=0 // loop_header
    %s17 = sphi 0, %s21
    %p18 = scmp.ge.s32.totalorder %s17, 4
    %s27 = sphi 0, %s29
    %s30 = sphi 0, %s27
    %s31 = sphi 0, %s30
    %s47 = sphi 0, %s31
    %s51 = sphi 0, %s51
    %s53 = sphi 0, %s51
    %s54 = sphi 0, %s53
    %s68 = sphi 0, %s54
    %s72 = sphi 0, %s72
    %s74 = sphi 0, %s72
    %s75 = sphi 0, %s74
    %s89 = sphi 0, %s75
    %s93 = sphi 0, %s93
    %s95 = sphi 0, %s93
    %s96 = sphi 0, %s95
    %s110 = sphi 0, %s96
    %s116 = sphi 0, %s118
    %s119 = sphi 0, %s116
    %s120 = sphi 0, %s119
    %s136 = sphi 0, %s120
    %s142 = sphi 0, %s144
    %s145 = sphi 0, %s142
    %s146 = sphi 0, %s145
    %s162 = sphi 0, %s146
    %s168 = sphi 0, %s170
    %s171 = sphi 0, %s168
    %s172 = sphi 0, %s171
    %s188 = sphi 0, %s172
    %s194 = sphi 0, %s196
    %s197 = sphi 0, %s194
    %s198 = sphi 0, %s197
    %s214 = sphi 0, %s198
    %s220 = sphi 0, %s222
    %s223 = sphi 0, %s220
    %s224 = sphi 0, %s223
    %s240 = sphi 0, %s224
    %s246 = sphi 0, %s248
    %s249 = sphi 0, %s246
    %s250 = sphi 0, %s249
    %s266 = sphi 0, %s250
    %s272 = sphi 0, %s274
    %s275 = sphi 0, %s272
    %s276 = sphi 0, %s275
    %s292 = sphi 0, %s276
  $region4: #{inception_resnet_b_pallas.5} parent=0 // loop_header_branch
    %20 = sbr.rel (%p18) target = $region8
  $region5: #{inception_resnet_b_pallas.5} parent=0 // loop_body
    %s22 = ssub.s32 %s17, 1
    %s23 = ssub.s32 %s17, 2
    %s24 = sadd.s32 %s17, 1
    %s25 = ssub.s32 %s17, %s24
    %p26 = scmp.eq.s32.totalorder %s25, 0
    %s28 = sadd.s32 %s27, 1
    %s29 = scalar_select %p26, %s27, %s28
    %p32 = pneg %p26
    %p33 = scmp.eq.s32.totalorder %s17, 1
    %p34 = por %p32, %p33
    %p35 = scmp.ne.s32.totalorder %s27, %s30
    %p36 = scmp.eq.s32.totalorder %s17, 0
    %p37 = por %p35, %p36
    %p38 = scmp.ne.s32.totalorder %s27, %s30
    %p39 = scmp.eq.s32.totalorder %s22, 1
    %p40 = por %p38, %p39
    %p41 = scmp.ne.s32.totalorder %s30, %s31
    %p42 = scmp.eq.s32.totalorder %s22, 0
    %p43 = por %p41, %p42
    %p44 = scmp.ne.s32.totalorder %s30, %s31
    %p45 = scmp.eq.s32.totalorder %s23, 1
    %p46 = por %p44, %p45
    %p48 = scmp.ne.s32.totalorder %s31, %s47
    %p49 = scmp.eq.s32.totalorder %s23, 0
    %p50 = por %p48, %p49
    %s52 = sadd.s32 %s51, 1
    %p55 = scmp.eq.s32.totalorder %s17, 1
    %p56 = scmp.ne.s32.totalorder %s51, %s53
    %p57 = scmp.eq.s32.totalorder %s17, 0
    %p58 = por %p56, %p57
    %p59 = scmp.ne.s32.totalorder %s51, %s53
    %p60 = scmp.eq.s32.totalorder %s22, 1
    %p61 = por %p59, %p60
    %p62 = scmp.ne.s32.totalorder %s53, %s54
    %p63 = scmp.eq.s32.totalorder %s22, 0
    %p64 = por %p62, %p63
    %p65 = scmp.ne.s32.totalorder %s53, %s54
    %p66 = scmp.eq.s32.totalorder %s23, 1
    %p67 = por %p65, %p66
    %p69 = scmp.ne.s32.totalorder %s54, %s68
    %p70 = scmp.eq.s32.totalorder %s23, 0
    %p71 = por %p69, %p70
    %s73 = sadd.s32 %s72, 1
    %p76 = scmp.eq.s32.totalorder %s17, 1
    %p77 = scmp.ne.s32.totalorder %s72, %s74
    %p78 = scmp.eq.s32.totalorder %s17, 0
    %p79 = por %p77, %p78
    %p80 = scmp.ne.s32.totalorder %s72, %s74
    %p81 = scmp.eq.s32.totalorder %s22, 1
    %p82 = por %p80, %p81
    %p83 = scmp.ne.s32.totalorder %s74, %s75
    %p84 = scmp.eq.s32.totalorder %s22, 0
    %p85 = por %p83, %p84
    %p86 = scmp.ne.s32.totalorder %s74, %s75
    %p87 = scmp.eq.s32.totalorder %s23, 1
    %p88 = por %p86, %p87
    %p90 = scmp.ne.s32.totalorder %s75, %s89
    %p91 = scmp.eq.s32.totalorder %s23, 0
    %p92 = por %p90, %p91
    %s94 = sadd.s32 %s93, 1
    %p97 = scmp.eq.s32.totalorder %s17, 1
    %p98 = scmp.ne.s32.totalorder %s93, %s95
    %p99 = scmp.eq.s32.totalorder %s17, 0
    %p100 = por %p98, %p99
    %p101 = scmp.ne.s32.totalorder %s93, %s95
    %p102 = scmp.eq.s32.totalorder %s22, 1
    %p103 = por %p101, %p102
    %p104 = scmp.ne.s32.totalorder %s95, %s96
    %p105 = scmp.eq.s32.totalorder %s22, 0
    %p106 = por %p104, %p105
    %p107 = scmp.ne.s32.totalorder %s95, %s96
    %p108 = scmp.eq.s32.totalorder %s23, 1
    %p109 = por %p107, %p108
    %p111 = scmp.ne.s32.totalorder %s96, %s110
    %p112 = scmp.eq.s32.totalorder %s23, 0
    %p113 = por %p111, %p112
    %s114 = ssub.s32 %s17, %s24
    %p115 = scmp.eq.s32.totalorder %s114, 0
    %s117 = sadd.s32 %s116, 1
    %s118 = scalar_select %p115, %s116, %s117
    %p121 = pneg %p115
    %p122 = scmp.eq.s32.totalorder %s17, 1
    %p123 = por %p121, %p122
    %p124 = scmp.ne.s32.totalorder %s116, %s119
    %p125 = scmp.eq.s32.totalorder %s17, 0
    %p126 = por %p124, %p125
    %p127 = scmp.ne.s32.totalorder %s116, %s119
    %p128 = scmp.eq.s32.totalorder %s22, 1
    %p129 = por %p127, %p128
    %p130 = scmp.ne.s32.totalorder %s119, %s120
    %p131 = scmp.eq.s32.totalorder %s22, 0
    %p132 = por %p130, %p131
    %p133 = scmp.ne.s32.totalorder %s119, %s120
    %p134 = scmp.eq.s32.totalorder %s23, 1
    %p135 = por %p133, %p134
    %p137 = scmp.ne.s32.totalorder %s120, %s136
    %p138 = scmp.eq.s32.totalorder %s23, 0
    %p139 = por %p137, %p138
    %s140 = ssub.s32 %s17, %s24
    %p141 = scmp.eq.s32.totalorder %s140, 0
    %s143 = sadd.s32 %s142, 1
    %s144 = scalar_select %p141, %s142, %s143
    %p147 = pneg %p141
    %p148 = scmp.eq.s32.totalorder %s17, 1
    %p149 = por %p147, %p148
    %p150 = scmp.ne.s32.totalorder %s142, %s145
    %p151 = scmp.eq.s32.totalorder %s17, 0
    %p152 = por %p150, %p151
    %p153 = scmp.ne.s32.totalorder %s142, %s145
    %p154 = scmp.eq.s32.totalorder %s22, 1
    %p155 = por %p153, %p154
    %p156 = scmp.ne.s32.totalorder %s145, %s146
    %p157 = scmp.eq.s32.totalorder %s22, 0
    %p158 = por %p156, %p157
    %p159 = scmp.ne.s32.totalorder %s145, %s146
    %p160 = scmp.eq.s32.totalorder %s23, 1
    %p161 = por %p159, %p160
    %p163 = scmp.ne.s32.totalorder %s146, %s162
    %p164 = scmp.eq.s32.totalorder %s23, 0
    %p165 = por %p163, %p164
    %s166 = ssub.s32 %s17, %s24
    %p167 = scmp.eq.s32.totalorder %s166, 0
    %s169 = sadd.s32 %s168, 1
    %s170 = scalar_select %p167, %s168, %s169
    %p173 = pneg %p167
    %p174 = scmp.eq.s32.totalorder %s17, 1
    %p175 = por %p173, %p174
    %p176 = scmp.ne.s32.totalorder %s168, %s171
    %p177 = scmp.eq.s32.totalorder %s17, 0
    %p178 = por %p176, %p177
    %p179 = scmp.ne.s32.totalorder %s168, %s171
    %p180 = scmp.eq.s32.totalorder %s22, 1
    %p181 = por %p179, %p180
    %p182 = scmp.ne.s32.totalorder %s171, %s172
    %p183 = scmp.eq.s32.totalorder %s22, 0
    %p184 = por %p182, %p183
    %p185 = scmp.ne.s32.totalorder %s171, %s172
    %p186 = scmp.eq.s32.totalorder %s23, 1
    %p187 = por %p185, %p186
    %p189 = scmp.ne.s32.totalorder %s172, %s188
    %p190 = scmp.eq.s32.totalorder %s23, 0
    %p191 = por %p189, %p190
    %s192 = ssub.s32 %s17, %s24
    %p193 = scmp.eq.s32.totalorder %s192, 0
    %s195 = sadd.s32 %s194, 1
    %s196 = scalar_select %p193, %s194, %s195
    %p199 = pneg %p193
    %p200 = scmp.eq.s32.totalorder %s17, 1
    %p201 = por %p199, %p200
    %p202 = scmp.ne.s32.totalorder %s194, %s197
    %p203 = scmp.eq.s32.totalorder %s17, 0
    %p204 = por %p202, %p203
    %p205 = scmp.ne.s32.totalorder %s194, %s197
    %p206 = scmp.eq.s32.totalorder %s22, 1
    %p207 = por %p205, %p206
    %p208 = scmp.ne.s32.totalorder %s197, %s198
    %p209 = scmp.eq.s32.totalorder %s22, 0
    %p210 = por %p208, %p209
    %p211 = scmp.ne.s32.totalorder %s197, %s198
    %p212 = scmp.eq.s32.totalorder %s23, 1
    %p213 = por %p211, %p212
    %p215 = scmp.ne.s32.totalorder %s198, %s214
    %p216 = scmp.eq.s32.totalorder %s23, 0
    %p217 = por %p215, %p216
    %s218 = ssub.s32 %s17, %s24
    %p219 = scmp.eq.s32.totalorder %s218, 0
    %s221 = sadd.s32 %s220, 1
    %s222 = scalar_select %p219, %s220, %s221
    %p225 = pneg %p219
    %p226 = scmp.eq.s32.totalorder %s17, 1
    %p227 = por %p225, %p226
    %p228 = scmp.ne.s32.totalorder %s220, %s223
    %p229 = scmp.eq.s32.totalorder %s17, 0
    %p230 = por %p228, %p229
    %p231 = scmp.ne.s32.totalorder %s220, %s223
    %p232 = scmp.eq.s32.totalorder %s22, 1
    %p233 = por %p231, %p232
    %p234 = scmp.ne.s32.totalorder %s223, %s224
    %p235 = scmp.eq.s32.totalorder %s22, 0
    %p236 = por %p234, %p235
    %p237 = scmp.ne.s32.totalorder %s223, %s224
    %p238 = scmp.eq.s32.totalorder %s23, 1
    %p239 = por %p237, %p238
    %p241 = scmp.ne.s32.totalorder %s224, %s240
    %p242 = scmp.eq.s32.totalorder %s23, 0
    %p243 = por %p241, %p242
    %s244 = ssub.s32 %s17, %s24
    %p245 = scmp.eq.s32.totalorder %s244, 0
    %s247 = sadd.s32 %s246, 1
    %s248 = scalar_select %p245, %s246, %s247
    %p251 = pneg %p245
    %p252 = scmp.eq.s32.totalorder %s17, 1
    %p253 = por %p251, %p252
    %p254 = scmp.ne.s32.totalorder %s246, %s249
    %p255 = scmp.eq.s32.totalorder %s17, 0
    %p256 = por %p254, %p255
    %p257 = scmp.ne.s32.totalorder %s246, %s249
    %p258 = scmp.eq.s32.totalorder %s22, 1
    %p259 = por %p257, %p258
    %p260 = scmp.ne.s32.totalorder %s249, %s250
    %p261 = scmp.eq.s32.totalorder %s22, 0
    %p262 = por %p260, %p261
    %p263 = scmp.ne.s32.totalorder %s249, %s250
    %p264 = scmp.eq.s32.totalorder %s23, 1
    %p265 = por %p263, %p264
    %p267 = scmp.ne.s32.totalorder %s250, %s266
    %p268 = scmp.eq.s32.totalorder %s23, 0
    %p269 = por %p267, %p268
    %s270 = ssub.s32 %s17, %s24
    %p271 = scmp.eq.s32.totalorder %s270, 0
    %s273 = sadd.s32 %s272, 1
    %s274 = scalar_select %p271, %s272, %s273
    %p277 = pneg %p271
    %p278 = scmp.eq.s32.totalorder %s17, 1
    %p279 = por %p277, %p278
    %p280 = scmp.ne.s32.totalorder %s272, %s275
    %p281 = scmp.eq.s32.totalorder %s17, 0
    %p282 = por %p280, %p281
    %p283 = scmp.ne.s32.totalorder %s272, %s275
    %p284 = scmp.eq.s32.totalorder %s22, 1
    %p285 = por %p283, %p284
    %p286 = scmp.ne.s32.totalorder %s275, %s276
    %p287 = scmp.eq.s32.totalorder %s22, 0
    %p288 = por %p286, %p287
    %p289 = scmp.ne.s32.totalorder %s275, %s276
    %p290 = scmp.eq.s32.totalorder %s23, 1
    %p291 = por %p289, %p290
    %p293 = scmp.ne.s32.totalorder %s276, %s292
    %p294 = scmp.eq.s32.totalorder %s23, 0
    %p295 = por %p293, %p294
    %p296 = scmp.le.s32.totalorder 1, %s17
    %p297 = scmp.lt.s32.totalorder %s17, 3
    %p298 = pnand %p296, %p297
    %p299 = pneg %p298
    // Predicated region
    $region9: #{inception_resnet_b_pallas.5} parent=5 // pred_check
      _
    $region10: #{inception_resnet_b_pallas.5} parent=5 // pred_check_branch
      %301 = sbr.rel (%p298) target = $region12
    $region11: #{inception_resnet_b_pallas.5} parent=5 // pred_region
      %s302 = ssub.s32 %s17, 1
      // Predicated region
      $region13: #{inception_resnet_b_pallas.5} parent=11 // pred_check
        %p303 = pneg %p64
      $region14: #{inception_resnet_b_pallas.5} parent=11 // pred_check_branch
        %305 = sbr.rel (%p303) target = $region16
      $region15: #{inception_resnet_b_pallas.5} parent=11 // pred_region
        _
      $region16: #{inception_resnet_b_pallas.5} parent=11 // pred_fallthru
        _
      // Predicated region
      $region17: #{inception_resnet_b_pallas.5} parent=11 // pred_check
        %p306 = pneg %p85
      $region18: #{inception_resnet_b_pallas.5} parent=11 // pred_check_branch
        %308 = sbr.rel (%p306) target = $region20
      $region19: #{inception_resnet_b_pallas.5} parent=11 // pred_region
        _
      $region20: #{inception_resnet_b_pallas.5} parent=11 // pred_fallthru
        _
      // Predicated region
      $region21: #{inception_resnet_b_pallas.5} parent=11 // pred_check
        %p309 = pneg %p106
      $region22: #{inception_resnet_b_pallas.5} parent=11 // pred_check_branch
        %311 = sbr.rel (%p309) target = $region24
      $region23: #{inception_resnet_b_pallas.5} parent=11 // pred_region
        _
      $region24: #{inception_resnet_b_pallas.5} parent=11 // pred_fallthru
        _
    $region12: #{inception_resnet_b_pallas.5} parent=5 // pred_fallthru
      _
    %p312 = scmp.lt.s32.totalorder %s17, 2
    // Predicated region
    $region25: #{inception_resnet_b_pallas.5} parent=5 // pred_check
      %p313 = pneg %p312
    $region26: #{inception_resnet_b_pallas.5} parent=5 // pred_check_branch
      %315 = sbr.rel (%p313) target = $region28
    $region27: #{inception_resnet_b_pallas.5} parent=5 // pred_region
      // Predicated region
      $region29: #{inception_resnet_b_pallas.5} parent=27 // pred_check
        %p316 = pneg %p37
      $region30: #{inception_resnet_b_pallas.5} parent=27 // pred_check_branch
        %318 = sbr.rel (%p316) target = $region32
      $region31: #{inception_resnet_b_pallas.5} parent=27 // pred_region
        %s319 = smul.u32 32, %s17
        %p320 = scmp.lt.s32.totalorder %s319, 63
        %s321 = scalar_select %p320, %s319, 63
        %s322 = smul.addr %s321, 4
        %s323 = scalar_lea.vmem %s0, %s322
        %s324 = smul.u32 32, %s17
      $region32: #{inception_resnet_b_pallas.5} parent=27 // pred_fallthru
        _
    $region28: #{inception_resnet_b_pallas.5} parent=5 // pred_fallthru
      _
    %p325 = scmp.le.s32.totalorder 1, %s17
    %p326 = scmp.lt.s32.totalorder %s17, 3
    %p327 = pnand %p325, %p326
    %p328 = pneg %p327
    // Predicated region
    $region33: #{inception_resnet_b_pallas.5} parent=5 // pred_check
      _
    $region34: #{inception_resnet_b_pallas.5} parent=5 // pred_check_branch
      %330 = sbr.rel (%p327) target = $region36
    $region35: #{inception_resnet_b_pallas.5} parent=5 // pred_region
      %s331 = ssub.s32 %s17, 1
      %s332 = smul.u32 32, %s22
      %p333 = scmp.lt.s32.totalorder %s332, 63
      %s334 = scalar_select %p333, %s332, 63
      %s335 = smul.addr %s334, 4
      %s336 = scalar_lea.vmem %s0, %s335
      %p337 = pneg %p43
      %p338 = pneg %p40
      %p339 = pneg %p64
      %p340 = pneg %p61
      %p341 = pneg %p85
      %p342 = pneg %p82
      %p343 = pneg %p106
      %p344 = pneg %p103
      %p345 = pneg %p132
      %p346 = pneg %p129
      %s347 = smul.u32 32, %s22
      %p348 = scmp.lt.s32.totalorder %s347, 63
      %s349 = scalar_select %p348, %s347, 63
      %s350 = smul.addr %s349, 4
      %s351 = scalar_lea.vmem %s4, %s350
      %p352 = pneg %p158
      %p353 = pneg %p155
      %s354 = smul.u32 32, %s22
      %p355 = scmp.lt.s32.totalorder %s354, 63
      %s356 = scalar_select %p355, %s354, 63
      %s357 = smul.addr %s356, 4
      %s358 = scalar_lea.vmem %s5, %s357
      %p359 = pneg %p184
      %p360 = pneg %p181
      %s361 = smul.u32 32, %s22
      %p362 = scmp.lt.s32.totalorder %s361, 63
      %s363 = scalar_select %p362, %s361, 63
      %s364 = smul.addr %s363, 4
      %s365 = scalar_lea.vmem %s6, %s364
      %p366 = pneg %p210
      %p367 = pneg %p207
      %p368 = scmp.lt.s32.totalorder %s22, 1
      %s369 = scalar_select %p368, %s22, 1
      %s370 = smul.addr %s369, 8
      %s371 = scalar_lea.vmem %s7, %s370
      %p372 = pneg %p236
      %p373 = pneg %p233
      %p374 = scmp.lt.s32.totalorder %s22, 1
      %s375 = scalar_select %p374, %s22, 1
      %s376 = smul.addr %s375, 8
      %s377 = scalar_lea.vmem %s8, %s376
      %p378 = pneg %p262
      %p379 = pneg %p259
      %p380 = scmp.lt.s32.totalorder %s22, 1
      %s381 = scalar_select %p380, %s22, 1
      %s382 = smul.addr %s381, 8
      %s383 = scalar_lea.vmem %s9, %s382
      %p384 = pneg %p288
      %p385 = pneg %p285
      %p386 = scmp.lt.s32.totalorder %s22, 1
      %s387 = scalar_select %p386, %s22, 1
      %s388 = smul.addr %s387, 8
      %s389 = scalar_lea.vmem %s10, %s388
      %s390 = smul.u32 32, %s22
      %p391 = scmp.lt.s32.totalorder %s390, 63
      %s392 = scalar_select %p391, %s390, 63
      %s393 = smul.addr %s392, 4
      %s394 = scalar_lea.vmem %s0, %s393
      %s395 = smul.u32 32, %s22
      %s396 = smul.u32 32, %s22
      %p397 = scmp.lt.s32.totalorder %s396, 63
      %s398 = scalar_select %p397, %s396, 63
      %s399 = smul.addr %s398, 4
      %s400 = scalar_lea.vmem %s4, %s399
      %s401 = smul.u32 32, %s22
      %s402 = smul.u32 32, %s22
      %p403 = scmp.lt.s32.totalorder %s402, 63
      %s404 = scalar_select %p403, %s402, 63
      %s405 = smul.addr %s404, 4
      %s406 = scalar_lea.vmem %s5, %s405
      %s407 = smul.u32 32, %s22
      %s408 = smul.u32 32, %s22
      %p409 = scmp.lt.s32.totalorder %s408, 63
      %s410 = scalar_select %p409, %s408, 63
      %s411 = smul.addr %s410, 4
      %s412 = scalar_lea.vmem %s6, %s411
      %s413 = smul.u32 32, %s22
      %p414 = scmp.lt.s32.totalorder %s22, 1
      %s415 = scalar_select %p414, %s22, 1
      %s416 = smul.addr %s415, 8
      %s417 = scalar_lea.vmem %s7, %s416
      %p418 = scmp.lt.s32.totalorder %s22, 1
      %s419 = scalar_select %p418, %s22, 1
      %s420 = smul.addr %s419, 8
      %s421 = scalar_lea.vmem %s8, %s420
      %p422 = scmp.lt.s32.totalorder %s22, 1
      %s423 = scalar_select %p422, %s22, 1
      %s424 = smul.addr %s423, 8
      %s425 = scalar_lea.vmem %s9, %s424
      %p426 = scmp.lt.s32.totalorder %s22, 1
      %s427 = scalar_select %p426, %s22, 1
      %s428 = smul.addr %s427, 8
      %s429 = scalar_lea.vmem %s10, %s428
      %v431 = vld [vmem:[%s394] sm:$0xf]
      %v432 = vld [vmem:[%s394 + $0x4] sm:$0xf]
      %v433 = vld [vmem:[%s394 + $0x8] sm:$0xf]
      %v434 = vld [vmem:[%s394 + $0xc] sm:$0xf]
      %v435 = vld [vmem:[%s394 + $0x10] sm:$0xf]
      %v436 = vld [vmem:[%s394 + $0x14] sm:$0xf]
      %v437 = vld [vmem:[%s394 + $0x18] sm:$0xf]
      %v438 = vld [vmem:[%s394 + $0x1c] sm:$0xf]
      %v439 = vld [vmem:[%s394 + $0x20] sm:$0xf]
      %v440 = vld [vmem:[%s394 + $0x24] sm:$0xf]
      %v441 = vld [vmem:[%s394 + $0x28] sm:$0xf]
      %v442 = vld [vmem:[%s394 + $0x2c] sm:$0xf]
      %v443 = vld [vmem:[%s394 + $0x30] sm:$0xf]
      %v444 = vld [vmem:[%s394 + $0x34] sm:$0xf]
      %v445 = vld [vmem:[%s394 + $0x38] sm:$0xf]
      %v446 = vld [vmem:[%s394 + $0x3c] sm:$0xf]
      %v447 = vld [vmem:[%s394 + $0x40] sm:$0xf]
      %v448 = vld [vmem:[%s394 + $0x44] sm:$0xf]
      %v449 = vld [vmem:[%s394 + $0x48] sm:$0xf]
      %v450 = vld [vmem:[%s394 + $0x4c] sm:$0xf]
      %v451 = vld [vmem:[%s394 + $0x50] sm:$0xf]
      %v452 = vld [vmem:[%s394 + $0x54] sm:$0xf]
      %v453 = vld [vmem:[%s394 + $0x58] sm:$0xf]
      %v454 = vld [vmem:[%s394 + $0x5c] sm:$0xf]
      %v455 = vld [vmem:[%s394 + $0x60] sm:$0xf]
      %v456 = vld [vmem:[%s394 + $0x64] sm:$0xf]
      %v457 = vld [vmem:[%s394 + $0x68] sm:$0xf]
      %v458 = vld [vmem:[%s394 + $0x6c] sm:$0xf]
      %v459 = vld [vmem:[%s394 + $0x70] sm:$0xf]
      %v460 = vld [vmem:[%s394 + $0x74] sm:$0xf]
      %v461 = vld [vmem:[%s394 + $0x78] sm:$0xf]
      %v462 = vld [vmem:[%s394 + $0x7c] sm:$0xf]
      %v463 = vld [vmem:[%s1] sm:$0xf]
      %v464 = vld [vmem:[%s1 + $0x4] sm:$0xf]
      %v497 = vunpack.c.l.b16 %v431
      %v498 = vunpack.c.l.b16 %v432
      %v499 = vunpack.c.l.b16 %v433
      %v500 = vunpack.c.l.b16 %v434
      %v501 = vunpack.c.l.b16 %v435
      %v502 = vunpack.c.l.b16 %v436
      %v503 = vunpack.c.l.b16 %v437
      %v504 = vunpack.c.l.b16 %v438
      %v505 = vunpack.c.l.b16 %v439
      %v506 = vunpack.c.l.b16 %v440
      %v507 = vunpack.c.l.b16 %v441
      %v508 = vunpack.c.l.b16 %v442
      %v509 = vunpack.c.l.b16 %v443
      %v510 = vunpack.c.l.b16 %v444
      %v511 = vunpack.c.l.b16 %v445
      %v512 = vunpack.c.l.b16 %v446
      %v513 = vunpack.c.l.b16 %v447
      %v514 = vunpack.c.l.b16 %v448
      %v515 = vunpack.c.l.b16 %v449
      %v516 = vunpack.c.l.b16 %v450
      %v517 = vunpack.c.l.b16 %v451
      %v518 = vunpack.c.l.b16 %v452
      %v519 = vunpack.c.l.b16 %v453
      %v520 = vunpack.c.l.b16 %v454
      %v521 = vunpack.c.l.b16 %v455
      %v522 = vunpack.c.l.b16 %v456
      %v523 = vunpack.c.l.b16 %v457
      %v524 = vunpack.c.l.b16 %v458
      %v525 = vunpack.c.l.b16 %v459
      %v526 = vunpack.c.l.b16 %v460
      %v527 = vunpack.c.l.b16 %v461
      %v528 = vunpack.c.l.b16 %v462
      %v529 = vpack.c.b16 %v498, %v497
      %v530 = vpack.c.b16 %v500, %v499
      %v531 = vpack.c.b16 %v502, %v501
      %v532 = vpack.c.b16 %v504, %v503
      %v533 = vpack.c.b16 %v506, %v505
      %v534 = vpack.c.b16 %v508, %v507
      %v535 = vpack.c.b16 %v510, %v509
      %v536 = vpack.c.b16 %v512, %v511
      %v537 = vpack.c.b16 %v514, %v513
      %v538 = vpack.c.b16 %v516, %v515
      %v539 = vpack.c.b16 %v518, %v517
      %v540 = vpack.c.b16 %v520, %v519
      %v541 = vpack.c.b16 %v522, %v521
      %v542 = vpack.c.b16 %v524, %v523
      %v543 = vpack.c.b16 %v526, %v525
      %v544 = vpack.c.b16 %v528, %v527
      %v547 = vunpack.c.l.b16 %v463
      %v548 = vunpack.c.l.b16 %v464
      %v549 = vpack.c.b16 %v548, %v547
      %vm551 = vcmask 130048
      %v553 = vsel %vm551, %v529, 0
      %v556 = vsel %vm551, %v530, 0
      %v559 = vsel %vm551, %v531, 0
      %v562 = vsel %vm551, %v532, 0
      %v565 = vsel %vm551, %v533, 0
      %v568 = vsel %vm551, %v534, 0
      %v571 = vsel %vm551, %v535, 0
      %v574 = vsel %vm551, %v536, 0
      %v577 = vsel %vm551, %v537, 0
      %v580 = vsel %vm551, %v538, 0
      %v583 = vsel %vm551, %v539, 0
      %v586 = vsel %vm551, %v540, 0
      %v589 = vsel %vm551, %v541, 0
      %v592 = vsel %vm551, %v542, 0
      %v595 = vsel %vm551, %v543, 0
      %v598 = vsel %vm551, %v544, 0
      %600 = vmatprep.subr.bf16.mxu0 0
      %601 = vmatpush1.bf16.msra.mxu0 %v549
      %602 = vmatprep.subr.bf16.mxu0 0
      %603 = vmatpush1.bf16.msra.mxu0 0
      %604 = vmatprep.subr.bf16.mxu0 0
      %605 = vmatpush1.bf16.msra.mxu0 0
      %606 = vmatprep.subr.bf16.mxu0 0
      %607 = vmatpush1.bf16.msra.mxu0 0
      %608 = vmatprep.subr.bf16.mxu0 0
      %609 = vmatpush1.bf16.msra.mxu0 0
      %610 = vmatprep.subr.bf16.mxu0 0
      %611 = vmatpush1.bf16.msra.mxu0 0
      %612 = vmatprep.subr.bf16.mxu0 0
      %613 = vmatpush1.bf16.msra.mxu0 0
      %614 = vmatprep.subr.bf16.mxu0 0
      %615 = vmatpush1.bf16.msra.mxu0 0
      %616 = vmatprep.subr.bf16.mxu0 0
      %617 = vmatpush1.bf16.msra.mxu0 0
      %618 = vmatprep.subr.bf16.mxu0 0
      %619 = vmatpush1.bf16.msra.mxu0 0
      %620 = vmatprep.subr.bf16.mxu0 0
      %621 = vmatpush1.bf16.msra.mxu0 0
      %622 = vmatprep.subr.bf16.mxu0 0
      %623 = vmatpush1.bf16.msra.mxu0 0
      %624 = vmatprep.subr.bf16.mxu0 0
      %625 = vmatpush1.bf16.msra.mxu0 0
      %626 = vmatprep.subr.bf16.mxu0 0
      %627 = vmatpush1.bf16.msra.mxu0 0
      %628 = vmatprep.subr.bf16.mxu0 0
      %629 = vmatpush1.bf16.msra.mxu0 0
      %630 = vmatprep.subr.bf16.mxu0 0
      %631 = vmatpush1.bf16.msra.mxu0 0
      %632 = vmatprep.mubr.bf16.mxu0 0
      %633 = vmatmul.mubr.bf16.gmra.mrb[0].mxu0 %v553
      %v634 = vpop.f32.mrb[0].mxu0
      %v635 = vadd.f32 0.0, %v634
      %v636 = vpop.f32.mrb[0].mxu0
      %v637 = vpop.f32.mrb[0].mxu0
      %v638 = vadd.f32 0.0, %v637
      %v639 = vpop.f32.mrb[0].mxu0
      %640 = vmatprep.mubr.bf16.mxu0 0
      %641 = vmatmul.mubr.bf16.gmra.mrb[0].mxu0 %v556
      %v642 = vpop.f32.mrb[0].mxu0
      %v643 = vadd.f32 0.0, %v642
      %v644 = vpop.f32.mrb[0].mxu0
      %v645 = vpop.f32.mrb[0].mxu0
      %v646 = vadd.f32 0.0, %v645
      %v647 = vpop.f32.mrb[0].mxu0
      %648 = vmatprep.mubr.bf16.mxu0 0
      %649 = vmatmul.mubr.bf16.gmra.mrb[0].mxu0 %v559
      %v650 = vpop.f32.mrb[0].mxu0
      %v651 = vadd.f32 0.0, %v650
      %v652 = vpop.f32.mrb[0].mxu0
      %v653 = vpop.f32.mrb[0].mxu0
      %v654 = vadd.f32 0.0, %v653
      %v655 = vpop.f32.mrb[0].mxu0
      %656 = vmatprep.mubr.bf16.mxu0 0
      %657 = vmatmul.mubr.bf16.gmra.mrb[0].mxu0 %v562
      %v658 = vpop.f32.mrb[0].mxu0
      %v659 = vadd.f32 0.0, %v658
      %v660 = vpop.f32.mrb[0].mxu0
      %v661 = vpop.f32.mrb[0].mxu0
      %v662 = vadd.f32 0.0, %v661
      %v663 = vpop.f32.mrb[0].mxu0
      %664 = vmatprep.mubr.bf16.mxu0 0
      %665 = vmatmul.mubr.bf16.gmra.mrb[0].mxu0 %v565
      %v666 = vpop.f32.mrb[0].mxu0
      %v667 = vadd.f32 0.0, %v666
      %v668 = vpop.f32.mrb[0].mxu0
      %v669 = vpop.f32.mrb[0].mxu0
      %v670 = vadd.f32 0.0, %v669
      %v671 = vpop.f32.mrb[0].mxu0
      %672 = vmatprep.mubr.bf16.mxu0 0
      %673 = vmatmul.mubr.bf16.gmra.mrb[0].mxu0 %v568
      %v674 = vpop.f32.mrb[0].mxu0
      %v675 = vadd.f32 0.0, %v674
      %v676 = vpop.f32.mrb[0].mxu0
      %v677 = vpop.f32.mrb[0].mxu0
      %v678 = vadd.f32 0.0, %v677
      %v679 = vpop.f32.mrb[0].mxu0
      %680 = vmatprep.mubr.bf16.mxu0 0
      %681 = vmatmul.mubr.bf16.gmra.mrb[0].mxu0 %v571
      %v682 = vpop.f32.mrb[0].mxu0
      %v683 = vadd.f32 0.0, %v682
      %v684 = vpop.f32.mrb[0].mxu0
      %v685 = vpop.f32.mrb[0].mxu0
      %v686 = vadd.f32 0.0, %v685
      %v687 = vpop.f32.mrb[0].mxu0
      %688 = vmatprep.mubr.bf16.mxu0 0
      %689 = vmatmul.mubr.bf16.gmra.mrb[0].mxu0 %v574
      %v690 = vpop.f32.mrb[0].mxu0
      %v691 = vadd.f32 0.0, %v690
      %v692 = vpop.f32.mrb[0].mxu0
      %v693 = vpop.f32.mrb[0].mxu0
      %v694 = vadd.f32 0.0, %v693
      %v695 = vpop.f32.mrb[0].mxu0
      %696 = vmatprep.mubr.bf16.mxu0 0
      %697 = vmatmul.mubr.bf16.gmra.mrb[0].mxu0 %v577
      %v698 = vpop.f32.mrb[0].mxu0
      %v699 = vadd.f32 0.0, %v698
      %v700 = vpop.f32.mrb[0].mxu0
      %v701 = vpop.f32.mrb[0].mxu0
      %v702 = vadd.f32 0.0, %v701
      %v703 = vpop.f32.mrb[0].mxu0
      %704 = vmatprep.mubr.bf16.mxu0 0
      %705 = vmatmul.mubr.bf16.gmra.mrb[0].mxu0 %v580
      %v706 = vpop.f32.mrb[0].mxu0
      %v707 = vadd.f32 0.0, %v706
      %v708 = vpop.f32.mrb[0].mxu0
      %v709 = vpop.f32.mrb[0].mxu0
      %v710 = vadd.f32 0.0, %v709
      %v711 = vpop.f32.mrb[0].mxu0
      %712 = vmatprep.mubr.bf16.mxu0 0
      %713 = vmatmul.mubr.bf16.gmra.mrb[0].mxu0 %v583
      %v714 = vpop.f32.mrb[0].mxu0
      %v715 = vadd.f32 0.0, %v714
      %v716 = vpop.f32.mrb[0].mxu0
      %v717 = vpop.f32.mrb[0].mxu0
      %v718 = vadd.f32 0.0, %v717
      %v719 = vpop.f32.mrb[0].mxu0
      %720 = vmatprep.mubr.bf16.mxu0 0
      %721 = vmatmul.mubr.bf16.gmra.mrb[0].mxu0 %v586
      %v722 = vpop.f32.mrb[0].mxu0
      %v723 = vadd.f32 0.0, %v722
      %v724 = vpop.f32.mrb[0].mxu0
      %v725 = vpop.f32.mrb[0].mxu0
      %v726 = vadd.f32 0.0, %v725
      %v727 = vpop.f32.mrb[0].mxu0
      %728 = vmatprep.mubr.bf16.mxu0 0
      %729 = vmatmul.mubr.bf16.gmra.mrb[0].mxu0 %v589
      %v730 = vpop.f32.mrb[0].mxu0
      %v731 = vadd.f32 0.0, %v730
      %v732 = vpop.f32.mrb[0].mxu0
      %v733 = vpop.f32.mrb[0].mxu0
      %v734 = vadd.f32 0.0, %v733
      %v735 = vpop.f32.mrb[0].mxu0
      %736 = vmatprep.mubr.bf16.mxu0 0
      %737 = vmatmul.mubr.bf16.gmra.mrb[0].mxu0 %v592
      %v738 = vpop.f32.mrb[0].mxu0
      %v739 = vadd.f32 0.0, %v738
      %v740 = vpop.f32.mrb[0].mxu0
      %v741 = vpop.f32.mrb[0].mxu0
      %v742 = vadd.f32 0.0, %v741
      %v743 = vpop.f32.mrb[0].mxu0
      %744 = vmatprep.mubr.bf16.mxu0 0
      %745 = vmatmul.mubr.bf16.gmra.mrb[0].mxu0 %v595
      %v746 = vpop.f32.mrb[0].mxu0
      %v747 = vadd.f32 0.0, %v746
      %v748 = vpop.f32.mrb[0].mxu0
      %v749 = vpop.f32.mrb[0].mxu0
      %v750 = vadd.f32 0.0, %v749
      %v751 = vpop.f32.mrb[0].mxu0
      %752 = vmatprep.mubr.bf16.mxu0 0
      %753 = vmatmul.mubr.bf16.gmra.mrb[0].mxu0 %v598
      %v754 = vpop.f32.mrb[0].mxu0
      %v755 = vadd.f32 0.0, %v754
      %v756 = vpop.f32.mrb[0].mxu0
      %v757 = vpop.f32.mrb[0].mxu0
      %v758 = vadd.f32 0.0, %v757
      %v759 = vpop.f32.mrb[0].mxu0
      %760 = vdwg.mxu0
      %v761 = vld [vmem:[%s2] sm:$0xf]
      %v762 = vld [vmem:[%s2 + $0x4] sm:$0xf]
      %v765 = vunpack.c.l.b16 %v761
      %v766 = vunpack.c.l.b16 %v762
      %v767 = vpack.c.b16 %v766, %v765
      %769 = vmatprep.subr.bf16.mxu0 0
      %770 = vmatpush1.bf16.msra.mxu0 %v767
      %771 = vmatprep.subr.bf16.mxu0 0
      %772 = vmatpush1.bf16.msra.mxu0 0
      %773 = vmatprep.subr.bf16.mxu0 0
      %774 = vmatpush1.bf16.msra.mxu0 0
      %775 = vmatprep.subr.bf16.mxu0 0
      %776 = vmatpush1.bf16.msra.mxu0 0
      %777 = vmatprep.subr.bf16.mxu0 0
      %778 = vmatpush1.bf16.msra.mxu0 0
      %779 = vmatprep.subr.bf16.mxu0 0
      %780 = vmatpush1.bf16.msra.mxu0 0
      %781 = vmatprep.subr.bf16.mxu0 0
      %782 = vmatpush1.bf16.msra.mxu0 0
      %783 = vmatprep.subr.bf16.mxu0 0
      %784 = vmatpush1.bf16.msra.mxu0 0
      %785 = vmatprep.subr.bf16.mxu0 0
      %786 = vmatpush1.bf16.msra.mxu0 0
      %787 = vmatprep.subr.bf16.mxu0 0
      %788 = vmatpush1.bf16.msra.mxu0 0
      %789 = vmatprep.subr.bf16.mxu0 0
      %790 = vmatpush1.bf16.msra.mxu0 0
      %791 = vmatprep.subr.bf16.mxu0 0
      %792 = vmatpush1.bf16.msra.mxu0 0
      %793 = vmatprep.subr.bf16.mxu0 0
      %794 = vmatpush1.bf16.msra.mxu0 0
      %795 = vmatprep.subr.bf16.mxu0 0
      %796 = vmatpush1.bf16.msra.mxu0 0
      %797 = vmatprep.subr.bf16.mxu0 0
      %798 = vmatpush1.bf16.msra.mxu0 0
      %799 = vmatprep.subr.bf16.mxu0 0
      %800 = vmatpush1.bf16.msra.mxu0 0
      %801 = vmatprep.mubr.bf16.mxu0 0
      %802 = vmatmul.mubr.bf16.gmra.mrb[0].mxu0 %v553
      %v803 = vpop.f32.mrb[0].mxu0
      %v804 = vadd.f32 0.0, %v803
      %v805 = vpop.f32.mrb[0].mxu0
      %v806 = vpop.f32.mrb[0].mxu0
      %v807 = vadd.f32 0.0, %v806
      %v808 = vpop.f32.mrb[0].mxu0
      %809 = vmatprep.mubr.bf16.mxu0 0
      %810 = vmatmul.mubr.bf16.gmra.mrb[0].mxu0 %v556
      %v811 = vpop.f32.mrb[0].mxu0
      %v812 = vadd.f32 0.0, %v811
      %v813 = vpop.f32.mrb[0].mxu0
      %v814 = vpop.f32.mrb[0].mxu0
      %v815 = vadd.f32 0.0, %v814
      %v816 = vpop.f32.mrb[0].mxu0
      %817 = vmatprep.mubr.bf16.mxu0 0
      %818 = vmatmul.mubr.bf16.gmra.mrb[0].mxu0 %v559
      %v819 = vpop.f32.mrb[0].mxu0
      %v820 = vadd.f32 0.0, %v819
      %v821 = vpop.f32.mrb[0].mxu0
      %v822 = vpop.f32.mrb[0].mxu0
      %v823 = vadd.f32 0.0, %v822
      %v824 = vpop.f32.mrb[0].mxu0
      %825 = vmatprep.mubr.bf16.mxu0 0
      %826 = vmatmul.mubr.bf16.gmra.mrb[0].mxu0 %v562
      %v827 = vpop.f32.mrb[0].mxu0
      %v828 = vadd.f32 0.0, %v827
      %v829 = vpop.f32.mrb[0].mxu0
      %v830 = vpop.f32.mrb[0].mxu0
      %v831 = vadd.f32 0.0, %v830
      %v832 = vpop.f32.mrb[0].mxu0
      %833 = vmatprep.mubr.bf16.mxu0 0
      %834 = vmatmul.mubr.bf16.gmra.mrb[0].mxu0 %v565
      %v835 = vpop.f32.mrb[0].mxu0
      %v836 = vadd.f32 0.0, %v835
      %v837 = vpop.f32.mrb[0].mxu0
      %v838 = vpop.f32.mrb[0].mxu0
      %v839 = vadd.f32 0.0, %v838
      %v840 = vpop.f32.mrb[0].mxu0
      %841 = vmatprep.mubr.bf16.mxu0 0
      %842 = vmatmul.mubr.bf16.gmra.mrb[0].mxu0 %v568
      %v843 = vpop.f32.mrb[0].mxu0
      %v844 = vadd.f32 0.0, %v843
      %v845 = vpop.f32.mrb[0].mxu0
      %v846 = vpop.f32.mrb[0].mxu0
      %v847 = vadd.f32 0.0, %v846
      %v848 = vpop.f32.mrb[0].mxu0
      %849 = vmatprep.mubr.bf16.mxu0 0
      %850 = vmatmul.mubr.bf16.gmra.mrb[0].mxu0 %v571
      %v851 = vpop.f32.mrb[0].mxu0
      %v852 = vadd.f32 0.0, %v851
      %v853 = vpop.f32.mrb[0].mxu0
      %v854 = vpop.f32.mrb[0].mxu0
      %v855 = vadd.f32 0.0, %v854
      %v856 = vpop.f32.mrb[0].mxu0
      %857 = vmatprep.mubr.bf16.mxu0 0
      %858 = vmatmul.mubr.bf16.gmra.mrb[0].mxu0 %v574
      %v859 = vpop.f32.mrb[0].mxu0
      %v860 = vadd.f32 0.0, %v859
      %v861 = vpop.f32.mrb[0].mxu0
      %v862 = vpop.f32.mrb[0].mxu0
      %v863 = vadd.f32 0.0, %v862
      %v864 = vpop.f32.mrb[0].mxu0
      %865 = vmatprep.mubr.bf16.mxu0 0
      %866 = vmatmul.mubr.bf16.gmra.mrb[0].mxu0 %v577
      %v867 = vpop.f32.mrb[0].mxu0
      %v868 = vadd.f32 0.0, %v867
      %v869 = vpop.f32.mrb[0].mxu0
      %v870 = vpop.f32.mrb[0].mxu0
      %v871 = vadd.f32 0.0, %v870
      %v872 = vpop.f32.mrb[0].mxu0
      %873 = vmatprep.mubr.bf16.mxu0 0
      %874 = vmatmul.mubr.bf16.gmra.mrb[0].mxu0 %v580
      %v875 = vpop.f32.mrb[0].mxu0
      %v876 = vadd.f32 0.0, %v875
      %v877 = vpop.f32.mrb[0].mxu0
      %v878 = vpop.f32.mrb[0].mxu0
      %v879 = vadd.f32 0.0, %v878
      %v880 = vpop.f32.mrb[0].mxu0
      %881 = vmatprep.mubr.bf16.mxu0 0
      %882 = vmatmul.mubr.bf16.gmra.mrb[0].mxu0 %v583
      %v883 = vpop.f32.mrb[0].mxu0
      %v884 = vadd.f32 0.0, %v883
      %v885 = vpop.f32.mrb[0].mxu0
      %v886 = vpop.f32.mrb[0].mxu0
      %v887 = vadd.f32 0.0, %v886
      %v888 = vpop.f32.mrb[0].mxu0
      %889 = vmatprep.mubr.bf16.mxu0 0
      %890 = vmatmul.mubr.bf16.gmra.mrb[0].mxu0 %v586
      %v891 = vpop.f32.mrb[0].mxu0
      %v892 = vadd.f32 0.0, %v891
      %v893 = vpop.f32.mrb[0].mxu0
      %v894 = vpop.f32.mrb[0].mxu0
      %v895 = vadd.f32 0.0, %v894
      %v896 = vpop.f32.mrb[0].mxu0
      %897 = vmatprep.mubr.bf16.mxu0 0
      %898 = vmatmul.mubr.bf16.gmra.mrb[0].mxu0 %v589
      %v899 = vpop.f32.mrb[0].mxu0
      %v900 = vadd.f32 0.0, %v899
      %v901 = vpop.f32.mrb[0].mxu0
      %v902 = vpop.f32.mrb[0].mxu0
      %v903 = vadd.f32 0.0, %v902
      %v904 = vpop.f32.mrb[0].mxu0
      %905 = vmatprep.mubr.bf16.mxu0 0
      %906 = vmatmul.mubr.bf16.gmra.mrb[0].mxu0 %v592
      %v907 = vpop.f32.mrb[0].mxu0
      %v908 = vadd.f32 0.0, %v907
      %v909 = vpop.f32.mrb[0].mxu0
      %v910 = vpop.f32.mrb[0].mxu0
      %v911 = vadd.f32 0.0, %v910
      %v912 = vpop.f32.mrb[0].mxu0
      %913 = vmatprep.mubr.bf16.mxu0 0
      %914 = vmatmul.mubr.bf16.gmra.mrb[0].mxu0 %v595
      %v915 = vpop.f32.mrb[0].mxu0
      %v916 = vadd.f32 0.0, %v915
      %v917 = vpop.f32.mrb[0].mxu0
      %v918 = vpop.f32.mrb[0].mxu0
      %v919 = vadd.f32 0.0, %v918
      %v920 = vpop.f32.mrb[0].mxu0
      %921 = vmatprep.mubr.bf16.mxu0 0
      %922 = vmatmul.mubr.bf16.gmra.mrb[0].mxu0 %v598
      %v923 = vpop.f32.mrb[0].mxu0
      %v924 = vadd.f32 0.0, %v923
      %v925 = vpop.f32.mrb[0].mxu0
      %v926 = vpop.f32.mrb[0].mxu0
      %v927 = vadd.f32 0.0, %v926
      %v928 = vpop.f32.mrb[0].mxu0
      %929 = vdwg.mxu0
      %v930 = vld [vmem:[%s3] sm:$0xf]
      %v931 = vld [vmem:[%s3 + $0x4] sm:$0xf]
      %v934 = vunpack.c.l.b16 %v930
      %v935 = vunpack.c.l.b16 %v931
      %v936 = vpack.c.b16 %v935, %v934
      %938 = vmatprep.subr.bf16.mxu0 0
      %939 = vmatpush1.bf16.msra.mxu0 %v936
      %940 = vmatprep.subr.bf16.mxu0 0
      %941 = vmatpush1.bf16.msra.mxu0 0
      %942 = vmatprep.subr.bf16.mxu0 0
      %943 = vmatpush1.bf16.msra.mxu0 0
      %944 = vmatprep.subr.bf16.mxu0 0
      %945 = vmatpush1.bf16.msra.mxu0 0
      %946 = vmatprep.subr.bf16.mxu0 0
      %947 = vmatpush1.bf16.msra.mxu0 0
      %948 = vmatprep.subr.bf16.mxu0 0
      %949 = vmatpush1.bf16.msra.mxu0 0
      %950 = vmatprep.subr.bf16.mxu0 0
      %951 = vmatpush1.bf16.msra.mxu0 0
      %952 = vmatprep.subr.bf16.mxu0 0
      %953 = vmatpush1.bf16.msra.mxu0 0
      %954 = vmatprep.subr.bf16.mxu0 0
      %955 = vmatpush1.bf16.msra.mxu0 0
      %956 = vmatprep.subr.bf16.mxu0 0
      %957 = vmatpush1.bf16.msra.mxu0 0
      %958 = vmatprep.subr.bf16.mxu0 0
      %959 = vmatpush1.bf16.msra.mxu0 0
      %960 = vmatprep.subr.bf16.mxu0 0
      %961 = vmatpush1.bf16.msra.mxu0 0
      %962 = vmatprep.subr.bf16.mxu0 0
      %963 = vmatpush1.bf16.msra.mxu0 0
      %964 = vmatprep.subr.bf16.mxu0 0
      %965 = vmatpush1.bf16.msra.mxu0 0
      %966 = vmatprep.subr.bf16.mxu0 0
      %967 = vmatpush1.bf16.msra.mxu0 0
      %968 = vmatprep.subr.bf16.mxu0 0
      %969 = vmatpush1.bf16.msra.mxu0 0
      %970 = vmatprep.mubr.bf16.mxu0 0
      %971 = vmatmul.mubr.bf16.gmra.mrb[0].mxu0 %v553
      %v972 = vpop.f32.mrb[0].mxu0
      %v973 = vadd.f32 0.0, %v972
      %v974 = vpop.f32.mrb[0].mxu0
      %v975 = vpop.f32.mrb[0].mxu0
      %v976 = vadd.f32 0.0, %v975
      %v977 = vpop.f32.mrb[0].mxu0
      %978 = vmatprep.mubr.bf16.mxu0 0
      %979 = vmatmul.mubr.bf16.gmra.mrb[0].mxu0 %v556
      %v980 = vpop.f32.mrb[0].mxu0
      %v981 = vadd.f32 0.0, %v980
      %v982 = vpop.f32.mrb[0].mxu0
      %v983 = vpop.f32.mrb[0].mxu0
      %v984 = vadd.f32 0.0, %v983
      %v985 = vpop.f32.mrb[0].mxu0
      %986 = vmatprep.mubr.bf16.mxu0 0
      %987 = vmatmul.mubr.bf16.gmra.mrb[0].mxu0 %v559
      %v988 = vpop.f32.mrb[0].mxu0
      %v989 = vadd.f32 0.0, %v988
      %v990 = vpop.f32.mrb[0].mxu0
      %v991 = vpop.f32.mrb[0].mxu0
      %v992 = vadd.f32 0.0, %v991
      %v993 = vpop.f32.mrb[0].mxu0
      %994 = vmatprep.mubr.bf16.mxu0 0
      %995 = vmatmul.mubr.bf16.gmra.mrb[0].mxu0 %v562
      %v996 = vpop.f32.mrb[0].mxu0
      %v997 = vadd.f32 0.0, %v996
      %v998 = vpop.f32.mrb[0].mxu0
      %v999 = vpop.f32.mrb[0].mxu0
      %v1000 = vadd.f32 0.0, %v999
      %v1001 = vpop.f32.mrb[0].mxu0
      %1002 = vmatprep.mubr.bf16.mxu0 0
      %1003 = vmatmul.mubr.bf16.gmra.mrb[0].mxu0 %v565
      %v1004 = vpop.f32.mrb[0].mxu0
      %v1005 = vadd.f32 0.0, %v1004
      %v1006 = vpop.f32.mrb[0].mxu0
      %v1007 = vpop.f32.mrb[0].mxu0
      %v1008 = vadd.f32 0.0, %v1007
      %v1009 = vpop.f32.mrb[0].mxu0
      %1010 = vmatprep.mubr.bf16.mxu0 0
      %1011 = vmatmul.mubr.bf16.gmra.mrb[0].mxu0 %v568
      %v1012 = vpop.f32.mrb[0].mxu0
      %v1013 = vadd.f32 0.0, %v1012
      %v1014 = vpop.f32.mrb[0].mxu0
      %v1015 = vpop.f32.mrb[0].mxu0
      %v1016 = vadd.f32 0.0, %v1015
      %v1017 = vpop.f32.mrb[0].mxu0
      %1018 = vmatprep.mubr.bf16.mxu0 0
      %1019 = vmatmul.mubr.bf16.gmra.mrb[0].mxu0 %v571
      %v1020 = vpop.f32.mrb[0].mxu0
      %v1021 = vadd.f32 0.0, %v1020
      %v1022 = vpop.f32.mrb[0].mxu0
      %v1023 = vpop.f32.mrb[0].mxu0
      %v1024 = vadd.f32 0.0, %v1023
      %v1025 = vpop.f32.mrb[0].mxu0
      %1026 = vmatprep.mubr.bf16.mxu0 0
      %1027 = vmatmul.mubr.bf16.gmra.mrb[0].mxu0 %v574
      %v1028 = vpop.f32.mrb[0].mxu0
      %v1029 = vadd.f32 0.0, %v1028
      %v1030 = vpop.f32.mrb[0].mxu0
      %v1031 = vpop.f32.mrb[0].mxu0
      %v1032 = vadd.f32 0.0, %v1031
      %v1033 = vpop.f32.mrb[0].mxu0
      %1034 = vmatprep.mubr.bf16.mxu0 0
      %1035 = vmatmul.mubr.bf16.gmra.mrb[0].mxu0 %v577
      %v1036 = vpop.f32.mrb[0].mxu0
      %v1037 = vadd.f32 0.0, %v1036
      %v1038 = vpop.f32.mrb[0].mxu0
      %v1039 = vpop.f32.mrb[0].mxu0
      %v1040 = vadd.f32 0.0, %v1039
      %v1041 = vpop.f32.mrb[0].mxu0
      %1042 = vmatprep.mubr.bf16.mxu0 0
      %1043 = vmatmul.mubr.bf16.gmra.mrb[0].mxu0 %v580
      %v1044 = vpop.f32.mrb[0].mxu0
      %v1045 = vadd.f32 0.0, %v1044
      %v1046 = vpop.f32.mrb[0].mxu0
      %v1047 = vpop.f32.mrb[0].mxu0
      %v1048 = vadd.f32 0.0, %v1047
      %v1049 = vpop.f32.mrb[0].mxu0
      %1050 = vmatprep.mubr.bf16.mxu0 0
      %1051 = vmatmul.mubr.bf16.gmra.mrb[0].mxu0 %v583
      %v1052 = vpop.f32.mrb[0].mxu0
      %v1053 = vadd.f32 0.0, %v1052
      %v1054 = vpop.f32.mrb[0].mxu0
      %v1055 = vpop.f32.mrb[0].mxu0
      %v1056 = vadd.f32 0.0, %v1055
      %v1057 = vpop.f32.mrb[0].mxu0
      %1058 = vmatprep.mubr.bf16.mxu0 0
      %1059 = vmatmul.mubr.bf16.gmra.mrb[0].mxu0 %v586
      %v1060 = vpop.f32.mrb[0].mxu0
      %v1061 = vadd.f32 0.0, %v1060
      %v1062 = vpop.f32.mrb[0].mxu0
      %v1063 = vpop.f32.mrb[0].mxu0
      %v1064 = vadd.f32 0.0, %v1063
      %v1065 = vpop.f32.mrb[0].mxu0
      %1066 = vmatprep.mubr.bf16.mxu0 0
      %1067 = vmatmul.mubr.bf16.gmra.mrb[0].mxu0 %v589
      %v1068 = vpop.f32.mrb[0].mxu0
      %v1069 = vadd.f32 0.0, %v1068
      %v1070 = vpop.f32.mrb[0].mxu0
      %v1071 = vpop.f32.mrb[0].mxu0
      %v1072 = vadd.f32 0.0, %v1071
      %v1073 = vpop.f32.mrb[0].mxu0
      %1074 = vmatprep.mubr.bf16.mxu0 0
      %1075 = vmatmul.mubr.bf16.gmra.mrb[0].mxu0 %v592
      %v1076 = vpop.f32.mrb[0].mxu0
      %v1077 = vadd.f32 0.0, %v1076
      %v1078 = vpop.f32.mrb[0].mxu0
      %v1079 = vpop.f32.mrb[0].mxu0
      %v1080 = vadd.f32 0.0, %v1079
      %v1081 = vpop.f32.mrb[0].mxu0
      %1082 = vmatprep.mubr.bf16.mxu0 0
      %1083 = vmatmul.mubr.bf16.gmra.mrb[0].mxu0 %v595
      %v1084 = vpop.f32.mrb[0].mxu0
      %v1085 = vadd.f32 0.0, %v1084
      %v1086 = vpop.f32.mrb[0].mxu0
      %v1087 = vpop.f32.mrb[0].mxu0
      %v1088 = vadd.f32 0.0, %v1087
      %v1089 = vpop.f32.mrb[0].mxu0
      %1090 = vmatprep.mubr.bf16.mxu0 0
      %1091 = vmatmul.mubr.bf16.gmra.mrb[0].mxu0 %v598
      %v1092 = vpop.f32.mrb[0].mxu0
      %v1093 = vadd.f32 0.0, %v1092
      %v1094 = vpop.f32.mrb[0].mxu0
      %v1095 = vpop.f32.mrb[0].mxu0
      %v1096 = vadd.f32 0.0, %v1095
      %v1097 = vpop.f32.mrb[0].mxu0
      %1098 = vdwg.mxu0
      %v1099 = vpack.c.bf16 %v638, %v635
      %v1100 = vpack.c.bf16 %v646, %v643
      %v1101 = vpack.c.bf16 %v654, %v651
      %v1102 = vpack.c.bf16 %v662, %v659
      %v1103 = vpack.c.bf16 %v670, %v667
      %v1104 = vpack.c.bf16 %v678, %v675
      %v1105 = vpack.c.bf16 %v686, %v683
      %v1106 = vpack.c.bf16 %v694, %v691
      %v1107 = vpack.c.bf16 %v702, %v699
      %v1108 = vpack.c.bf16 %v710, %v707
      %v1109 = vpack.c.bf16 %v718, %v715
      %v1110 = vpack.c.bf16 %v726, %v723
      %v1111 = vpack.c.bf16 %v734, %v731
      %v1112 = vpack.c.bf16 %v742, %v739
      %v1113 = vpack.c.bf16 %v750, %v747
      %v1114 = vpack.c.bf16 %v758, %v755
      %v1131 = vunpack.c.l.b16 %v1099
      %v1132 = vunpack.c.h.b16 %v1099
      %v1133 = vunpack.c.l.b16 %v1100
      %v1134 = vunpack.c.h.b16 %v1100
      %v1135 = vunpack.c.l.b16 %v1101
      %v1136 = vunpack.c.h.b16 %v1101
      %v1137 = vunpack.c.l.b16 %v1102
      %v1138 = vunpack.c.h.b16 %v1102
      %v1139 = vunpack.c.l.b16 %v1103
      %v1140 = vunpack.c.h.b16 %v1103
      %v1141 = vunpack.c.l.b16 %v1104
      %v1142 = vunpack.c.h.b16 %v1104
      %v1143 = vunpack.c.l.b16 %v1105
      %v1144 = vunpack.c.h.b16 %v1105
      %v1145 = vunpack.c.l.b16 %v1106
      %v1146 = vunpack.c.h.b16 %v1106
      %v1147 = vunpack.c.l.b16 %v1107
      %v1148 = vunpack.c.h.b16 %v1107
      %v1149 = vunpack.c.l.b16 %v1108
      %v1150 = vunpack.c.h.b16 %v1108
      %v1151 = vunpack.c.l.b16 %v1109
      %v1152 = vunpack.c.h.b16 %v1109
      %v1153 = vunpack.c.l.b16 %v1110
      %v1154 = vunpack.c.h.b16 %v1110
      %v1155 = vunpack.c.l.b16 %v1111
      %v1156 = vunpack.c.h.b16 %v1111
      %v1157 = vunpack.c.l.b16 %v1112
      %v1158 = vunpack.c.h.b16 %v1112
      %v1159 = vunpack.c.l.b16 %v1113
      %v1160 = vunpack.c.h.b16 %v1113
      %v1161 = vunpack.c.l.b16 %v1114
      %v1162 = vunpack.c.h.b16 %v1114
      %v1163 = vpack.c.b16 %v1131, %v1131
      %v1164 = vpack.c.b16 %v1132, %v1132
      %v1165 = vpack.c.b16 %v1133, %v1133
      %v1166 = vpack.c.b16 %v1134, %v1134
      %v1167 = vpack.c.b16 %v1135, %v1135
      %v1168 = vpack.c.b16 %v1136, %v1136
      %v1169 = vpack.c.b16 %v1137, %v1137
      %v1170 = vpack.c.b16 %v1138, %v1138
      %v1171 = vpack.c.b16 %v1139, %v1139
      %v1172 = vpack.c.b16 %v1140, %v1140
      %v1173 = vpack.c.b16 %v1141, %v1141
      %v1174 = vpack.c.b16 %v1142, %v1142
      %v1175 = vpack.c.b16 %v1143, %v1143
      %v1176 = vpack.c.b16 %v1144, %v1144
      %v1177 = vpack.c.b16 %v1145, %v1145
      %v1178 = vpack.c.b16 %v1146, %v1146
      %v1179 = vpack.c.b16 %v1147, %v1147
      %v1180 = vpack.c.b16 %v1148, %v1148
      %v1181 = vpack.c.b16 %v1149, %v1149
      %v1182 = vpack.c.b16 %v1150, %v1150
      %v1183 = vpack.c.b16 %v1151, %v1151
      %v1184 = vpack.c.b16 %v1152, %v1152
      %v1185 = vpack.c.b16 %v1153, %v1153
      %v1186 = vpack.c.b16 %v1154, %v1154
      %v1187 = vpack.c.b16 %v1155, %v1155
      %v1188 = vpack.c.b16 %v1156, %v1156
      %v1189 = vpack.c.b16 %v1157, %v1157
      %v1190 = vpack.c.b16 %v1158, %v1158
      %v1191 = vpack.c.b16 %v1159, %v1159
      %v1192 = vpack.c.b16 %v1160, %v1160
      %v1193 = vpack.c.b16 %v1161, %v1161
      %v1194 = vpack.c.b16 %v1162, %v1162
      %vm1227 = vcmask 11264
      %1228 = vst.msk [vmem:[%s400] sm:$0xf] %vm1227, %v1163
      %1229 = vst.msk [vmem:[%s400 + $0x4] sm:$0xf] %vm1227, %v1164
      %1230 = vst.msk [vmem:[%s400 + $0x8] sm:$0xf] %vm1227, %v1165
      %1231 = vst.msk [vmem:[%s400 + $0xc] sm:$0xf] %vm1227, %v1166
      %1232 = vst.msk [vmem:[%s400 + $0x10] sm:$0xf] %vm1227, %v1167
      %1233 = vst.msk [vmem:[%s400 + $0x14] sm:$0xf] %vm1227, %v1168
      %1234 = vst.msk [vmem:[%s400 + $0x18] sm:$0xf] %vm1227, %v1169
      %1235 = vst.msk [vmem:[%s400 + $0x1c] sm:$0xf] %vm1227, %v1170
      %1236 = vst.msk [vmem:[%s400 + $0x20] sm:$0xf] %vm1227, %v1171
      %1237 = vst.msk [vmem:[%s400 + $0x24] sm:$0xf] %vm1227, %v1172
      %1238 = vst.msk [vmem:[%s400 + $0x28] sm:$0xf] %vm1227, %v1173
      %1239 = vst.msk [vmem:[%s400 + $0x2c] sm:$0xf] %vm1227, %v1174
      %1240 = vst.msk [vmem:[%s400 + $0x30] sm:$0xf] %vm1227, %v1175
      %1241 = vst.msk [vmem:[%s400 + $0x34] sm:$0xf] %vm1227, %v1176
      %1242 = vst.msk [vmem:[%s400 + $0x38] sm:$0xf] %vm1227, %v1177
      %1243 = vst.msk [vmem:[%s400 + $0x3c] sm:$0xf] %vm1227, %v1178
      %1244 = vst.msk [vmem:[%s400 + $0x40] sm:$0xf] %vm1227, %v1179
      %1245 = vst.msk [vmem:[%s400 + $0x44] sm:$0xf] %vm1227, %v1180
      %1246 = vst.msk [vmem:[%s400 + $0x48] sm:$0xf] %vm1227, %v1181
      %1247 = vst.msk [vmem:[%s400 + $0x4c] sm:$0xf] %vm1227, %v1182
      %1248 = vst.msk [vmem:[%s400 + $0x50] sm:$0xf] %vm1227, %v1183
      %1249 = vst.msk [vmem:[%s400 + $0x54] sm:$0xf] %vm1227, %v1184
      %1250 = vst.msk [vmem:[%s400 + $0x58] sm:$0xf] %vm1227, %v1185
      %1251 = vst.msk [vmem:[%s400 + $0x5c] sm:$0xf] %vm1227, %v1186
      %1252 = vst.msk [vmem:[%s400 + $0x60] sm:$0xf] %vm1227, %v1187
      %1253 = vst.msk [vmem:[%s400 + $0x64] sm:$0xf] %vm1227, %v1188
      %1254 = vst.msk [vmem:[%s400 + $0x68] sm:$0xf] %vm1227, %v1189
      %1255 = vst.msk [vmem:[%s400 + $0x6c] sm:$0xf] %vm1227, %v1190
      %1256 = vst.msk [vmem:[%s400 + $0x70] sm:$0xf] %vm1227, %v1191
      %1257 = vst.msk [vmem:[%s400 + $0x74] sm:$0xf] %vm1227, %v1192
      %1258 = vst.msk [vmem:[%s400 + $0x78] sm:$0xf] %vm1227, %v1193
      %1259 = vst.msk [vmem:[%s400 + $0x7c] sm:$0xf] %vm1227, %v1194
      %v1260 = vpack.c.bf16 %v807, %v804
      %v1261 = vpack.c.bf16 %v815, %v812
      %v1262 = vpack.c.bf16 %v823, %v820
      %v1263 = vpack.c.bf16 %v831, %v828
      %v1264 = vpack.c.bf16 %v839, %v836
      %v1265 = vpack.c.bf16 %v847, %v844
      %v1266 = vpack.c.bf16 %v855, %v852
      %v1267 = vpack.c.bf16 %v863, %v860
      %v1268 = vpack.c.bf16 %v871, %v868
      %v1269 = vpack.c.bf16 %v879, %v876
      %v1270 = vpack.c.bf16 %v887, %v884
      %v1271 = vpack.c.bf16 %v895, %v892
      %v1272 = vpack.c.bf16 %v903, %v900
      %v1273 = vpack.c.bf16 %v911, %v908
      %v1274 = vpack.c.bf16 %v919, %v916
      %v1275 = vpack.c.bf16 %v927, %v924
      %v1292 = vunpack.c.l.b16 %v1260
      %v1293 = vunpack.c.h.b16 %v1260
      %v1294 = vunpack.c.l.b16 %v1261
      %v1295 = vunpack.c.h.b16 %v1261
      %v1296 = vunpack.c.l.b16 %v1262
      %v1297 = vunpack.c.h.b16 %v1262
      %v1298 = vunpack.c.l.b16 %v1263
      %v1299 = vunpack.c.h.b16 %v1263
      %v1300 = vunpack.c.l.b16 %v1264
      %v1301 = vunpack.c.h.b16 %v1264
      %v1302 = vunpack.c.l.b16 %v1265
      %v1303 = vunpack.c.h.b16 %v1265
      %v1304 = vunpack.c.l.b16 %v1266
      %v1305 = vunpack.c.h.b16 %v1266
      %v1306 = vunpack.c.l.b16 %v1267
      %v1307 = vunpack.c.h.b16 %v1267
      %v1308 = vunpack.c.l.b16 %v1268
      %v1309 = vunpack.c.h.b16 %v1268
      %v1310 = vunpack.c.l.b16 %v1269
      %v1311 = vunpack.c.h.b16 %v1269
      %v1312 = vunpack.c.l.b16 %v1270
      %v1313 = vunpack.c.h.b16 %v1270
      %v1314 = vunpack.c.l.b16 %v1271
      %v1315 = vunpack.c.h.b16 %v1271
      %v1316 = vunpack.c.l.b16 %v1272
      %v1317 = vunpack.c.h.b16 %v1272
      %v1318 = vunpack.c.l.b16 %v1273
      %v1319 = vunpack.c.h.b16 %v1273
      %v1320 = vunpack.c.l.b16 %v1274
      %v1321 = vunpack.c.h.b16 %v1274
      %v1322 = vunpack.c.l.b16 %v1275
      %v1323 = vunpack.c.h.b16 %v1275
      %v1324 = vpack.c.b16 %v1292, %v1292
      %v1325 = vpack.c.b16 %v1293, %v1293
      %v1326 = vpack.c.b16 %v1294, %v1294
      %v1327 = vpack.c.b16 %v1295, %v1295
      %v1328 = vpack.c.b16 %v1296, %v1296
      %v1329 = vpack.c.b16 %v1297, %v1297
      %v1330 = vpack.c.b16 %v1298, %v1298
      %v1331 = vpack.c.b16 %v1299, %v1299
      %v1332 = vpack.c.b16 %v1300, %v1300
      %v1333 = vpack.c.b16 %v1301, %v1301
      %v1334 = vpack.c.b16 %v1302, %v1302
      %v1335 = vpack.c.b16 %v1303, %v1303
      %v1336 = vpack.c.b16 %v1304, %v1304
      %v1337 = vpack.c.b16 %v1305, %v1305
      %v1338 = vpack.c.b16 %v1306, %v1306
      %v1339 = vpack.c.b16 %v1307, %v1307
      %v1340 = vpack.c.b16 %v1308, %v1308
      %v1341 = vpack.c.b16 %v1309, %v1309
      %v1342 = vpack.c.b16 %v1310, %v1310
      %v1343 = vpack.c.b16 %v1311, %v1311
      %v1344 = vpack.c.b16 %v1312, %v1312
      %v1345 = vpack.c.b16 %v1313, %v1313
      %v1346 = vpack.c.b16 %v1314, %v1314
      %v1347 = vpack.c.b16 %v1315, %v1315
      %v1348 = vpack.c.b16 %v1316, %v1316
      %v1349 = vpack.c.b16 %v1317, %v1317
      %v1350 = vpack.c.b16 %v1318, %v1318
      %v1351 = vpack.c.b16 %v1319, %v1319
      %v1352 = vpack.c.b16 %v1320, %v1320
      %v1353 = vpack.c.b16 %v1321, %v1321
      %v1354 = vpack.c.b16 %v1322, %v1322
      %v1355 = vpack.c.b16 %v1323, %v1323
      %vm1388 = vcmask 27648
      %1389 = vst.msk [vmem:[%s406] sm:$0xf] %vm1388, %v1324
      %1390 = vst.msk [vmem:[%s406 + $0x4] sm:$0xf] %vm1388, %v1325
      %1391 = vst.msk [vmem:[%s406 + $0x8] sm:$0xf] %vm1388, %v1326
      %1392 = vst.msk [vmem:[%s406 + $0xc] sm:$0xf] %vm1388, %v1327
      %1393 = vst.msk [vmem:[%s406 + $0x10] sm:$0xf] %vm1388, %v1328
      %1394 = vst.msk [vmem:[%s406 + $0x14] sm:$0xf] %vm1388, %v1329
      %1395 = vst.msk [vmem:[%s406 + $0x18] sm:$0xf] %vm1388, %v1330
      %1396 = vst.msk [vmem:[%s406 + $0x1c] sm:$0xf] %vm1388, %v1331
      %1397 = vst.msk [vmem:[%s406 + $0x20] sm:$0xf] %vm1388, %v1332
      %1398 = vst.msk [vmem:[%s406 + $0x24] sm:$0xf] %vm1388, %v1333
      %1399 = vst.msk [vmem:[%s406 + $0x28] sm:$0xf] %vm1388, %v1334
      %1400 = vst.msk [vmem:[%s406 + $0x2c] sm:$0xf] %vm1388, %v1335
      %1401 = vst.msk [vmem:[%s406 + $0x30] sm:$0xf] %vm1388, %v1336
      %1402 = vst.msk [vmem:[%s406 + $0x34] sm:$0xf] %vm1388, %v1337
      %1403 = vst.msk [vmem:[%s406 + $0x38] sm:$0xf] %vm1388, %v1338
      %1404 = vst.msk [vmem:[%s406 + $0x3c] sm:$0xf] %vm1388, %v1339
      %1405 = vst.msk [vmem:[%s406 + $0x40] sm:$0xf] %vm1388, %v1340
      %1406 = vst.msk [vmem:[%s406 + $0x44] sm:$0xf] %vm1388, %v1341
      %1407 = vst.msk [vmem:[%s406 + $0x48] sm:$0xf] %vm1388, %v1342
      %1408 = vst.msk [vmem:[%s406 + $0x4c] sm:$0xf] %vm1388, %v1343
      %1409 = vst.msk [vmem:[%s406 + $0x50] sm:$0xf] %vm1388, %v1344
      %1410 = vst.msk [vmem:[%s406 + $0x54] sm:$0xf] %vm1388, %v1345
      %1411 = vst.msk [vmem:[%s406 + $0x58] sm:$0xf] %vm1388, %v1346
      %1412 = vst.msk [vmem:[%s406 + $0x5c] sm:$0xf] %vm1388, %v1347
      %1413 = vst.msk [vmem:[%s406 + $0x60] sm:$0xf] %vm1388, %v1348
      %1414 = vst.msk [vmem:[%s406 + $0x64] sm:$0xf] %vm1388, %v1349
      %1415 = vst.msk [vmem:[%s406 + $0x68] sm:$0xf] %vm1388, %v1350
      %1416 = vst.msk [vmem:[%s406 + $0x6c] sm:$0xf] %vm1388, %v1351
      %1417 = vst.msk [vmem:[%s406 + $0x70] sm:$0xf] %vm1388, %v1352
      %1418 = vst.msk [vmem:[%s406 + $0x74] sm:$0xf] %vm1388, %v1353
      %1419 = vst.msk [vmem:[%s406 + $0x78] sm:$0xf] %vm1388, %v1354
      %1420 = vst.msk [vmem:[%s406 + $0x7c] sm:$0xf] %vm1388, %v1355
      %v1421 = vpack.c.bf16 %v976, %v973
      %v1422 = vpack.c.bf16 %v984, %v981
      %v1423 = vpack.c.bf16 %v992, %v989
      %v1424 = vpack.c.bf16 %v1000, %v997
      %v1425 = vpack.c.bf16 %v1008, %v1005
      %v1426 = vpack.c.bf16 %v1016, %v1013
      %v1427 = vpack.c.bf16 %v1024, %v1021
      %v1428 = vpack.c.bf16 %v1032, %v1029
      %v1429 = vpack.c.bf16 %v1040, %v1037
      %v1430 = vpack.c.bf16 %v1048, %v1045
      %v1431 = vpack.c.bf16 %v1056, %v1053
      %v1432 = vpack.c.bf16 %v1064, %v1061
      %v1433 = vpack.c.bf16 %v1072, %v1069
      %v1434 = vpack.c.bf16 %v1080, %v1077
      %v1435 = vpack.c.bf16 %v1088, %v1085
      %v1436 = vpack.c.bf16 %v1096, %v1093
      %v1453 = vunpack.c.l.b16 %v1421
      %v1454 = vunpack.c.h.b16 %v1421
      %v1455 = vunpack.c.l.b16 %v1422
      %v1456 = vunpack.c.h.b16 %v1422
      %v1457 = vunpack.c.l.b16 %v1423
      %v1458 = vunpack.c.h.b16 %v1423
      %v1459 = vunpack.c.l.b16 %v1424
      %v1460 = vunpack.c.h.b16 %v1424
      %v1461 = vunpack.c.l.b16 %v1425
      %v1462 = vunpack.c.h.b16 %v1425
      %v1463 = vunpack.c.l.b16 %v1426
      %v1464 = vunpack.c.h.b16 %v1426
      %v1465 = vunpack.c.l.b16 %v1427
      %v1466 = vunpack.c.h.b16 %v1427
      %v1467 = vunpack.c.l.b16 %v1428
      %v1468 = vunpack.c.h.b16 %v1428
      %v1469 = vunpack.c.l.b16 %v1429
      %v1470 = vunpack.c.h.b16 %v1429
      %v1471 = vunpack.c.l.b16 %v1430
      %v1472 = vunpack.c.h.b16 %v1430
      %v1473 = vunpack.c.l.b16 %v1431
      %v1474 = vunpack.c.h.b16 %v1431
      %v1475 = vunpack.c.l.b16 %v1432
      %v1476 = vunpack.c.h.b16 %v1432
      %v1477 = vunpack.c.l.b16 %v1433
      %v1478 = vunpack.c.h.b16 %v1433
      %v1479 = vunpack.c.l.b16 %v1434
      %v1480 = vunpack.c.h.b16 %v1434
      %v1481 = vunpack.c.l.b16 %v1435
      %v1482 = vunpack.c.h.b16 %v1435
      %v1483 = vunpack.c.l.b16 %v1436
      %v1484 = vunpack.c.h.b16 %v1436
      %v1485 = vpack.c.b16 %v1453, %v1453
      %v1486 = vpack.c.b16 %v1454, %v1454
      %v1487 = vpack.c.b16 %v1455, %v1455
      %v1488 = vpack.c.b16 %v1456, %v1456
      %v1489 = vpack.c.b16 %v1457, %v1457
      %v1490 = vpack.c.b16 %v1458, %v1458
      %v1491 = vpack.c.b16 %v1459, %v1459
      %v1492 = vpack.c.b16 %v1460, %v1460
      %v1493 = vpack.c.b16 %v1461, %v1461
      %v1494 = vpack.c.b16 %v1462, %v1462
      %v1495 = vpack.c.b16 %v1463, %v1463
      %v1496 = vpack.c.b16 %v1464, %v1464
      %v1497 = vpack.c.b16 %v1465, %v1465
      %v1498 = vpack.c.b16 %v1466, %v1466
      %v1499 = vpack.c.b16 %v1467, %v1467
      %v1500 = vpack.c.b16 %v1468, %v1468
      %v1501 = vpack.c.b16 %v1469, %v1469
      %v1502 = vpack.c.b16 %v1470, %v1470
      %v1503 = vpack.c.b16 %v1471, %v1471
      %v1504 = vpack.c.b16 %v1472, %v1472
      %v1505 = vpack.c.b16 %v1473, %v1473
      %v1506 = vpack.c.b16 %v1474, %v1474
      %v1507 = vpack.c.b16 %v1475, %v1475
      %v1508 = vpack.c.b16 %v1476, %v1476
      %v1509 = vpack.c.b16 %v1477, %v1477
      %v1510 = vpack.c.b16 %v1478, %v1478
      %v1511 = vpack.c.b16 %v1479, %v1479
      %v1512 = vpack.c.b16 %v1480, %v1480
      %v1513 = vpack.c.b16 %v1481, %v1481
      %v1514 = vpack.c.b16 %v1482, %v1482
      %v1515 = vpack.c.b16 %v1483, %v1483
      %v1516 = vpack.c.b16 %v1484, %v1484
      %vm1549 = vcmask 125952
      %1550 = vst.msk [vmem:[%s412] sm:$0xf] %vm1549, %v1485
      %1551 = vst.msk [vmem:[%s412 + $0x4] sm:$0xf] %vm1549, %v1486
      %1552 = vst.msk [vmem:[%s412 + $0x8] sm:$0xf] %vm1549, %v1487
      %1553 = vst.msk [vmem:[%s412 + $0xc] sm:$0xf] %vm1549, %v1488
      %1554 = vst.msk [vmem:[%s412 + $0x10] sm:$0xf] %vm1549, %v1489
      %1555 = vst.msk [vmem:[%s412 + $0x14] sm:$0xf] %vm1549, %v1490
      %1556 = vst.msk [vmem:[%s412 + $0x18] sm:$0xf] %vm1549, %v1491
      %1557 = vst.msk [vmem:[%s412 + $0x1c] sm:$0xf] %vm1549, %v1492
      %1558 = vst.msk [vmem:[%s412 + $0x20] sm:$0xf] %vm1549, %v1493
      %1559 = vst.msk [vmem:[%s412 + $0x24] sm:$0xf] %vm1549, %v1494
      %1560 = vst.msk [vmem:[%s412 + $0x28] sm:$0xf] %vm1549, %v1495
      %1561 = vst.msk [vmem:[%s412 + $0x2c] sm:$0xf] %vm1549, %v1496
      %1562 = vst.msk [vmem:[%s412 + $0x30] sm:$0xf] %vm1549, %v1497
      %1563 = vst.msk [vmem:[%s412 + $0x34] sm:$0xf] %vm1549, %v1498
      %1564 = vst.msk [vmem:[%s412 + $0x38] sm:$0xf] %vm1549, %v1499
      %1565 = vst.msk [vmem:[%s412 + $0x3c] sm:$0xf] %vm1549, %v1500
      %1566 = vst.msk [vmem:[%s412 + $0x40] sm:$0xf] %vm1549, %v1501
      %1567 = vst.msk [vmem:[%s412 + $0x44] sm:$0xf] %vm1549, %v1502
      %1568 = vst.msk [vmem:[%s412 + $0x48] sm:$0xf] %vm1549, %v1503
      %1569 = vst.msk [vmem:[%s412 + $0x4c] sm:$0xf] %vm1549, %v1504
      %1570 = vst.msk [vmem:[%s412 + $0x50] sm:$0xf] %vm1549, %v1505
      %1571 = vst.msk [vmem:[%s412 + $0x54] sm:$0xf] %vm1549, %v1506
      %1572 = vst.msk [vmem:[%s412 + $0x58] sm:$0xf] %vm1549, %v1507
      %1573 = vst.msk [vmem:[%s412 + $0x5c] sm:$0xf] %vm1549, %v1508
      %1574 = vst.msk [vmem:[%s412 + $0x60] sm:$0xf] %vm1549, %v1509
      %1575 = vst.msk [vmem:[%s412 + $0x64] sm:$0xf] %vm1549, %v1510
      %1576 = vst.msk [vmem:[%s412 + $0x68] sm:$0xf] %vm1549, %v1511
      %1577 = vst.msk [vmem:[%s412 + $0x6c] sm:$0xf] %vm1549, %v1512
      %1578 = vst.msk [vmem:[%s412 + $0x70] sm:$0xf] %vm1549, %v1513
      %1579 = vst.msk [vmem:[%s412 + $0x74] sm:$0xf] %vm1549, %v1514
      %1580 = vst.msk [vmem:[%s412 + $0x78] sm:$0xf] %vm1549, %v1515
      %1581 = vst.msk [vmem:[%s412 + $0x7c] sm:$0xf] %vm1549, %v1516
      %vm1582 = vcmask 15360
      %v1583 = vsel %vm1582, %v635, 0.0
      %v1584 = vsel %vm1582, %v638, 0.0
      %v1585 = vadd.f32 %v1583, %v1584
      %v1586 = vsel %vm1582, %v643, 0.0
      %v1587 = vadd.f32 %v1585, %v1586
      %v1588 = vsel %vm1582, %v646, 0.0
      %v1589 = vadd.f32 %v1587, %v1588
      %v1590 = vsel %vm1582, %v651, 0.0
      %v1591 = vadd.f32 %v1589, %v1590
      %v1592 = vsel %vm1582, %v654, 0.0
      %v1593 = vadd.f32 %v1591, %v1592
      %v1594 = vsel %vm1582, %v659, 0.0
      %v1595 = vadd.f32 %v1593, %v1594
      %v1596 = vsel %vm1582, %v662, 0.0
      %v1597 = vadd.f32 %v1595, %v1596
      %v1598 = vsel %vm1582, %v667, 0.0
      %v1599 = vadd.f32 %v1597, %v1598
      %v1600 = vsel %vm1582, %v670, 0.0
      %v1601 = vadd.f32 %v1599, %v1600
      %v1602 = vsel %vm1582, %v675, 0.0
      %v1603 = vadd.f32 %v1601, %v1602
      %v1604 = vsel %vm1582, %v678, 0.0
      %v1605 = vadd.f32 %v1603, %v1604
      %v1606 = vsel %vm1582, %v683, 0.0
      %v1607 = vadd.f32 %v1605, %v1606
      %v1608 = vsel %vm1582, %v686, 0.0
      %v1609 = vadd.f32 %v1607, %v1608
      %v1610 = vsel %vm1582, %v691, 0.0
      %v1611 = vadd.f32 %v1609, %v1610
      %v1612 = vsel %vm1582, %v694, 0.0
      %v1613 = vadd.f32 %v1611, %v1612
      %v1614 = vsel %vm1582, %v699, 0.0
      %v1615 = vadd.f32 %v1613, %v1614
      %v1616 = vsel %vm1582, %v702, 0.0
      %v1617 = vadd.f32 %v1615, %v1616
      %v1618 = vsel %vm1582, %v707, 0.0
      %v1619 = vadd.f32 %v1617, %v1618
      %v1620 = vsel %vm1582, %v710, 0.0
      %v1621 = vadd.f32 %v1619, %v1620
      %v1622 = vsel %vm1582, %v715, 0.0
      %v1623 = vadd.f32 %v1621, %v1622
      %v1624 = vsel %vm1582, %v718, 0.0
      %v1625 = vadd.f32 %v1623, %v1624
      %v1626 = vsel %vm1582, %v723, 0.0
      %v1627 = vadd.f32 %v1625, %v1626
      %v1628 = vsel %vm1582, %v726, 0.0
      %v1629 = vadd.f32 %v1627, %v1628
      %v1630 = vsel %vm1582, %v731, 0.0
      %v1631 = vadd.f32 %v1629, %v1630
      %v1632 = vsel %vm1582, %v734, 0.0
      %v1633 = vadd.f32 %v1631, %v1632
      %v1634 = vsel %vm1582, %v739, 0.0
      %v1635 = vadd.f32 %v1633, %v1634
      %v1636 = vsel %vm1582, %v742, 0.0
      %v1637 = vadd.f32 %v1635, %v1636
      %v1638 = vsel %vm1582, %v747, 0.0
      %v1639 = vadd.f32 %v1637, %v1638
      %v1640 = vsel %vm1582, %v750, 0.0
      %v1641 = vadd.f32 %v1639, %v1640
      %v1642 = vsel %vm1582, %v755, 0.0
      %v1643 = vadd.f32 %v1641, %v1642
      %v1644 = vsel %vm1582, %v758, 0.0
      %v1645 = vadd.f32 %v1643, %v1644
      %v1646 = vmul.f32 %v635, %v635
      %v1647 = vmul.f32 %v638, %v638
      %v1648 = vmul.f32 %v643, %v643
      %v1649 = vmul.f32 %v646, %v646
      %v1650 = vmul.f32 %v651, %v651
      %v1651 = vmul.f32 %v654, %v654
      %v1652 = vmul.f32 %v659, %v659
      %v1653 = vmul.f32 %v662, %v662
      %v1654 = vmul.f32 %v667, %v667
      %v1655 = vmul.f32 %v670, %v670
      %v1656 = vmul.f32 %v675, %v675
      %v1657 = vmul.f32 %v678, %v678
      %v1658 = vmul.f32 %v683, %v683
      %v1659 = vmul.f32 %v686, %v686
      %v1660 = vmul.f32 %v691, %v691
      %v1661 = vmul.f32 %v694, %v694
      %v1662 = vmul.f32 %v699, %v699
      %v1663 = vmul.f32 %v702, %v702
      %v1664 = vmul.f32 %v707, %v707
      %v1665 = vmul.f32 %v710, %v710
      %v1666 = vmul.f32 %v715, %v715
      %v1667 = vmul.f32 %v718, %v718
      %v1668 = vmul.f32 %v723, %v723
      %v1669 = vmul.f32 %v726, %v726
      %v1670 = vmul.f32 %v731, %v731
      %v1671 = vmul.f32 %v734, %v734
      %v1672 = vmul.f32 %v739, %v739
      %v1673 = vmul.f32 %v742, %v742
      %v1674 = vmul.f32 %v747, %v747
      %v1675 = vmul.f32 %v750, %v750
      %v1676 = vmul.f32 %v755, %v755
      %v1677 = vmul.f32 %v758, %v758
      %v1678 = vsel %vm1582, %v1646, 0.0
      %v1679 = vsel %vm1582, %v1647, 0.0
      %v1680 = vadd.f32 %v1678, %v1679
      %v1681 = vsel %vm1582, %v1648, 0.0
      %v1682 = vadd.f32 %v1680, %v1681
      %v1683 = vsel %vm1582, %v1649, 0.0
      %v1684 = vadd.f32 %v1682, %v1683
      %v1685 = vsel %vm1582, %v1650, 0.0
      %v1686 = vadd.f32 %v1684, %v1685
      %v1687 = vsel %vm1582, %v1651, 0.0
      %v1688 = vadd.f32 %v1686, %v1687
      %v1689 = vsel %vm1582, %v1652, 0.0
      %v1690 = vadd.f32 %v1688, %v1689
      %v1691 = vsel %vm1582, %v1653, 0.0
      %v1692 = vadd.f32 %v1690, %v1691
      %v1693 = vsel %vm1582, %v1654, 0.0
      %v1694 = vadd.f32 %v1692, %v1693
      %v1695 = vsel %vm1582, %v1655, 0.0
      %v1696 = vadd.f32 %v1694, %v1695
      %v1697 = vsel %vm1582, %v1656, 0.0
      %v1698 = vadd.f32 %v1696, %v1697
      %v1699 = vsel %vm1582, %v1657, 0.0
      %v1700 = vadd.f32 %v1698, %v1699
      %v1701 = vsel %vm1582, %v1658, 0.0
      %v1702 = vadd.f32 %v1700, %v1701
      %v1703 = vsel %vm1582, %v1659, 0.0
      %v1704 = vadd.f32 %v1702, %v1703
      %v1705 = vsel %vm1582, %v1660, 0.0
      %v1706 = vadd.f32 %v1704, %v1705
      %v1707 = vsel %vm1582, %v1661, 0.0
      %v1708 = vadd.f32 %v1706, %v1707
      %v1709 = vsel %vm1582, %v1662, 0.0
      %v1710 = vadd.f32 %v1708, %v1709
      %v1711 = vsel %vm1582, %v1663, 0.0
      %v1712 = vadd.f32 %v1710, %v1711
      %v1713 = vsel %vm1582, %v1664, 0.0
      %v1714 = vadd.f32 %v1712, %v1713
      %v1715 = vsel %vm1582, %v1665, 0.0
      %v1716 = vadd.f32 %v1714, %v1715
      %v1717 = vsel %vm1582, %v1666, 0.0
      %v1718 = vadd.f32 %v1716, %v1717
      %v1719 = vsel %vm1582, %v1667, 0.0
      %v1720 = vadd.f32 %v1718, %v1719
      %v1721 = vsel %vm1582, %v1668, 0.0
      %v1722 = vadd.f32 %v1720, %v1721
      %v1723 = vsel %vm1582, %v1669, 0.0
      %v1724 = vadd.f32 %v1722, %v1723
      %v1725 = vsel %vm1582, %v1670, 0.0
      %v1726 = vadd.f32 %v1724, %v1725
      %v1727 = vsel %vm1582, %v1671, 0.0
      %v1728 = vadd.f32 %v1726, %v1727
      %v1729 = vsel %vm1582, %v1672, 0.0
      %v1730 = vadd.f32 %v1728, %v1729
      %v1731 = vsel %vm1582, %v1673, 0.0
      %v1732 = vadd.f32 %v1730, %v1731
      %v1733 = vsel %vm1582, %v1674, 0.0
      %v1734 = vadd.f32 %v1732, %v1733
      %v1735 = vsel %vm1582, %v1675, 0.0
      %v1736 = vadd.f32 %v1734, %v1735
      %v1737 = vsel %vm1582, %v1676, 0.0
      %v1738 = vadd.f32 %v1736, %v1737
      %v1739 = vsel %vm1582, %v1677, 0.0
      %v1740 = vadd.f32 %v1738, %v1739
      %1741 = vst.msk [vmem:[%s417] sm:$0xff] %vm1582, %v1645
      %1742 = vst.msk [vmem:[%s421] sm:$0xff] %vm1582, %v1740
      %vm1743 = vcmask 31744
      %v1744 = vsel %vm1743, %v804, 0.0
      %v1745 = vsel %vm1743, %v807, 0.0
      %v1746 = vadd.f32 %v1744, %v1745
      %v1747 = vsel %vm1743, %v812, 0.0
      %v1748 = vadd.f32 %v1746, %v1747
      %v1749 = vsel %vm1743, %v815, 0.0
      %v1750 = vadd.f32 %v1748, %v1749
      %v1751 = vsel %vm1743, %v820, 0.0
      %v1752 = vadd.f32 %v1750, %v1751
      %v1753 = vsel %vm1743, %v823, 0.0
      %v1754 = vadd.f32 %v1752, %v1753
      %v1755 = vsel %vm1743, %v828, 0.0
      %v1756 = vadd.f32 %v1754, %v1755
      %v1757 = vsel %vm1743, %v831, 0.0
      %v1758 = vadd.f32 %v1756, %v1757
      %v1759 = vsel %vm1743, %v836, 0.0
      %v1760 = vadd.f32 %v1758, %v1759
      %v1761 = vsel %vm1743, %v839, 0.0
      %v1762 = vadd.f32 %v1760, %v1761
      %v1763 = vsel %vm1743, %v844, 0.0
      %v1764 = vadd.f32 %v1762, %v1763
      %v1765 = vsel %vm1743, %v847, 0.0
      %v1766 = vadd.f32 %v1764, %v1765
      %v1767 = vsel %vm1743, %v852, 0.0
      %v1768 = vadd.f32 %v1766, %v1767
      %v1769 = vsel %vm1743, %v855, 0.0
      %v1770 = vadd.f32 %v1768, %v1769
      %v1771 = vsel %vm1743, %v860, 0.0
      %v1772 = vadd.f32 %v1770, %v1771
      %v1773 = vsel %vm1743, %v863, 0.0
      %v1774 = vadd.f32 %v1772, %v1773
      %v1775 = vsel %vm1743, %v868, 0.0
      %v1776 = vadd.f32 %v1774, %v1775
      %v1777 = vsel %vm1743, %v871, 0.0
      %v1778 = vadd.f32 %v1776, %v1777
      %v1779 = vsel %vm1743, %v876, 0.0
      %v1780 = vadd.f32 %v1778, %v1779
      %v1781 = vsel %vm1743, %v879, 0.0
      %v1782 = vadd.f32 %v1780, %v1781
      %v1783 = vsel %vm1743, %v884, 0.0
      %v1784 = vadd.f32 %v1782, %v1783
      %v1785 = vsel %vm1743, %v887, 0.0
      %v1786 = vadd.f32 %v1784, %v1785
      %v1787 = vsel %vm1743, %v892, 0.0
      %v1788 = vadd.f32 %v1786, %v1787
      %v1789 = vsel %vm1743, %v895, 0.0
      %v1790 = vadd.f32 %v1788, %v1789
      %v1791 = vsel %vm1743, %v900, 0.0
      %v1792 = vadd.f32 %v1790, %v1791
      %v1793 = vsel %vm1743, %v903, 0.0
      %v1794 = vadd.f32 %v1792, %v1793
      %v1795 = vsel %vm1743, %v908, 0.0
      %v1796 = vadd.f32 %v1794, %v1795
      %v1797 = vsel %vm1743, %v911, 0.0
      %v1798 = vadd.f32 %v1796, %v1797
      %v1799 = vsel %vm1743, %v916, 0.0
      %v1800 = vadd.f32 %v1798, %v1799
      %v1801 = vsel %vm1743, %v919, 0.0
      %v1802 = vadd.f32 %v1800, %v1801
      %v1803 = vsel %vm1743, %v924, 0.0
      %v1804 = vadd.f32 %v1802, %v1803
      %v1805 = vsel %vm1743, %v927, 0.0
      %v1806 = vadd.f32 %v1804, %v1805
      %v1807 = vmul.f32 %v804, %v804
      %v1808 = vmul.f32 %v807, %v807
      %v1809 = vmul.f32 %v812, %v812
      %v1810 = vmul.f32 %v815, %v815
      %v1811 = vmul.f32 %v820, %v820
      %v1812 = vmul.f32 %v823, %v823
      %v1813 = vmul.f32 %v828, %v828
      %v1814 = vmul.f32 %v831, %v831
      %v1815 = vmul.f32 %v836, %v836
      %v1816 = vmul.f32 %v839, %v839
      %v1817 = vmul.f32 %v844, %v844
      %v1818 = vmul.f32 %v847, %v847
      %v1819 = vmul.f32 %v852, %v852
      %v1820 = vmul.f32 %v855, %v855
      %v1821 = vmul.f32 %v860, %v860
      %v1822 = vmul.f32 %v863, %v863
      %v1823 = vmul.f32 %v868, %v868
      %v1824 = vmul.f32 %v871, %v871
      %v1825 = vmul.f32 %v876, %v876
      %v1826 = vmul.f32 %v879, %v879
      %v1827 = vmul.f32 %v884, %v884
      %v1828 = vmul.f32 %v887, %v887
      %v1829 = vmul.f32 %v892, %v892
      %v1830 = vmul.f32 %v895, %v895
      %v1831 = vmul.f32 %v900, %v900
      %v1832 = vmul.f32 %v903, %v903
      %v1833 = vmul.f32 %v908, %v908
      %v1834 = vmul.f32 %v911, %v911
      %v1835 = vmul.f32 %v916, %v916
      %v1836 = vmul.f32 %v919, %v919
      %v1837 = vmul.f32 %v924, %v924
      %v1838 = vmul.f32 %v927, %v927
      %v1839 = vsel %vm1743, %v1807, 0.0
      %v1840 = vsel %vm1743, %v1808, 0.0
      %v1841 = vadd.f32 %v1839, %v1840
      %v1842 = vsel %vm1743, %v1809, 0.0
      %v1843 = vadd.f32 %v1841, %v1842
      %v1844 = vsel %vm1743, %v1810, 0.0
      %v1845 = vadd.f32 %v1843, %v1844
      %v1846 = vsel %vm1743, %v1811, 0.0
      %v1847 = vadd.f32 %v1845, %v1846
      %v1848 = vsel %vm1743, %v1812, 0.0
      %v1849 = vadd.f32 %v1847, %v1848
      %v1850 = vsel %vm1743, %v1813, 0.0
      %v1851 = vadd.f32 %v1849, %v1850
      %v1852 = vsel %vm1743, %v1814, 0.0
      %v1853 = vadd.f32 %v1851, %v1852
      %v1854 = vsel %vm1743, %v1815, 0.0
      %v1855 = vadd.f32 %v1853, %v1854
      %v1856 = vsel %vm1743, %v1816, 0.0
      %v1857 = vadd.f32 %v1855, %v1856
      %v1858 = vsel %vm1743, %v1817, 0.0
      %v1859 = vadd.f32 %v1857, %v1858
      %v1860 = vsel %vm1743, %v1818, 0.0
      %v1861 = vadd.f32 %v1859, %v1860
      %v1862 = vsel %vm1743, %v1819, 0.0
      %v1863 = vadd.f32 %v1861, %v1862
      %v1864 = vsel %vm1743, %v1820, 0.0
      %v1865 = vadd.f32 %v1863, %v1864
      %v1866 = vsel %vm1743, %v1821, 0.0
      %v1867 = vadd.f32 %v1865, %v1866
      %v1868 = vsel %vm1743, %v1822, 0.0
      %v1869 = vadd.f32 %v1867, %v1868
      %v1870 = vsel %vm1743, %v1823, 0.0
      %v1871 = vadd.f32 %v1869, %v1870
      %v1872 = vsel %vm1743, %v1824, 0.0
      %v1873 = vadd.f32 %v1871, %v1872
      %v1874 = vsel %vm1743, %v1825, 0.0
      %v1875 = vadd.f32 %v1873, %v1874
      %v1876 = vsel %vm1743, %v1826, 0.0
      %v1877 = vadd.f32 %v1875, %v1876
      %v1878 = vsel %vm1743, %v1827, 0.0
      %v1879 = vadd.f32 %v1877, %v1878
      %v1880 = vsel %vm1743, %v1828, 0.0
      %v1881 = vadd.f32 %v1879, %v1880
      %v1882 = vsel %vm1743, %v1829, 0.0
      %v1883 = vadd.f32 %v1881, %v1882
      %v1884 = vsel %vm1743, %v1830, 0.0
      %v1885 = vadd.f32 %v1883, %v1884
      %v1886 = vsel %vm1743, %v1831, 0.0
      %v1887 = vadd.f32 %v1885, %v1886
      %v1888 = vsel %vm1743, %v1832, 0.0
      %v1889 = vadd.f32 %v1887, %v1888
      %v1890 = vsel %vm1743, %v1833, 0.0
      %v1891 = vadd.f32 %v1889, %v1890
      %v1892 = vsel %vm1743, %v1834, 0.0
      %v1893 = vadd.f32 %v1891, %v1892
      %v1894 = vsel %vm1743, %v1835, 0.0
      %v1895 = vadd.f32 %v1893, %v1894
      %v1896 = vsel %vm1743, %v1836, 0.0
      %v1897 = vadd.f32 %v1895, %v1896
      %v1898 = vsel %vm1743, %v1837, 0.0
      %v1899 = vadd.f32 %v1897, %v1898
      %v1900 = vsel %vm1743, %v1838, 0.0
      %v1901 = vadd.f32 %v1899, %v1900
      %1902 = vst.msk [vmem:[%s425] sm:$0xff] %vm1743, %v1806
      %1903 = vst.msk [vmem:[%s429] sm:$0xff] %vm1743, %v1901
      %s1904 = smul.u32 32, %s22
      %p1905 = scmp.lt.s32.totalorder %s1904, 63
      %s1906 = scalar_select %p1905, %s1904, 63
      %s1907 = smul.addr %s1906, 4
      %s1908 = scalar_lea.vmem %s4, %s1907
      %s1909 = smul.u32 32, %s22
      %p1910 = scmp.lt.s32.totalorder %s1909, 63
      %s1911 = scalar_select %p1910, %s1909, 63
      %s1912 = smul.addr %s1911, 4
      %s1913 = scalar_lea.vmem %s5, %s1912
      %s1914 = smul.u32 32, %s22
      %p1915 = scmp.lt.s32.totalorder %s1914, 63
      %s1916 = scalar_select %p1915, %s1914, 63
      %s1917 = smul.addr %s1916, 4
      %s1918 = scalar_lea.vmem %s6, %s1917
      %p1919 = scmp.lt.s32.totalorder %s22, 1
      %s1920 = scalar_select %p1919, %s22, 1
      %s1921 = smul.addr %s1920, 8
      %s1922 = scalar_lea.vmem %s7, %s1921
      %p1923 = scmp.lt.s32.totalorder %s22, 1
      %s1924 = scalar_select %p1923, %s22, 1
      %s1925 = smul.addr %s1924, 8
      %s1926 = scalar_lea.vmem %s8, %s1925
      %p1927 = scmp.lt.s32.totalorder %s22, 1
      %s1928 = scalar_select %p1927, %s22, 1
      %s1929 = smul.addr %s1928, 8
      %s1930 = scalar_lea.vmem %s9, %s1929
      %p1931 = scmp.lt.s32.totalorder %s22, 1
      %s1932 = scalar_select %p1931, %s22, 1
      %s1933 = smul.addr %s1932, 8
      %s1934 = scalar_lea.vmem %s10, %s1933
      // Predicated region
      $region37: #{inception_resnet_b_pallas.5} parent=35 // pred_check
        %p1935 = pneg %p129
      $region38: #{inception_resnet_b_pallas.5} parent=35 // pred_check_branch
        %1937 = sbr.rel (%p1935) target = $region40
      $region39: #{inception_resnet_b_pallas.5} parent=35 // pred_region
        %s1938 = smul.u32 32, %s22
      $region40: #{inception_resnet_b_pallas.5} parent=35 // pred_fallthru
        _
      // Predicated region
      $region41: #{inception_resnet_b_pallas.5} parent=35 // pred_check
        %p1939 = pneg %p155
      $region42: #{inception_resnet_b_pallas.5} parent=35 // pred_check_branch
        %1941 = sbr.rel (%p1939) target = $region44
      $region43: #{inception_resnet_b_pallas.5} parent=35 // pred_region
        %s1942 = smul.u32 32, %s22
      $region44: #{inception_resnet_b_pallas.5} parent=35 // pred_fallthru
        _
      // Predicated region
      $region45: #{inception_resnet_b_pallas.5} parent=35 // pred_check
        %p1943 = pneg %p181
      $region46: #{inception_resnet_b_pallas.5} parent=35 // pred_check_branch
        %1945 = sbr.rel (%p1943) target = $region48
      $region47: #{inception_resnet_b_pallas.5} parent=35 // pred_region
        %s1946 = smul.u32 32, %s22
      $region48: #{inception_resnet_b_pallas.5} parent=35 // pred_fallthru
        _
      // Predicated region
      $region49: #{inception_resnet_b_pallas.5} parent=35 // pred_check
        %p1947 = pneg %p207
      $region50: #{inception_resnet_b_pallas.5} parent=35 // pred_check_branch
        %1949 = sbr.rel (%p1947) target = $region52
      $region51: #{inception_resnet_b_pallas.5} parent=35 // pred_region
        _
      $region52: #{inception_resnet_b_pallas.5} parent=35 // pred_fallthru
        _
      // Predicated region
      $region53: #{inception_resnet_b_pallas.5} parent=35 // pred_check
        %p1950 = pneg %p233
      $region54: #{inception_resnet_b_pallas.5} parent=35 // pred_check_branch
        %1952 = sbr.rel (%p1950) target = $region56
      $region55: #{inception_resnet_b_pallas.5} parent=35 // pred_region
        _
      $region56: #{inception_resnet_b_pallas.5} parent=35 // pred_fallthru
        _
      // Predicated region
      $region57: #{inception_resnet_b_pallas.5} parent=35 // pred_check
        %p1953 = pneg %p259
      $region58: #{inception_resnet_b_pallas.5} parent=35 // pred_check_branch
        %1955 = sbr.rel (%p1953) target = $region60
      $region59: #{inception_resnet_b_pallas.5} parent=35 // pred_region
        _
      $region60: #{inception_resnet_b_pallas.5} parent=35 // pred_fallthru
        _
      // Predicated region
      $region61: #{inception_resnet_b_pallas.5} parent=35 // pred_check
        %p1956 = pneg %p285
      $region62: #{inception_resnet_b_pallas.5} parent=35 // pred_check_branch
        %1958 = sbr.rel (%p1956) target = $region64
      $region63: #{inception_resnet_b_pallas.5} parent=35 // pred_region
        _
      $region64: #{inception_resnet_b_pallas.5} parent=35 // pred_fallthru
        _
    $region36: #{inception_resnet_b_pallas.5} parent=5 // pred_fallthru
      _
    %p1959 = scmp.le.s32.totalorder 2, %s17
    // Predicated region
    $region65: #{inception_resnet_b_pallas.5} parent=5 // pred_check
      %p1960 = pneg %p1959
    $region66: #{inception_resnet_b_pallas.5} parent=5 // pred_check_branch
      %1962 = sbr.rel (%p1960) target = $region68
    $region67: #{inception_resnet_b_pallas.5} parent=5 // pred_region
      %s1963 = ssub.s32 %s17, 2
      // Predicated region
      $region69: #{inception_resnet_b_pallas.5} parent=67 // pred_check
        %p1964 = pneg %p135
      $region70: #{inception_resnet_b_pallas.5} parent=67 // pred_check_branch
        %1966 = sbr.rel (%p1964) target = $region72
      $region71: #{inception_resnet_b_pallas.5} parent=67 // pred_region
        %s1967 = smul.u32 32, %s23
        %p1968 = scmp.lt.s32.totalorder %s1967, 63
        %s1969 = scalar_select %p1968, %s1967, 63
        %s1970 = smul.addr %s1969, 4
        %s1971 = scalar_lea.vmem %s4, %s1970
      $region72: #{inception_resnet_b_pallas.5} parent=67 // pred_fallthru
        _
      // Predicated region
      $region73: #{inception_resnet_b_pallas.5} parent=67 // pred_check
        %p1972 = pneg %p161
      $region74: #{inception_resnet_b_pallas.5} parent=67 // pred_check_branch
        %1974 = sbr.rel (%p1972) target = $region76
      $region75: #{inception_resnet_b_pallas.5} parent=67 // pred_region
        %s1975 = smul.u32 32, %s23
        %p1976 = scmp.lt.s32.totalorder %s1975, 63
        %s1977 = scalar_select %p1976, %s1975, 63
        %s1978 = smul.addr %s1977, 4
        %s1979 = scalar_lea.vmem %s5, %s1978
      $region76: #{inception_resnet_b_pallas.5} parent=67 // pred_fallthru
        _
      // Predicated region
      $region77: #{inception_resnet_b_pallas.5} parent=67 // pred_check
        %p1980 = pneg %p187
      $region78: #{inception_resnet_b_pallas.5} parent=67 // pred_check_branch
        %1982 = sbr.rel (%p1980) target = $region80
      $region79: #{inception_resnet_b_pallas.5} parent=67 // pred_region
        %s1983 = smul.u32 32, %s23
        %p1984 = scmp.lt.s32.totalorder %s1983, 63
        %s1985 = scalar_select %p1984, %s1983, 63
        %s1986 = smul.addr %s1985, 4
        %s1987 = scalar_lea.vmem %s6, %s1986
      $region80: #{inception_resnet_b_pallas.5} parent=67 // pred_fallthru
        _
      // Predicated region
      $region81: #{inception_resnet_b_pallas.5} parent=67 // pred_check
        %p1988 = pneg %p213
      $region82: #{inception_resnet_b_pallas.5} parent=67 // pred_check_branch
        %1990 = sbr.rel (%p1988) target = $region84
      $region83: #{inception_resnet_b_pallas.5} parent=67 // pred_region
        %p1991 = scmp.lt.s32.totalorder %s23, 1
        %s1992 = scalar_select %p1991, %s23, 1
        %s1993 = smul.addr %s1992, 8
        %s1994 = scalar_lea.vmem %s7, %s1993
      $region84: #{inception_resnet_b_pallas.5} parent=67 // pred_fallthru
        _
      // Predicated region
      $region85: #{inception_resnet_b_pallas.5} parent=67 // pred_check
        %p1995 = pneg %p239
      $region86: #{inception_resnet_b_pallas.5} parent=67 // pred_check_branch
        %1997 = sbr.rel (%p1995) target = $region88
      $region87: #{inception_resnet_b_pallas.5} parent=67 // pred_region
        %p1998 = scmp.lt.s32.totalorder %s23, 1
        %s1999 = scalar_select %p1998, %s23, 1
        %s2000 = smul.addr %s1999, 8
        %s2001 = scalar_lea.vmem %s8, %s2000
      $region88: #{inception_resnet_b_pallas.5} parent=67 // pred_fallthru
        _
      // Predicated region
      $region89: #{inception_resnet_b_pallas.5} parent=67 // pred_check
        %p2002 = pneg %p265
      $region90: #{inception_resnet_b_pallas.5} parent=67 // pred_check_branch
        %2004 = sbr.rel (%p2002) target = $region92
      $region91: #{inception_resnet_b_pallas.5} parent=67 // pred_region
        %p2005 = scmp.lt.s32.totalorder %s23, 1
        %s2006 = scalar_select %p2005, %s23, 1
        %s2007 = smul.addr %s2006, 8
        %s2008 = scalar_lea.vmem %s9, %s2007
      $region92: #{inception_resnet_b_pallas.5} parent=67 // pred_fallthru
        _
      // Predicated region
      $region93: #{inception_resnet_b_pallas.5} parent=67 // pred_check
        %p2009 = pneg %p291
      $region94: #{inception_resnet_b_pallas.5} parent=67 // pred_check_branch
        %2011 = sbr.rel (%p2009) target = $region96
      $region95: #{inception_resnet_b_pallas.5} parent=67 // pred_region
        %p2012 = scmp.lt.s32.totalorder %s23, 1
        %s2013 = scalar_select %p2012, %s23, 1
        %s2014 = smul.addr %s2013, 8
        %s2015 = scalar_lea.vmem %s10, %s2014
      $region96: #{inception_resnet_b_pallas.5} parent=67 // pred_fallthru
        _
    $region68: #{inception_resnet_b_pallas.5} parent=5 // pred_fallthru
      _
  $region6: #{inception_resnet_b_pallas.5} parent=0 // loop_footer
    %s21 = sadd.s32 1, %s17
  $region7: #{inception_resnet_b_pallas.5} parent=0 // loop_footer_branch
    %16 = sbr.rel target = $region3
  $region8: #{inception_resnet_b_pallas.5} parent=0 // loop_exit
    _

// kernel: inception_resnet_b_pallas.7
$region0: #{inception_resnet_b_pallas.7}
  #allocation0 [shape = 'u32[]', space=smem, size = 0x4, offset = 0x4, fixed_abs, tag = 'smem constant byte address 0x4 - core index']
  #allocation1 [shape = 'u32[144,128]{1,0:T(1,128)}', space=vmem, size = 0x12000, scoped, tag = 'internal scratch']
  %s0 = inlined_call_operand.vmem [shape: bf16[2,16,16,2], index: 0, kind: input, shape index: {}]
  %s1 = inlined_call_operand.vmem [shape: f32[1,2], index: 1, kind: input, shape index: {}]
  %s2 = inlined_call_operand.vmem [shape: f32[1,2], index: 2, kind: input, shape index: {}]
  %s3 = inlined_call_operand.vmem [shape: f32[7,2,4], index: 3, kind: input, shape index: {}]
  %s4 = inlined_call_operand.vmem [shape: bf16[2,16,16,4], index: 4, kind: output, shape index: {0}]
  %s5 = inlined_call_operand.vmem [shape: f32[2,8,4], index: 5, kind: output, shape index: {1}]
  %s6 = inlined_call_operand.vmem [shape: f32[2,8,4], index: 6, kind: output, shape index: {2}]
  %7 = xla_tuple %s4, %s5, %s6
  %s8 = sld [smem:[#allocation0]]
  $region65: #{inception_resnet_b_pallas.7} parent=0
    _
  %s10 = ssub.s32 1, %s8
  %s11 = scalar_select 0, %s10, %s8
  loop: start=0, step=1, limit=4
  $region2: #{inception_resnet_b_pallas.7} parent=0 // loop_pre_header
    _
  $region3: #{inception_resnet_b_pallas.7} parent=0 // loop_header
    %s13 = sphi 0, %s17
    %p14 = scmp.ge.s32.totalorder %s13, 4
    %s23 = sphi 0, %s25
    %s26 = sphi 0, %s23
    %s27 = sphi 0, %s26
    %s43 = sphi 0, %s27
    %s47 = sphi 0, %s47
    %s49 = sphi 0, %s47
    %s50 = sphi 0, %s49
    %s64 = sphi 0, %s50
    %s68 = sphi 0, %s68
    %s70 = sphi 0, %s68
    %s71 = sphi 0, %s70
    %s85 = sphi 0, %s71
    %s89 = sphi 0, %s89
    %s91 = sphi 0, %s89
    %s92 = sphi 0, %s91
    %s106 = sphi 0, %s92
    %s112 = sphi 0, %s114
    %s115 = sphi 0, %s112
    %s116 = sphi 0, %s115
    %s132 = sphi 0, %s116
    %s138 = sphi 0, %s140
    %s141 = sphi 0, %s138
    %s142 = sphi 0, %s141
    %s158 = sphi 0, %s142
    %s164 = sphi 0, %s166
    %s167 = sphi 0, %s164
    %s168 = sphi 0, %s167
    %s184 = sphi 0, %s168
  $region4: #{inception_resnet_b_pallas.7} parent=0 // loop_header_branch
    %16 = sbr.rel (%p14) target = $region8
  $region5: #{inception_resnet_b_pallas.7} parent=0 // loop_body
    %s18 = ssub.s32 %s13, 1
    %s19 = ssub.s32 %s13, 2
    %s20 = sadd.s32 %s13, 1
    %s21 = ssub.s32 %s13, %s20
    %p22 = scmp.eq.s32.totalorder %s21, 0
    %s24 = sadd.s32 %s23, 1
    %s25 = scalar_select %p22, %s23, %s24
    %p28 = pneg %p22
    %p29 = scmp.eq.s32.totalorder %s13, 1
    %p30 = por %p28, %p29
    %p31 = scmp.ne.s32.totalorder %s23, %s26
    %p32 = scmp.eq.s32.totalorder %s13, 0
    %p33 = por %p31, %p32
    %p34 = scmp.ne.s32.totalorder %s23, %s26
    %p35 = scmp.eq.s32.totalorder %s18, 1
    %p36 = por %p34, %p35
    %p37 = scmp.ne.s32.totalorder %s26, %s27
    %p38 = scmp.eq.s32.totalorder %s18, 0
    %p39 = por %p37, %p38
    %p40 = scmp.ne.s32.totalorder %s26, %s27
    %p41 = scmp.eq.s32.totalorder %s19, 1
    %p42 = por %p40, %p41
    %p44 = scmp.ne.s32.totalorder %s27, %s43
    %p45 = scmp.eq.s32.totalorder %s19, 0
    %p46 = por %p44, %p45
    %s48 = sadd.s32 %s47, 1
    %p51 = scmp.eq.s32.totalorder %s13, 1
    %p52 = scmp.ne.s32.totalorder %s47, %s49
    %p53 = scmp.eq.s32.totalorder %s13, 0
    %p54 = por %p52, %p53
    %p55 = scmp.ne.s32.totalorder %s47, %s49
    %p56 = scmp.eq.s32.totalorder %s18, 1
    %p57 = por %p55, %p56
    %p58 = scmp.ne.s32.totalorder %s49, %s50
    %p59 = scmp.eq.s32.totalorder %s18, 0
    %p60 = por %p58, %p59
    %p61 = scmp.ne.s32.totalorder %s49, %s50
    %p62 = scmp.eq.s32.totalorder %s19, 1
    %p63 = por %p61, %p62
    %p65 = scmp.ne.s32.totalorder %s50, %s64
    %p66 = scmp.eq.s32.totalorder %s19, 0
    %p67 = por %p65, %p66
    %s69 = sadd.s32 %s68, 1
    %p72 = scmp.eq.s32.totalorder %s13, 1
    %p73 = scmp.ne.s32.totalorder %s68, %s70
    %p74 = scmp.eq.s32.totalorder %s13, 0
    %p75 = por %p73, %p74
    %p76 = scmp.ne.s32.totalorder %s68, %s70
    %p77 = scmp.eq.s32.totalorder %s18, 1
    %p78 = por %p76, %p77
    %p79 = scmp.ne.s32.totalorder %s70, %s71
    %p80 = scmp.eq.s32.totalorder %s18, 0
    %p81 = por %p79, %p80
    %p82 = scmp.ne.s32.totalorder %s70, %s71
    %p83 = scmp.eq.s32.totalorder %s19, 1
    %p84 = por %p82, %p83
    %p86 = scmp.ne.s32.totalorder %s71, %s85
    %p87 = scmp.eq.s32.totalorder %s19, 0
    %p88 = por %p86, %p87
    %s90 = sadd.s32 %s89, 1
    %p93 = scmp.eq.s32.totalorder %s13, 1
    %p94 = scmp.ne.s32.totalorder %s89, %s91
    %p95 = scmp.eq.s32.totalorder %s13, 0
    %p96 = por %p94, %p95
    %p97 = scmp.ne.s32.totalorder %s89, %s91
    %p98 = scmp.eq.s32.totalorder %s18, 1
    %p99 = por %p97, %p98
    %p100 = scmp.ne.s32.totalorder %s91, %s92
    %p101 = scmp.eq.s32.totalorder %s18, 0
    %p102 = por %p100, %p101
    %p103 = scmp.ne.s32.totalorder %s91, %s92
    %p104 = scmp.eq.s32.totalorder %s19, 1
    %p105 = por %p103, %p104
    %p107 = scmp.ne.s32.totalorder %s92, %s106
    %p108 = scmp.eq.s32.totalorder %s19, 0
    %p109 = por %p107, %p108
    %s110 = ssub.s32 %s13, %s20
    %p111 = scmp.eq.s32.totalorder %s110, 0
    %s113 = sadd.s32 %s112, 1
    %s114 = scalar_select %p111, %s112, %s113
    %p117 = pneg %p111
    %p118 = scmp.eq.s32.totalorder %s13, 1
    %p119 = por %p117, %p118
    %p120 = scmp.ne.s32.totalorder %s112, %s115
    %p121 = scmp.eq.s32.totalorder %s13, 0
    %p122 = por %p120, %p121
    %p123 = scmp.ne.s32.totalorder %s112, %s115
    %p124 = scmp.eq.s32.totalorder %s18, 1
    %p125 = por %p123, %p124
    %p126 = scmp.ne.s32.totalorder %s115, %s116
    %p127 = scmp.eq.s32.totalorder %s18, 0
    %p128 = por %p126, %p127
    %p129 = scmp.ne.s32.totalorder %s115, %s116
    %p130 = scmp.eq.s32.totalorder %s19, 1
    %p131 = por %p129, %p130
    %p133 = scmp.ne.s32.totalorder %s116, %s132
    %p134 = scmp.eq.s32.totalorder %s19, 0
    %p135 = por %p133, %p134
    %s136 = ssub.s32 %s13, %s20
    %p137 = scmp.eq.s32.totalorder %s136, 0
    %s139 = sadd.s32 %s138, 1
    %s140 = scalar_select %p137, %s138, %s139
    %p143 = pneg %p137
    %p144 = scmp.eq.s32.totalorder %s13, 1
    %p145 = por %p143, %p144
    %p146 = scmp.ne.s32.totalorder %s138, %s141
    %p147 = scmp.eq.s32.totalorder %s13, 0
    %p148 = por %p146, %p147
    %p149 = scmp.ne.s32.totalorder %s138, %s141
    %p150 = scmp.eq.s32.totalorder %s18, 1
    %p151 = por %p149, %p150
    %p152 = scmp.ne.s32.totalorder %s141, %s142
    %p153 = scmp.eq.s32.totalorder %s18, 0
    %p154 = por %p152, %p153
    %p155 = scmp.ne.s32.totalorder %s141, %s142
    %p156 = scmp.eq.s32.totalorder %s19, 1
    %p157 = por %p155, %p156
    %p159 = scmp.ne.s32.totalorder %s142, %s158
    %p160 = scmp.eq.s32.totalorder %s19, 0
    %p161 = por %p159, %p160
    %s162 = ssub.s32 %s13, %s20
    %p163 = scmp.eq.s32.totalorder %s162, 0
    %s165 = sadd.s32 %s164, 1
    %s166 = scalar_select %p163, %s164, %s165
    %p169 = pneg %p163
    %p170 = scmp.eq.s32.totalorder %s13, 1
    %p171 = por %p169, %p170
    %p172 = scmp.ne.s32.totalorder %s164, %s167
    %p173 = scmp.eq.s32.totalorder %s13, 0
    %p174 = por %p172, %p173
    %p175 = scmp.ne.s32.totalorder %s164, %s167
    %p176 = scmp.eq.s32.totalorder %s18, 1
    %p177 = por %p175, %p176
    %p178 = scmp.ne.s32.totalorder %s167, %s168
    %p179 = scmp.eq.s32.totalorder %s18, 0
    %p180 = por %p178, %p179
    %p181 = scmp.ne.s32.totalorder %s167, %s168
    %p182 = scmp.eq.s32.totalorder %s19, 1
    %p183 = por %p181, %p182
    %p185 = scmp.ne.s32.totalorder %s168, %s184
    %p186 = scmp.eq.s32.totalorder %s19, 0
    %p187 = por %p185, %p186
    %p188 = scmp.le.s32.totalorder 1, %s13
    %p189 = scmp.lt.s32.totalorder %s13, 3
    %p190 = pnand %p188, %p189
    %p191 = pneg %p190
    // Predicated region
    $region9: #{inception_resnet_b_pallas.7} parent=5 // pred_check
      _
    $region10: #{inception_resnet_b_pallas.7} parent=5 // pred_check_branch
      %193 = sbr.rel (%p190) target = $region12
    $region11: #{inception_resnet_b_pallas.7} parent=5 // pred_region
      %s194 = ssub.s32 %s13, 1
      // Predicated region
      $region13: #{inception_resnet_b_pallas.7} parent=11 // pred_check
        %p195 = pneg %p60
      $region14: #{inception_resnet_b_pallas.7} parent=11 // pred_check_branch
        %197 = sbr.rel (%p195) target = $region16
      $region15: #{inception_resnet_b_pallas.7} parent=11 // pred_region
        _
      $region16: #{inception_resnet_b_pallas.7} parent=11 // pred_fallthru
        _
      // Predicated region
      $region17: #{inception_resnet_b_pallas.7} parent=11 // pred_check
        %p198 = pneg %p81
      $region18: #{inception_resnet_b_pallas.7} parent=11 // pred_check_branch
        %200 = sbr.rel (%p198) target = $region20
      $region19: #{inception_resnet_b_pallas.7} parent=11 // pred_region
        _
      $region20: #{inception_resnet_b_pallas.7} parent=11 // pred_fallthru
        _
      // Predicated region
      $region21: #{inception_resnet_b_pallas.7} parent=11 // pred_check
        %p201 = pneg %p102
      $region22: #{inception_resnet_b_pallas.7} parent=11 // pred_check_branch
        %203 = sbr.rel (%p201) target = $region24
      $region23: #{inception_resnet_b_pallas.7} parent=11 // pred_region
        _
      $region24: #{inception_resnet_b_pallas.7} parent=11 // pred_fallthru
        _
    $region12: #{inception_resnet_b_pallas.7} parent=5 // pred_fallthru
      _
    %p204 = scmp.lt.s32.totalorder %s13, 2
    // Predicated region
    $region25: #{inception_resnet_b_pallas.7} parent=5 // pred_check
      %p205 = pneg %p204
    $region26: #{inception_resnet_b_pallas.7} parent=5 // pred_check_branch
      %207 = sbr.rel (%p205) target = $region28
    $region27: #{inception_resnet_b_pallas.7} parent=5 // pred_region
      // Predicated region
      $region29: #{inception_resnet_b_pallas.7} parent=27 // pred_check
        %p208 = pneg %p33
      $region30: #{inception_resnet_b_pallas.7} parent=27 // pred_check_branch
        %210 = sbr.rel (%p208) target = $region32
      $region31: #{inception_resnet_b_pallas.7} parent=27 // pred_region
        %p211 = scmp.lt.s32.totalorder %s13, 1
        %s212 = scalar_select %p211, %s13, 1
        %s213 = smul.addr %s212, 32
        %s214 = smul.addr %s213, 4
        %s215 = scalar_lea.vmem %s0, %s214
      $region32: #{inception_resnet_b_pallas.7} parent=27 // pred_fallthru
        _
    $region28: #{inception_resnet_b_pallas.7} parent=5 // pred_fallthru
      _
    %p216 = scmp.le.s32.totalorder 1, %s13
    %p217 = scmp.lt.s32.totalorder %s13, 3
    %p218 = pnand %p216, %p217
    %p219 = pneg %p218
    // Predicated region
    $region33: #{inception_resnet_b_pallas.7} parent=5 // pred_check
      _
    $region34: #{inception_resnet_b_pallas.7} parent=5 // pred_check_branch
      %221 = sbr.rel (%p218) target = $region36
    $region35: #{inception_resnet_b_pallas.7} parent=5 // pred_region
      %s222 = ssub.s32 %s13, 1
      %p223 = scmp.lt.s32.totalorder %s18, 1
      %s224 = scalar_select %p223, %s18, 1
      %s225 = smul.addr %s224, 32
      %s226 = smul.addr %s225, 4
      %s227 = scalar_lea.vmem %s0, %s226
      %p228 = pneg %p39
      %p229 = pneg %p36
      %p230 = pneg %p60
      %p231 = pneg %p57
      %p232 = pneg %p81
      %p233 = pneg %p78
      %p234 = pneg %p102
      %p235 = pneg %p99
      %p236 = pneg %p128
      %p237 = pneg %p125
      %p238 = scmp.lt.s32.totalorder %s18, 1
      %s239 = scalar_select %p238, %s18, 1
      %s240 = smul.addr %s239, 32
      %s241 = smul.addr %s240, 4
      %s242 = scalar_lea.vmem %s4, %s241
      %p243 = pneg %p154
      %p244 = pneg %p151
      %p245 = scmp.lt.s32.totalorder %s18, 1
      %s246 = scalar_select %p245, %s18, 1
      %s247 = smul.addr %s246, 8
      %s248 = scalar_lea.vmem %s5, %s247
      %p249 = pneg %p180
      %p250 = pneg %p177
      %p251 = scmp.lt.s32.totalorder %s18, 1
      %s252 = scalar_select %p251, %s18, 1
      %s253 = smul.addr %s252, 8
      %s254 = scalar_lea.vmem %s6, %s253
      %p255 = scmp.lt.s32.totalorder %s18, 1
      %s256 = scalar_select %p255, %s18, 1
      %s257 = smul.addr %s256, 32
      %s258 = smul.addr %s257, 4
      %s259 = scalar_lea.vmem %s0, %s258
      %p260 = scmp.lt.s32.totalorder %s18, 1
      %s261 = scalar_select %p260, %s18, 1
      %s262 = smul.addr %s261, 32
      %s263 = smul.addr %s262, 4
      %s264 = scalar_lea.vmem %s4, %s263
      %p265 = scmp.lt.s32.totalorder %s18, 1
      %s266 = scalar_select %p265, %s18, 1
      %s267 = smul.addr %s266, 8
      %s268 = scalar_lea.vmem %s5, %s267
      %p269 = scmp.lt.s32.totalorder %s18, 1
      %s270 = scalar_select %p269, %s18, 1
      %s271 = smul.addr %s270, 8
      %s272 = scalar_lea.vmem %s6, %s271
      %v273 = vld [vmem:[%s259] sm:$0xf]
      %v274 = vld [vmem:[%s259 + $0x4] sm:$0xf]
      %v275 = vld [vmem:[%s259 + $0x8] sm:$0xf]
      %v276 = vld [vmem:[%s259 + $0xc] sm:$0xf]
      %v277 = vld [vmem:[%s259 + $0x10] sm:$0xf]
      %v278 = vld [vmem:[%s259 + $0x14] sm:$0xf]
      %v279 = vld [vmem:[%s259 + $0x18] sm:$0xf]
      %v280 = vld [vmem:[%s259 + $0x1c] sm:$0xf]
      %v281 = vld [vmem:[%s259 + $0x20] sm:$0xf]
      %v282 = vld [vmem:[%s259 + $0x24] sm:$0xf]
      %v283 = vld [vmem:[%s259 + $0x28] sm:$0xf]
      %v284 = vld [vmem:[%s259 + $0x2c] sm:$0xf]
      %v285 = vld [vmem:[%s259 + $0x30] sm:$0xf]
      %v286 = vld [vmem:[%s259 + $0x34] sm:$0xf]
      %v287 = vld [vmem:[%s259 + $0x38] sm:$0xf]
      %v288 = vld [vmem:[%s259 + $0x3c] sm:$0xf]
      %v289 = vld [vmem:[%s259 + $0x40] sm:$0xf]
      %v290 = vld [vmem:[%s259 + $0x44] sm:$0xf]
      %v291 = vld [vmem:[%s259 + $0x48] sm:$0xf]
      %v292 = vld [vmem:[%s259 + $0x4c] sm:$0xf]
      %v293 = vld [vmem:[%s259 + $0x50] sm:$0xf]
      %v294 = vld [vmem:[%s259 + $0x54] sm:$0xf]
      %v295 = vld [vmem:[%s259 + $0x58] sm:$0xf]
      %v296 = vld [vmem:[%s259 + $0x5c] sm:$0xf]
      %v297 = vld [vmem:[%s259 + $0x60] sm:$0xf]
      %v298 = vld [vmem:[%s259 + $0x64] sm:$0xf]
      %v299 = vld [vmem:[%s259 + $0x68] sm:$0xf]
      %v300 = vld [vmem:[%s259 + $0x6c] sm:$0xf]
      %v301 = vld [vmem:[%s259 + $0x70] sm:$0xf]
      %v302 = vld [vmem:[%s259 + $0x74] sm:$0xf]
      %v303 = vld [vmem:[%s259 + $0x78] sm:$0xf]
      %v304 = vld [vmem:[%s259 + $0x7c] sm:$0xf]
      %v305 = vunpack.c.l.bf16 %v273
      %v306 = vunpack.c.l.bf16 %v274
      %v307 = vunpack.c.l.bf16 %v275
      %v308 = vunpack.c.l.bf16 %v276
      %v309 = vunpack.c.l.bf16 %v277
      %v310 = vunpack.c.l.bf16 %v278
      %v311 = vunpack.c.l.bf16 %v279
      %v312 = vunpack.c.l.bf16 %v280
      %v313 = vunpack.c.l.bf16 %v281
      %v314 = vunpack.c.l.bf16 %v282
      %v315 = vunpack.c.l.bf16 %v283
      %v316 = vunpack.c.l.bf16 %v284
      %v317 = vunpack.c.l.bf16 %v285
      %v318 = vunpack.c.l.bf16 %v286
      %v319 = vunpack.c.l.bf16 %v287
      %v320 = vunpack.c.l.bf16 %v288
      %v321 = vunpack.c.l.bf16 %v289
      %v322 = vunpack.c.l.bf16 %v290
      %v323 = vunpack.c.l.bf16 %v291
      %v324 = vunpack.c.l.bf16 %v292
      %v325 = vunpack.c.l.bf16 %v293
      %v326 = vunpack.c.l.bf16 %v294
      %v327 = vunpack.c.l.bf16 %v295
      %v328 = vunpack.c.l.bf16 %v296
      %v329 = vunpack.c.l.bf16 %v297
      %v330 = vunpack.c.l.bf16 %v298
      %v331 = vunpack.c.l.bf16 %v299
      %v332 = vunpack.c.l.bf16 %v300
      %v333 = vunpack.c.l.bf16 %v301
      %v334 = vunpack.c.l.bf16 %v302
      %v335 = vunpack.c.l.bf16 %v303
      %v336 = vunpack.c.l.bf16 %v304
      %v337 = vld [vmem:[%s1] sm:$0x1]
      %v338 = vld [vmem:[%s2] sm:$0x1]
      %v340 = vlaneseq
      %v341 = vshrl.u32 %v340, 7
      %v342 = vsub.s32 0, %v341
      %v343 = vrot.slane %v337, %v342
      %v345 = vmul.f32 %v305, %v343
      %v346 = vmul.f32 %v306, %v343
      %v347 = vmul.f32 %v307, %v343
      %v348 = vmul.f32 %v308, %v343
      %v349 = vmul.f32 %v309, %v343
      %v350 = vmul.f32 %v310, %v343
      %v351 = vmul.f32 %v311, %v343
      %v352 = vmul.f32 %v312, %v343
      %v353 = vmul.f32 %v313, %v343
      %v354 = vmul.f32 %v314, %v343
      %v355 = vmul.f32 %v315, %v343
      %v356 = vmul.f32 %v316, %v343
      %v357 = vmul.f32 %v317, %v343
      %v358 = vmul.f32 %v318, %v343
      %v359 = vmul.f32 %v319, %v343
      %v360 = vmul.f32 %v320, %v343
      %v361 = vmul.f32 %v321, %v343
      %v362 = vmul.f32 %v322, %v343
      %v363 = vmul.f32 %v323, %v343
      %v364 = vmul.f32 %v324, %v343
      %v365 = vmul.f32 %v325, %v343
      %v366 = vmul.f32 %v326, %v343
      %v367 = vmul.f32 %v327, %v343
      %v368 = vmul.f32 %v328, %v343
      %v369 = vmul.f32 %v329, %v343
      %v370 = vmul.f32 %v330, %v343
      %v371 = vmul.f32 %v331, %v343
      %v372 = vmul.f32 %v332, %v343
      %v373 = vmul.f32 %v333, %v343
      %v374 = vmul.f32 %v334, %v343
      %v375 = vmul.f32 %v335, %v343
      %v376 = vmul.f32 %v336, %v343
      %v378 = vlaneseq
      %v379 = vshrl.u32 %v378, 7
      %v380 = vsub.s32 0, %v379
      %v381 = vrot.slane %v338, %v380
      %v383 = vadd.f32 %v345, %v381
      %v384 = vadd.f32 %v346, %v381
      %v385 = vadd.f32 %v347, %v381
      %v386 = vadd.f32 %v348, %v381
      %v387 = vadd.f32 %v349, %v381
      %v388 = vadd.f32 %v350, %v381
      %v389 = vadd.f32 %v351, %v381
      %v390 = vadd.f32 %v352, %v381
      %v391 = vadd.f32 %v353, %v381
      %v392 = vadd.f32 %v354, %v381
      %v393 = vadd.f32 %v355, %v381
      %v394 = vadd.f32 %v356, %v381
      %v395 = vadd.f32 %v357, %v381
      %v396 = vadd.f32 %v358, %v381
      %v397 = vadd.f32 %v359, %v381
      %v398 = vadd.f32 %v360, %v381
      %v399 = vadd.f32 %v361, %v381
      %v400 = vadd.f32 %v362, %v381
      %v401 = vadd.f32 %v363, %v381
      %v402 = vadd.f32 %v364, %v381
      %v403 = vadd.f32 %v365, %v381
      %v404 = vadd.f32 %v366, %v381
      %v405 = vadd.f32 %v367, %v381
      %v406 = vadd.f32 %v368, %v381
      %v407 = vadd.f32 %v369, %v381
      %v408 = vadd.f32 %v370, %v381
      %v409 = vadd.f32 %v371, %v381
      %v410 = vadd.f32 %v372, %v381
      %v411 = vadd.f32 %v373, %v381
      %v412 = vadd.f32 %v374, %v381
      %v413 = vadd.f32 %v375, %v381
      %v414 = vadd.f32 %v376, %v381
      %v415 = vmax.f32 %v383, 0.0
      %v416 = vmax.f32 %v384, 0.0
      %v417 = vmax.f32 %v385, 0.0
      %v418 = vmax.f32 %v386, 0.0
      %v419 = vmax.f32 %v387, 0.0
      %v420 = vmax.f32 %v388, 0.0
      %v421 = vmax.f32 %v389, 0.0
      %v422 = vmax.f32 %v390, 0.0
      %v423 = vmax.f32 %v391, 0.0
      %v424 = vmax.f32 %v392, 0.0
      %v425 = vmax.f32 %v393, 0.0
      %v426 = vmax.f32 %v394, 0.0
      %v427 = vmax.f32 %v395, 0.0
      %v428 = vmax.f32 %v396, 0.0
      %v429 = vmax.f32 %v397, 0.0
      %v430 = vmax.f32 %v398, 0.0
      %v431 = vmax.f32 %v399, 0.0
      %v432 = vmax.f32 %v400, 0.0
      %v433 = vmax.f32 %v401, 0.0
      %v434 = vmax.f32 %v402, 0.0
      %v435 = vmax.f32 %v403, 0.0
      %v436 = vmax.f32 %v404, 0.0
      %v437 = vmax.f32 %v405, 0.0
      %v438 = vmax.f32 %v406, 0.0
      %v439 = vmax.f32 %v407, 0.0
      %v440 = vmax.f32 %v408, 0.0
      %v441 = vmax.f32 %v409, 0.0
      %v442 = vmax.f32 %v410, 0.0
      %v443 = vmax.f32 %v411, 0.0
      %v444 = vmax.f32 %v412, 0.0
      %v445 = vmax.f32 %v413, 0.0
      %v446 = vmax.f32 %v414, 0.0
      %v447 = vld [vmem:[%s3] sm:$0x3]
      %v448 = vld [vmem:[%s3 + $0x2] sm:$0x3]
      %v449 = vld [vmem:[%s3 + $0x4] sm:$0x3]
      %v450 = vld [vmem:[%s3 + $0x6] sm:$0x3]
      %v451 = vld [vmem:[%s3 + $0x8] sm:$0x3]
      %v452 = vld [vmem:[%s3 + $0xa] sm:$0x3]
      %v453 = vld [vmem:[%s3 + $0xc] sm:$0x3]
      %vm454 = vcmask 15360
      %v456 = vsel %vm454, 0.0, 0
      %v459 = vsel %vm454, %v415, 0
      %v462 = vsel %vm454, %v416, 0
      %v465 = vsel %vm454, %v417, 0
      %v468 = vsel %vm454, %v418, 0
      %v471 = vsel %vm454, %v419, 0
      %v474 = vsel %vm454, %v420, 0
      %v477 = vsel %vm454, %v421, 0
      %v480 = vsel %vm454, %v422, 0
      %v483 = vsel %vm454, %v423, 0
      %v486 = vsel %vm454, %v424, 0
      %v489 = vsel %vm454, %v425, 0
      %v492 = vsel %vm454, %v426, 0
      %v495 = vsel %vm454, %v427, 0
      %v498 = vsel %vm454, %v428, 0
      %v501 = vsel %vm454, %v429, 0
      %v504 = vsel %vm454, %v430, 0
      %v507 = vsel %vm454, %v431, 0
      %v510 = vsel %vm454, %v432, 0
      %v513 = vsel %vm454, %v433, 0
      %v516 = vsel %vm454, %v434, 0
      %v519 = vsel %vm454, %v435, 0
      %v522 = vsel %vm454, %v436, 0
      %v525 = vsel %vm454, %v437, 0
      %v528 = vsel %vm454, %v438, 0
      %v531 = vsel %vm454, %v439, 0
      %v534 = vsel %vm454, %v440, 0
      %v537 = vsel %vm454, %v441, 0
      %v540 = vsel %vm454, %v442, 0
      %vm542 = vcmask 1041408
      %v544 = vsel %vm542, %v448, 0
      %546 = vmatprep.subr.mxu0 0.0
      %547 = vmatpush1.msra.mxu0 %v544
      %548 = vmatprep.subr.mxu0 0.0
      %549 = vmatpush1.msra.mxu0 0.0
      %550 = vmatprep.subr.mxu0 0.0
      %551 = vmatpush1.msra.mxu0 0.0
      %552 = vmatprep.subr.mxu0 0.0
      %553 = vmatpush1.msra.mxu0 0.0
      %554 = vmatprep.subr.mxu0 0.0
      %555 = vmatpush1.msra.mxu0 0.0
      %556 = vmatprep.subr.mxu0 0.0
      %557 = vmatpush1.msra.mxu0 0.0
      %558 = vmatprep.subr.mxu0 0.0
      %559 = vmatpush1.msra.mxu0 0.0
      %560 = vmatprep.subr.mxu0 0.0
      %561 = vmatpush1.msra.mxu0 0.0
      %562 = vmatprep.subr.mxu0 0.0
      %563 = vmatpush1.msra.mxu0 0.0
      %564 = vmatprep.subr.mxu0 0.0
      %565 = vmatpush1.msra.mxu0 0.0
      %566 = vmatprep.subr.mxu0 0.0
      %567 = vmatpush1.msra.mxu0 0.0
      %568 = vmatprep.subr.mxu0 0.0
      %569 = vmatpush1.msra.mxu0 0.0
      %570 = vmatprep.subr.mxu0 0.0
      %571 = vmatpush1.msra.mxu0 0.0
      %572 = vmatprep.subr.mxu0 0.0
      %573 = vmatpush1.msra.mxu0 0.0
      %574 = vmatprep.subr.mxu0 0.0
      %575 = vmatpush1.msra.mxu0 0.0
      %576 = vmatprep.subr.mxu0 0.0
      %577 = vmatpush1.msra.mxu0 0.0
      %578 = vmatprep.subr.mxu0 0.0
      %579 = vmatpush1.msra.mxu0 0.0
      %580 = vmatprep.subr.mxu0 0.0
      %581 = vmatpush1.msra.mxu0 0.0
      %582 = vmatprep.subr.mxu0 0.0
      %583 = vmatpush1.msra.mxu0 0.0
      %584 = vmatprep.subr.mxu0 0.0
      %585 = vmatpush1.msra.mxu0 0.0
      %586 = vmatprep.subr.mxu0 0.0
      %587 = vmatpush1.msra.mxu0 0.0
      %588 = vmatprep.subr.mxu0 0.0
      %589 = vmatpush1.msra.mxu0 0.0
      %590 = vmatprep.subr.mxu0 0.0
      %591 = vmatpush1.msra.mxu0 0.0
      %592 = vmatprep.subr.mxu0 0.0
      %593 = vmatpush1.msra.mxu0 0.0
      %594 = vmatprep.subr.mxu0 0.0
      %595 = vmatpush1.msra.mxu0 0.0
      %596 = vmatprep.subr.mxu0 0.0
      %597 = vmatpush1.msra.mxu0 0.0
      %598 = vmatprep.subr.mxu0 0.0
      %599 = vmatpush1.msra.mxu0 0.0
      %600 = vmatprep.subr.mxu0 0.0
      %601 = vmatpush1.msra.mxu0 0.0
      %602 = vmatprep.subr.mxu0 0.0
      %603 = vmatpush1.msra.mxu0 0.0
      %604 = vmatprep.subr.mxu0 0.0
      %605 = vmatpush1.msra.mxu0 0.0
      %606 = vmatprep.subr.mxu0 0.0
      %607 = vmatpush1.msra.mxu0 0.0
      %608 = vmatprep.subr.mxu0 0.0
      %609 = vmatpush1.msra.mxu0 0.0
      %610 = vmatprep.mubr.f32.mxu0 0.0
      %611 = vmatmul.mubr.f32.gmra.mrb[0].mxu0 %v456
      %v612 = vpop.f32.mrb[0].mxu0
      %v613 = vadd.f32 0.0, %v612
      %v614 = vpop.f32.mrb[0].mxu0
      %615 = vmatprep.mubr.f32.mxu0 0.0
      %616 = vmatmul.mubr.f32.gmra.mrb[0].mxu0 %v456
      %v617 = vpop.f32.mrb[0].mxu0
      %v618 = vadd.f32 0.0, %v617
      %v619 = vpop.f32.mrb[0].mxu0
      %620 = vmatprep.mubr.f32.mxu0 0.0
      %621 = vmatmul.mubr.f32.gmra.mrb[0].mxu0 %v456
      %v622 = vpop.f32.mrb[0].mxu0
      %v623 = vadd.f32 0.0, %v622
      %v624 = vpop.f32.mrb[0].mxu0
      %625 = vmatprep.mubr.f32.mxu0 0.0
      %626 = vmatmul.mubr.f32.gmra.mrb[0].mxu0 %v456
      %v627 = vpop.f32.mrb[0].mxu0
      %v628 = vadd.f32 0.0, %v627
      %v629 = vpop.f32.mrb[0].mxu0
      %630 = vmatprep.mubr.f32.mxu0 0.0
      %631 = vmatmul.mubr.f32.gmra.mrb[0].mxu0 %v459
      %v632 = vpop.f32.mrb[0].mxu0
      %v633 = vadd.f32 0.0, %v632
      %v634 = vpop.f32.mrb[0].mxu0
      %635 = vmatprep.mubr.f32.mxu0 0.0
      %636 = vmatmul.mubr.f32.gmra.mrb[0].mxu0 %v462
      %v637 = vpop.f32.mrb[0].mxu0
      %v638 = vadd.f32 0.0, %v637
      %v639 = vpop.f32.mrb[0].mxu0
      %640 = vmatprep.mubr.f32.mxu0 0.0
      %641 = vmatmul.mubr.f32.gmra.mrb[0].mxu0 %v465
      %v642 = vpop.f32.mrb[0].mxu0
      %v643 = vadd.f32 0.0, %v642
      %v644 = vpop.f32.mrb[0].mxu0
      %645 = vmatprep.mubr.f32.mxu0 0.0
      %646 = vmatmul.mubr.f32.gmra.mrb[0].mxu0 %v468
      %v647 = vpop.f32.mrb[0].mxu0
      %v648 = vadd.f32 0.0, %v647
      %v649 = vpop.f32.mrb[0].mxu0
      %650 = vmatprep.mubr.f32.mxu0 0.0
      %651 = vmatmul.mubr.f32.gmra.mrb[0].mxu0 %v471
      %v652 = vpop.f32.mrb[0].mxu0
      %v653 = vadd.f32 0.0, %v652
      %v654 = vpop.f32.mrb[0].mxu0
      %655 = vmatprep.mubr.f32.mxu0 0.0
      %656 = vmatmul.mubr.f32.gmra.mrb[0].mxu0 %v474
      %v657 = vpop.f32.mrb[0].mxu0
      %v658 = vadd.f32 0.0, %v657
      %v659 = vpop.f32.mrb[0].mxu0
      %660 = vmatprep.mubr.f32.mxu0 0.0
      %661 = vmatmul.mubr.f32.gmra.mrb[0].mxu0 %v477
      %v662 = vpop.f32.mrb[0].mxu0
      %v663 = vadd.f32 0.0, %v662
      %v664 = vpop.f32.mrb[0].mxu0
      %665 = vmatprep.mubr.f32.mxu0 0.0
      %666 = vmatmul.mubr.f32.gmra.mrb[0].mxu0 %v480
      %v667 = vpop.f32.mrb[0].mxu0
      %v668 = vadd.f32 0.0, %v667
      %v669 = vpop.f32.mrb[0].mxu0
      %670 = vmatprep.mubr.f32.mxu0 0.0
      %671 = vmatmul.mubr.f32.gmra.mrb[0].mxu0 %v483
      %v672 = vpop.f32.mrb[0].mxu0
      %v673 = vadd.f32 0.0, %v672
      %v674 = vpop.f32.mrb[0].mxu0
      %675 = vmatprep.mubr.f32.mxu0 0.0
      %676 = vmatmul.mubr.f32.gmra.mrb[0].mxu0 %v486
      %v677 = vpop.f32.mrb[0].mxu0
      %v678 = vadd.f32 0.0, %v677
      %v679 = vpop.f32.mrb[0].mxu0
      %680 = vmatprep.mubr.f32.mxu0 0.0
      %681 = vmatmul.mubr.f32.gmra.mrb[0].mxu0 %v489
      %v682 = vpop.f32.mrb[0].mxu0
      %v683 = vadd.f32 0.0, %v682
      %v684 = vpop.f32.mrb[0].mxu0
      %685 = vmatprep.mubr.f32.mxu0 0.0
      %686 = vmatmul.mubr.f32.gmra.mrb[0].mxu0 %v492
      %v687 = vpop.f32.mrb[0].mxu0
      %v688 = vadd.f32 0.0, %v687
      %v689 = vpop.f32.mrb[0].mxu0
      %690 = vmatprep.mubr.f32.mxu0 0.0
      %691 = vmatmul.mubr.f32.gmra.mrb[0].mxu0 %v495
      %v692 = vpop.f32.mrb[0].mxu0
      %v693 = vadd.f32 0.0, %v692
      %v694 = vpop.f32.mrb[0].mxu0
      %695 = vmatprep.mubr.f32.mxu0 0.0
      %696 = vmatmul.mubr.f32.gmra.mrb[0].mxu0 %v498
      %v697 = vpop.f32.mrb[0].mxu0
      %v698 = vadd.f32 0.0, %v697
      %v699 = vpop.f32.mrb[0].mxu0
      %700 = vmatprep.mubr.f32.mxu0 0.0
      %701 = vmatmul.mubr.f32.gmra.mrb[0].mxu0 %v501
      %v702 = vpop.f32.mrb[0].mxu0
      %v703 = vadd.f32 0.0, %v702
      %v704 = vpop.f32.mrb[0].mxu0
      %705 = vmatprep.mubr.f32.mxu0 0.0
      %706 = vmatmul.mubr.f32.gmra.mrb[0].mxu0 %v504
      %v707 = vpop.f32.mrb[0].mxu0
      %v708 = vadd.f32 0.0, %v707
      %v709 = vpop.f32.mrb[0].mxu0
      %710 = vmatprep.mubr.f32.mxu0 0.0
      %711 = vmatmul.mubr.f32.gmra.mrb[0].mxu0 %v507
      %v712 = vpop.f32.mrb[0].mxu0
      %v713 = vadd.f32 0.0, %v712
      %v714 = vpop.f32.mrb[0].mxu0
      %715 = vmatprep.mubr.f32.mxu0 0.0
      %716 = vmatmul.mubr.f32.gmra.mrb[0].mxu0 %v510
      %v717 = vpop.f32.mrb[0].mxu0
      %v718 = vadd.f32 0.0, %v717
      %v719 = vpop.f32.mrb[0].mxu0
      %720 = vmatprep.mubr.f32.mxu0 0.0
      %721 = vmatmul.mubr.f32.gmra.mrb[0].mxu0 %v513
      %v722 = vpop.f32.mrb[0].mxu0
      %v723 = vadd.f32 0.0, %v722
      %v724 = vpop.f32.mrb[0].mxu0
      %725 = vmatprep.mubr.f32.mxu0 0.0
      %726 = vmatmul.mubr.f32.gmra.mrb[0].mxu0 %v516
      %v727 = vpop.f32.mrb[0].mxu0
      %v728 = vadd.f32 0.0, %v727
      %v729 = vpop.f32.mrb[0].mxu0
      %730 = vmatprep.mubr.f32.mxu0 0.0
      %731 = vmatmul.mubr.f32.gmra.mrb[0].mxu0 %v519
      %v732 = vpop.f32.mrb[0].mxu0
      %v733 = vadd.f32 0.0, %v732
      %v734 = vpop.f32.mrb[0].mxu0
      %735 = vmatprep.mubr.f32.mxu0 0.0
      %736 = vmatmul.mubr.f32.gmra.mrb[0].mxu0 %v522
      %v737 = vpop.f32.mrb[0].mxu0
      %v738 = vadd.f32 0.0, %v737
      %v739 = vpop.f32.mrb[0].mxu0
      %740 = vmatprep.mubr.f32.mxu0 0.0
      %741 = vmatmul.mubr.f32.gmra.mrb[0].mxu0 %v525
      %v742 = vpop.f32.mrb[0].mxu0
      %v743 = vadd.f32 0.0, %v742
      %v744 = vpop.f32.mrb[0].mxu0
      %745 = vmatprep.mubr.f32.mxu0 0.0
      %746 = vmatmul.mubr.f32.gmra.mrb[0].mxu0 %v528
      %v747 = vpop.f32.mrb[0].mxu0
      %v748 = vadd.f32 0.0, %v747
      %v749 = vpop.f32.mrb[0].mxu0
      %750 = vmatprep.mubr.f32.mxu0 0.0
      %751 = vmatmul.mubr.f32.gmra.mrb[0].mxu0 %v531
      %v752 = vpop.f32.mrb[0].mxu0
      %v753 = vadd.f32 0.0, %v752
      %v754 = vpop.f32.mrb[0].mxu0
      %755 = vmatprep.mubr.f32.mxu0 0.0
      %756 = vmatmul.mubr.f32.gmra.mrb[0].mxu0 %v534
      %v757 = vpop.f32.mrb[0].mxu0
      %v758 = vadd.f32 0.0, %v757
      %v759 = vpop.f32.mrb[0].mxu0
      %760 = vmatprep.mubr.f32.mxu0 0.0
      %761 = vmatmul.mubr.f32.gmra.mrb[0].mxu0 %v537
      %v762 = vpop.f32.mrb[0].mxu0
      %v763 = vadd.f32 0.0, %v762
      %v764 = vpop.f32.mrb[0].mxu0
      %765 = vmatprep.mubr.f32.mxu0 0.0
      %766 = vmatmul.mubr.f32.gmra.mrb[0].mxu0 %v540
      %v767 = vpop.f32.mrb[0].mxu0
      %v768 = vadd.f32 0.0, %v767
      %v769 = vpop.f32.mrb[0].mxu0
      %770 = vdwg.mxu0
      %v772 = vsel %vm542, %v447, 0
      %774 = vmatprep.subr.mxu0 0.0
      %775 = vmatpush1.msra.mxu0 %v772
      %776 = vmatprep.subr.mxu0 0.0
      %777 = vmatpush1.msra.mxu0 0.0
      %778 = vmatprep.subr.mxu0 0.0
      %779 = vmatpush1.msra.mxu0 0.0
      %780 = vmatprep.subr.mxu0 0.0
      %781 = vmatpush1.msra.mxu0 0.0
      %782 = vmatprep.subr.mxu0 0.0
      %783 = vmatpush1.msra.mxu0 0.0
      %784 = vmatprep.subr.mxu0 0.0
      %785 = vmatpush1.msra.mxu0 0.0
      %786 = vmatprep.subr.mxu0 0.0
      %787 = vmatpush1.msra.mxu0 0.0
      %788 = vmatprep.subr.mxu0 0.0
      %789 = vmatpush1.msra.mxu0 0.0
      %790 = vmatprep.subr.mxu0 0.0
      %791 = vmatpush1.msra.mxu0 0.0
      %792 = vmatprep.subr.mxu0 0.0
      %793 = vmatpush1.msra.mxu0 0.0
      %794 = vmatprep.subr.mxu0 0.0
      %795 = vmatpush1.msra.mxu0 0.0
      %796 = vmatprep.subr.mxu0 0.0
      %797 = vmatpush1.msra.mxu0 0.0
      %798 = vmatprep.subr.mxu0 0.0
      %799 = vmatpush1.msra.mxu0 0.0
      %800 = vmatprep.subr.mxu0 0.0
      %801 = vmatpush1.msra.mxu0 0.0
      %802 = vmatprep.subr.mxu0 0.0
      %803 = vmatpush1.msra.mxu0 0.0
      %804 = vmatprep.subr.mxu0 0.0
      %805 = vmatpush1.msra.mxu0 0.0
      %806 = vmatprep.subr.mxu0 0.0
      %807 = vmatpush1.msra.mxu0 0.0
      %808 = vmatprep.subr.mxu0 0.0
      %809 = vmatpush1.msra.mxu0 0.0
      %810 = vmatprep.subr.mxu0 0.0
      %811 = vmatpush1.msra.mxu0 0.0
      %812 = vmatprep.subr.mxu0 0.0
      %813 = vmatpush1.msra.mxu0 0.0
      %814 = vmatprep.subr.mxu0 0.0
      %815 = vmatpush1.msra.mxu0 0.0
      %816 = vmatprep.subr.mxu0 0.0
      %817 = vmatpush1.msra.mxu0 0.0
      %818 = vmatprep.subr.mxu0 0.0
      %819 = vmatpush1.msra.mxu0 0.0
      %820 = vmatprep.subr.mxu0 0.0
      %821 = vmatpush1.msra.mxu0 0.0
      %822 = vmatprep.subr.mxu0 0.0
      %823 = vmatpush1.msra.mxu0 0.0
      %824 = vmatprep.subr.mxu0 0.0
      %825 = vmatpush1.msra.mxu0 0.0
      %826 = vmatprep.subr.mxu0 0.0
      %827 = vmatpush1.msra.mxu0 0.0
      %828 = vmatprep.subr.mxu0 0.0
      %829 = vmatpush1.msra.mxu0 0.0
      %830 = vmatprep.subr.mxu0 0.0
      %831 = vmatpush1.msra.mxu0 0.0
      %832 = vmatprep.subr.mxu0 0.0
      %833 = vmatpush1.msra.mxu0 0.0
      %834 = vmatprep.subr.mxu0 0.0
      %835 = vmatpush1.msra.mxu0 0.0
      %836 = vmatprep.subr.mxu0 0.0
      %837 = vmatpush1.msra.mxu0 0.0
      %838 = vmatprep.mubr.f32.mxu0 0.0
      %839 = vmatmul.mubr.f32.gmra.mrb[0].mxu0 %v456
      %v840 = vpop.f32.mrb[0].mxu0
      %v841 = vadd.f32 %v613, %v840
      %v842 = vpop.f32.mrb[0].mxu0
      %843 = vmatprep.mubr.f32.mxu0 0.0
      %844 = vmatmul.mubr.f32.gmra.mrb[0].mxu0 %v456
      %v845 = vpop.f32.mrb[0].mxu0
      %v846 = vadd.f32 %v618, %v845
      %v847 = vpop.f32.mrb[0].mxu0
      %848 = vmatprep.mubr.f32.mxu0 0.0
      %849 = vmatmul.mubr.f32.gmra.mrb[0].mxu0 %v456
      %v850 = vpop.f32.mrb[0].mxu0
      %v851 = vadd.f32 %v623, %v850
      %v852 = vpop.f32.mrb[0].mxu0
      %853 = vmatprep.mubr.f32.mxu0 0.0
      %854 = vmatmul.mubr.f32.gmra.mrb[0].mxu0 %v456
      %v855 = vpop.f32.mrb[0].mxu0
      %v856 = vadd.f32 %v628, %v855
      %v857 = vpop.f32.mrb[0].mxu0
      %858 = vmatprep.mubr.f32.mxu0 0.0
      %859 = vmatmul.mubr.f32.gmra.mrb[0].mxu0 %v456
      %v860 = vpop.f32.mrb[0].mxu0
      %v861 = vadd.f32 %v633, %v860
      %v862 = vpop.f32.mrb[0].mxu0
      %863 = vmatprep.mubr.f32.mxu0 0.0
      %864 = vmatmul.mubr.f32.gmra.mrb[0].mxu0 %v456
      %v865 = vpop.f32.mrb[0].mxu0
      %v866 = vadd.f32 %v638, %v865
      %v867 = vpop.f32.mrb[0].mxu0
      %868 = vmatprep.mubr.f32.mxu0 0.0
      %869 = vmatmul.mubr.f32.gmra.mrb[0].mxu0 %v459
      %v870 = vpop.f32.mrb[0].mxu0
      %v871 = vadd.f32 %v643, %v870
      %v872 = vpop.f32.mrb[0].mxu0
      %873 = vmatprep.mubr.f32.mxu0 0.0
      %874 = vmatmul.mubr.f32.gmra.mrb[0].mxu0 %v462
      %v875 = vpop.f32.mrb[0].mxu0
      %v876 = vadd.f32 %v648, %v875
      %v877 = vpop.f32.mrb[0].mxu0
      %878 = vmatprep.mubr.f32.mxu0 0.0
      %879 = vmatmul.mubr.f32.gmra.mrb[0].mxu0 %v465
      %v880 = vpop.f32.mrb[0].mxu0
      %v881 = vadd.f32 %v653, %v880
      %v882 = vpop.f32.mrb[0].mxu0
      %883 = vmatprep.mubr.f32.mxu0 0.0
      %884 = vmatmul.mubr.f32.gmra.mrb[0].mxu0 %v468
      %v885 = vpop.f32.mrb[0].mxu0
      %v886 = vadd.f32 %v658, %v885
      %v887 = vpop.f32.mrb[0].mxu0
      %888 = vmatprep.mubr.f32.mxu0 0.0
      %889 = vmatmul.mubr.f32.gmra.mrb[0].mxu0 %v471
      %v890 = vpop.f32.mrb[0].mxu0
      %v891 = vadd.f32 %v663, %v890
      %v892 = vpop.f32.mrb[0].mxu0
      %893 = vmatprep.mubr.f32.mxu0 0.0
      %894 = vmatmul.mubr.f32.gmra.mrb[0].mxu0 %v474
      %v895 = vpop.f32.mrb[0].mxu0
      %v896 = vadd.f32 %v668, %v895
      %v897 = vpop.f32.mrb[0].mxu0
      %898 = vmatprep.mubr.f32.mxu0 0.0
      %899 = vmatmul.mubr.f32.gmra.mrb[0].mxu0 %v477
      %v900 = vpop.f32.mrb[0].mxu0
      %v901 = vadd.f32 %v673, %v900
      %v902 = vpop.f32.mrb[0].mxu0
      %903 = vmatprep.mubr.f32.mxu0 0.0
      %904 = vmatmul.mubr.f32.gmra.mrb[0].mxu0 %v480
      %v905 = vpop.f32.mrb[0].mxu0
      %v906 = vadd.f32 %v678, %v905
      %v907 = vpop.f32.mrb[0].mxu0
      %908 = vmatprep.mubr.f32.mxu0 0.0
      %909 = vmatmul.mubr.f32.gmra.mrb[0].mxu0 %v483
      %v910 = vpop.f32.mrb[0].mxu0
      %v911 = vadd.f32 %v683, %v910
      %v912 = vpop.f32.mrb[0].mxu0
      %913 = vmatprep.mubr.f32.mxu0 0.0
      %914 = vmatmul.mubr.f32.gmra.mrb[0].mxu0 %v486
      %v915 = vpop.f32.mrb[0].mxu0
      %v916 = vadd.f32 %v688, %v915
      %v917 = vpop.f32.mrb[0].mxu0
      %918 = vmatprep.mubr.f32.mxu0 0.0
      %919 = vmatmul.mubr.f32.gmra.mrb[0].mxu0 %v489
      %v920 = vpop.f32.mrb[0].mxu0
      %v921 = vadd.f32 %v693, %v920
      %v922 = vpop.f32.mrb[0].mxu0
      %923 = vmatprep.mubr.f32.mxu0 0.0
      %924 = vmatmul.mubr.f32.gmra.mrb[0].mxu0 %v492
      %v925 = vpop.f32.mrb[0].mxu0
      %v926 = vadd.f32 %v698, %v925
      %v927 = vpop.f32.mrb[0].mxu0
      %928 = vmatprep.mubr.f32.mxu0 0.0
      %929 = vmatmul.mubr.f32.gmra.mrb[0].mxu0 %v495
      %v930 = vpop.f32.mrb[0].mxu0
      %v931 = vadd.f32 %v703, %v930
      %v932 = vpop.f32.mrb[0].mxu0
      %933 = vmatprep.mubr.f32.mxu0 0.0
      %934 = vmatmul.mubr.f32.gmra.mrb[0].mxu0 %v498
      %v935 = vpop.f32.mrb[0].mxu0
      %v936 = vadd.f32 %v708, %v935
      %v937 = vpop.f32.mrb[0].mxu0
      %938 = vmatprep.mubr.f32.mxu0 0.0
      %939 = vmatmul.mubr.f32.gmra.mrb[0].mxu0 %v501
      %v940 = vpop.f32.mrb[0].mxu0
      %v941 = vadd.f32 %v713, %v940
      %v942 = vpop.f32.mrb[0].mxu0
      %943 = vmatprep.mubr.f32.mxu0 0.0
      %944 = vmatmul.mubr.f32.gmra.mrb[0].mxu0 %v504
      %v945 = vpop.f32.mrb[0].mxu0
      %v946 = vadd.f32 %v718, %v945
      %v947 = vpop.f32.mrb[0].mxu0
      %948 = vmatprep.mubr.f32.mxu0 0.0
      %949 = vmatmul.mubr.f32.gmra.mrb[0].mxu0 %v507
      %v950 = vpop.f32.mrb[0].mxu0
      %v951 = vadd.f32 %v723, %v950
      %v952 = vpop.f32.mrb[0].mxu0
      %953 = vmatprep.mubr.f32.mxu0 0.0
      %954 = vmatmul.mubr.f32.gmra.mrb[0].mxu0 %v510
      %v955 = vpop.f32.mrb[0].mxu0
      %v956 = vadd.f32 %v728, %v955
      %v957 = vpop.f32.mrb[0].mxu0
      %958 = vmatprep.mubr.f32.mxu0 0.0
      %959 = vmatmul.mubr.f32.gmra.mrb[0].mxu0 %v513
      %v960 = vpop.f32.mrb[0].mxu0
      %v961 = vadd.f32 %v733, %v960
      %v962 = vpop.f32.mrb[0].mxu0
      %963 = vmatprep.mubr.f32.mxu0 0.0
      %964 = vmatmul.mubr.f32.gmra.mrb[0].mxu0 %v516
      %v965 = vpop.f32.mrb[0].mxu0
      %v966 = vadd.f32 %v738, %v965
      %v967 = vpop.f32.mrb[0].mxu0
      %968 = vmatprep.mubr.f32.mxu0 0.0
      %969 = vmatmul.mubr.f32.gmra.mrb[0].mxu0 %v519
      %v970 = vpop.f32.mrb[0].mxu0
      %v971 = vadd.f32 %v743, %v970
      %v972 = vpop.f32.mrb[0].mxu0
      %973 = vmatprep.mubr.f32.mxu0 0.0
      %974 = vmatmul.mubr.f32.gmra.mrb[0].mxu0 %v522
      %v975 = vpop.f32.mrb[0].mxu0
      %v976 = vadd.f32 %v748, %v975
      %v977 = vpop.f32.mrb[0].mxu0
      %978 = vmatprep.mubr.f32.mxu0 0.0
      %979 = vmatmul.mubr.f32.gmra.mrb[0].mxu0 %v525
      %v980 = vpop.f32.mrb[0].mxu0
      %v981 = vadd.f32 %v753, %v980
      %v982 = vpop.f32.mrb[0].mxu0
      %983 = vmatprep.mubr.f32.mxu0 0.0
      %984 = vmatmul.mubr.f32.gmra.mrb[0].mxu0 %v528
      %v985 = vpop.f32.mrb[0].mxu0
      %v986 = vadd.f32 %v758, %v985
      %v987 = vpop.f32.mrb[0].mxu0
      %988 = vmatprep.mubr.f32.mxu0 0.0
      %989 = vmatmul.mubr.f32.gmra.mrb[0].mxu0 %v531
      %v990 = vpop.f32.mrb[0].mxu0
      %v991 = vadd.f32 %v763, %v990
      %v992 = vpop.f32.mrb[0].mxu0
      %993 = vmatprep.mubr.f32.mxu0 0.0
      %994 = vmatmul.mubr.f32.gmra.mrb[0].mxu0 %v534
      %v995 = vpop.f32.mrb[0].mxu0
      %v996 = vadd.f32 %v768, %v995
      %v997 = vpop.f32.mrb[0].mxu0
      %998 = vdwg.mxu0
      %v1000 = vsel %vm454, %v443, 0
      %v1003 = vsel %vm454, %v444, 0
      %v1006 = vsel %vm542, %v449, 0
      %1008 = vmatprep.subr.mxu0 0.0
      %1009 = vmatpush1.msra.mxu0 %v1006
      %1010 = vmatprep.subr.mxu0 0.0
      %1011 = vmatpush1.msra.mxu0 0.0
      %1012 = vmatprep.subr.mxu0 0.0
      %1013 = vmatpush1.msra.mxu0 0.0
      %1014 = vmatprep.subr.mxu0 0.0
      %1015 = vmatpush1.msra.mxu0 0.0
      %1016 = vmatprep.subr.mxu0 0.0
      %1017 = vmatpush1.msra.mxu0 0.0
      %1018 = vmatprep.subr.mxu0 0.0
      %1019 = vmatpush1.msra.mxu0 0.0
      %1020 = vmatprep.subr.mxu0 0.0
      %1021 = vmatpush1.msra.mxu0 0.0
      %1022 = vmatprep.subr.mxu0 0.0
      %1023 = vmatpush1.msra.mxu0 0.0
      %1024 = vmatprep.subr.mxu0 0.0
      %1025 = vmatpush1.msra.mxu0 0.0
      %1026 = vmatprep.subr.mxu0 0.0
      %1027 = vmatpush1.msra.mxu0 0.0
      %1028 = vmatprep.subr.mxu0 0.0
      %1029 = vmatpush1.msra.mxu0 0.0
      %1030 = vmatprep.subr.mxu0 0.0
      %1031 = vmatpush1.msra.mxu0 0.0
      %1032 = vmatprep.subr.mxu0 0.0
      %1033 = vmatpush1.msra.mxu0 0.0
      %1034 = vmatprep.subr.mxu0 0.0
      %1035 = vmatpush1.msra.mxu0 0.0
      %1036 = vmatprep.subr.mxu0 0.0
      %1037 = vmatpush1.msra.mxu0 0.0
      %1038 = vmatprep.subr.mxu0 0.0
      %1039 = vmatpush1.msra.mxu0 0.0
      %1040 = vmatprep.subr.mxu0 0.0
      %1041 = vmatpush1.msra.mxu0 0.0
      %1042 = vmatprep.subr.mxu0 0.0
      %1043 = vmatpush1.msra.mxu0 0.0
      %1044 = vmatprep.subr.mxu0 0.0
      %1045 = vmatpush1.msra.mxu0 0.0
      %1046 = vmatprep.subr.mxu0 0.0
      %1047 = vmatpush1.msra.mxu0 0.0
      %1048 = vmatprep.subr.mxu0 0.0
      %1049 = vmatpush1.msra.mxu0 0.0
      %1050 = vmatprep.subr.mxu0 0.0
      %1051 = vmatpush1.msra.mxu0 0.0
      %1052 = vmatprep.subr.mxu0 0.0
      %1053 = vmatpush1.msra.mxu0 0.0
      %1054 = vmatprep.subr.mxu0 0.0
      %1055 = vmatpush1.msra.mxu0 0.0
      %1056 = vmatprep.subr.mxu0 0.0
      %1057 = vmatpush1.msra.mxu0 0.0
      %1058 = vmatprep.subr.mxu0 0.0
      %1059 = vmatpush1.msra.mxu0 0.0
      %1060 = vmatprep.subr.mxu0 0.0
      %1061 = vmatpush1.msra.mxu0 0.0
      %1062 = vmatprep.subr.mxu0 0.0
      %1063 = vmatpush1.msra.mxu0 0.0
      %1064 = vmatprep.subr.mxu0 0.0
      %1065 = vmatpush1.msra.mxu0 0.0
      %1066 = vmatprep.subr.mxu0 0.0
      %1067 = vmatpush1.msra.mxu0 0.0
      %1068 = vmatprep.subr.mxu0 0.0
      %1069 = vmatpush1.msra.mxu0 0.0
      %1070 = vmatprep.subr.mxu0 0.0
      %1071 = vmatpush1.msra.mxu0 0.0
      %1072 = vmatprep.mubr.f32.mxu0 0.0
      %1073 = vmatmul.mubr.f32.gmra.mrb[0].mxu0 %v456
      %v1074 = vpop.f32.mrb[0].mxu0
      %v1075 = vadd.f32 0.0, %v1074
      %v1076 = vpop.f32.mrb[0].mxu0
      %1077 = vmatprep.mubr.f32.mxu0 0.0
      %1078 = vmatmul.mubr.f32.gmra.mrb[0].mxu0 %v456
      %v1079 = vpop.f32.mrb[0].mxu0
      %v1080 = vadd.f32 0.0, %v1079
      %v1081 = vpop.f32.mrb[0].mxu0
      %1082 = vmatprep.mubr.f32.mxu0 0.0
      %1083 = vmatmul.mubr.f32.gmra.mrb[0].mxu0 %v459
      %v1084 = vpop.f32.mrb[0].mxu0
      %v1085 = vadd.f32 0.0, %v1084
      %v1086 = vpop.f32.mrb[0].mxu0
      %1087 = vmatprep.mubr.f32.mxu0 0.0
      %1088 = vmatmul.mubr.f32.gmra.mrb[0].mxu0 %v462
      %v1089 = vpop.f32.mrb[0].mxu0
      %v1090 = vadd.f32 0.0, %v1089
      %v1091 = vpop.f32.mrb[0].mxu0
      %1092 = vmatprep.mubr.f32.mxu0 0.0
      %1093 = vmatmul.mubr.f32.gmra.mrb[0].mxu0 %v465
      %v1094 = vpop.f32.mrb[0].mxu0
      %v1095 = vadd.f32 0.0, %v1094
      %v1096 = vpop.f32.mrb[0].mxu0
      %1097 = vmatprep.mubr.f32.mxu0 0.0
      %1098 = vmatmul.mubr.f32.gmra.mrb[0].mxu0 %v468
      %v1099 = vpop.f32.mrb[0].mxu0
      %v1100 = vadd.f32 0.0, %v1099
      %v1101 = vpop.f32.mrb[0].mxu0
      %1102 = vmatprep.mubr.f32.mxu0 0.0
      %1103 = vmatmul.mubr.f32.gmra.mrb[0].mxu0 %v471
      %v1104 = vpop.f32.mrb[0].mxu0
      %v1105 = vadd.f32 0.0, %v1104
      %v1106 = vpop.f32.mrb[0].mxu0
      %1107 = vmatprep.mubr.f32.mxu0 0.0
      %1108 = vmatmul.mubr.f32.gmra.mrb[0].mxu0 %v474
      %v1109 = vpop.f32.mrb[0].mxu0
      %v1110 = vadd.f32 0.0, %v1109
      %v1111 = vpop.f32.mrb[0].mxu0
      %1112 = vmatprep.mubr.f32.mxu0 0.0
      %1113 = vmatmul.mubr.f32.gmra.mrb[0].mxu0 %v477
      %v1114 = vpop.f32.mrb[0].mxu0
      %v1115 = vadd.f32 0.0, %v1114
      %v1116 = vpop.f32.mrb[0].mxu0
      %1117 = vmatprep.mubr.f32.mxu0 0.0
      %1118 = vmatmul.mubr.f32.gmra.mrb[0].mxu0 %v480
      %v1119 = vpop.f32.mrb[0].mxu0
      %v1120 = vadd.f32 0.0, %v1119
      %v1121 = vpop.f32.mrb[0].mxu0
      %1122 = vmatprep.mubr.f32.mxu0 0.0
      %1123 = vmatmul.mubr.f32.gmra.mrb[0].mxu0 %v483
      %v1124 = vpop.f32.mrb[0].mxu0
      %v1125 = vadd.f32 0.0, %v1124
      %v1126 = vpop.f32.mrb[0].mxu0
      %1127 = vmatprep.mubr.f32.mxu0 0.0
      %1128 = vmatmul.mubr.f32.gmra.mrb[0].mxu0 %v486
      %v1129 = vpop.f32.mrb[0].mxu0
      %v1130 = vadd.f32 0.0, %v1129
      %v1131 = vpop.f32.mrb[0].mxu0
      %1132 = vmatprep.mubr.f32.mxu0 0.0
      %1133 = vmatmul.mubr.f32.gmra.mrb[0].mxu0 %v489
      %v1134 = vpop.f32.mrb[0].mxu0
      %v1135 = vadd.f32 0.0, %v1134
      %v1136 = vpop.f32.mrb[0].mxu0
      %1137 = vmatprep.mubr.f32.mxu0 0.0
      %1138 = vmatmul.mubr.f32.gmra.mrb[0].mxu0 %v492
      %v1139 = vpop.f32.mrb[0].mxu0
      %v1140 = vadd.f32 0.0, %v1139
      %v1141 = vpop.f32.mrb[0].mxu0
      %1142 = vmatprep.mubr.f32.mxu0 0.0
      %1143 = vmatmul.mubr.f32.gmra.mrb[0].mxu0 %v495
      %v1144 = vpop.f32.mrb[0].mxu0
      %v1145 = vadd.f32 0.0, %v1144
      %v1146 = vpop.f32.mrb[0].mxu0
      %1147 = vmatprep.mubr.f32.mxu0 0.0
      %1148 = vmatmul.mubr.f32.gmra.mrb[0].mxu0 %v498
      %v1149 = vpop.f32.mrb[0].mxu0
      %v1150 = vadd.f32 0.0, %v1149
      %v1151 = vpop.f32.mrb[0].mxu0
      %1152 = vmatprep.mubr.f32.mxu0 0.0
      %1153 = vmatmul.mubr.f32.gmra.mrb[0].mxu0 %v501
      %v1154 = vpop.f32.mrb[0].mxu0
      %v1155 = vadd.f32 0.0, %v1154
      %v1156 = vpop.f32.mrb[0].mxu0
      %1157 = vmatprep.mubr.f32.mxu0 0.0
      %1158 = vmatmul.mubr.f32.gmra.mrb[0].mxu0 %v504
      %v1159 = vpop.f32.mrb[0].mxu0
      %v1160 = vadd.f32 0.0, %v1159
      %v1161 = vpop.f32.mrb[0].mxu0
      %1162 = vmatprep.mubr.f32.mxu0 0.0
      %1163 = vmatmul.mubr.f32.gmra.mrb[0].mxu0 %v507
      %v1164 = vpop.f32.mrb[0].mxu0
      %v1165 = vadd.f32 0.0, %v1164
      %v1166 = vpop.f32.mrb[0].mxu0
      %1167 = vmatprep.mubr.f32.mxu0 0.0
      %1168 = vmatmul.mubr.f32.gmra.mrb[0].mxu0 %v510
      %v1169 = vpop.f32.mrb[0].mxu0
      %v1170 = vadd.f32 0.0, %v1169
      %v1171 = vpop.f32.mrb[0].mxu0
      %1172 = vmatprep.mubr.f32.mxu0 0.0
      %1173 = vmatmul.mubr.f32.gmra.mrb[0].mxu0 %v513
      %v1174 = vpop.f32.mrb[0].mxu0
      %v1175 = vadd.f32 0.0, %v1174
      %v1176 = vpop.f32.mrb[0].mxu0
      %1177 = vmatprep.mubr.f32.mxu0 0.0
      %1178 = vmatmul.mubr.f32.gmra.mrb[0].mxu0 %v516
      %v1179 = vpop.f32.mrb[0].mxu0
      %v1180 = vadd.f32 0.0, %v1179
      %v1181 = vpop.f32.mrb[0].mxu0
      %1182 = vmatprep.mubr.f32.mxu0 0.0
      %1183 = vmatmul.mubr.f32.gmra.mrb[0].mxu0 %v519
      %v1184 = vpop.f32.mrb[0].mxu0
      %v1185 = vadd.f32 0.0, %v1184
      %v1186 = vpop.f32.mrb[0].mxu0
      %1187 = vmatprep.mubr.f32.mxu0 0.0
      %1188 = vmatmul.mubr.f32.gmra.mrb[0].mxu0 %v522
      %v1189 = vpop.f32.mrb[0].mxu0
      %v1190 = vadd.f32 0.0, %v1189
      %v1191 = vpop.f32.mrb[0].mxu0
      %1192 = vmatprep.mubr.f32.mxu0 0.0
      %1193 = vmatmul.mubr.f32.gmra.mrb[0].mxu0 %v525
      %v1194 = vpop.f32.mrb[0].mxu0
      %v1195 = vadd.f32 0.0, %v1194
      %v1196 = vpop.f32.mrb[0].mxu0
      %1197 = vmatprep.mubr.f32.mxu0 0.0
      %1198 = vmatmul.mubr.f32.gmra.mrb[0].mxu0 %v528
      %v1199 = vpop.f32.mrb[0].mxu0
      %v1200 = vadd.f32 0.0, %v1199
      %v1201 = vpop.f32.mrb[0].mxu0
      %1202 = vmatprep.mubr.f32.mxu0 0.0
      %1203 = vmatmul.mubr.f32.gmra.mrb[0].mxu0 %v531
      %v1204 = vpop.f32.mrb[0].mxu0
      %v1205 = vadd.f32 0.0, %v1204
      %v1206 = vpop.f32.mrb[0].mxu0
      %1207 = vmatprep.mubr.f32.mxu0 0.0
      %1208 = vmatmul.mubr.f32.gmra.mrb[0].mxu0 %v534
      %v1209 = vpop.f32.mrb[0].mxu0
      %v1210 = vadd.f32 0.0, %v1209
      %v1211 = vpop.f32.mrb[0].mxu0
      %1212 = vmatprep.mubr.f32.mxu0 0.0
      %1213 = vmatmul.mubr.f32.gmra.mrb[0].mxu0 %v537
      %v1214 = vpop.f32.mrb[0].mxu0
      %v1215 = vadd.f32 0.0, %v1214
      %v1216 = vpop.f32.mrb[0].mxu0
      %1217 = vmatprep.mubr.f32.mxu0 0.0
      %1218 = vmatmul.mubr.f32.gmra.mrb[0].mxu0 %v540
      %v1219 = vpop.f32.mrb[0].mxu0
      %v1220 = vadd.f32 0.0, %v1219
      %v1221 = vpop.f32.mrb[0].mxu0
      %1222 = vmatprep.mubr.f32.mxu0 0.0
      %1223 = vmatmul.mubr.f32.gmra.mrb[0].mxu0 %v1000
      %v1224 = vpop.f32.mrb[0].mxu0
      %v1225 = vadd.f32 0.0, %v1224
      %v1226 = vpop.f32.mrb[0].mxu0
      %1227 = vmatprep.mubr.f32.mxu0 0.0
      %1228 = vmatmul.mubr.f32.gmra.mrb[0].mxu0 %v1003
      %v1229 = vpop.f32.mrb[0].mxu0
      %v1230 = vadd.f32 0.0, %v1229
      %v1231 = vpop.f32.mrb[0].mxu0
      %1232 = vdwg.mxu0
      %v1233 = vadd.f32 %v841, %v1075
      %v1234 = vadd.f32 %v846, %v1080
      %v1235 = vadd.f32 %v851, %v1085
      %v1236 = vadd.f32 %v856, %v1090
      %v1237 = vadd.f32 %v861, %v1095
      %v1238 = vadd.f32 %v866, %v1100
      %v1239 = vadd.f32 %v871, %v1105
      %v1240 = vadd.f32 %v876, %v1110
      %v1241 = vadd.f32 %v881, %v1115
      %v1242 = vadd.f32 %v886, %v1120
      %v1243 = vadd.f32 %v891, %v1125
      %v1244 = vadd.f32 %v896, %v1130
      %v1245 = vadd.f32 %v901, %v1135
      %v1246 = vadd.f32 %v906, %v1140
      %v1247 = vadd.f32 %v911, %v1145
      %v1248 = vadd.f32 %v916, %v1150
      %v1249 = vadd.f32 %v921, %v1155
      %v1250 = vadd.f32 %v926, %v1160
      %v1251 = vadd.f32 %v931, %v1165
      %v1252 = vadd.f32 %v936, %v1170
      %v1253 = vadd.f32 %v941, %v1175
      %v1254 = vadd.f32 %v946, %v1180
      %v1255 = vadd.f32 %v951, %v1185
      %v1256 = vadd.f32 %v956, %v1190
      %v1257 = vadd.f32 %v961, %v1195
      %v1258 = vadd.f32 %v966, %v1200
      %v1259 = vadd.f32 %v971, %v1205
      %v1260 = vadd.f32 %v976, %v1210
      %v1261 = vadd.f32 %v981, %v1215
      %v1262 = vadd.f32 %v986, %v1220
      %v1263 = vadd.f32 %v991, %v1225
      %v1264 = vadd.f32 %v996, %v1230
      %v1266 = vsel %vm454, %v445, 0
      %v1269 = vsel %vm454, %v446, 0
      %v1272 = vsel %vm542, %v450, 0
      %1274 = vmatprep.subr.mxu0 0.0
      %1275 = vmatpush1.msra.mxu0 %v1272
      %1276 = vmatprep.subr.mxu0 0.0
      %1277 = vmatpush1.msra.mxu0 0.0
      %1278 = vmatprep.subr.mxu0 0.0
      %1279 = vmatpush1.msra.mxu0 0.0
      %1280 = vmatprep.subr.mxu0 0.0
      %1281 = vmatpush1.msra.mxu0 0.0
      %1282 = vmatprep.subr.mxu0 0.0
      %1283 = vmatpush1.msra.mxu0 0.0
      %1284 = vmatprep.subr.mxu0 0.0
      %1285 = vmatpush1.msra.mxu0 0.0
      %1286 = vmatprep.subr.mxu0 0.0
      %1287 = vmatpush1.msra.mxu0 0.0
      %1288 = vmatprep.subr.mxu0 0.0
      %1289 = vmatpush1.msra.mxu0 0.0
      %1290 = vmatprep.subr.mxu0 0.0
      %1291 = vmatpush1.msra.mxu0 0.0
      %1292 = vmatprep.subr.mxu0 0.0
      %1293 = vmatpush1.msra.mxu0 0.0
      %1294 = vmatprep.subr.mxu0 0.0
      %1295 = vmatpush1.msra.mxu0 0.0
      %1296 = vmatprep.subr.mxu0 0.0
      %1297 = vmatpush1.msra.mxu0 0.0
      %1298 = vmatprep.subr.mxu0 0.0
      %1299 = vmatpush1.msra.mxu0 0.0
      %1300 = vmatprep.subr.mxu0 0.0
      %1301 = vmatpush1.msra.mxu0 0.0
      %1302 = vmatprep.subr.mxu0 0.0
      %1303 = vmatpush1.msra.mxu0 0.0
      %1304 = vmatprep.subr.mxu0 0.0
      %1305 = vmatpush1.msra.mxu0 0.0
      %1306 = vmatprep.subr.mxu0 0.0
      %1307 = vmatpush1.msra.mxu0 0.0
      %1308 = vmatprep.subr.mxu0 0.0
      %1309 = vmatpush1.msra.mxu0 0.0
      %1310 = vmatprep.subr.mxu0 0.0
      %1311 = vmatpush1.msra.mxu0 0.0
      %1312 = vmatprep.subr.mxu0 0.0
      %1313 = vmatpush1.msra.mxu0 0.0
      %1314 = vmatprep.subr.mxu0 0.0
      %1315 = vmatpush1.msra.mxu0 0.0
      %1316 = vmatprep.subr.mxu0 0.0
      %1317 = vmatpush1.msra.mxu0 0.0
      %1318 = vmatprep.subr.mxu0 0.0
      %1319 = vmatpush1.msra.mxu0 0.0
      %1320 = vmatprep.subr.mxu0 0.0
      %1321 = vmatpush1.msra.mxu0 0.0
      %1322 = vmatprep.subr.mxu0 0.0
      %1323 = vmatpush1.msra.mxu0 0.0
      %1324 = vmatprep.subr.mxu0 0.0
      %1325 = vmatpush1.msra.mxu0 0.0
      %1326 = vmatprep.subr.mxu0 0.0
      %1327 = vmatpush1.msra.mxu0 0.0
      %1328 = vmatprep.subr.mxu0 0.0
      %1329 = vmatpush1.msra.mxu0 0.0
      %1330 = vmatprep.subr.mxu0 0.0
      %1331 = vmatpush1.msra.mxu0 0.0
      %1332 = vmatprep.subr.mxu0 0.0
      %1333 = vmatpush1.msra.mxu0 0.0
      %1334 = vmatprep.subr.mxu0 0.0
      %1335 = vmatpush1.msra.mxu0 0.0
      %1336 = vmatprep.subr.mxu0 0.0
      %1337 = vmatpush1.msra.mxu0 0.0
      %1338 = vmatprep.mubr.f32.mxu0 0.0
      %1339 = vmatmul.mubr.f32.gmra.mrb[0].mxu0 %v459
      %v1340 = vpop.f32.mrb[0].mxu0
      %v1341 = vadd.f32 0.0, %v1340
      %v1342 = vpop.f32.mrb[0].mxu0
      %1343 = vmatprep.mubr.f32.mxu0 0.0
      %1344 = vmatmul.mubr.f32.gmra.mrb[0].mxu0 %v462
      %v1345 = vpop.f32.mrb[0].mxu0
      %v1346 = vadd.f32 0.0, %v1345
      %v1347 = vpop.f32.mrb[0].mxu0
      %1348 = vmatprep.mubr.f32.mxu0 0.0
      %1349 = vmatmul.mubr.f32.gmra.mrb[0].mxu0 %v465
      %v1350 = vpop.f32.mrb[0].mxu0
      %v1351 = vadd.f32 0.0, %v1350
      %v1352 = vpop.f32.mrb[0].mxu0
      %1353 = vmatprep.mubr.f32.mxu0 0.0
      %1354 = vmatmul.mubr.f32.gmra.mrb[0].mxu0 %v468
      %v1355 = vpop.f32.mrb[0].mxu0
      %v1356 = vadd.f32 0.0, %v1355
      %v1357 = vpop.f32.mrb[0].mxu0
      %1358 = vmatprep.mubr.f32.mxu0 0.0
      %1359 = vmatmul.mubr.f32.gmra.mrb[0].mxu0 %v471
      %v1360 = vpop.f32.mrb[0].mxu0
      %v1361 = vadd.f32 0.0, %v1360
      %v1362 = vpop.f32.mrb[0].mxu0
      %1363 = vmatprep.mubr.f32.mxu0 0.0
      %1364 = vmatmul.mubr.f32.gmra.mrb[0].mxu0 %v474
      %v1365 = vpop.f32.mrb[0].mxu0
      %v1366 = vadd.f32 0.0, %v1365
      %v1367 = vpop.f32.mrb[0].mxu0
      %1368 = vmatprep.mubr.f32.mxu0 0.0
      %1369 = vmatmul.mubr.f32.gmra.mrb[0].mxu0 %v477
      %v1370 = vpop.f32.mrb[0].mxu0
      %v1371 = vadd.f32 0.0, %v1370
      %v1372 = vpop.f32.mrb[0].mxu0
      %1373 = vmatprep.mubr.f32.mxu0 0.0
      %1374 = vmatmul.mubr.f32.gmra.mrb[0].mxu0 %v480
      %v1375 = vpop.f32.mrb[0].mxu0
      %v1376 = vadd.f32 0.0, %v1375
      %v1377 = vpop.f32.mrb[0].mxu0
      %1378 = vmatprep.mubr.f32.mxu0 0.0
      %1379 = vmatmul.mubr.f32.gmra.mrb[0].mxu0 %v483
      %v1380 = vpop.f32.mrb[0].mxu0
      %v1381 = vadd.f32 0.0, %v1380
      %v1382 = vpop.f32.mrb[0].mxu0
      %1383 = vmatprep.mubr.f32.mxu0 0.0
      %1384 = vmatmul.mubr.f32.gmra.mrb[0].mxu0 %v486
      %v1385 = vpop.f32.mrb[0].mxu0
      %v1386 = vadd.f32 0.0, %v1385
      %v1387 = vpop.f32.mrb[0].mxu0
      %1388 = vmatprep.mubr.f32.mxu0 0.0
      %1389 = vmatmul.mubr.f32.gmra.mrb[0].mxu0 %v489
      %v1390 = vpop.f32.mrb[0].mxu0
      %v1391 = vadd.f32 0.0, %v1390
      %v1392 = vpop.f32.mrb[0].mxu0
      %1393 = vmatprep.mubr.f32.mxu0 0.0
      %1394 = vmatmul.mubr.f32.gmra.mrb[0].mxu0 %v492
      %v1395 = vpop.f32.mrb[0].mxu0
      %v1396 = vadd.f32 0.0, %v1395
      %v1397 = vpop.f32.mrb[0].mxu0
      %1398 = vmatprep.mubr.f32.mxu0 0.0
      %1399 = vmatmul.mubr.f32.gmra.mrb[0].mxu0 %v495
      %v1400 = vpop.f32.mrb[0].mxu0
      %v1401 = vadd.f32 0.0, %v1400
      %v1402 = vpop.f32.mrb[0].mxu0
      %1403 = vmatprep.mubr.f32.mxu0 0.0
      %1404 = vmatmul.mubr.f32.gmra.mrb[0].mxu0 %v498
      %v1405 = vpop.f32.mrb[0].mxu0
      %v1406 = vadd.f32 0.0, %v1405
      %v1407 = vpop.f32.mrb[0].mxu0
      %1408 = vmatprep.mubr.f32.mxu0 0.0
      %1409 = vmatmul.mubr.f32.gmra.mrb[0].mxu0 %v501
      %v1410 = vpop.f32.mrb[0].mxu0
      %v1411 = vadd.f32 0.0, %v1410
      %v1412 = vpop.f32.mrb[0].mxu0
      %1413 = vmatprep.mubr.f32.mxu0 0.0
      %1414 = vmatmul.mubr.f32.gmra.mrb[0].mxu0 %v504
      %v1415 = vpop.f32.mrb[0].mxu0
      %v1416 = vadd.f32 0.0, %v1415
      %v1417 = vpop.f32.mrb[0].mxu0
      %1418 = vmatprep.mubr.f32.mxu0 0.0
      %1419 = vmatmul.mubr.f32.gmra.mrb[0].mxu0 %v507
      %v1420 = vpop.f32.mrb[0].mxu0
      %v1421 = vadd.f32 0.0, %v1420
      %v1422 = vpop.f32.mrb[0].mxu0
      %1423 = vmatprep.mubr.f32.mxu0 0.0
      %1424 = vmatmul.mubr.f32.gmra.mrb[0].mxu0 %v510
      %v1425 = vpop.f32.mrb[0].mxu0
      %v1426 = vadd.f32 0.0, %v1425
      %v1427 = vpop.f32.mrb[0].mxu0
      %1428 = vmatprep.mubr.f32.mxu0 0.0
      %1429 = vmatmul.mubr.f32.gmra.mrb[0].mxu0 %v513
      %v1430 = vpop.f32.mrb[0].mxu0
      %v1431 = vadd.f32 0.0, %v1430
      %v1432 = vpop.f32.mrb[0].mxu0
      %1433 = vmatprep.mubr.f32.mxu0 0.0
      %1434 = vmatmul.mubr.f32.gmra.mrb[0].mxu0 %v516
      %v1435 = vpop.f32.mrb[0].mxu0
      %v1436 = vadd.f32 0.0, %v1435
      %v1437 = vpop.f32.mrb[0].mxu0
      %1438 = vmatprep.mubr.f32.mxu0 0.0
      %1439 = vmatmul.mubr.f32.gmra.mrb[0].mxu0 %v519
      %v1440 = vpop.f32.mrb[0].mxu0
      %v1441 = vadd.f32 0.0, %v1440
      %v1442 = vpop.f32.mrb[0].mxu0
      %1443 = vmatprep.mubr.f32.mxu0 0.0
      %1444 = vmatmul.mubr.f32.gmra.mrb[0].mxu0 %v522
      %v1445 = vpop.f32.mrb[0].mxu0
      %v1446 = vadd.f32 0.0, %v1445
      %v1447 = vpop.f32.mrb[0].mxu0
      %1448 = vmatprep.mubr.f32.mxu0 0.0
      %1449 = vmatmul.mubr.f32.gmra.mrb[0].mxu0 %v525
      %v1450 = vpop.f32.mrb[0].mxu0
      %v1451 = vadd.f32 0.0, %v1450
      %v1452 = vpop.f32.mrb[0].mxu0
      %1453 = vmatprep.mubr.f32.mxu0 0.0
      %1454 = vmatmul.mubr.f32.gmra.mrb[0].mxu0 %v528
      %v1455 = vpop.f32.mrb[0].mxu0
      %v1456 = vadd.f32 0.0, %v1455
      %v1457 = vpop.f32.mrb[0].mxu0
      %1458 = vmatprep.mubr.f32.mxu0 0.0
      %1459 = vmatmul.mubr.f32.gmra.mrb[0].mxu0 %v531
      %v1460 = vpop.f32.mrb[0].mxu0
      %v1461 = vadd.f32 0.0, %v1460
      %v1462 = vpop.f32.mrb[0].mxu0
      %1463 = vmatprep.mubr.f32.mxu0 0.0
      %1464 = vmatmul.mubr.f32.gmra.mrb[0].mxu0 %v534
      %v1465 = vpop.f32.mrb[0].mxu0
      %v1466 = vadd.f32 0.0, %v1465
      %v1467 = vpop.f32.mrb[0].mxu0
      %1468 = vmatprep.mubr.f32.mxu0 0.0
      %1469 = vmatmul.mubr.f32.gmra.mrb[0].mxu0 %v537
      %v1470 = vpop.f32.mrb[0].mxu0
      %v1471 = vadd.f32 0.0, %v1470
      %v1472 = vpop.f32.mrb[0].mxu0
      %1473 = vmatprep.mubr.f32.mxu0 0.0
      %1474 = vmatmul.mubr.f32.gmra.mrb[0].mxu0 %v540
      %v1475 = vpop.f32.mrb[0].mxu0
      %v1476 = vadd.f32 0.0, %v1475
      %v1477 = vpop.f32.mrb[0].mxu0
      %1478 = vmatprep.mubr.f32.mxu0 0.0
      %1479 = vmatmul.mubr.f32.gmra.mrb[0].mxu0 %v1000
      %v1480 = vpop.f32.mrb[0].mxu0
      %v1481 = vadd.f32 0.0, %v1480
      %v1482 = vpop.f32.mrb[0].mxu0
      %1483 = vmatprep.mubr.f32.mxu0 0.0
      %1484 = vmatmul.mubr.f32.gmra.mrb[0].mxu0 %v1003
      %v1485 = vpop.f32.mrb[0].mxu0
      %v1486 = vadd.f32 0.0, %v1485
      %v1487 = vpop.f32.mrb[0].mxu0
      %1488 = vmatprep.mubr.f32.mxu0 0.0
      %1489 = vmatmul.mubr.f32.gmra.mrb[0].mxu0 %v1266
      %v1490 = vpop.f32.mrb[0].mxu0
      %v1491 = vadd.f32 0.0, %v1490
      %v1492 = vpop.f32.mrb[0].mxu0
      %1493 = vmatprep.mubr.f32.mxu0 0.0
      %1494 = vmatmul.mubr.f32.gmra.mrb[0].mxu0 %v1269
      %v1495 = vpop.f32.mrb[0].mxu0
      %v1496 = vadd.f32 0.0, %v1495
      %v1497 = vpop.f32.mrb[0].mxu0
      %1498 = vdwg.mxu0
      %v1499 = vadd.f32 %v1233, %v1341
      %v1500 = vadd.f32 %v1234, %v1346
      %v1501 = vadd.f32 %v1235, %v1351
      %v1502 = vadd.f32 %v1236, %v1356
      %v1503 = vadd.f32 %v1237, %v1361
      %v1504 = vadd.f32 %v1238, %v1366
      %v1505 = vadd.f32 %v1239, %v1371
      %v1506 = vadd.f32 %v1240, %v1376
      %v1507 = vadd.f32 %v1241, %v1381
      %v1508 = vadd.f32 %v1242, %v1386
      %v1509 = vadd.f32 %v1243, %v1391
      %v1510 = vadd.f32 %v1244, %v1396
      %v1511 = vadd.f32 %v1245, %v1401
      %v1512 = vadd.f32 %v1246, %v1406
      %v1513 = vadd.f32 %v1247, %v1411
      %v1514 = vadd.f32 %v1248, %v1416
      %v1515 = vadd.f32 %v1249, %v1421
      %v1516 = vadd.f32 %v1250, %v1426
      %v1517 = vadd.f32 %v1251, %v1431
      %v1518 = vadd.f32 %v1252, %v1436
      %v1519 = vadd.f32 %v1253, %v1441
      %v1520 = vadd.f32 %v1254, %v1446
      %v1521 = vadd.f32 %v1255, %v1451
      %v1522 = vadd.f32 %v1256, %v1456
      %v1523 = vadd.f32 %v1257, %v1461
      %v1524 = vadd.f32 %v1258, %v1466
      %v1525 = vadd.f32 %v1259, %v1471
      %v1526 = vadd.f32 %v1260, %v1476
      %v1527 = vadd.f32 %v1261, %v1481
      %v1528 = vadd.f32 %v1262, %v1486
      %v1529 = vadd.f32 %v1263, %v1491
      %v1530 = vadd.f32 %v1264, %v1496
      %v1532 = vsel %vm542, %v451, 0
      %1534 = vmatprep.subr.mxu0 0.0
      %1535 = vmatpush1.msra.mxu0 %v1532
      %1536 = vmatprep.subr.mxu0 0.0
      %1537 = vmatpush1.msra.mxu0 0.0
      %1538 = vmatprep.subr.mxu0 0.0
      %1539 = vmatpush1.msra.mxu0 0.0
      %1540 = vmatprep.subr.mxu0 0.0
      %1541 = vmatpush1.msra.mxu0 0.0
      %1542 = vmatprep.subr.mxu0 0.0
      %1543 = vmatpush1.msra.mxu0 0.0
      %1544 = vmatprep.subr.mxu0 0.0
      %1545 = vmatpush1.msra.mxu0 0.0
      %1546 = vmatprep.subr.mxu0 0.0
      %1547 = vmatpush1.msra.mxu0 0.0
      %1548 = vmatprep.subr.mxu0 0.0
      %1549 = vmatpush1.msra.mxu0 0.0
      %1550 = vmatprep.subr.mxu0 0.0
      %1551 = vmatpush1.msra.mxu0 0.0
      %1552 = vmatprep.subr.mxu0 0.0
      %1553 = vmatpush1.msra.mxu0 0.0
      %1554 = vmatprep.subr.mxu0 0.0
      %1555 = vmatpush1.msra.mxu0 0.0
      %1556 = vmatprep.subr.mxu0 0.0
      %1557 = vmatpush1.msra.mxu0 0.0
      %1558 = vmatprep.subr.mxu0 0.0
      %1559 = vmatpush1.msra.mxu0 0.0
      %1560 = vmatprep.subr.mxu0 0.0
      %1561 = vmatpush1.msra.mxu0 0.0
      %1562 = vmatprep.subr.mxu0 0.0
      %1563 = vmatpush1.msra.mxu0 0.0
      %1564 = vmatprep.subr.mxu0 0.0
      %1565 = vmatpush1.msra.mxu0 0.0
      %1566 = vmatprep.subr.mxu0 0.0
      %1567 = vmatpush1.msra.mxu0 0.0
      %1568 = vmatprep.subr.mxu0 0.0
      %1569 = vmatpush1.msra.mxu0 0.0
      %1570 = vmatprep.subr.mxu0 0.0
      %1571 = vmatpush1.msra.mxu0 0.0
      %1572 = vmatprep.subr.mxu0 0.0
      %1573 = vmatpush1.msra.mxu0 0.0
      %1574 = vmatprep.subr.mxu0 0.0
      %1575 = vmatpush1.msra.mxu0 0.0
      %1576 = vmatprep.subr.mxu0 0.0
      %1577 = vmatpush1.msra.mxu0 0.0
      %1578 = vmatprep.subr.mxu0 0.0
      %1579 = vmatpush1.msra.mxu0 0.0
      %1580 = vmatprep.subr.mxu0 0.0
      %1581 = vmatpush1.msra.mxu0 0.0
      %1582 = vmatprep.subr.mxu0 0.0
      %1583 = vmatpush1.msra.mxu0 0.0
      %1584 = vmatprep.subr.mxu0 0.0
      %1585 = vmatpush1.msra.mxu0 0.0
      %1586 = vmatprep.subr.mxu0 0.0
      %1587 = vmatpush1.msra.mxu0 0.0
      %1588 = vmatprep.subr.mxu0 0.0
      %1589 = vmatpush1.msra.mxu0 0.0
      %1590 = vmatprep.subr.mxu0 0.0
      %1591 = vmatpush1.msra.mxu0 0.0
      %1592 = vmatprep.subr.mxu0 0.0
      %1593 = vmatpush1.msra.mxu0 0.0
      %1594 = vmatprep.subr.mxu0 0.0
      %1595 = vmatpush1.msra.mxu0 0.0
      %1596 = vmatprep.subr.mxu0 0.0
      %1597 = vmatpush1.msra.mxu0 0.0
      %1598 = vmatprep.mubr.f32.mxu0 0.0
      %1599 = vmatmul.mubr.f32.gmra.mrb[0].mxu0 %v465
      %v1600 = vpop.f32.mrb[0].mxu0
      %v1601 = vadd.f32 0.0, %v1600
      %v1602 = vpop.f32.mrb[0].mxu0
      %1603 = vmatprep.mubr.f32.mxu0 0.0
      %1604 = vmatmul.mubr.f32.gmra.mrb[0].mxu0 %v468
      %v1605 = vpop.f32.mrb[0].mxu0
      %v1606 = vadd.f32 0.0, %v1605
      %v1607 = vpop.f32.mrb[0].mxu0
      %1608 = vmatprep.mubr.f32.mxu0 0.0
      %1609 = vmatmul.mubr.f32.gmra.mrb[0].mxu0 %v471
      %v1610 = vpop.f32.mrb[0].mxu0
      %v1611 = vadd.f32 0.0, %v1610
      %v1612 = vpop.f32.mrb[0].mxu0
      %1613 = vmatprep.mubr.f32.mxu0 0.0
      %1614 = vmatmul.mubr.f32.gmra.mrb[0].mxu0 %v474
      %v1615 = vpop.f32.mrb[0].mxu0
      %v1616 = vadd.f32 0.0, %v1615
      %v1617 = vpop.f32.mrb[0].mxu0
      %1618 = vmatprep.mubr.f32.mxu0 0.0
      %1619 = vmatmul.mubr.f32.gmra.mrb[0].mxu0 %v477
      %v1620 = vpop.f32.mrb[0].mxu0
      %v1621 = vadd.f32 0.0, %v1620
      %v1622 = vpop.f32.mrb[0].mxu0
      %1623 = vmatprep.mubr.f32.mxu0 0.0
      %1624 = vmatmul.mubr.f32.gmra.mrb[0].mxu0 %v480
      %v1625 = vpop.f32.mrb[0].mxu0
      %v1626 = vadd.f32 0.0, %v1625
      %v1627 = vpop.f32.mrb[0].mxu0
      %1628 = vmatprep.mubr.f32.mxu0 0.0
      %1629 = vmatmul.mubr.f32.gmra.mrb[0].mxu0 %v483
      %v1630 = vpop.f32.mrb[0].mxu0
      %v1631 = vadd.f32 0.0, %v1630
      %v1632 = vpop.f32.mrb[0].mxu0
      %1633 = vmatprep.mubr.f32.mxu0 0.0
      %1634 = vmatmul.mubr.f32.gmra.mrb[0].mxu0 %v486
      %v1635 = vpop.f32.mrb[0].mxu0
      %v1636 = vadd.f32 0.0, %v1635
      %v1637 = vpop.f32.mrb[0].mxu0
      %1638 = vmatprep.mubr.f32.mxu0 0.0
      %1639 = vmatmul.mubr.f32.gmra.mrb[0].mxu0 %v489
      %v1640 = vpop.f32.mrb[0].mxu0
      %v1641 = vadd.f32 0.0, %v1640
      %v1642 = vpop.f32.mrb[0].mxu0
      %1643 = vmatprep.mubr.f32.mxu0 0.0
      %1644 = vmatmul.mubr.f32.gmra.mrb[0].mxu0 %v492
      %v1645 = vpop.f32.mrb[0].mxu0
      %v1646 = vadd.f32 0.0, %v1645
      %v1647 = vpop.f32.mrb[0].mxu0
      %1648 = vmatprep.mubr.f32.mxu0 0.0
      %1649 = vmatmul.mubr.f32.gmra.mrb[0].mxu0 %v495
      %v1650 = vpop.f32.mrb[0].mxu0
      %v1651 = vadd.f32 0.0, %v1650
      %v1652 = vpop.f32.mrb[0].mxu0
      %1653 = vmatprep.mubr.f32.mxu0 0.0
      %1654 = vmatmul.mubr.f32.gmra.mrb[0].mxu0 %v498
      %v1655 = vpop.f32.mrb[0].mxu0
      %v1656 = vadd.f32 0.0, %v1655
      %v1657 = vpop.f32.mrb[0].mxu0
      %1658 = vmatprep.mubr.f32.mxu0 0.0
      %1659 = vmatmul.mubr.f32.gmra.mrb[0].mxu0 %v501
      %v1660 = vpop.f32.mrb[0].mxu0
      %v1661 = vadd.f32 0.0, %v1660
      %v1662 = vpop.f32.mrb[0].mxu0
      %1663 = vmatprep.mubr.f32.mxu0 0.0
      %1664 = vmatmul.mubr.f32.gmra.mrb[0].mxu0 %v504
      %v1665 = vpop.f32.mrb[0].mxu0
      %v1666 = vadd.f32 0.0, %v1665
      %v1667 = vpop.f32.mrb[0].mxu0
      %1668 = vmatprep.mubr.f32.mxu0 0.0
      %1669 = vmatmul.mubr.f32.gmra.mrb[0].mxu0 %v507
      %v1670 = vpop.f32.mrb[0].mxu0
      %v1671 = vadd.f32 0.0, %v1670
      %v1672 = vpop.f32.mrb[0].mxu0
      %1673 = vmatprep.mubr.f32.mxu0 0.0
      %1674 = vmatmul.mubr.f32.gmra.mrb[0].mxu0 %v510
      %v1675 = vpop.f32.mrb[0].mxu0
      %v1676 = vadd.f32 0.0, %v1675
      %v1677 = vpop.f32.mrb[0].mxu0
      %1678 = vmatprep.mubr.f32.mxu0 0.0
      %1679 = vmatmul.mubr.f32.gmra.mrb[0].mxu0 %v513
      %v1680 = vpop.f32.mrb[0].mxu0
      %v1681 = vadd.f32 0.0, %v1680
      %v1682 = vpop.f32.mrb[0].mxu0
      %1683 = vmatprep.mubr.f32.mxu0 0.0
      %1684 = vmatmul.mubr.f32.gmra.mrb[0].mxu0 %v516
      %v1685 = vpop.f32.mrb[0].mxu0
      %v1686 = vadd.f32 0.0, %v1685
      %v1687 = vpop.f32.mrb[0].mxu0
      %1688 = vmatprep.mubr.f32.mxu0 0.0
      %1689 = vmatmul.mubr.f32.gmra.mrb[0].mxu0 %v519
      %v1690 = vpop.f32.mrb[0].mxu0
      %v1691 = vadd.f32 0.0, %v1690
      %v1692 = vpop.f32.mrb[0].mxu0
      %1693 = vmatprep.mubr.f32.mxu0 0.0
      %1694 = vmatmul.mubr.f32.gmra.mrb[0].mxu0 %v522
      %v1695 = vpop.f32.mrb[0].mxu0
      %v1696 = vadd.f32 0.0, %v1695
      %v1697 = vpop.f32.mrb[0].mxu0
      %1698 = vmatprep.mubr.f32.mxu0 0.0
      %1699 = vmatmul.mubr.f32.gmra.mrb[0].mxu0 %v525
      %v1700 = vpop.f32.mrb[0].mxu0
      %v1701 = vadd.f32 0.0, %v1700
      %v1702 = vpop.f32.mrb[0].mxu0
      %1703 = vmatprep.mubr.f32.mxu0 0.0
      %1704 = vmatmul.mubr.f32.gmra.mrb[0].mxu0 %v528
      %v1705 = vpop.f32.mrb[0].mxu0
      %v1706 = vadd.f32 0.0, %v1705
      %v1707 = vpop.f32.mrb[0].mxu0
      %1708 = vmatprep.mubr.f32.mxu0 0.0
      %1709 = vmatmul.mubr.f32.gmra.mrb[0].mxu0 %v531
      %v1710 = vpop.f32.mrb[0].mxu0
      %v1711 = vadd.f32 0.0, %v1710
      %v1712 = vpop.f32.mrb[0].mxu0
      %1713 = vmatprep.mubr.f32.mxu0 0.0
      %1714 = vmatmul.mubr.f32.gmra.mrb[0].mxu0 %v534
      %v1715 = vpop.f32.mrb[0].mxu0
      %v1716 = vadd.f32 0.0, %v1715
      %v1717 = vpop.f32.mrb[0].mxu0
      %1718 = vmatprep.mubr.f32.mxu0 0.0
      %1719 = vmatmul.mubr.f32.gmra.mrb[0].mxu0 %v537
      %v1720 = vpop.f32.mrb[0].mxu0
      %v1721 = vadd.f32 0.0, %v1720
      %v1722 = vpop.f32.mrb[0].mxu0
      %1723 = vmatprep.mubr.f32.mxu0 0.0
      %1724 = vmatmul.mubr.f32.gmra.mrb[0].mxu0 %v540
      %v1725 = vpop.f32.mrb[0].mxu0
      %v1726 = vadd.f32 0.0, %v1725
      %v1727 = vpop.f32.mrb[0].mxu0
      %1728 = vmatprep.mubr.f32.mxu0 0.0
      %1729 = vmatmul.mubr.f32.gmra.mrb[0].mxu0 %v1000
      %v1730 = vpop.f32.mrb[0].mxu0
      %v1731 = vadd.f32 0.0, %v1730
      %v1732 = vpop.f32.mrb[0].mxu0
      %1733 = vmatprep.mubr.f32.mxu0 0.0
      %1734 = vmatmul.mubr.f32.gmra.mrb[0].mxu0 %v1003
      %v1735 = vpop.f32.mrb[0].mxu0
      %v1736 = vadd.f32 0.0, %v1735
      %v1737 = vpop.f32.mrb[0].mxu0
      %1738 = vmatprep.mubr.f32.mxu0 0.0
      %1739 = vmatmul.mubr.f32.gmra.mrb[0].mxu0 %v1266
      %v1740 = vpop.f32.mrb[0].mxu0
      %v1741 = vadd.f32 0.0, %v1740
      %v1742 = vpop.f32.mrb[0].mxu0
      %1743 = vmatprep.mubr.f32.mxu0 0.0
      %1744 = vmatmul.mubr.f32.gmra.mrb[0].mxu0 %v1269
      %v1745 = vpop.f32.mrb[0].mxu0
      %v1746 = vadd.f32 0.0, %v1745
      %v1747 = vpop.f32.mrb[0].mxu0
      %1748 = vmatprep.mubr.f32.mxu0 0.0
      %1749 = vmatmul.mubr.f32.gmra.mrb[0].mxu0 %v456
      %v1750 = vpop.f32.mrb[0].mxu0
      %v1751 = vadd.f32 0.0, %v1750
      %v1752 = vpop.f32.mrb[0].mxu0
      %1753 = vmatprep.mubr.f32.mxu0 0.0
      %1754 = vmatmul.mubr.f32.gmra.mrb[0].mxu0 %v456
      %v1755 = vpop.f32.mrb[0].mxu0
      %v1756 = vadd.f32 0.0, %v1755
      %v1757 = vpop.f32.mrb[0].mxu0
      %1758 = vdwg.mxu0
      %v1759 = vadd.f32 %v1499, %v1601
      %v1760 = vadd.f32 %v1500, %v1606
      %v1761 = vadd.f32 %v1501, %v1611
      %v1762 = vadd.f32 %v1502, %v1616
      %v1763 = vadd.f32 %v1503, %v1621
      %v1764 = vadd.f32 %v1504, %v1626
      %v1765 = vadd.f32 %v1505, %v1631
      %v1766 = vadd.f32 %v1506, %v1636
      %v1767 = vadd.f32 %v1507, %v1641
      %v1768 = vadd.f32 %v1508, %v1646
      %v1769 = vadd.f32 %v1509, %v1651
      %v1770 = vadd.f32 %v1510, %v1656
      %v1771 = vadd.f32 %v1511, %v1661
      %v1772 = vadd.f32 %v1512, %v1666
      %v1773 = vadd.f32 %v1513, %v1671
      %v1774 = vadd.f32 %v1514, %v1676
      %v1775 = vadd.f32 %v1515, %v1681
      %v1776 = vadd.f32 %v1516, %v1686
      %v1777 = vadd.f32 %v1517, %v1691
      %v1778 = vadd.f32 %v1518, %v1696
      %v1779 = vadd.f32 %v1519, %v1701
      %v1780 = vadd.f32 %v1520, %v1706
      %v1781 = vadd.f32 %v1521, %v1711
      %v1782 = vadd.f32 %v1522, %v1716
      %v1783 = vadd.f32 %v1523, %v1721
      %v1784 = vadd.f32 %v1524, %v1726
      %v1785 = vadd.f32 %v1525, %v1731
      %v1786 = vadd.f32 %v1526, %v1736
      %v1787 = vadd.f32 %v1527, %v1741
      %v1788 = vadd.f32 %v1528, %v1746
      %v1789 = vadd.f32 %v1529, %v1751
      %v1790 = vadd.f32 %v1530, %v1756
      %v1792 = vsel %vm542, %v452, 0
      %1794 = vmatprep.subr.mxu0 0.0
      %1795 = vmatpush1.msra.mxu0 %v1792
      %1796 = vmatprep.subr.mxu0 0.0
      %1797 = vmatpush1.msra.mxu0 0.0
      %1798 = vmatprep.subr.mxu0 0.0
      %1799 = vmatpush1.msra.mxu0 0.0
      %1800 = vmatprep.subr.mxu0 0.0
      %1801 = vmatpush1.msra.mxu0 0.0
      %1802 = vmatprep.subr.mxu0 0.0
      %1803 = vmatpush1.msra.mxu0 0.0
      %1804 = vmatprep.subr.mxu0 0.0
      %1805 = vmatpush1.msra.mxu0 0.0
      %1806 = vmatprep.subr.mxu0 0.0
      %1807 = vmatpush1.msra.mxu0 0.0
      %1808 = vmatprep.subr.mxu0 0.0
      %1809 = vmatpush1.msra.mxu0 0.0
      %1810 = vmatprep.subr.mxu0 0.0
      %1811 = vmatpush1.msra.mxu0 0.0
      %1812 = vmatprep.subr.mxu0 0.0
      %1813 = vmatpush1.msra.mxu0 0.0
      %1814 = vmatprep.subr.mxu0 0.0
      %1815 = vmatpush1.msra.mxu0 0.0
      %1816 = vmatprep.subr.mxu0 0.0
      %1817 = vmatpush1.msra.mxu0 0.0
      %1818 = vmatprep.subr.mxu0 0.0
      %1819 = vmatpush1.msra.mxu0 0.0
      %1820 = vmatprep.subr.mxu0 0.0
      %1821 = vmatpush1.msra.mxu0 0.0
      %1822 = vmatprep.subr.mxu0 0.0
      %1823 = vmatpush1.msra.mxu0 0.0
      %1824 = vmatprep.subr.mxu0 0.0
      %1825 = vmatpush1.msra.mxu0 0.0
      %1826 = vmatprep.subr.mxu0 0.0
      %1827 = vmatpush1.msra.mxu0 0.0
      %1828 = vmatprep.subr.mxu0 0.0
      %1829 = vmatpush1.msra.mxu0 0.0
      %1830 = vmatprep.subr.mxu0 0.0
      %1831 = vmatpush1.msra.mxu0 0.0
      %1832 = vmatprep.subr.mxu0 0.0
      %1833 = vmatpush1.msra.mxu0 0.0
      %1834 = vmatprep.subr.mxu0 0.0
      %1835 = vmatpush1.msra.mxu0 0.0
      %1836 = vmatprep.subr.mxu0 0.0
      %1837 = vmatpush1.msra.mxu0 0.0
      %1838 = vmatprep.subr.mxu0 0.0
      %1839 = vmatpush1.msra.mxu0 0.0
      %1840 = vmatprep.subr.mxu0 0.0
      %1841 = vmatpush1.msra.mxu0 0.0
      %1842 = vmatprep.subr.mxu0 0.0
      %1843 = vmatpush1.msra.mxu0 0.0
      %1844 = vmatprep.subr.mxu0 0.0
      %1845 = vmatpush1.msra.mxu0 0.0
      %1846 = vmatprep.subr.mxu0 0.0
      %1847 = vmatpush1.msra.mxu0 0.0
      %1848 = vmatprep.subr.mxu0 0.0
      %1849 = vmatpush1.msra.mxu0 0.0
      %1850 = vmatprep.subr.mxu0 0.0
      %1851 = vmatpush1.msra.mxu0 0.0
      %1852 = vmatprep.subr.mxu0 0.0
      %1853 = vmatpush1.msra.mxu0 0.0
      %1854 = vmatprep.subr.mxu0 0.0
      %1855 = vmatpush1.msra.mxu0 0.0
      %1856 = vmatprep.subr.mxu0 0.0
      %1857 = vmatpush1.msra.mxu0 0.0
      %1858 = vmatprep.mubr.f32.mxu0 0.0
      %1859 = vmatmul.mubr.f32.gmra.mrb[0].mxu0 %v471
      %v1860 = vpop.f32.mrb[0].mxu0
      %v1861 = vadd.f32 0.0, %v1860
      %v1862 = vpop.f32.mrb[0].mxu0
      %1863 = vmatprep.mubr.f32.mxu0 0.0
      %1864 = vmatmul.mubr.f32.gmra.mrb[0].mxu0 %v474
      %v1865 = vpop.f32.mrb[0].mxu0
      %v1866 = vadd.f32 0.0, %v1865
      %v1867 = vpop.f32.mrb[0].mxu0
      %1868 = vmatprep.mubr.f32.mxu0 0.0
      %1869 = vmatmul.mubr.f32.gmra.mrb[0].mxu0 %v477
      %v1870 = vpop.f32.mrb[0].mxu0
      %v1871 = vadd.f32 0.0, %v1870
      %v1872 = vpop.f32.mrb[0].mxu0
      %1873 = vmatprep.mubr.f32.mxu0 0.0
      %1874 = vmatmul.mubr.f32.gmra.mrb[0].mxu0 %v480
      %v1875 = vpop.f32.mrb[0].mxu0
      %v1876 = vadd.f32 0.0, %v1875
      %v1877 = vpop.f32.mrb[0].mxu0
      %1878 = vmatprep.mubr.f32.mxu0 0.0
      %1879 = vmatmul.mubr.f32.gmra.mrb[0].mxu0 %v483
      %v1880 = vpop.f32.mrb[0].mxu0
      %v1881 = vadd.f32 0.0, %v1880
      %v1882 = vpop.f32.mrb[0].mxu0
      %1883 = vmatprep.mubr.f32.mxu0 0.0
      %1884 = vmatmul.mubr.f32.gmra.mrb[0].mxu0 %v486
      %v1885 = vpop.f32.mrb[0].mxu0
      %v1886 = vadd.f32 0.0, %v1885
      %v1887 = vpop.f32.mrb[0].mxu0
      %1888 = vmatprep.mubr.f32.mxu0 0.0
      %1889 = vmatmul.mubr.f32.gmra.mrb[0].mxu0 %v489
      %v1890 = vpop.f32.mrb[0].mxu0
      %v1891 = vadd.f32 0.0, %v1890
      %v1892 = vpop.f32.mrb[0].mxu0
      %1893 = vmatprep.mubr.f32.mxu0 0.0
      %1894 = vmatmul.mubr.f32.gmra.mrb[0].mxu0 %v492
      %v1895 = vpop.f32.mrb[0].mxu0
      %v1896 = vadd.f32 0.0, %v1895
      %v1897 = vpop.f32.mrb[0].mxu0
      %1898 = vmatprep.mubr.f32.mxu0 0.0
      %1899 = vmatmul.mubr.f32.gmra.mrb[0].mxu0 %v495
      %v1900 = vpop.f32.mrb[0].mxu0
      %v1901 = vadd.f32 0.0, %v1900
      %v1902 = vpop.f32.mrb[0].mxu0
      %1903 = vmatprep.mubr.f32.mxu0 0.0
      %1904 = vmatmul.mubr.f32.gmra.mrb[0].mxu0 %v498
      %v1905 = vpop.f32.mrb[0].mxu0
      %v1906 = vadd.f32 0.0, %v1905
      %v1907 = vpop.f32.mrb[0].mxu0
      %1908 = vmatprep.mubr.f32.mxu0 0.0
      %1909 = vmatmul.mubr.f32.gmra.mrb[0].mxu0 %v501
      %v1910 = vpop.f32.mrb[0].mxu0
      %v1911 = vadd.f32 0.0, %v1910
      %v1912 = vpop.f32.mrb[0].mxu0
      %1913 = vmatprep.mubr.f32.mxu0 0.0
      %1914 = vmatmul.mubr.f32.gmra.mrb[0].mxu0 %v504
      %v1915 = vpop.f32.mrb[0].mxu0
      %v1916 = vadd.f32 0.0, %v1915
      %v1917 = vpop.f32.mrb[0].mxu0
      %1918 = vmatprep.mubr.f32.mxu0 0.0
      %1919 = vmatmul.mubr.f32.gmra.mrb[0].mxu0 %v507
      %v1920 = vpop.f32.mrb[0].mxu0
      %v1921 = vadd.f32 0.0, %v1920
      %v1922 = vpop.f32.mrb[0].mxu0
      %1923 = vmatprep.mubr.f32.mxu0 0.0
      %1924 = vmatmul.mubr.f32.gmra.mrb[0].mxu0 %v510
      %v1925 = vpop.f32.mrb[0].mxu0
      %v1926 = vadd.f32 0.0, %v1925
      %v1927 = vpop.f32.mrb[0].mxu0
      %1928 = vmatprep.mubr.f32.mxu0 0.0
      %1929 = vmatmul.mubr.f32.gmra.mrb[0].mxu0 %v513
      %v1930 = vpop.f32.mrb[0].mxu0
      %v1931 = vadd.f32 0.0, %v1930
      %v1932 = vpop.f32.mrb[0].mxu0
      %1933 = vmatprep.mubr.f32.mxu0 0.0
      %1934 = vmatmul.mubr.f32.gmra.mrb[0].mxu0 %v516
      %v1935 = vpop.f32.mrb[0].mxu0
      %v1936 = vadd.f32 0.0, %v1935
      %v1937 = vpop.f32.mrb[0].mxu0
      %1938 = vmatprep.mubr.f32.mxu0 0.0
      %1939 = vmatmul.mubr.f32.gmra.mrb[0].mxu0 %v519
      %v1940 = vpop.f32.mrb[0].mxu0
      %v1941 = vadd.f32 0.0, %v1940
      %v1942 = vpop.f32.mrb[0].mxu0
      %1943 = vmatprep.mubr.f32.mxu0 0.0
      %1944 = vmatmul.mubr.f32.gmra.mrb[0].mxu0 %v522
      %v1945 = vpop.f32.mrb[0].mxu0
      %v1946 = vadd.f32 0.0, %v1945
      %v1947 = vpop.f32.mrb[0].mxu0
      %1948 = vmatprep.mubr.f32.mxu0 0.0
      %1949 = vmatmul.mubr.f32.gmra.mrb[0].mxu0 %v525
      %v1950 = vpop.f32.mrb[0].mxu0
      %v1951 = vadd.f32 0.0, %v1950
      %v1952 = vpop.f32.mrb[0].mxu0
      %1953 = vmatprep.mubr.f32.mxu0 0.0
      %1954 = vmatmul.mubr.f32.gmra.mrb[0].mxu0 %v528
      %v1955 = vpop.f32.mrb[0].mxu0
      %v1956 = vadd.f32 0.0, %v1955
      %v1957 = vpop.f32.mrb[0].mxu0
      %1958 = vmatprep.mubr.f32.mxu0 0.0
      %1959 = vmatmul.mubr.f32.gmra.mrb[0].mxu0 %v531
      %v1960 = vpop.f32.mrb[0].mxu0
      %v1961 = vadd.f32 0.0, %v1960
      %v1962 = vpop.f32.mrb[0].mxu0
      %1963 = vmatprep.mubr.f32.mxu0 0.0
      %1964 = vmatmul.mubr.f32.gmra.mrb[0].mxu0 %v534
      %v1965 = vpop.f32.mrb[0].mxu0
      %v1966 = vadd.f32 0.0, %v1965
      %v1967 = vpop.f32.mrb[0].mxu0
      %1968 = vmatprep.mubr.f32.mxu0 0.0
      %1969 = vmatmul.mubr.f32.gmra.mrb[0].mxu0 %v537
      %v1970 = vpop.f32.mrb[0].mxu0
      %v1971 = vadd.f32 0.0, %v1970
      %v1972 = vpop.f32.mrb[0].mxu0
      %1973 = vmatprep.mubr.f32.mxu0 0.0
      %1974 = vmatmul.mubr.f32.gmra.mrb[0].mxu0 %v540
      %v1975 = vpop.f32.mrb[0].mxu0
      %v1976 = vadd.f32 0.0, %v1975
      %v1977 = vpop.f32.mrb[0].mxu0
      %1978 = vmatprep.mubr.f32.mxu0 0.0
      %1979 = vmatmul.mubr.f32.gmra.mrb[0].mxu0 %v1000
      %v1980 = vpop.f32.mrb[0].mxu0
      %v1981 = vadd.f32 0.0, %v1980
      %v1982 = vpop.f32.mrb[0].mxu0
      %1983 = vmatprep.mubr.f32.mxu0 0.0
      %1984 = vmatmul.mubr.f32.gmra.mrb[0].mxu0 %v1003
      %v1985 = vpop.f32.mrb[0].mxu0
      %v1986 = vadd.f32 0.0, %v1985
      %v1987 = vpop.f32.mrb[0].mxu0
      %1988 = vmatprep.mubr.f32.mxu0 0.0
      %1989 = vmatmul.mubr.f32.gmra.mrb[0].mxu0 %v1266
      %v1990 = vpop.f32.mrb[0].mxu0
      %v1991 = vadd.f32 0.0, %v1990
      %v1992 = vpop.f32.mrb[0].mxu0
      %1993 = vmatprep.mubr.f32.mxu0 0.0
      %1994 = vmatmul.mubr.f32.gmra.mrb[0].mxu0 %v1269
      %v1995 = vpop.f32.mrb[0].mxu0
      %v1996 = vadd.f32 0.0, %v1995
      %v1997 = vpop.f32.mrb[0].mxu0
      %1998 = vmatprep.mubr.f32.mxu0 0.0
      %1999 = vmatmul.mubr.f32.gmra.mrb[0].mxu0 %v456
      %v2000 = vpop.f32.mrb[0].mxu0
      %v2001 = vadd.f32 0.0, %v2000
      %v2002 = vpop.f32.mrb[0].mxu0
      %2003 = vmatprep.mubr.f32.mxu0 0.0
      %2004 = vmatmul.mubr.f32.gmra.mrb[0].mxu0 %v456
      %v2005 = vpop.f32.mrb[0].mxu0
      %v2006 = vadd.f32 0.0, %v2005
      %v2007 = vpop.f32.mrb[0].mxu0
      %2008 = vmatprep.mubr.f32.mxu0 0.0
      %2009 = vmatmul.mubr.f32.gmra.mrb[0].mxu0 %v456
      %v2010 = vpop.f32.mrb[0].mxu0
      %v2011 = vadd.f32 0.0, %v2010
      %v2012 = vpop.f32.mrb[0].mxu0
      %2013 = vmatprep.mubr.f32.mxu0 0.0
      %2014 = vmatmul.mubr.f32.gmra.mrb[0].mxu0 %v456
      %v2015 = vpop.f32.mrb[0].mxu0
      %v2016 = vadd.f32 0.0, %v2015
      %v2017 = vpop.f32.mrb[0].mxu0
      %2018 = vdwg.mxu0
      %v2019 = vadd.f32 %v1759, %v1861
      %v2020 = vadd.f32 %v1760, %v1866
      %v2021 = vadd.f32 %v1761, %v1871
      %v2022 = vadd.f32 %v1762, %v1876
      %v2023 = vadd.f32 %v1763, %v1881
      %v2024 = vadd.f32 %v1764, %v1886
      %v2025 = vadd.f32 %v1765, %v1891
      %v2026 = vadd.f32 %v1766, %v1896
      %v2027 = vadd.f32 %v1767, %v1901
      %v2028 = vadd.f32 %v1768, %v1906
      %v2029 = vadd.f32 %v1769, %v1911
      %v2030 = vadd.f32 %v1770, %v1916
      %v2031 = vadd.f32 %v1771, %v1921
      %v2032 = vadd.f32 %v1772, %v1926
      %v2033 = vadd.f32 %v1773, %v1931
      %v2034 = vadd.f32 %v1774, %v1936
      %v2035 = vadd.f32 %v1775, %v1941
      %v2036 = vadd.f32 %v1776, %v1946
      %v2037 = vadd.f32 %v1777, %v1951
      %v2038 = vadd.f32 %v1778, %v1956
      %v2039 = vadd.f32 %v1779, %v1961
      %v2040 = vadd.f32 %v1780, %v1966
      %v2041 = vadd.f32 %v1781, %v1971
      %v2042 = vadd.f32 %v1782, %v1976
      %v2043 = vadd.f32 %v1783, %v1981
      %v2044 = vadd.f32 %v1784, %v1986
      %v2045 = vadd.f32 %v1785, %v1991
      %v2046 = vadd.f32 %v1786, %v1996
      %v2047 = vadd.f32 %v1787, %v2001
      %v2048 = vadd.f32 %v1788, %v2006
      %v2049 = vadd.f32 %v1789, %v2011
      %v2050 = vadd.f32 %v1790, %v2016
      %v2052 = vsel %vm542, %v453, 0
      %2054 = vmatprep.subr.mxu0 0.0
      %2055 = vmatpush1.msra.mxu0 %v2052
      %2056 = vmatprep.subr.mxu0 0.0
      %2057 = vmatpush1.msra.mxu0 0.0
      %2058 = vmatprep.subr.mxu0 0.0
      %2059 = vmatpush1.msra.mxu0 0.0
      %2060 = vmatprep.subr.mxu0 0.0
      %2061 = vmatpush1.msra.mxu0 0.0
      %2062 = vmatprep.subr.mxu0 0.0
      %2063 = vmatpush1.msra.mxu0 0.0
      %2064 = vmatprep.subr.mxu0 0.0
      %2065 = vmatpush1.msra.mxu0 0.0
      %2066 = vmatprep.subr.mxu0 0.0
      %2067 = vmatpush1.msra.mxu0 0.0
      %2068 = vmatprep.subr.mxu0 0.0
      %2069 = vmatpush1.msra.mxu0 0.0
      %2070 = vmatprep.subr.mxu0 0.0
      %2071 = vmatpush1.msra.mxu0 0.0
      %2072 = vmatprep.subr.mxu0 0.0
      %2073 = vmatpush1.msra.mxu0 0.0
      %2074 = vmatprep.subr.mxu0 0.0
      %2075 = vmatpush1.msra.mxu0 0.0
      %2076 = vmatprep.subr.mxu0 0.0
      %2077 = vmatpush1.msra.mxu0 0.0
      %2078 = vmatprep.subr.mxu0 0.0
      %2079 = vmatpush1.msra.mxu0 0.0
      %2080 = vmatprep.subr.mxu0 0.0
      %2081 = vmatpush1.msra.mxu0 0.0
      %2082 = vmatprep.subr.mxu0 0.0
      %2083 = vmatpush1.msra.mxu0 0.0
      %2084 = vmatprep.subr.mxu0 0.0
      %2085 = vmatpush1.msra.mxu0 0.0
      %2086 = vmatprep.subr.mxu0 0.0
      %2087 = vmatpush1.msra.mxu0 0.0
      %2088 = vmatprep.subr.mxu0 0.0
      %2089 = vmatpush1.msra.mxu0 0.0
      %2090 = vmatprep.subr.mxu0 0.0
      %2091 = vmatpush1.msra.mxu0 0.0
      %2092 = vmatprep.subr.mxu0 0.0
      %2093 = vmatpush1.msra.mxu0 0.0
      %2094 = vmatprep.subr.mxu0 0.0
      %2095 = vmatpush1.msra.mxu0 0.0
      %2096 = vmatprep.subr.mxu0 0.0
      %2097 = vmatpush1.msra.mxu0 0.0
      %2098 = vmatprep.subr.mxu0 0.0
      %2099 = vmatpush1.msra.mxu0 0.0
      %2100 = vmatprep.subr.mxu0 0.0
      %2101 = vmatpush1.msra.mxu0 0.0
      %2102 = vmatprep.subr.mxu0 0.0
      %2103 = vmatpush1.msra.mxu0 0.0
      %2104 = vmatprep.subr.mxu0 0.0
      %2105 = vmatpush1.msra.mxu0 0.0
      %2106 = vmatprep.subr.mxu0 0.0
      %2107 = vmatpush1.msra.mxu0 0.0
      %2108 = vmatprep.subr.mxu0 0.0
      %2109 = vmatpush1.msra.mxu0 0.0
      %2110 = vmatprep.subr.mxu0 0.0
      %2111 = vmatpush1.msra.mxu0 0.0
      %2112 = vmatprep.subr.mxu0 0.0
      %2113 = vmatpush1.msra.mxu0 0.0
      %2114 = vmatprep.subr.mxu0 0.0
      %2115 = vmatpush1.msra.mxu0 0.0
      %2116 = vmatprep.subr.mxu0 0.0
      %2117 = vmatpush1.msra.mxu0 0.0
      %2118 = vmatprep.mubr.f32.mxu0 0.0
      %2119 = vmatmul.mubr.f32.gmra.mrb[0].mxu0 %v477
      %v2120 = vpop.f32.mrb[0].mxu0
      %v2121 = vadd.f32 0.0, %v2120
      %v2122 = vpop.f32.mrb[0].mxu0
      %2123 = vmatprep.mubr.f32.mxu0 0.0
      %2124 = vmatmul.mubr.f32.gmra.mrb[0].mxu0 %v480
      %v2125 = vpop.f32.mrb[0].mxu0
      %v2126 = vadd.f32 0.0, %v2125
      %v2127 = vpop.f32.mrb[0].mxu0
      %2128 = vmatprep.mubr.f32.mxu0 0.0
      %2129 = vmatmul.mubr.f32.gmra.mrb[0].mxu0 %v483
      %v2130 = vpop.f32.mrb[0].mxu0
      %v2131 = vadd.f32 0.0, %v2130
      %v2132 = vpop.f32.mrb[0].mxu0
      %2133 = vmatprep.mubr.f32.mxu0 0.0
      %2134 = vmatmul.mubr.f32.gmra.mrb[0].mxu0 %v486
      %v2135 = vpop.f32.mrb[0].mxu0
      %v2136 = vadd.f32 0.0, %v2135
      %v2137 = vpop.f32.mrb[0].mxu0
      %2138 = vmatprep.mubr.f32.mxu0 0.0
      %2139 = vmatmul.mubr.f32.gmra.mrb[0].mxu0 %v489
      %v2140 = vpop.f32.mrb[0].mxu0
      %v2141 = vadd.f32 0.0, %v2140
      %v2142 = vpop.f32.mrb[0].mxu0
      %2143 = vmatprep.mubr.f32.mxu0 0.0
      %2144 = vmatmul.mubr.f32.gmra.mrb[0].mxu0 %v492
      %v2145 = vpop.f32.mrb[0].mxu0
      %v2146 = vadd.f32 0.0, %v2145
      %v2147 = vpop.f32.mrb[0].mxu0
      %2148 = vmatprep.mubr.f32.mxu0 0.0
      %2149 = vmatmul.mubr.f32.gmra.mrb[0].mxu0 %v495
      %v2150 = vpop.f32.mrb[0].mxu0
      %v2151 = vadd.f32 0.0, %v2150
      %v2152 = vpop.f32.mrb[0].mxu0
      %2153 = vmatprep.mubr.f32.mxu0 0.0
      %2154 = vmatmul.mubr.f32.gmra.mrb[0].mxu0 %v498
      %v2155 = vpop.f32.mrb[0].mxu0
      %v2156 = vadd.f32 0.0, %v2155
      %v2157 = vpop.f32.mrb[0].mxu0
      %2158 = vmatprep.mubr.f32.mxu0 0.0
      %2159 = vmatmul.mubr.f32.gmra.mrb[0].mxu0 %v501
      %v2160 = vpop.f32.mrb[0].mxu0
      %v2161 = vadd.f32 0.0, %v2160
      %v2162 = vpop.f32.mrb[0].mxu0
      %2163 = vmatprep.mubr.f32.mxu0 0.0
      %2164 = vmatmul.mubr.f32.gmra.mrb[0].mxu0 %v504
      %v2165 = vpop.f32.mrb[0].mxu0
      %v2166 = vadd.f32 0.0, %v2165
      %v2167 = vpop.f32.mrb[0].mxu0
      %2168 = vmatprep.mubr.f32.mxu0 0.0
      %2169 = vmatmul.mubr.f32.gmra.mrb[0].mxu0 %v507
      %v2170 = vpop.f32.mrb[0].mxu0
      %v2171 = vadd.f32 0.0, %v2170
      %v2172 = vpop.f32.mrb[0].mxu0
      %2173 = vmatprep.mubr.f32.mxu0 0.0
      %2174 = vmatmul.mubr.f32.gmra.mrb[0].mxu0 %v510
      %v2175 = vpop.f32.mrb[0].mxu0
      %v2176 = vadd.f32 0.0, %v2175
      %v2177 = vpop.f32.mrb[0].mxu0
      %2178 = vmatprep.mubr.f32.mxu0 0.0
      %2179 = vmatmul.mubr.f32.gmra.mrb[0].mxu0 %v513
      %v2180 = vpop.f32.mrb[0].mxu0
      %v2181 = vadd.f32 0.0, %v2180
      %v2182 = vpop.f32.mrb[0].mxu0
      %2183 = vmatprep.mubr.f32.mxu0 0.0
      %2184 = vmatmul.mubr.f32.gmra.mrb[0].mxu0 %v516
      %v2185 = vpop.f32.mrb[0].mxu0
      %v2186 = vadd.f32 0.0, %v2185
      %v2187 = vpop.f32.mrb[0].mxu0
      %2188 = vmatprep.mubr.f32.mxu0 0.0
      %2189 = vmatmul.mubr.f32.gmra.mrb[0].mxu0 %v519
      %v2190 = vpop.f32.mrb[0].mxu0
      %v2191 = vadd.f32 0.0, %v2190
      %v2192 = vpop.f32.mrb[0].mxu0
      %2193 = vmatprep.mubr.f32.mxu0 0.0
      %2194 = vmatmul.mubr.f32.gmra.mrb[0].mxu0 %v522
      %v2195 = vpop.f32.mrb[0].mxu0
      %v2196 = vadd.f32 0.0, %v2195
      %v2197 = vpop.f32.mrb[0].mxu0
      %2198 = vmatprep.mubr.f32.mxu0 0.0
      %2199 = vmatmul.mubr.f32.gmra.mrb[0].mxu0 %v525
      %v2200 = vpop.f32.mrb[0].mxu0
      %v2201 = vadd.f32 0.0, %v2200
      %v2202 = vpop.f32.mrb[0].mxu0
      %2203 = vmatprep.mubr.f32.mxu0 0.0
      %2204 = vmatmul.mubr.f32.gmra.mrb[0].mxu0 %v528
      %v2205 = vpop.f32.mrb[0].mxu0
      %v2206 = vadd.f32 0.0, %v2205
      %v2207 = vpop.f32.mrb[0].mxu0
      %2208 = vmatprep.mubr.f32.mxu0 0.0
      %2209 = vmatmul.mubr.f32.gmra.mrb[0].mxu0 %v531
      %v2210 = vpop.f32.mrb[0].mxu0
      %v2211 = vadd.f32 0.0, %v2210
      %v2212 = vpop.f32.mrb[0].mxu0
      %2213 = vmatprep.mubr.f32.mxu0 0.0
      %2214 = vmatmul.mubr.f32.gmra.mrb[0].mxu0 %v534
      %v2215 = vpop.f32.mrb[0].mxu0
      %v2216 = vadd.f32 0.0, %v2215
      %v2217 = vpop.f32.mrb[0].mxu0
      %2218 = vmatprep.mubr.f32.mxu0 0.0
      %2219 = vmatmul.mubr.f32.gmra.mrb[0].mxu0 %v537
      %v2220 = vpop.f32.mrb[0].mxu0
      %v2221 = vadd.f32 0.0, %v2220
      %v2222 = vpop.f32.mrb[0].mxu0
      %2223 = vmatprep.mubr.f32.mxu0 0.0
      %2224 = vmatmul.mubr.f32.gmra.mrb[0].mxu0 %v540
      %v2225 = vpop.f32.mrb[0].mxu0
      %v2226 = vadd.f32 0.0, %v2225
      %v2227 = vpop.f32.mrb[0].mxu0
      %2228 = vmatprep.mubr.f32.mxu0 0.0
      %2229 = vmatmul.mubr.f32.gmra.mrb[0].mxu0 %v1000
      %v2230 = vpop.f32.mrb[0].mxu0
      %v2231 = vadd.f32 0.0, %v2230
      %v2232 = vpop.f32.mrb[0].mxu0
      %2233 = vmatprep.mubr.f32.mxu0 0.0
      %2234 = vmatmul.mubr.f32.gmra.mrb[0].mxu0 %v1003
      %v2235 = vpop.f32.mrb[0].mxu0
      %v2236 = vadd.f32 0.0, %v2235
      %v2237 = vpop.f32.mrb[0].mxu0
      %2238 = vmatprep.mubr.f32.mxu0 0.0
      %2239 = vmatmul.mubr.f32.gmra.mrb[0].mxu0 %v1266
      %v2240 = vpop.f32.mrb[0].mxu0
      %v2241 = vadd.f32 0.0, %v2240
      %v2242 = vpop.f32.mrb[0].mxu0
      %2243 = vmatprep.mubr.f32.mxu0 0.0
      %2244 = vmatmul.mubr.f32.gmra.mrb[0].mxu0 %v1269
      %v2245 = vpop.f32.mrb[0].mxu0
      %v2246 = vadd.f32 0.0, %v2245
      %v2247 = vpop.f32.mrb[0].mxu0
      %2248 = vmatprep.mubr.f32.mxu0 0.0
      %2249 = vmatmul.mubr.f32.gmra.mrb[0].mxu0 %v456
      %v2250 = vpop.f32.mrb[0].mxu0
      %v2251 = vadd.f32 0.0, %v2250
      %v2252 = vpop.f32.mrb[0].mxu0
      %2253 = vmatprep.mubr.f32.mxu0 0.0
      %2254 = vmatmul.mubr.f32.gmra.mrb[0].mxu0 %v456
      %v2255 = vpop.f32.mrb[0].mxu0
      %v2256 = vadd.f32 0.0, %v2255
      %v2257 = vpop.f32.mrb[0].mxu0
      %2258 = vmatprep.mubr.f32.mxu0 0.0
      %2259 = vmatmul.mubr.f32.gmra.mrb[0].mxu0 %v456
      %v2260 = vpop.f32.mrb[0].mxu0
      %v2261 = vadd.f32 0.0, %v2260
      %v2262 = vpop.f32.mrb[0].mxu0
      %2263 = vmatprep.mubr.f32.mxu0 0.0
      %2264 = vmatmul.mubr.f32.gmra.mrb[0].mxu0 %v456
      %v2265 = vpop.f32.mrb[0].mxu0
      %v2266 = vadd.f32 0.0, %v2265
      %v2267 = vpop.f32.mrb[0].mxu0
      %2268 = vmatprep.mubr.f32.mxu0 0.0
      %2269 = vmatmul.mubr.f32.gmra.mrb[0].mxu0 %v456
      %v2270 = vpop.f32.mrb[0].mxu0
      %v2271 = vadd.f32 0.0, %v2270
      %v2272 = vpop.f32.mrb[0].mxu0
      %2273 = vmatprep.mubr.f32.mxu0 0.0
      %2274 = vmatmul.mubr.f32.gmra.mrb[0].mxu0 %v456
      %v2275 = vpop.f32.mrb[0].mxu0
      %v2276 = vadd.f32 0.0, %v2275
      %v2277 = vpop.f32.mrb[0].mxu0
      %2278 = vdwg.mxu0
      %v2279 = vadd.f32 %v2019, %v2121
      %v2280 = vadd.f32 %v2020, %v2126
      %v2281 = vadd.f32 %v2021, %v2131
      %v2282 = vadd.f32 %v2022, %v2136
      %v2283 = vadd.f32 %v2023, %v2141
      %v2284 = vadd.f32 %v2024, %v2146
      %v2285 = vadd.f32 %v2025, %v2151
      %v2286 = vadd.f32 %v2026, %v2156
      %v2287 = vadd.f32 %v2027, %v2161
      %v2288 = vadd.f32 %v2028, %v2166
      %v2289 = vadd.f32 %v2029, %v2171
      %v2290 = vadd.f32 %v2030, %v2176
      %v2291 = vadd.f32 %v2031, %v2181
      %v2292 = vadd.f32 %v2032, %v2186
      %v2293 = vadd.f32 %v2033, %v2191
      %v2294 = vadd.f32 %v2034, %v2196
      %v2295 = vadd.f32 %v2035, %v2201
      %v2296 = vadd.f32 %v2036, %v2206
      %v2297 = vadd.f32 %v2037, %v2211
      %v2298 = vadd.f32 %v2038, %v2216
      %v2299 = vadd.f32 %v2039, %v2221
      %v2300 = vadd.f32 %v2040, %v2226
      %v2301 = vadd.f32 %v2041, %v2231
      %v2302 = vadd.f32 %v2042, %v2236
      %v2303 = vadd.f32 %v2043, %v2241
      %v2304 = vadd.f32 %v2044, %v2246
      %v2305 = vadd.f32 %v2045, %v2251
      %v2306 = vadd.f32 %v2046, %v2256
      %v2307 = vadd.f32 %v2047, %v2261
      %v2308 = vadd.f32 %v2048, %v2266
      %v2309 = vadd.f32 %v2049, %v2271
      %v2310 = vadd.f32 %v2050, %v2276
      %v2311 = vpack.c.bf16 %v2280, %v2279
      %v2312 = vpack.c.bf16 %v2282, %v2281
      %v2313 = vpack.c.bf16 %v2284, %v2283
      %v2314 = vpack.c.bf16 %v2286, %v2285
      %v2315 = vpack.c.bf16 %v2288, %v2287
      %v2316 = vpack.c.bf16 %v2290, %v2289
      %v2317 = vpack.c.bf16 %v2292, %v2291
      %v2318 = vpack.c.bf16 %v2294, %v2293
      %v2319 = vpack.c.bf16 %v2296, %v2295
      %v2320 = vpack.c.bf16 %v2298, %v2297
      %v2321 = vpack.c.bf16 %v2300, %v2299
      %v2322 = vpack.c.bf16 %v2302, %v2301
      %v2323 = vpack.c.bf16 %v2304, %v2303
      %v2324 = vpack.c.bf16 %v2306, %v2305
      %v2325 = vpack.c.bf16 %v2308, %v2307
      %v2326 = vpack.c.bf16 %v2310, %v2309
      %v2343 = vunpack.c.l.b16 %v2311
      %v2344 = vunpack.c.h.b16 %v2311
      %v2345 = vunpack.c.l.b16 %v2312
      %v2346 = vunpack.c.h.b16 %v2312
      %v2347 = vunpack.c.l.b16 %v2313
      %v2348 = vunpack.c.h.b16 %v2313
      %v2349 = vunpack.c.l.b16 %v2314
      %v2350 = vunpack.c.h.b16 %v2314
      %v2351 = vunpack.c.l.b16 %v2315
      %v2352 = vunpack.c.h.b16 %v2315
      %v2353 = vunpack.c.l.b16 %v2316
      %v2354 = vunpack.c.h.b16 %v2316
      %v2355 = vunpack.c.l.b16 %v2317
      %v2356 = vunpack.c.h.b16 %v2317
      %v2357 = vunpack.c.l.b16 %v2318
      %v2358 = vunpack.c.h.b16 %v2318
      %v2359 = vunpack.c.l.b16 %v2319
      %v2360 = vunpack.c.h.b16 %v2319
      %v2361 = vunpack.c.l.b16 %v2320
      %v2362 = vunpack.c.h.b16 %v2320
      %v2363 = vunpack.c.l.b16 %v2321
      %v2364 = vunpack.c.h.b16 %v2321
      %v2365 = vunpack.c.l.b16 %v2322
      %v2366 = vunpack.c.h.b16 %v2322
      %v2367 = vunpack.c.l.b16 %v2323
      %v2368 = vunpack.c.h.b16 %v2323
      %v2369 = vunpack.c.l.b16 %v2324
      %v2370 = vunpack.c.h.b16 %v2324
      %v2371 = vunpack.c.l.b16 %v2325
      %v2372 = vunpack.c.h.b16 %v2325
      %v2373 = vunpack.c.l.b16 %v2326
      %v2374 = vunpack.c.h.b16 %v2326
      %v2375 = vpack.c.b16 %v2343, %v2343
      %v2376 = vpack.c.b16 %v2344, %v2344
      %v2377 = vpack.c.b16 %v2345, %v2345
      %v2378 = vpack.c.b16 %v2346, %v2346
      %v2379 = vpack.c.b16 %v2347, %v2347
      %v2380 = vpack.c.b16 %v2348, %v2348
      %v2381 = vpack.c.b16 %v2349, %v2349
      %v2382 = vpack.c.b16 %v2350, %v2350
      %v2383 = vpack.c.b16 %v2351, %v2351
      %v2384 = vpack.c.b16 %v2352, %v2352
      %v2385 = vpack.c.b16 %v2353, %v2353
      %v2386 = vpack.c.b16 %v2354, %v2354
      %v2387 = vpack.c.b16 %v2355, %v2355
      %v2388 = vpack.c.b16 %v2356, %v2356
      %v2389 = vpack.c.b16 %v2357, %v2357
      %v2390 = vpack.c.b16 %v2358, %v2358
      %v2391 = vpack.c.b16 %v2359, %v2359
      %v2392 = vpack.c.b16 %v2360, %v2360
      %v2393 = vpack.c.b16 %v2361, %v2361
      %v2394 = vpack.c.b16 %v2362, %v2362
      %v2395 = vpack.c.b16 %v2363, %v2363
      %v2396 = vpack.c.b16 %v2364, %v2364
      %v2397 = vpack.c.b16 %v2365, %v2365
      %v2398 = vpack.c.b16 %v2366, %v2366
      %v2399 = vpack.c.b16 %v2367, %v2367
      %v2400 = vpack.c.b16 %v2368, %v2368
      %v2401 = vpack.c.b16 %v2369, %v2369
      %v2402 = vpack.c.b16 %v2370, %v2370
      %v2403 = vpack.c.b16 %v2371, %v2371
      %v2404 = vpack.c.b16 %v2372, %v2372
      %v2405 = vpack.c.b16 %v2373, %v2373
      %v2406 = vpack.c.b16 %v2374, %v2374
      %vm2439 = vcmask 27648
      %2440 = vst.msk [vmem:[%s264] sm:$0xf] %vm2439, %v2375
      %2441 = vst.msk [vmem:[%s264 + $0x4] sm:$0xf] %vm2439, %v2376
      %2442 = vst.msk [vmem:[%s264 + $0x8] sm:$0xf] %vm2439, %v2377
      %2443 = vst.msk [vmem:[%s264 + $0xc] sm:$0xf] %vm2439, %v2378
      %2444 = vst.msk [vmem:[%s264 + $0x10] sm:$0xf] %vm2439, %v2379
      %2445 = vst.msk [vmem:[%s264 + $0x14] sm:$0xf] %vm2439, %v2380
      %2446 = vst.msk [vmem:[%s264 + $0x18] sm:$0xf] %vm2439, %v2381
      %2447 = vst.msk [vmem:[%s264 + $0x1c] sm:$0xf] %vm2439, %v2382
      %2448 = vst.msk [vmem:[%s264 + $0x20] sm:$0xf] %vm2439, %v2383
      %2449 = vst.msk [vmem:[%s264 + $0x24] sm:$0xf] %vm2439, %v2384
      %2450 = vst.msk [vmem:[%s264 + $0x28] sm:$0xf] %vm2439, %v2385
      %2451 = vst.msk [vmem:[%s264 + $0x2c] sm:$0xf] %vm2439, %v2386
      %2452 = vst.msk [vmem:[%s264 + $0x30] sm:$0xf] %vm2439, %v2387
      %2453 = vst.msk [vmem:[%s264 + $0x34] sm:$0xf] %vm2439, %v2388
      %2454 = vst.msk [vmem:[%s264 + $0x38] sm:$0xf] %vm2439, %v2389
      %2455 = vst.msk [vmem:[%s264 + $0x3c] sm:$0xf] %vm2439, %v2390
      %2456 = vst.msk [vmem:[%s264 + $0x40] sm:$0xf] %vm2439, %v2391
      %2457 = vst.msk [vmem:[%s264 + $0x44] sm:$0xf] %vm2439, %v2392
      %2458 = vst.msk [vmem:[%s264 + $0x48] sm:$0xf] %vm2439, %v2393
      %2459 = vst.msk [vmem:[%s264 + $0x4c] sm:$0xf] %vm2439, %v2394
      %2460 = vst.msk [vmem:[%s264 + $0x50] sm:$0xf] %vm2439, %v2395
      %2461 = vst.msk [vmem:[%s264 + $0x54] sm:$0xf] %vm2439, %v2396
      %2462 = vst.msk [vmem:[%s264 + $0x58] sm:$0xf] %vm2439, %v2397
      %2463 = vst.msk [vmem:[%s264 + $0x5c] sm:$0xf] %vm2439, %v2398
      %2464 = vst.msk [vmem:[%s264 + $0x60] sm:$0xf] %vm2439, %v2399
      %2465 = vst.msk [vmem:[%s264 + $0x64] sm:$0xf] %vm2439, %v2400
      %2466 = vst.msk [vmem:[%s264 + $0x68] sm:$0xf] %vm2439, %v2401
      %2467 = vst.msk [vmem:[%s264 + $0x6c] sm:$0xf] %vm2439, %v2402
      %2468 = vst.msk [vmem:[%s264 + $0x70] sm:$0xf] %vm2439, %v2403
      %2469 = vst.msk [vmem:[%s264 + $0x74] sm:$0xf] %vm2439, %v2404
      %2470 = vst.msk [vmem:[%s264 + $0x78] sm:$0xf] %vm2439, %v2405
      %2471 = vst.msk [vmem:[%s264 + $0x7c] sm:$0xf] %vm2439, %v2406
      %vm2472 = vcmask 31744
      %v2473 = vsel %vm2472, %v2279, 0.0
      %v2474 = vsel %vm2472, %v2280, 0.0
      %v2475 = vadd.f32 %v2473, %v2474
      %v2476 = vsel %vm2472, %v2281, 0.0
      %v2477 = vadd.f32 %v2475, %v2476
      %v2478 = vsel %vm2472, %v2282, 0.0
      %v2479 = vadd.f32 %v2477, %v2478
      %v2480 = vsel %vm2472, %v2283, 0.0
      %v2481 = vadd.f32 %v2479, %v2480
      %v2482 = vsel %vm2472, %v2284, 0.0
      %v2483 = vadd.f32 %v2481, %v2482
      %v2484 = vsel %vm2472, %v2285, 0.0
      %v2485 = vadd.f32 %v2483, %v2484
      %v2486 = vsel %vm2472, %v2286, 0.0
      %v2487 = vadd.f32 %v2485, %v2486
      %v2488 = vsel %vm2472, %v2287, 0.0
      %v2489 = vadd.f32 %v2487, %v2488
      %v2490 = vsel %vm2472, %v2288, 0.0
      %v2491 = vadd.f32 %v2489, %v2490
      %v2492 = vsel %vm2472, %v2289, 0.0
      %v2493 = vadd.f32 %v2491, %v2492
      %v2494 = vsel %vm2472, %v2290, 0.0
      %v2495 = vadd.f32 %v2493, %v2494
      %v2496 = vsel %vm2472, %v2291, 0.0
      %v2497 = vadd.f32 %v2495, %v2496
      %v2498 = vsel %vm2472, %v2292, 0.0
      %v2499 = vadd.f32 %v2497, %v2498
      %v2500 = vsel %vm2472, %v2293, 0.0
      %v2501 = vadd.f32 %v2499, %v2500
      %v2502 = vsel %vm2472, %v2294, 0.0
      %v2503 = vadd.f32 %v2501, %v2502
      %v2504 = vsel %vm2472, %v2295, 0.0
      %v2505 = vadd.f32 %v2503, %v2504
      %v2506 = vsel %vm2472, %v2296, 0.0
      %v2507 = vadd.f32 %v2505, %v2506
      %v2508 = vsel %vm2472, %v2297, 0.0
      %v2509 = vadd.f32 %v2507, %v2508
      %v2510 = vsel %vm2472, %v2298, 0.0
      %v2511 = vadd.f32 %v2509, %v2510
      %v2512 = vsel %vm2472, %v2299, 0.0
      %v2513 = vadd.f32 %v2511, %v2512
      %v2514 = vsel %vm2472, %v2300, 0.0
      %v2515 = vadd.f32 %v2513, %v2514
      %v2516 = vsel %vm2472, %v2301, 0.0
      %v2517 = vadd.f32 %v2515, %v2516
      %v2518 = vsel %vm2472, %v2302, 0.0
      %v2519 = vadd.f32 %v2517, %v2518
      %v2520 = vsel %vm2472, %v2303, 0.0
      %v2521 = vadd.f32 %v2519, %v2520
      %v2522 = vsel %vm2472, %v2304, 0.0
      %v2523 = vadd.f32 %v2521, %v2522
      %v2524 = vsel %vm2472, %v2305, 0.0
      %v2525 = vadd.f32 %v2523, %v2524
      %v2526 = vsel %vm2472, %v2306, 0.0
      %v2527 = vadd.f32 %v2525, %v2526
      %v2528 = vsel %vm2472, %v2307, 0.0
      %v2529 = vadd.f32 %v2527, %v2528
      %v2530 = vsel %vm2472, %v2308, 0.0
      %v2531 = vadd.f32 %v2529, %v2530
      %v2532 = vsel %vm2472, %v2309, 0.0
      %v2533 = vadd.f32 %v2531, %v2532
      %v2534 = vsel %vm2472, %v2310, 0.0
      %v2535 = vadd.f32 %v2533, %v2534
      %v2536 = vmul.f32 %v2279, %v2279
      %v2537 = vmul.f32 %v2280, %v2280
      %v2538 = vmul.f32 %v2281, %v2281
      %v2539 = vmul.f32 %v2282, %v2282
      %v2540 = vmul.f32 %v2283, %v2283
      %v2541 = vmul.f32 %v2284, %v2284
      %v2542 = vmul.f32 %v2285, %v2285
      %v2543 = vmul.f32 %v2286, %v2286
      %v2544 = vmul.f32 %v2287, %v2287
      %v2545 = vmul.f32 %v2288, %v2288
      %v2546 = vmul.f32 %v2289, %v2289
      %v2547 = vmul.f32 %v2290, %v2290
      %v2548 = vmul.f32 %v2291, %v2291
      %v2549 = vmul.f32 %v2292, %v2292
      %v2550 = vmul.f32 %v2293, %v2293
      %v2551 = vmul.f32 %v2294, %v2294
      %v2552 = vmul.f32 %v2295, %v2295
      %v2553 = vmul.f32 %v2296, %v2296
      %v2554 = vmul.f32 %v2297, %v2297
      %v2555 = vmul.f32 %v2298, %v2298
      %v2556 = vmul.f32 %v2299, %v2299
      %v2557 = vmul.f32 %v2300, %v2300
      %v2558 = vmul.f32 %v2301, %v2301
      %v2559 = vmul.f32 %v2302, %v2302
      %v2560 = vmul.f32 %v2303, %v2303
      %v2561 = vmul.f32 %v2304, %v2304
      %v2562 = vmul.f32 %v2305, %v2305
      %v2563 = vmul.f32 %v2306, %v2306
      %v2564 = vmul.f32 %v2307, %v2307
      %v2565 = vmul.f32 %v2308, %v2308
      %v2566 = vmul.f32 %v2309, %v2309
      %v2567 = vmul.f32 %v2310, %v2310
      %v2568 = vsel %vm2472, %v2536, 0.0
      %v2569 = vsel %vm2472, %v2537, 0.0
      %v2570 = vadd.f32 %v2568, %v2569
      %v2571 = vsel %vm2472, %v2538, 0.0
      %v2572 = vadd.f32 %v2570, %v2571
      %v2573 = vsel %vm2472, %v2539, 0.0
      %v2574 = vadd.f32 %v2572, %v2573
      %v2575 = vsel %vm2472, %v2540, 0.0
      %v2576 = vadd.f32 %v2574, %v2575
      %v2577 = vsel %vm2472, %v2541, 0.0
      %v2578 = vadd.f32 %v2576, %v2577
      %v2579 = vsel %vm2472, %v2542, 0.0
      %v2580 = vadd.f32 %v2578, %v2579
      %v2581 = vsel %vm2472, %v2543, 0.0
      %v2582 = vadd.f32 %v2580, %v2581
      %v2583 = vsel %vm2472, %v2544, 0.0
      %v2584 = vadd.f32 %v2582, %v2583
      %v2585 = vsel %vm2472, %v2545, 0.0
      %v2586 = vadd.f32 %v2584, %v2585
      %v2587 = vsel %vm2472, %v2546, 0.0
      %v2588 = vadd.f32 %v2586, %v2587
      %v2589 = vsel %vm2472, %v2547, 0.0
      %v2590 = vadd.f32 %v2588, %v2589
      %v2591 = vsel %vm2472, %v2548, 0.0
      %v2592 = vadd.f32 %v2590, %v2591
      %v2593 = vsel %vm2472, %v2549, 0.0
      %v2594 = vadd.f32 %v2592, %v2593
      %v2595 = vsel %vm2472, %v2550, 0.0
      %v2596 = vadd.f32 %v2594, %v2595
      %v2597 = vsel %vm2472, %v2551, 0.0
      %v2598 = vadd.f32 %v2596, %v2597
      %v2599 = vsel %vm2472, %v2552, 0.0
      %v2600 = vadd.f32 %v2598, %v2599
      %v2601 = vsel %vm2472, %v2553, 0.0
      %v2602 = vadd.f32 %v2600, %v2601
      %v2603 = vsel %vm2472, %v2554, 0.0
      %v2604 = vadd.f32 %v2602, %v2603
      %v2605 = vsel %vm2472, %v2555, 0.0
      %v2606 = vadd.f32 %v2604, %v2605
      %v2607 = vsel %vm2472, %v2556, 0.0
      %v2608 = vadd.f32 %v2606, %v2607
      %v2609 = vsel %vm2472, %v2557, 0.0
      %v2610 = vadd.f32 %v2608, %v2609
      %v2611 = vsel %vm2472, %v2558, 0.0
      %v2612 = vadd.f32 %v2610, %v2611
      %v2613 = vsel %vm2472, %v2559, 0.0
      %v2614 = vadd.f32 %v2612, %v2613
      %v2615 = vsel %vm2472, %v2560, 0.0
      %v2616 = vadd.f32 %v2614, %v2615
      %v2617 = vsel %vm2472, %v2561, 0.0
      %v2618 = vadd.f32 %v2616, %v2617
      %v2619 = vsel %vm2472, %v2562, 0.0
      %v2620 = vadd.f32 %v2618, %v2619
      %v2621 = vsel %vm2472, %v2563, 0.0
      %v2622 = vadd.f32 %v2620, %v2621
      %v2623 = vsel %vm2472, %v2564, 0.0
      %v2624 = vadd.f32 %v2622, %v2623
      %v2625 = vsel %vm2472, %v2565, 0.0
      %v2626 = vadd.f32 %v2624, %v2625
      %v2627 = vsel %vm2472, %v2566, 0.0
      %v2628 = vadd.f32 %v2626, %v2627
      %v2629 = vsel %vm2472, %v2567, 0.0
      %v2630 = vadd.f32 %v2628, %v2629
      %2631 = vst.msk [vmem:[%s268] sm:$0xff] %vm2472, %v2535
      %2632 = vst.msk [vmem:[%s272] sm:$0xff] %vm2472, %v2630
      %p2633 = scmp.lt.s32.totalorder %s18, 1
      %s2634 = scalar_select %p2633, %s18, 1
      %s2635 = smul.addr %s2634, 32
      %s2636 = smul.addr %s2635, 4
      %s2637 = scalar_lea.vmem %s4, %s2636
      %p2638 = scmp.lt.s32.totalorder %s18, 1
      %s2639 = scalar_select %p2638, %s18, 1
      %s2640 = smul.addr %s2639, 8
      %s2641 = scalar_lea.vmem %s5, %s2640
      %p2642 = scmp.lt.s32.totalorder %s18, 1
      %s2643 = scalar_select %p2642, %s18, 1
      %s2644 = smul.addr %s2643, 8
      %s2645 = scalar_lea.vmem %s6, %s2644
      // Predicated region
      $region37: #{inception_resnet_b_pallas.7} parent=35 // pred_check
        %p2646 = pneg %p125
      $region38: #{inception_resnet_b_pallas.7} parent=35 // pred_check_branch
        %2648 = sbr.rel (%p2646) target = $region40
      $region39: #{inception_resnet_b_pallas.7} parent=35 // pred_region
        _
      $region40: #{inception_resnet_b_pallas.7} parent=35 // pred_fallthru
        _
      // Predicated region
      $region41: #{inception_resnet_b_pallas.7} parent=35 // pred_check
        %p2649 = pneg %p151
      $region42: #{inception_resnet_b_pallas.7} parent=35 // pred_check_branch
        %2651 = sbr.rel (%p2649) target = $region44
      $region43: #{inception_resnet_b_pallas.7} parent=35 // pred_region
        _
      $region44: #{inception_resnet_b_pallas.7} parent=35 // pred_fallthru
        _
      // Predicated region
      $region45: #{inception_resnet_b_pallas.7} parent=35 // pred_check
        %p2652 = pneg %p177
      $region46: #{inception_resnet_b_pallas.7} parent=35 // pred_check_branch
        %2654 = sbr.rel (%p2652) target = $region48
      $region47: #{inception_resnet_b_pallas.7} parent=35 // pred_region
        _
      $region48: #{inception_resnet_b_pallas.7} parent=35 // pred_fallthru
        _
    $region36: #{inception_resnet_b_pallas.7} parent=5 // pred_fallthru
      _
    %p2655 = scmp.le.s32.totalorder 2, %s13
    // Predicated region
    $region49: #{inception_resnet_b_pallas.7} parent=5 // pred_check
      %p2656 = pneg %p2655
    $region50: #{inception_resnet_b_pallas.7} parent=5 // pred_check_branch
      %2658 = sbr.rel (%p2656) target = $region52
    $region51: #{inception_resnet_b_pallas.7} parent=5 // pred_region
      %s2659 = ssub.s32 %s13, 2
      // Predicated region
      $region53: #{inception_resnet_b_pallas.7} parent=51 // pred_check
        %p2660 = pneg %p131
      $region54: #{inception_resnet_b_pallas.7} parent=51 // pred_check_branch
        %2662 = sbr.rel (%p2660) target = $region56
      $region55: #{inception_resnet_b_pallas.7} parent=51 // pred_region
        %p2663 = scmp.lt.s32.totalorder %s19, 1
        %s2664 = scalar_select %p2663, %s19, 1
        %s2665 = smul.addr %s2664, 32
        %s2666 = smul.addr %s2665, 4
        %s2667 = scalar_lea.vmem %s4, %s2666
      $region56: #{inception_resnet_b_pallas.7} parent=51 // pred_fallthru
        _
      // Predicated region
      $region57: #{inception_resnet_b_pallas.7} parent=51 // pred_check
        %p2668 = pneg %p157
      $region58: #{inception_resnet_b_pallas.7} parent=51 // pred_check_branch
        %2670 = sbr.rel (%p2668) target = $region60
      $region59: #{inception_resnet_b_pallas.7} parent=51 // pred_region
        %p2671 = scmp.lt.s32.totalorder %s19, 1
        %s2672 = scalar_select %p2671, %s19, 1
        %s2673 = smul.addr %s2672, 8
        %s2674 = scalar_lea.vmem %s5, %s2673
      $region60: #{inception_resnet_b_pallas.7} parent=51 // pred_fallthru
        _
      // Predicated region
      $region61: #{inception_resnet_b_pallas.7} parent=51 // pred_check
        %p2675 = pneg %p183
      $region62: #{inception_resnet_b_pallas.7} parent=51 // pred_check_branch
        %2677 = sbr.rel (%p2675) target = $region64
      $region63: #{inception_resnet_b_pallas.7} parent=51 // pred_region
        %p2678 = scmp.lt.s32.totalorder %s19, 1
        %s2679 = scalar_select %p2678, %s19, 1
        %s2680 = smul.addr %s2679, 8
        %s2681 = scalar_lea.vmem %s6, %s2680
      $region64: #{inception_resnet_b_pallas.7} parent=51 // pred_fallthru
        _
    $region52: #{inception_resnet_b_pallas.7} parent=5 // pred_fallthru
      _
  $region6: #{inception_resnet_b_pallas.7} parent=0 // loop_footer
    %s17 = sadd.s32 1, %s13
  $region7: #{inception_resnet_b_pallas.7} parent=0 // loop_footer_branch
    %12 = sbr.rel target = $region3
  $region8: #{inception_resnet_b_pallas.7} parent=0 // loop_exit
    _

// kernel: inception_resnet_b_pallas.6
$region0: #{inception_resnet_b_pallas.6}
  #allocation0 [shape = 'u32[]', space=smem, size = 0x4, offset = 0x4, fixed_abs, tag = 'smem constant byte address 0x4 - core index']
  #allocation1 [shape = 'u32[144,128]{1,0:T(1,128)}', space=vmem, size = 0x12000, scoped, tag = 'internal scratch']
  %s0 = inlined_call_operand.vmem [shape: bf16[32,16,2], index: 0, kind: input, shape index: {}]
  %s1 = inlined_call_operand.vmem [shape: f32[1,2], index: 1, kind: input, shape index: {}]
  %s2 = inlined_call_operand.vmem [shape: f32[1,2], index: 2, kind: input, shape index: {}]
  %s3 = inlined_call_operand.vmem [shape: f32[7,2,2], index: 3, kind: input, shape index: {}]
  %s4 = inlined_call_operand.vmem [shape: bf16[32,16,2], index: 4, kind: output, shape index: {0}]
  %s5 = inlined_call_operand.vmem [shape: f32[2,8,2], index: 5, kind: output, shape index: {1}]
  %s6 = inlined_call_operand.vmem [shape: f32[2,8,2], index: 6, kind: output, shape index: {2}]
  %7 = xla_tuple %s4, %s5, %s6
  %s8 = sld [smem:[#allocation0]]
  $region65: #{inception_resnet_b_pallas.6} parent=0
    _
  %s10 = ssub.s32 1, %s8
  %s11 = scalar_select 0, %s10, %s8
  loop: start=0, step=1, limit=4
  $region2: #{inception_resnet_b_pallas.6} parent=0 // loop_pre_header
    _
  $region3: #{inception_resnet_b_pallas.6} parent=0 // loop_header
    %s13 = sphi 0, %s17
    %p14 = scmp.ge.s32.totalorder %s13, 4
    %s23 = sphi 0, %s25
    %s26 = sphi 0, %s23
    %s27 = sphi 0, %s26
    %s43 = sphi 0, %s27
    %s47 = sphi 0, %s47
    %s49 = sphi 0, %s47
    %s50 = sphi 0, %s49
    %s64 = sphi 0, %s50
    %s68 = sphi 0, %s68
    %s70 = sphi 0, %s68
    %s71 = sphi 0, %s70
    %s85 = sphi 0, %s71
    %s89 = sphi 0, %s89
    %s91 = sphi 0, %s89
    %s92 = sphi 0, %s91
    %s106 = sphi 0, %s92
    %s112 = sphi 0, %s114
    %s115 = sphi 0, %s112
    %s116 = sphi 0, %s115
    %s132 = sphi 0, %s116
    %s138 = sphi 0, %s140
    %s141 = sphi 0, %s138
    %s142 = sphi 0, %s141
    %s158 = sphi 0, %s142
    %s164 = sphi 0, %s166
    %s167 = sphi 0, %s164
    %s168 = sphi 0, %s167
    %s184 = sphi 0, %s168
  $region4: #{inception_resnet_b_pallas.6} parent=0 // loop_header_branch
    %16 = sbr.rel (%p14) target = $region8
  $region5: #{inception_resnet_b_pallas.6} parent=0 // loop_body
    %s18 = ssub.s32 %s13, 1
    %s19 = ssub.s32 %s13, 2
    %s20 = sadd.s32 %s13, 1
    %s21 = ssub.s32 %s13, %s20
    %p22 = scmp.eq.s32.totalorder %s21, 0
    %s24 = sadd.s32 %s23, 1
    %s25 = scalar_select %p22, %s23, %s24
    %p28 = pneg %p22
    %p29 = scmp.eq.s32.totalorder %s13, 1
    %p30 = por %p28, %p29
    %p31 = scmp.ne.s32.totalorder %s23, %s26
    %p32 = scmp.eq.s32.totalorder %s13, 0
    %p33 = por %p31, %p32
    %p34 = scmp.ne.s32.totalorder %s23, %s26
    %p35 = scmp.eq.s32.totalorder %s18, 1
    %p36 = por %p34, %p35
    %p37 = scmp.ne.s32.totalorder %s26, %s27
    %p38 = scmp.eq.s32.totalorder %s18, 0
    %p39 = por %p37, %p38
    %p40 = scmp.ne.s32.totalorder %s26, %s27
    %p41 = scmp.eq.s32.totalorder %s19, 1
    %p42 = por %p40, %p41
    %p44 = scmp.ne.s32.totalorder %s27, %s43
    %p45 = scmp.eq.s32.totalorder %s19, 0
    %p46 = por %p44, %p45
    %s48 = sadd.s32 %s47, 1
    %p51 = scmp.eq.s32.totalorder %s13, 1
    %p52 = scmp.ne.s32.totalorder %s47, %s49
    %p53 = scmp.eq.s32.totalorder %s13, 0
    %p54 = por %p52, %p53
    %p55 = scmp.ne.s32.totalorder %s47, %s49
    %p56 = scmp.eq.s32.totalorder %s18, 1
    %p57 = por %p55, %p56
    %p58 = scmp.ne.s32.totalorder %s49, %s50
    %p59 = scmp.eq.s32.totalorder %s18, 0
    %p60 = por %p58, %p59
    %p61 = scmp.ne.s32.totalorder %s49, %s50
    %p62 = scmp.eq.s32.totalorder %s19, 1
    %p63 = por %p61, %p62
    %p65 = scmp.ne.s32.totalorder %s50, %s64
    %p66 = scmp.eq.s32.totalorder %s19, 0
    %p67 = por %p65, %p66
    %s69 = sadd.s32 %s68, 1
    %p72 = scmp.eq.s32.totalorder %s13, 1
    %p73 = scmp.ne.s32.totalorder %s68, %s70
    %p74 = scmp.eq.s32.totalorder %s13, 0
    %p75 = por %p73, %p74
    %p76 = scmp.ne.s32.totalorder %s68, %s70
    %p77 = scmp.eq.s32.totalorder %s18, 1
    %p78 = por %p76, %p77
    %p79 = scmp.ne.s32.totalorder %s70, %s71
    %p80 = scmp.eq.s32.totalorder %s18, 0
    %p81 = por %p79, %p80
    %p82 = scmp.ne.s32.totalorder %s70, %s71
    %p83 = scmp.eq.s32.totalorder %s19, 1
    %p84 = por %p82, %p83
    %p86 = scmp.ne.s32.totalorder %s71, %s85
    %p87 = scmp.eq.s32.totalorder %s19, 0
    %p88 = por %p86, %p87
    %s90 = sadd.s32 %s89, 1
    %p93 = scmp.eq.s32.totalorder %s13, 1
    %p94 = scmp.ne.s32.totalorder %s89, %s91
    %p95 = scmp.eq.s32.totalorder %s13, 0
    %p96 = por %p94, %p95
    %p97 = scmp.ne.s32.totalorder %s89, %s91
    %p98 = scmp.eq.s32.totalorder %s18, 1
    %p99 = por %p97, %p98
    %p100 = scmp.ne.s32.totalorder %s91, %s92
    %p101 = scmp.eq.s32.totalorder %s18, 0
    %p102 = por %p100, %p101
    %p103 = scmp.ne.s32.totalorder %s91, %s92
    %p104 = scmp.eq.s32.totalorder %s19, 1
    %p105 = por %p103, %p104
    %p107 = scmp.ne.s32.totalorder %s92, %s106
    %p108 = scmp.eq.s32.totalorder %s19, 0
    %p109 = por %p107, %p108
    %s110 = ssub.s32 %s13, %s20
    %p111 = scmp.eq.s32.totalorder %s110, 0
    %s113 = sadd.s32 %s112, 1
    %s114 = scalar_select %p111, %s112, %s113
    %p117 = pneg %p111
    %p118 = scmp.eq.s32.totalorder %s13, 1
    %p119 = por %p117, %p118
    %p120 = scmp.ne.s32.totalorder %s112, %s115
    %p121 = scmp.eq.s32.totalorder %s13, 0
    %p122 = por %p120, %p121
    %p123 = scmp.ne.s32.totalorder %s112, %s115
    %p124 = scmp.eq.s32.totalorder %s18, 1
    %p125 = por %p123, %p124
    %p126 = scmp.ne.s32.totalorder %s115, %s116
    %p127 = scmp.eq.s32.totalorder %s18, 0
    %p128 = por %p126, %p127
    %p129 = scmp.ne.s32.totalorder %s115, %s116
    %p130 = scmp.eq.s32.totalorder %s19, 1
    %p131 = por %p129, %p130
    %p133 = scmp.ne.s32.totalorder %s116, %s132
    %p134 = scmp.eq.s32.totalorder %s19, 0
    %p135 = por %p133, %p134
    %s136 = ssub.s32 %s13, %s20
    %p137 = scmp.eq.s32.totalorder %s136, 0
    %s139 = sadd.s32 %s138, 1
    %s140 = scalar_select %p137, %s138, %s139
    %p143 = pneg %p137
    %p144 = scmp.eq.s32.totalorder %s13, 1
    %p145 = por %p143, %p144
    %p146 = scmp.ne.s32.totalorder %s138, %s141
    %p147 = scmp.eq.s32.totalorder %s13, 0
    %p148 = por %p146, %p147
    %p149 = scmp.ne.s32.totalorder %s138, %s141
    %p150 = scmp.eq.s32.totalorder %s18, 1
    %p151 = por %p149, %p150
    %p152 = scmp.ne.s32.totalorder %s141, %s142
    %p153 = scmp.eq.s32.totalorder %s18, 0
    %p154 = por %p152, %p153
    %p155 = scmp.ne.s32.totalorder %s141, %s142
    %p156 = scmp.eq.s32.totalorder %s19, 1
    %p157 = por %p155, %p156
    %p159 = scmp.ne.s32.totalorder %s142, %s158
    %p160 = scmp.eq.s32.totalorder %s19, 0
    %p161 = por %p159, %p160
    %s162 = ssub.s32 %s13, %s20
    %p163 = scmp.eq.s32.totalorder %s162, 0
    %s165 = sadd.s32 %s164, 1
    %s166 = scalar_select %p163, %s164, %s165
    %p169 = pneg %p163
    %p170 = scmp.eq.s32.totalorder %s13, 1
    %p171 = por %p169, %p170
    %p172 = scmp.ne.s32.totalorder %s164, %s167
    %p173 = scmp.eq.s32.totalorder %s13, 0
    %p174 = por %p172, %p173
    %p175 = scmp.ne.s32.totalorder %s164, %s167
    %p176 = scmp.eq.s32.totalorder %s18, 1
    %p177 = por %p175, %p176
    %p178 = scmp.ne.s32.totalorder %s167, %s168
    %p179 = scmp.eq.s32.totalorder %s18, 0
    %p180 = por %p178, %p179
    %p181 = scmp.ne.s32.totalorder %s167, %s168
    %p182 = scmp.eq.s32.totalorder %s19, 1
    %p183 = por %p181, %p182
    %p185 = scmp.ne.s32.totalorder %s168, %s184
    %p186 = scmp.eq.s32.totalorder %s19, 0
    %p187 = por %p185, %p186
    %p188 = scmp.le.s32.totalorder 1, %s13
    %p189 = scmp.lt.s32.totalorder %s13, 3
    %p190 = pnand %p188, %p189
    %p191 = pneg %p190
    // Predicated region
    $region9: #{inception_resnet_b_pallas.6} parent=5 // pred_check
      _
    $region10: #{inception_resnet_b_pallas.6} parent=5 // pred_check_branch
      %193 = sbr.rel (%p190) target = $region12
    $region11: #{inception_resnet_b_pallas.6} parent=5 // pred_region
      %s194 = ssub.s32 %s13, 1
      // Predicated region
      $region13: #{inception_resnet_b_pallas.6} parent=11 // pred_check
        %p195 = pneg %p60
      $region14: #{inception_resnet_b_pallas.6} parent=11 // pred_check_branch
        %197 = sbr.rel (%p195) target = $region16
      $region15: #{inception_resnet_b_pallas.6} parent=11 // pred_region
        _
      $region16: #{inception_resnet_b_pallas.6} parent=11 // pred_fallthru
        _
      // Predicated region
      $region17: #{inception_resnet_b_pallas.6} parent=11 // pred_check
        %p198 = pneg %p81
      $region18: #{inception_resnet_b_pallas.6} parent=11 // pred_check_branch
        %200 = sbr.rel (%p198) target = $region20
      $region19: #{inception_resnet_b_pallas.6} parent=11 // pred_region
        _
      $region20: #{inception_resnet_b_pallas.6} parent=11 // pred_fallthru
        _
      // Predicated region
      $region21: #{inception_resnet_b_pallas.6} parent=11 // pred_check
        %p201 = pneg %p102
      $region22: #{inception_resnet_b_pallas.6} parent=11 // pred_check_branch
        %203 = sbr.rel (%p201) target = $region24
      $region23: #{inception_resnet_b_pallas.6} parent=11 // pred_region
        _
      $region24: #{inception_resnet_b_pallas.6} parent=11 // pred_fallthru
        _
    $region12: #{inception_resnet_b_pallas.6} parent=5 // pred_fallthru
      _
    %p204 = scmp.lt.s32.totalorder %s13, 2
    // Predicated region
    $region25: #{inception_resnet_b_pallas.6} parent=5 // pred_check
      %p205 = pneg %p204
    $region26: #{inception_resnet_b_pallas.6} parent=5 // pred_check_branch
      %207 = sbr.rel (%p205) target = $region28
    $region27: #{inception_resnet_b_pallas.6} parent=5 // pred_region
      // Predicated region
      $region29: #{inception_resnet_b_pallas.6} parent=27 // pred_check
        %p208 = pneg %p33
      $region30: #{inception_resnet_b_pallas.6} parent=27 // pred_check_branch
        %210 = sbr.rel (%p208) target = $region32
      $region31: #{inception_resnet_b_pallas.6} parent=27 // pred_region
        %s211 = smul.u32 16, %s13
        %p212 = scmp.lt.s32.totalorder %s211, 31
        %s213 = scalar_select %p212, %s211, 31
        %s214 = smul.addr %s213, 2
        %s215 = smul.addr %s214, 4
        %s216 = scalar_lea.vmem %s0, %s215
        %s217 = smul.u32 16, %s13
      $region32: #{inception_resnet_b_pallas.6} parent=27 // pred_fallthru
        _
    $region28: #{inception_resnet_b_pallas.6} parent=5 // pred_fallthru
      _
    %p218 = scmp.le.s32.totalorder 1, %s13
    %p219 = scmp.lt.s32.totalorder %s13, 3
    %p220 = pnand %p218, %p219
    %p221 = pneg %p220
    // Predicated region
    $region33: #{inception_resnet_b_pallas.6} parent=5 // pred_check
      _
    $region34: #{inception_resnet_b_pallas.6} parent=5 // pred_check_branch
      %223 = sbr.rel (%p220) target = $region36
    $region35: #{inception_resnet_b_pallas.6} parent=5 // pred_region
      %s224 = ssub.s32 %s13, 1
      %s225 = smul.u32 16, %s18
      %p226 = scmp.lt.s32.totalorder %s225, 31
      %s227 = scalar_select %p226, %s225, 31
      %s228 = smul.addr %s227, 2
      %s229 = smul.addr %s228, 4
      %s230 = scalar_lea.vmem %s0, %s229
      %p231 = pneg %p39
      %p232 = pneg %p36
      %p233 = pneg %p60
      %p234 = pneg %p57
      %p235 = pneg %p81
      %p236 = pneg %p78
      %p237 = pneg %p102
      %p238 = pneg %p99
      %p239 = pneg %p128
      %p240 = pneg %p125
      %s241 = smul.u32 16, %s18
      %p242 = scmp.lt.s32.totalorder %s241, 31
      %s243 = scalar_select %p242, %s241, 31
      %s244 = smul.addr %s243, 2
      %s245 = smul.addr %s244, 4
      %s246 = scalar_lea.vmem %s4, %s245
      %p247 = pneg %p154
      %p248 = pneg %p151
      %p249 = scmp.lt.s32.totalorder %s18, 1
      %s250 = scalar_select %p249, %s18, 1
      %s251 = smul.addr %s250, 8
      %s252 = scalar_lea.vmem %s5, %s251
      %p253 = pneg %p180
      %p254 = pneg %p177
      %p255 = scmp.lt.s32.totalorder %s18, 1
      %s256 = scalar_select %p255, %s18, 1
      %s257 = smul.addr %s256, 8
      %s258 = scalar_lea.vmem %s6, %s257
      %s259 = smul.u32 16, %s18
      %p260 = scmp.lt.s32.totalorder %s259, 31
      %s261 = scalar_select %p260, %s259, 31
      %s262 = smul.addr %s261, 2
      %s263 = smul.addr %s262, 4
      %s264 = scalar_lea.vmem %s0, %s263
      %s265 = smul.u32 16, %s18
      %s266 = smul.u32 16, %s18
      %p267 = scmp.lt.s32.totalorder %s266, 31
      %s268 = scalar_select %p267, %s266, 31
      %s269 = smul.addr %s268, 2
      %s270 = smul.addr %s269, 4
      %s271 = scalar_lea.vmem %s4, %s270
      %s272 = smul.u32 16, %s18
      %p273 = scmp.lt.s32.totalorder %s18, 1
      %s274 = scalar_select %p273, %s18, 1
      %s275 = smul.addr %s274, 8
      %s276 = scalar_lea.vmem %s5, %s275
      %p277 = scmp.lt.s32.totalorder %s18, 1
      %s278 = scalar_select %p277, %s18, 1
      %s279 = smul.addr %s278, 8
      %s280 = scalar_lea.vmem %s6, %s279
      %v281 = vld [vmem:[%s264] sm:$0xf]
      %v282 = vld [vmem:[%s264 + $0x4] sm:$0xf]
      %v283 = vld [vmem:[%s264 + $0x8] sm:$0xf]
      %v284 = vld [vmem:[%s264 + $0xc] sm:$0xf]
      %v285 = vld [vmem:[%s264 + $0x10] sm:$0xf]
      %v286 = vld [vmem:[%s264 + $0x14] sm:$0xf]
      %v287 = vld [vmem:[%s264 + $0x18] sm:$0xf]
      %v288 = vld [vmem:[%s264 + $0x1c] sm:$0xf]
      %v289 = vld [vmem:[%s264 + $0x20] sm:$0xf]
      %v290 = vld [vmem:[%s264 + $0x24] sm:$0xf]
      %v291 = vld [vmem:[%s264 + $0x28] sm:$0xf]
      %v292 = vld [vmem:[%s264 + $0x2c] sm:$0xf]
      %v293 = vld [vmem:[%s264 + $0x30] sm:$0xf]
      %v294 = vld [vmem:[%s264 + $0x34] sm:$0xf]
      %v295 = vld [vmem:[%s264 + $0x38] sm:$0xf]
      %v296 = vld [vmem:[%s264 + $0x3c] sm:$0xf]
      %v297 = vld [vmem:[%s264 + $0x40] sm:$0xf]
      %v298 = vld [vmem:[%s264 + $0x44] sm:$0xf]
      %v299 = vld [vmem:[%s264 + $0x48] sm:$0xf]
      %v300 = vld [vmem:[%s264 + $0x4c] sm:$0xf]
      %v301 = vld [vmem:[%s264 + $0x50] sm:$0xf]
      %v302 = vld [vmem:[%s264 + $0x54] sm:$0xf]
      %v303 = vld [vmem:[%s264 + $0x58] sm:$0xf]
      %v304 = vld [vmem:[%s264 + $0x5c] sm:$0xf]
      %v305 = vld [vmem:[%s264 + $0x60] sm:$0xf]
      %v306 = vld [vmem:[%s264 + $0x64] sm:$0xf]
      %v307 = vld [vmem:[%s264 + $0x68] sm:$0xf]
      %v308 = vld [vmem:[%s264 + $0x6c] sm:$0xf]
      %v309 = vld [vmem:[%s264 + $0x70] sm:$0xf]
      %v310 = vld [vmem:[%s264 + $0x74] sm:$0xf]
      %v311 = vld [vmem:[%s264 + $0x78] sm:$0xf]
      %v312 = vld [vmem:[%s264 + $0x7c] sm:$0xf]
      %v313 = vunpack.c.l.bf16 %v281
      %v314 = vunpack.c.l.bf16 %v282
      %v315 = vunpack.c.l.bf16 %v283
      %v316 = vunpack.c.l.bf16 %v284
      %v317 = vunpack.c.l.bf16 %v285
      %v318 = vunpack.c.l.bf16 %v286
      %v319 = vunpack.c.l.bf16 %v287
      %v320 = vunpack.c.l.bf16 %v288
      %v321 = vunpack.c.l.bf16 %v289
      %v322 = vunpack.c.l.bf16 %v290
      %v323 = vunpack.c.l.bf16 %v291
      %v324 = vunpack.c.l.bf16 %v292
      %v325 = vunpack.c.l.bf16 %v293
      %v326 = vunpack.c.l.bf16 %v294
      %v327 = vunpack.c.l.bf16 %v295
      %v328 = vunpack.c.l.bf16 %v296
      %v329 = vunpack.c.l.bf16 %v297
      %v330 = vunpack.c.l.bf16 %v298
      %v331 = vunpack.c.l.bf16 %v299
      %v332 = vunpack.c.l.bf16 %v300
      %v333 = vunpack.c.l.bf16 %v301
      %v334 = vunpack.c.l.bf16 %v302
      %v335 = vunpack.c.l.bf16 %v303
      %v336 = vunpack.c.l.bf16 %v304
      %v337 = vunpack.c.l.bf16 %v305
      %v338 = vunpack.c.l.bf16 %v306
      %v339 = vunpack.c.l.bf16 %v307
      %v340 = vunpack.c.l.bf16 %v308
      %v341 = vunpack.c.l.bf16 %v309
      %v342 = vunpack.c.l.bf16 %v310
      %v343 = vunpack.c.l.bf16 %v311
      %v344 = vunpack.c.l.bf16 %v312
      %v345 = vld [vmem:[%s1] sm:$0x1]
      %v346 = vld [vmem:[%s2] sm:$0x1]
      %v348 = vlaneseq
      %v349 = vshrl.u32 %v348, 7
      %v350 = vsub.s32 0, %v349
      %v351 = vrot.slane %v345, %v350
      %v353 = vmul.f32 %v313, %v351
      %v354 = vmul.f32 %v314, %v351
      %v355 = vmul.f32 %v315, %v351
      %v356 = vmul.f32 %v316, %v351
      %v357 = vmul.f32 %v317, %v351
      %v358 = vmul.f32 %v318, %v351
      %v359 = vmul.f32 %v319, %v351
      %v360 = vmul.f32 %v320, %v351
      %v361 = vmul.f32 %v321, %v351
      %v362 = vmul.f32 %v322, %v351
      %v363 = vmul.f32 %v323, %v351
      %v364 = vmul.f32 %v324, %v351
      %v365 = vmul.f32 %v325, %v351
      %v366 = vmul.f32 %v326, %v351
      %v367 = vmul.f32 %v327, %v351
      %v368 = vmul.f32 %v328, %v351
      %v369 = vmul.f32 %v329, %v351
      %v370 = vmul.f32 %v330, %v351
      %v371 = vmul.f32 %v331, %v351
      %v372 = vmul.f32 %v332, %v351
      %v373 = vmul.f32 %v333, %v351
      %v374 = vmul.f32 %v334, %v351
      %v375 = vmul.f32 %v335, %v351
      %v376 = vmul.f32 %v336, %v351
      %v377 = vmul.f32 %v337, %v351
      %v378 = vmul.f32 %v338, %v351
      %v379 = vmul.f32 %v339, %v351
      %v380 = vmul.f32 %v340, %v351
      %v381 = vmul.f32 %v341, %v351
      %v382 = vmul.f32 %v342, %v351
      %v383 = vmul.f32 %v343, %v351
      %v384 = vmul.f32 %v344, %v351
      %v386 = vlaneseq
      %v387 = vshrl.u32 %v386, 7
      %v388 = vsub.s32 0, %v387
      %v389 = vrot.slane %v346, %v388
      %v391 = vadd.f32 %v353, %v389
      %v392 = vadd.f32 %v354, %v389
      %v393 = vadd.f32 %v355, %v389
      %v394 = vadd.f32 %v356, %v389
      %v395 = vadd.f32 %v357, %v389
      %v396 = vadd.f32 %v358, %v389
      %v397 = vadd.f32 %v359, %v389
      %v398 = vadd.f32 %v360, %v389
      %v399 = vadd.f32 %v361, %v389
      %v400 = vadd.f32 %v362, %v389
      %v401 = vadd.f32 %v363, %v389
      %v402 = vadd.f32 %v364, %v389
      %v403 = vadd.f32 %v365, %v389
      %v404 = vadd.f32 %v366, %v389
      %v405 = vadd.f32 %v367, %v389
      %v406 = vadd.f32 %v368, %v389
      %v407 = vadd.f32 %v369, %v389
      %v408 = vadd.f32 %v370, %v389
      %v409 = vadd.f32 %v371, %v389
      %v410 = vadd.f32 %v372, %v389
      %v411 = vadd.f32 %v373, %v389
      %v412 = vadd.f32 %v374, %v389
      %v413 = vadd.f32 %v375, %v389
      %v414 = vadd.f32 %v376, %v389
      %v415 = vadd.f32 %v377, %v389
      %v416 = vadd.f32 %v378, %v389
      %v417 = vadd.f32 %v379, %v389
      %v418 = vadd.f32 %v380, %v389
      %v419 = vadd.f32 %v381, %v389
      %v420 = vadd.f32 %v382, %v389
      %v421 = vadd.f32 %v383, %v389
      %v422 = vadd.f32 %v384, %v389
      %v423 = vmax.f32 %v391, 0.0
      %v424 = vmax.f32 %v392, 0.0
      %v425 = vmax.f32 %v393, 0.0
      %v426 = vmax.f32 %v394, 0.0
      %v427 = vmax.f32 %v395, 0.0
      %v428 = vmax.f32 %v396, 0.0
      %v429 = vmax.f32 %v397, 0.0
      %v430 = vmax.f32 %v398, 0.0
      %v431 = vmax.f32 %v399, 0.0
      %v432 = vmax.f32 %v400, 0.0
      %v433 = vmax.f32 %v401, 0.0
      %v434 = vmax.f32 %v402, 0.0
      %v435 = vmax.f32 %v403, 0.0
      %v436 = vmax.f32 %v404, 0.0
      %v437 = vmax.f32 %v405, 0.0
      %v438 = vmax.f32 %v406, 0.0
      %v439 = vmax.f32 %v407, 0.0
      %v440 = vmax.f32 %v408, 0.0
      %v441 = vmax.f32 %v409, 0.0
      %v442 = vmax.f32 %v410, 0.0
      %v443 = vmax.f32 %v411, 0.0
      %v444 = vmax.f32 %v412, 0.0
      %v445 = vmax.f32 %v413, 0.0
      %v446 = vmax.f32 %v414, 0.0
      %v447 = vmax.f32 %v415, 0.0
      %v448 = vmax.f32 %v416, 0.0
      %v449 = vmax.f32 %v417, 0.0
      %v450 = vmax.f32 %v418, 0.0
      %v451 = vmax.f32 %v419, 0.0
      %v452 = vmax.f32 %v420, 0.0
      %v453 = vmax.f32 %v421, 0.0
      %v454 = vmax.f32 %v422, 0.0
      %vm487 = vcmask 1042432
      %v488 = vrot.slane %v423, 5
      %v489 = vrot.slane %v424, 5
      %v490 = vsel %vm487, %v488, %v489
      %v491 = vrot.slane %v425, 5
      %v492 = vrot.slane %v426, 5
      %v493 = vsel %vm487, %v491, %v492
      %v494 = vrot.slane %v427, 5
      %v495 = vrot.slane %v428, 5
      %v496 = vsel %vm487, %v494, %v495
      %v497 = vrot.slane %v429, 5
      %v498 = vrot.slane %v430, 5
      %v499 = vsel %vm487, %v497, %v498
      %v500 = vrot.slane %v431, 5
      %v501 = vrot.slane %v432, 5
      %v502 = vsel %vm487, %v500, %v501
      %v503 = vrot.slane %v433, 5
      %v504 = vrot.slane %v434, 5
      %v505 = vsel %vm487, %v503, %v504
      %v506 = vrot.slane %v435, 5
      %v507 = vrot.slane %v436, 5
      %v508 = vsel %vm487, %v506, %v507
      %v509 = vrot.slane %v437, 5
      %v510 = vrot.slane %v438, 5
      %v511 = vsel %vm487, %v509, %v510
      %v512 = vrot.slane %v439, 5
      %v513 = vrot.slane %v440, 5
      %v514 = vsel %vm487, %v512, %v513
      %v515 = vrot.slane %v441, 5
      %v516 = vrot.slane %v442, 5
      %v517 = vsel %vm487, %v515, %v516
      %v518 = vrot.slane %v443, 5
      %v519 = vrot.slane %v444, 5
      %v520 = vsel %vm487, %v518, %v519
      %v521 = vrot.slane %v445, 5
      %v522 = vrot.slane %v446, 5
      %v523 = vsel %vm487, %v521, %v522
      %v524 = vrot.slane %v447, 5
      %v525 = vrot.slane %v448, 5
      %v526 = vsel %vm487, %v524, %v525
      %v527 = vrot.slane %v449, 5
      %v528 = vrot.slane %v450, 5
      %v529 = vsel %vm487, %v527, %v528
      %v530 = vrot.slane %v451, 5
      %v531 = vrot.slane %v452, 5
      %v532 = vsel %vm487, %v530, %v531
      %v533 = vrot.slane %v453, 5
      %v534 = vrot.slane %v454, 5
      %v535 = vsel %vm487, %v533, %v534
      %v568 = vsel %vm487, 0.0, %v488
      %v569 = vsel %vm487, 0.0, %v491
      %v570 = vsel %vm487, 0.0, %v494
      %v571 = vsel %vm487, 0.0, %v497
      %v572 = vsel %vm487, 0.0, %v500
      %v573 = vsel %vm487, 0.0, %v503
      %v574 = vsel %vm487, 0.0, %v506
      %v575 = vsel %vm487, 0.0, %v509
      %v576 = vsel %vm487, 0.0, %v512
      %v577 = vsel %vm487, 0.0, %v515
      %v578 = vsel %vm487, 0.0, %v518
      %v579 = vsel %vm487, 0.0, %v521
      %v580 = vsel %vm487, 0.0, %v524
      %v581 = vsel %vm487, 0.0, %v527
      %v582 = vsel %vm487, 0.0, %v530
      %v583 = vsel %vm487, 0.0, %v533
      %v584 = vsel %vm487, %v489, 0.0
      %v585 = vsel %vm487, %v492, 0.0
      %v586 = vsel %vm487, %v495, 0.0
      %v587 = vsel %vm487, %v498, 0.0
      %v588 = vsel %vm487, %v501, 0.0
      %v589 = vsel %vm487, %v504, 0.0
      %v590 = vsel %vm487, %v507, 0.0
      %v591 = vsel %vm487, %v510, 0.0
      %v592 = vsel %vm487, %v513, 0.0
      %v593 = vsel %vm487, %v516, 0.0
      %v594 = vsel %vm487, %v519, 0.0
      %v595 = vsel %vm487, %v522, 0.0
      %v596 = vsel %vm487, %v525, 0.0
      %v597 = vsel %vm487, %v528, 0.0
      %v598 = vsel %vm487, %v531, 0.0
      %v599 = vsel %vm487, %v534, 0.0
      %v600 = vld [vmem:[%s3] sm:$0x3]
      %v601 = vld [vmem:[%s3 + $0x2] sm:$0x3]
      %v602 = vld [vmem:[%s3 + $0x4] sm:$0x3]
      %v603 = vld [vmem:[%s3 + $0x6] sm:$0x3]
      %v604 = vld [vmem:[%s3 + $0x8] sm:$0x3]
      %v605 = vld [vmem:[%s3 + $0xa] sm:$0x3]
      %v606 = vld [vmem:[%s3 + $0xc] sm:$0x3]
      %vm639 = vcmask 1046528
      %v640 = vrot.slane %v568, 1
      %v641 = vrot.slane %v490, 1
      %v642 = vsel %vm639, %v640, %v641
      %v643 = vrot.slane %v584, 1
      %v644 = vsel %vm639, %v641, %v643
      %v645 = vrot.slane %v569, 1
      %v646 = vrot.slane %v493, 1
      %v647 = vsel %vm639, %v645, %v646
      %v648 = vrot.slane %v585, 1
      %v649 = vsel %vm639, %v646, %v648
      %v650 = vrot.slane %v570, 1
      %v651 = vrot.slane %v496, 1
      %v652 = vsel %vm639, %v650, %v651
      %v653 = vrot.slane %v586, 1
      %v654 = vsel %vm639, %v651, %v653
      %v655 = vrot.slane %v571, 1
      %v656 = vrot.slane %v499, 1
      %v657 = vsel %vm639, %v655, %v656
      %v658 = vrot.slane %v587, 1
      %v659 = vsel %vm639, %v656, %v658
      %v660 = vrot.slane %v572, 1
      %v661 = vrot.slane %v502, 1
      %v662 = vsel %vm639, %v660, %v661
      %v663 = vrot.slane %v588, 1
      %v664 = vsel %vm639, %v661, %v663
      %v665 = vrot.slane %v573, 1
      %v666 = vrot.slane %v505, 1
      %v667 = vsel %vm639, %v665, %v666
      %v668 = vrot.slane %v589, 1
      %v669 = vsel %vm639, %v666, %v668
      %v670 = vrot.slane %v574, 1
      %v671 = vrot.slane %v508, 1
      %v672 = vsel %vm639, %v670, %v671
      %v673 = vrot.slane %v590, 1
      %v674 = vsel %vm639, %v671, %v673
      %v675 = vrot.slane %v575, 1
      %v676 = vrot.slane %v511, 1
      %v677 = vsel %vm639, %v675, %v676
      %v678 = vrot.slane %v591, 1
      %v679 = vsel %vm639, %v676, %v678
      %v680 = vrot.slane %v576, 1
      %v681 = vrot.slane %v514, 1
      %v682 = vsel %vm639, %v680, %v681
      %v683 = vrot.slane %v592, 1
      %v684 = vsel %vm639, %v681, %v683
      %v685 = vrot.slane %v577, 1
      %v686 = vrot.slane %v517, 1
      %v687 = vsel %vm639, %v685, %v686
      %v688 = vrot.slane %v593, 1
      %v689 = vsel %vm639, %v686, %v688
      %v690 = vrot.slane %v578, 1
      %v691 = vrot.slane %v520, 1
      %v692 = vsel %vm639, %v690, %v691
      %v693 = vrot.slane %v594, 1
      %v694 = vsel %vm639, %v691, %v693
      %v695 = vrot.slane %v579, 1
      %v696 = vrot.slane %v523, 1
      %v697 = vsel %vm639, %v695, %v696
      %v698 = vrot.slane %v595, 1
      %v699 = vsel %vm639, %v696, %v698
      %v700 = vrot.slane %v580, 1
      %v701 = vrot.slane %v526, 1
      %v702 = vsel %vm639, %v700, %v701
      %v703 = vrot.slane %v596, 1
      %v704 = vsel %vm639, %v701, %v703
      %v705 = vrot.slane %v581, 1
      %v706 = vrot.slane %v529, 1
      %v707 = vsel %vm639, %v705, %v706
      %v708 = vrot.slane %v597, 1
      %v709 = vsel %vm639, %v706, %v708
      %v710 = vrot.slane %v582, 1
      %v711 = vrot.slane %v532, 1
      %v712 = vsel %vm639, %v710, %v711
      %v713 = vrot.slane %v598, 1
      %v714 = vsel %vm639, %v711, %v713
      %v715 = vrot.slane %v583, 1
      %v716 = vrot.slane %v535, 1
      %v717 = vsel %vm639, %v715, %v716
      %v718 = vrot.slane %v599, 1
      %v719 = vsel %vm639, %v716, %v718
      %vm720 = vcmask 15360
      %v721 = vsel %vm720, %v642, 0
      %v723 = vsel %vm720, %v644, 0
      %v725 = vsel %vm720, %v647, 0
      %v727 = vsel %vm720, %v649, 0
      %v729 = vsel %vm720, %v652, 0
      %v731 = vsel %vm720, %v654, 0
      %v733 = vsel %vm720, %v657, 0
      %v735 = vsel %vm720, %v659, 0
      %v737 = vsel %vm720, %v662, 0
      %v739 = vsel %vm720, %v664, 0
      %v741 = vsel %vm720, %v667, 0
      %v743 = vsel %vm720, %v669, 0
      %v745 = vsel %vm720, %v672, 0
      %v747 = vsel %vm720, %v674, 0
      %v749 = vsel %vm720, %v677, 0
      %v751 = vsel %vm720, %v679, 0
      %v753 = vsel %vm720, %v682, 0
      %v755 = vsel %vm720, %v684, 0
      %v757 = vsel %vm720, %v687, 0
      %v759 = vsel %vm720, %v689, 0
      %v761 = vsel %vm720, %v692, 0
      %v763 = vsel %vm720, %v694, 0
      %v765 = vsel %vm720, %v697, 0
      %v767 = vsel %vm720, %v699, 0
      %v769 = vsel %vm720, %v702, 0
      %v771 = vsel %vm720, %v704, 0
      %v773 = vsel %vm720, %v707, 0
      %v775 = vsel %vm720, %v709, 0
      %v777 = vsel %vm720, %v712, 0
      %v779 = vsel %vm720, %v714, 0
      %v781 = vsel %vm720, %v717, 0
      %v783 = vsel %vm720, %v719, 0
      %vm785 = vcmask 1041408
      %v787 = vsel %vm785, %v601, 0
      %789 = vmatprep.subr.mxu0 0.0
      %790 = vmatpush1.msra.mxu0 %v787
      %791 = vmatprep.subr.mxu0 0.0
      %792 = vmatpush1.msra.mxu0 0.0
      %793 = vmatprep.subr.mxu0 0.0
      %794 = vmatpush1.msra.mxu0 0.0
      %795 = vmatprep.subr.mxu0 0.0
      %796 = vmatpush1.msra.mxu0 0.0
      %797 = vmatprep.subr.mxu0 0.0
      %798 = vmatpush1.msra.mxu0 0.0
      %799 = vmatprep.subr.mxu0 0.0
      %800 = vmatpush1.msra.mxu0 0.0
      %801 = vmatprep.subr.mxu0 0.0
      %802 = vmatpush1.msra.mxu0 0.0
      %803 = vmatprep.subr.mxu0 0.0
      %804 = vmatpush1.msra.mxu0 0.0
      %805 = vmatprep.subr.mxu0 0.0
      %806 = vmatpush1.msra.mxu0 0.0
      %807 = vmatprep.subr.mxu0 0.0
      %808 = vmatpush1.msra.mxu0 0.0
      %809 = vmatprep.subr.mxu0 0.0
      %810 = vmatpush1.msra.mxu0 0.0
      %811 = vmatprep.subr.mxu0 0.0
      %812 = vmatpush1.msra.mxu0 0.0
      %813 = vmatprep.subr.mxu0 0.0
      %814 = vmatpush1.msra.mxu0 0.0
      %815 = vmatprep.subr.mxu0 0.0
      %816 = vmatpush1.msra.mxu0 0.0
      %817 = vmatprep.subr.mxu0 0.0
      %818 = vmatpush1.msra.mxu0 0.0
      %819 = vmatprep.subr.mxu0 0.0
      %820 = vmatpush1.msra.mxu0 0.0
      %821 = vmatprep.subr.mxu0 0.0
      %822 = vmatpush1.msra.mxu0 0.0
      %823 = vmatprep.subr.mxu0 0.0
      %824 = vmatpush1.msra.mxu0 0.0
      %825 = vmatprep.subr.mxu0 0.0
      %826 = vmatpush1.msra.mxu0 0.0
      %827 = vmatprep.subr.mxu0 0.0
      %828 = vmatpush1.msra.mxu0 0.0
      %829 = vmatprep.subr.mxu0 0.0
      %830 = vmatpush1.msra.mxu0 0.0
      %831 = vmatprep.subr.mxu0 0.0
      %832 = vmatpush1.msra.mxu0 0.0
      %833 = vmatprep.subr.mxu0 0.0
      %834 = vmatpush1.msra.mxu0 0.0
      %835 = vmatprep.subr.mxu0 0.0
      %836 = vmatpush1.msra.mxu0 0.0
      %837 = vmatprep.subr.mxu0 0.0
      %838 = vmatpush1.msra.mxu0 0.0
      %839 = vmatprep.subr.mxu0 0.0
      %840 = vmatpush1.msra.mxu0 0.0
      %841 = vmatprep.subr.mxu0 0.0
      %842 = vmatpush1.msra.mxu0 0.0
      %843 = vmatprep.subr.mxu0 0.0
      %844 = vmatpush1.msra.mxu0 0.0
      %845 = vmatprep.subr.mxu0 0.0
      %846 = vmatpush1.msra.mxu0 0.0
      %847 = vmatprep.subr.mxu0 0.0
      %848 = vmatpush1.msra.mxu0 0.0
      %849 = vmatprep.subr.mxu0 0.0
      %850 = vmatpush1.msra.mxu0 0.0
      %851 = vmatprep.subr.mxu0 0.0
      %852 = vmatpush1.msra.mxu0 0.0
      %853 = vmatprep.mubr.f32.mxu0 0.0
      %854 = vmatmul.mubr.f32.gmra.mrb[0].mxu0 %v721
      %v855 = vpop.f32.mrb[0].mxu0
      %v856 = vadd.f32 0.0, %v855
      %v857 = vpop.f32.mrb[0].mxu0
      %858 = vmatprep.mubr.f32.mxu0 0.0
      %859 = vmatmul.mubr.f32.gmra.mrb[0].mxu0 %v723
      %v860 = vpop.f32.mrb[0].mxu0
      %v861 = vadd.f32 0.0, %v860
      %v862 = vpop.f32.mrb[0].mxu0
      %863 = vmatprep.mubr.f32.mxu0 0.0
      %864 = vmatmul.mubr.f32.gmra.mrb[0].mxu0 %v725
      %v865 = vpop.f32.mrb[0].mxu0
      %v866 = vadd.f32 0.0, %v865
      %v867 = vpop.f32.mrb[0].mxu0
      %868 = vmatprep.mubr.f32.mxu0 0.0
      %869 = vmatmul.mubr.f32.gmra.mrb[0].mxu0 %v727
      %v870 = vpop.f32.mrb[0].mxu0
      %v871 = vadd.f32 0.0, %v870
      %v872 = vpop.f32.mrb[0].mxu0
      %873 = vmatprep.mubr.f32.mxu0 0.0
      %874 = vmatmul.mubr.f32.gmra.mrb[0].mxu0 %v729
      %v875 = vpop.f32.mrb[0].mxu0
      %v876 = vadd.f32 0.0, %v875
      %v877 = vpop.f32.mrb[0].mxu0
      %878 = vmatprep.mubr.f32.mxu0 0.0
      %879 = vmatmul.mubr.f32.gmra.mrb[0].mxu0 %v731
      %v880 = vpop.f32.mrb[0].mxu0
      %v881 = vadd.f32 0.0, %v880
      %v882 = vpop.f32.mrb[0].mxu0
      %883 = vmatprep.mubr.f32.mxu0 0.0
      %884 = vmatmul.mubr.f32.gmra.mrb[0].mxu0 %v733
      %v885 = vpop.f32.mrb[0].mxu0
      %v886 = vadd.f32 0.0, %v885
      %v887 = vpop.f32.mrb[0].mxu0
      %888 = vmatprep.mubr.f32.mxu0 0.0
      %889 = vmatmul.mubr.f32.gmra.mrb[0].mxu0 %v735
      %v890 = vpop.f32.mrb[0].mxu0
      %v891 = vadd.f32 0.0, %v890
      %v892 = vpop.f32.mrb[0].mxu0
      %893 = vmatprep.mubr.f32.mxu0 0.0
      %894 = vmatmul.mubr.f32.gmra.mrb[0].mxu0 %v737
      %v895 = vpop.f32.mrb[0].mxu0
      %v896 = vadd.f32 0.0, %v895
      %v897 = vpop.f32.mrb[0].mxu0
      %898 = vmatprep.mubr.f32.mxu0 0.0
      %899 = vmatmul.mubr.f32.gmra.mrb[0].mxu0 %v739
      %v900 = vpop.f32.mrb[0].mxu0
      %v901 = vadd.f32 0.0, %v900
      %v902 = vpop.f32.mrb[0].mxu0
      %903 = vmatprep.mubr.f32.mxu0 0.0
      %904 = vmatmul.mubr.f32.gmra.mrb[0].mxu0 %v741
      %v905 = vpop.f32.mrb[0].mxu0
      %v906 = vadd.f32 0.0, %v905
      %v907 = vpop.f32.mrb[0].mxu0
      %908 = vmatprep.mubr.f32.mxu0 0.0
      %909 = vmatmul.mubr.f32.gmra.mrb[0].mxu0 %v743
      %v910 = vpop.f32.mrb[0].mxu0
      %v911 = vadd.f32 0.0, %v910
      %v912 = vpop.f32.mrb[0].mxu0
      %913 = vmatprep.mubr.f32.mxu0 0.0
      %914 = vmatmul.mubr.f32.gmra.mrb[0].mxu0 %v745
      %v915 = vpop.f32.mrb[0].mxu0
      %v916 = vadd.f32 0.0, %v915
      %v917 = vpop.f32.mrb[0].mxu0
      %918 = vmatprep.mubr.f32.mxu0 0.0
      %919 = vmatmul.mubr.f32.gmra.mrb[0].mxu0 %v747
      %v920 = vpop.f32.mrb[0].mxu0
      %v921 = vadd.f32 0.0, %v920
      %v922 = vpop.f32.mrb[0].mxu0
      %923 = vmatprep.mubr.f32.mxu0 0.0
      %924 = vmatmul.mubr.f32.gmra.mrb[0].mxu0 %v749
      %v925 = vpop.f32.mrb[0].mxu0
      %v926 = vadd.f32 0.0, %v925
      %v927 = vpop.f32.mrb[0].mxu0
      %928 = vmatprep.mubr.f32.mxu0 0.0
      %929 = vmatmul.mubr.f32.gmra.mrb[0].mxu0 %v751
      %v930 = vpop.f32.mrb[0].mxu0
      %v931 = vadd.f32 0.0, %v930
      %v932 = vpop.f32.mrb[0].mxu0
      %933 = vmatprep.mubr.f32.mxu0 0.0
      %934 = vmatmul.mubr.f32.gmra.mrb[0].mxu0 %v753
      %v935 = vpop.f32.mrb[0].mxu0
      %v936 = vadd.f32 0.0, %v935
      %v937 = vpop.f32.mrb[0].mxu0
      %938 = vmatprep.mubr.f32.mxu0 0.0
      %939 = vmatmul.mubr.f32.gmra.mrb[0].mxu0 %v755
      %v940 = vpop.f32.mrb[0].mxu0
      %v941 = vadd.f32 0.0, %v940
      %v942 = vpop.f32.mrb[0].mxu0
      %943 = vmatprep.mubr.f32.mxu0 0.0
      %944 = vmatmul.mubr.f32.gmra.mrb[0].mxu0 %v757
      %v945 = vpop.f32.mrb[0].mxu0
      %v946 = vadd.f32 0.0, %v945
      %v947 = vpop.f32.mrb[0].mxu0
      %948 = vmatprep.mubr.f32.mxu0 0.0
      %949 = vmatmul.mubr.f32.gmra.mrb[0].mxu0 %v759
      %v950 = vpop.f32.mrb[0].mxu0
      %v951 = vadd.f32 0.0, %v950
      %v952 = vpop.f32.mrb[0].mxu0
      %953 = vmatprep.mubr.f32.mxu0 0.0
      %954 = vmatmul.mubr.f32.gmra.mrb[0].mxu0 %v761
      %v955 = vpop.f32.mrb[0].mxu0
      %v956 = vadd.f32 0.0, %v955
      %v957 = vpop.f32.mrb[0].mxu0
      %958 = vmatprep.mubr.f32.mxu0 0.0
      %959 = vmatmul.mubr.f32.gmra.mrb[0].mxu0 %v763
      %v960 = vpop.f32.mrb[0].mxu0
      %v961 = vadd.f32 0.0, %v960
      %v962 = vpop.f32.mrb[0].mxu0
      %963 = vmatprep.mubr.f32.mxu0 0.0
      %964 = vmatmul.mubr.f32.gmra.mrb[0].mxu0 %v765
      %v965 = vpop.f32.mrb[0].mxu0
      %v966 = vadd.f32 0.0, %v965
      %v967 = vpop.f32.mrb[0].mxu0
      %968 = vmatprep.mubr.f32.mxu0 0.0
      %969 = vmatmul.mubr.f32.gmra.mrb[0].mxu0 %v767
      %v970 = vpop.f32.mrb[0].mxu0
      %v971 = vadd.f32 0.0, %v970
      %v972 = vpop.f32.mrb[0].mxu0
      %973 = vmatprep.mubr.f32.mxu0 0.0
      %974 = vmatmul.mubr.f32.gmra.mrb[0].mxu0 %v769
      %v975 = vpop.f32.mrb[0].mxu0
      %v976 = vadd.f32 0.0, %v975
      %v977 = vpop.f32.mrb[0].mxu0
      %978 = vmatprep.mubr.f32.mxu0 0.0
      %979 = vmatmul.mubr.f32.gmra.mrb[0].mxu0 %v771
      %v980 = vpop.f32.mrb[0].mxu0
      %v981 = vadd.f32 0.0, %v980
      %v982 = vpop.f32.mrb[0].mxu0
      %983 = vmatprep.mubr.f32.mxu0 0.0
      %984 = vmatmul.mubr.f32.gmra.mrb[0].mxu0 %v773
      %v985 = vpop.f32.mrb[0].mxu0
      %v986 = vadd.f32 0.0, %v985
      %v987 = vpop.f32.mrb[0].mxu0
      %988 = vmatprep.mubr.f32.mxu0 0.0
      %989 = vmatmul.mubr.f32.gmra.mrb[0].mxu0 %v775
      %v990 = vpop.f32.mrb[0].mxu0
      %v991 = vadd.f32 0.0, %v990
      %v992 = vpop.f32.mrb[0].mxu0
      %993 = vmatprep.mubr.f32.mxu0 0.0
      %994 = vmatmul.mubr.f32.gmra.mrb[0].mxu0 %v777
      %v995 = vpop.f32.mrb[0].mxu0
      %v996 = vadd.f32 0.0, %v995
      %v997 = vpop.f32.mrb[0].mxu0
      %998 = vmatprep.mubr.f32.mxu0 0.0
      %999 = vmatmul.mubr.f32.gmra.mrb[0].mxu0 %v779
      %v1000 = vpop.f32.mrb[0].mxu0
      %v1001 = vadd.f32 0.0, %v1000
      %v1002 = vpop.f32.mrb[0].mxu0
      %1003 = vmatprep.mubr.f32.mxu0 0.0
      %1004 = vmatmul.mubr.f32.gmra.mrb[0].mxu0 %v781
      %v1005 = vpop.f32.mrb[0].mxu0
      %v1006 = vadd.f32 0.0, %v1005
      %v1007 = vpop.f32.mrb[0].mxu0
      %1008 = vmatprep.mubr.f32.mxu0 0.0
      %1009 = vmatmul.mubr.f32.gmra.mrb[0].mxu0 %v783
      %v1010 = vpop.f32.mrb[0].mxu0
      %v1011 = vadd.f32 0.0, %v1010
      %v1012 = vpop.f32.mrb[0].mxu0
      %1013 = vdwg.mxu0
      %v1014 = vsel %vm720, %v568, 0
      %v1016 = vsel %vm720, %v490, 0
      %v1018 = vsel %vm720, %v569, 0
      %v1020 = vsel %vm720, %v493, 0
      %v1022 = vsel %vm720, %v570, 0
      %v1024 = vsel %vm720, %v496, 0
      %v1026 = vsel %vm720, %v571, 0
      %v1028 = vsel %vm720, %v499, 0
      %v1030 = vsel %vm720, %v572, 0
      %v1032 = vsel %vm720, %v502, 0
      %v1034 = vsel %vm720, %v573, 0
      %v1036 = vsel %vm720, %v505, 0
      %v1038 = vsel %vm720, %v574, 0
      %v1040 = vsel %vm720, %v508, 0
      %v1042 = vsel %vm720, %v575, 0
      %v1044 = vsel %vm720, %v511, 0
      %v1046 = vsel %vm720, %v576, 0
      %v1048 = vsel %vm720, %v514, 0
      %v1050 = vsel %vm720, %v577, 0
      %v1052 = vsel %vm720, %v517, 0
      %v1054 = vsel %vm720, %v578, 0
      %v1056 = vsel %vm720, %v520, 0
      %v1058 = vsel %vm720, %v579, 0
      %v1060 = vsel %vm720, %v523, 0
      %v1062 = vsel %vm720, %v580, 0
      %v1064 = vsel %vm720, %v526, 0
      %v1066 = vsel %vm720, %v581, 0
      %v1068 = vsel %vm720, %v529, 0
      %v1070 = vsel %vm720, %v582, 0
      %v1072 = vsel %vm720, %v532, 0
      %v1074 = vsel %vm720, %v583, 0
      %v1076 = vsel %vm720, %v535, 0
      %v1079 = vsel %vm785, %v600, 0
      %1081 = vmatprep.subr.mxu0 0.0
      %1082 = vmatpush1.msra.mxu0 %v1079
      %1083 = vmatprep.subr.mxu0 0.0
      %1084 = vmatpush1.msra.mxu0 0.0
      %1085 = vmatprep.subr.mxu0 0.0
      %1086 = vmatpush1.msra.mxu0 0.0
      %1087 = vmatprep.subr.mxu0 0.0
      %1088 = vmatpush1.msra.mxu0 0.0
      %1089 = vmatprep.subr.mxu0 0.0
      %1090 = vmatpush1.msra.mxu0 0.0
      %1091 = vmatprep.subr.mxu0 0.0
      %1092 = vmatpush1.msra.mxu0 0.0
      %1093 = vmatprep.subr.mxu0 0.0
      %1094 = vmatpush1.msra.mxu0 0.0
      %1095 = vmatprep.subr.mxu0 0.0
      %1096 = vmatpush1.msra.mxu0 0.0
      %1097 = vmatprep.subr.mxu0 0.0
      %1098 = vmatpush1.msra.mxu0 0.0
      %1099 = vmatprep.subr.mxu0 0.0
      %1100 = vmatpush1.msra.mxu0 0.0
      %1101 = vmatprep.subr.mxu0 0.0
      %1102 = vmatpush1.msra.mxu0 0.0
      %1103 = vmatprep.subr.mxu0 0.0
      %1104 = vmatpush1.msra.mxu0 0.0
      %1105 = vmatprep.subr.mxu0 0.0
      %1106 = vmatpush1.msra.mxu0 0.0
      %1107 = vmatprep.subr.mxu0 0.0
      %1108 = vmatpush1.msra.mxu0 0.0
      %1109 = vmatprep.subr.mxu0 0.0
      %1110 = vmatpush1.msra.mxu0 0.0
      %1111 = vmatprep.subr.mxu0 0.0
      %1112 = vmatpush1.msra.mxu0 0.0
      %1113 = vmatprep.subr.mxu0 0.0
      %1114 = vmatpush1.msra.mxu0 0.0
      %1115 = vmatprep.subr.mxu0 0.0
      %1116 = vmatpush1.msra.mxu0 0.0
      %1117 = vmatprep.subr.mxu0 0.0
      %1118 = vmatpush1.msra.mxu0 0.0
      %1119 = vmatprep.subr.mxu0 0.0
      %1120 = vmatpush1.msra.mxu0 0.0
      %1121 = vmatprep.subr.mxu0 0.0
      %1122 = vmatpush1.msra.mxu0 0.0
      %1123 = vmatprep.subr.mxu0 0.0
      %1124 = vmatpush1.msra.mxu0 0.0
      %1125 = vmatprep.subr.mxu0 0.0
      %1126 = vmatpush1.msra.mxu0 0.0
      %1127 = vmatprep.subr.mxu0 0.0
      %1128 = vmatpush1.msra.mxu0 0.0
      %1129 = vmatprep.subr.mxu0 0.0
      %1130 = vmatpush1.msra.mxu0 0.0
      %1131 = vmatprep.subr.mxu0 0.0
      %1132 = vmatpush1.msra.mxu0 0.0
      %1133 = vmatprep.subr.mxu0 0.0
      %1134 = vmatpush1.msra.mxu0 0.0
      %1135 = vmatprep.subr.mxu0 0.0
      %1136 = vmatpush1.msra.mxu0 0.0
      %1137 = vmatprep.subr.mxu0 0.0
      %1138 = vmatpush1.msra.mxu0 0.0
      %1139 = vmatprep.subr.mxu0 0.0
      %1140 = vmatpush1.msra.mxu0 0.0
      %1141 = vmatprep.subr.mxu0 0.0
      %1142 = vmatpush1.msra.mxu0 0.0
      %1143 = vmatprep.subr.mxu0 0.0
      %1144 = vmatpush1.msra.mxu0 0.0
      %1145 = vmatprep.mubr.f32.mxu0 0.0
      %1146 = vmatmul.mubr.f32.gmra.mrb[0].mxu0 %v1014
      %v1147 = vpop.f32.mrb[0].mxu0
      %v1148 = vadd.f32 %v856, %v1147
      %v1149 = vpop.f32.mrb[0].mxu0
      %1150 = vmatprep.mubr.f32.mxu0 0.0
      %1151 = vmatmul.mubr.f32.gmra.mrb[0].mxu0 %v1016
      %v1152 = vpop.f32.mrb[0].mxu0
      %v1153 = vadd.f32 %v861, %v1152
      %v1154 = vpop.f32.mrb[0].mxu0
      %1155 = vmatprep.mubr.f32.mxu0 0.0
      %1156 = vmatmul.mubr.f32.gmra.mrb[0].mxu0 %v1018
      %v1157 = vpop.f32.mrb[0].mxu0
      %v1158 = vadd.f32 %v866, %v1157
      %v1159 = vpop.f32.mrb[0].mxu0
      %1160 = vmatprep.mubr.f32.mxu0 0.0
      %1161 = vmatmul.mubr.f32.gmra.mrb[0].mxu0 %v1020
      %v1162 = vpop.f32.mrb[0].mxu0
      %v1163 = vadd.f32 %v871, %v1162
      %v1164 = vpop.f32.mrb[0].mxu0
      %1165 = vmatprep.mubr.f32.mxu0 0.0
      %1166 = vmatmul.mubr.f32.gmra.mrb[0].mxu0 %v1022
      %v1167 = vpop.f32.mrb[0].mxu0
      %v1168 = vadd.f32 %v876, %v1167
      %v1169 = vpop.f32.mrb[0].mxu0
      %1170 = vmatprep.mubr.f32.mxu0 0.0
      %1171 = vmatmul.mubr.f32.gmra.mrb[0].mxu0 %v1024
      %v1172 = vpop.f32.mrb[0].mxu0
      %v1173 = vadd.f32 %v881, %v1172
      %v1174 = vpop.f32.mrb[0].mxu0
      %1175 = vmatprep.mubr.f32.mxu0 0.0
      %1176 = vmatmul.mubr.f32.gmra.mrb[0].mxu0 %v1026
      %v1177 = vpop.f32.mrb[0].mxu0
      %v1178 = vadd.f32 %v886, %v1177
      %v1179 = vpop.f32.mrb[0].mxu0
      %1180 = vmatprep.mubr.f32.mxu0 0.0
      %1181 = vmatmul.mubr.f32.gmra.mrb[0].mxu0 %v1028
      %v1182 = vpop.f32.mrb[0].mxu0
      %v1183 = vadd.f32 %v891, %v1182
      %v1184 = vpop.f32.mrb[0].mxu0
      %1185 = vmatprep.mubr.f32.mxu0 0.0
      %1186 = vmatmul.mubr.f32.gmra.mrb[0].mxu0 %v1030
      %v1187 = vpop.f32.mrb[0].mxu0
      %v1188 = vadd.f32 %v896, %v1187
      %v1189 = vpop.f32.mrb[0].mxu0
      %1190 = vmatprep.mubr.f32.mxu0 0.0
      %1191 = vmatmul.mubr.f32.gmra.mrb[0].mxu0 %v1032
      %v1192 = vpop.f32.mrb[0].mxu0
      %v1193 = vadd.f32 %v901, %v1192
      %v1194 = vpop.f32.mrb[0].mxu0
      %1195 = vmatprep.mubr.f32.mxu0 0.0
      %1196 = vmatmul.mubr.f32.gmra.mrb[0].mxu0 %v1034
      %v1197 = vpop.f32.mrb[0].mxu0
      %v1198 = vadd.f32 %v906, %v1197
      %v1199 = vpop.f32.mrb[0].mxu0
      %1200 = vmatprep.mubr.f32.mxu0 0.0
      %1201 = vmatmul.mubr.f32.gmra.mrb[0].mxu0 %v1036
      %v1202 = vpop.f32.mrb[0].mxu0
      %v1203 = vadd.f32 %v911, %v1202
      %v1204 = vpop.f32.mrb[0].mxu0
      %1205 = vmatprep.mubr.f32.mxu0 0.0
      %1206 = vmatmul.mubr.f32.gmra.mrb[0].mxu0 %v1038
      %v1207 = vpop.f32.mrb[0].mxu0
      %v1208 = vadd.f32 %v916, %v1207
      %v1209 = vpop.f32.mrb[0].mxu0
      %1210 = vmatprep.mubr.f32.mxu0 0.0
      %1211 = vmatmul.mubr.f32.gmra.mrb[0].mxu0 %v1040
      %v1212 = vpop.f32.mrb[0].mxu0
      %v1213 = vadd.f32 %v921, %v1212
      %v1214 = vpop.f32.mrb[0].mxu0
      %1215 = vmatprep.mubr.f32.mxu0 0.0
      %1216 = vmatmul.mubr.f32.gmra.mrb[0].mxu0 %v1042
      %v1217 = vpop.f32.mrb[0].mxu0
      %v1218 = vadd.f32 %v926, %v1217
      %v1219 = vpop.f32.mrb[0].mxu0
      %1220 = vmatprep.mubr.f32.mxu0 0.0
      %1221 = vmatmul.mubr.f32.gmra.mrb[0].mxu0 %v1044
      %v1222 = vpop.f32.mrb[0].mxu0
      %v1223 = vadd.f32 %v931, %v1222
      %v1224 = vpop.f32.mrb[0].mxu0
      %1225 = vmatprep.mubr.f32.mxu0 0.0
      %1226 = vmatmul.mubr.f32.gmra.mrb[0].mxu0 %v1046
      %v1227 = vpop.f32.mrb[0].mxu0
      %v1228 = vadd.f32 %v936, %v1227
      %v1229 = vpop.f32.mrb[0].mxu0
      %1230 = vmatprep.mubr.f32.mxu0 0.0
      %1231 = vmatmul.mubr.f32.gmra.mrb[0].mxu0 %v1048
      %v1232 = vpop.f32.mrb[0].mxu0
      %v1233 = vadd.f32 %v941, %v1232
      %v1234 = vpop.f32.mrb[0].mxu0
      %1235 = vmatprep.mubr.f32.mxu0 0.0
      %1236 = vmatmul.mubr.f32.gmra.mrb[0].mxu0 %v1050
      %v1237 = vpop.f32.mrb[0].mxu0
      %v1238 = vadd.f32 %v946, %v1237
      %v1239 = vpop.f32.mrb[0].mxu0
      %1240 = vmatprep.mubr.f32.mxu0 0.0
      %1241 = vmatmul.mubr.f32.gmra.mrb[0].mxu0 %v1052
      %v1242 = vpop.f32.mrb[0].mxu0
      %v1243 = vadd.f32 %v951, %v1242
      %v1244 = vpop.f32.mrb[0].mxu0
      %1245 = vmatprep.mubr.f32.mxu0 0.0
      %1246 = vmatmul.mubr.f32.gmra.mrb[0].mxu0 %v1054
      %v1247 = vpop.f32.mrb[0].mxu0
      %v1248 = vadd.f32 %v956, %v1247
      %v1249 = vpop.f32.mrb[0].mxu0
      %1250 = vmatprep.mubr.f32.mxu0 0.0
      %1251 = vmatmul.mubr.f32.gmra.mrb[0].mxu0 %v1056
      %v1252 = vpop.f32.mrb[0].mxu0
      %v1253 = vadd.f32 %v961, %v1252
      %v1254 = vpop.f32.mrb[0].mxu0
      %1255 = vmatprep.mubr.f32.mxu0 0.0
      %1256 = vmatmul.mubr.f32.gmra.mrb[0].mxu0 %v1058
      %v1257 = vpop.f32.mrb[0].mxu0
      %v1258 = vadd.f32 %v966, %v1257
      %v1259 = vpop.f32.mrb[0].mxu0
      %1260 = vmatprep.mubr.f32.mxu0 0.0
      %1261 = vmatmul.mubr.f32.gmra.mrb[0].mxu0 %v1060
      %v1262 = vpop.f32.mrb[0].mxu0
      %v1263 = vadd.f32 %v971, %v1262
      %v1264 = vpop.f32.mrb[0].mxu0
      %1265 = vmatprep.mubr.f32.mxu0 0.0
      %1266 = vmatmul.mubr.f32.gmra.mrb[0].mxu0 %v1062
      %v1267 = vpop.f32.mrb[0].mxu0
      %v1268 = vadd.f32 %v976, %v1267
      %v1269 = vpop.f32.mrb[0].mxu0
      %1270 = vmatprep.mubr.f32.mxu0 0.0
      %1271 = vmatmul.mubr.f32.gmra.mrb[0].mxu0 %v1064
      %v1272 = vpop.f32.mrb[0].mxu0
      %v1273 = vadd.f32 %v981, %v1272
      %v1274 = vpop.f32.mrb[0].mxu0
      %1275 = vmatprep.mubr.f32.mxu0 0.0
      %1276 = vmatmul.mubr.f32.gmra.mrb[0].mxu0 %v1066
      %v1277 = vpop.f32.mrb[0].mxu0
      %v1278 = vadd.f32 %v986, %v1277
      %v1279 = vpop.f32.mrb[0].mxu0
      %1280 = vmatprep.mubr.f32.mxu0 0.0
      %1281 = vmatmul.mubr.f32.gmra.mrb[0].mxu0 %v1068
      %v1282 = vpop.f32.mrb[0].mxu0
      %v1283 = vadd.f32 %v991, %v1282
      %v1284 = vpop.f32.mrb[0].mxu0
      %1285 = vmatprep.mubr.f32.mxu0 0.0
      %1286 = vmatmul.mubr.f32.gmra.mrb[0].mxu0 %v1070
      %v1287 = vpop.f32.mrb[0].mxu0
      %v1288 = vadd.f32 %v996, %v1287
      %v1289 = vpop.f32.mrb[0].mxu0
      %1290 = vmatprep.mubr.f32.mxu0 0.0
      %1291 = vmatmul.mubr.f32.gmra.mrb[0].mxu0 %v1072
      %v1292 = vpop.f32.mrb[0].mxu0
      %v1293 = vadd.f32 %v1001, %v1292
      %v1294 = vpop.f32.mrb[0].mxu0
      %1295 = vmatprep.mubr.f32.mxu0 0.0
      %1296 = vmatmul.mubr.f32.gmra.mrb[0].mxu0 %v1074
      %v1297 = vpop.f32.mrb[0].mxu0
      %v1298 = vadd.f32 %v1006, %v1297
      %v1299 = vpop.f32.mrb[0].mxu0
      %1300 = vmatprep.mubr.f32.mxu0 0.0
      %1301 = vmatmul.mubr.f32.gmra.mrb[0].mxu0 %v1076
      %v1302 = vpop.f32.mrb[0].mxu0
      %v1303 = vadd.f32 %v1011, %v1302
      %v1304 = vpop.f32.mrb[0].mxu0
      %1305 = vdwg.mxu0
      %vm1306 = vcmask 1045504
      %v1307 = vrot.slane %v568, 2
      %v1308 = vrot.slane %v490, 2
      %v1309 = vsel %vm1306, %v1307, %v1308
      %v1310 = vrot.slane %v584, 2
      %v1311 = vsel %vm1306, %v1308, %v1310
      %v1312 = vrot.slane %v569, 2
      %v1313 = vrot.slane %v493, 2
      %v1314 = vsel %vm1306, %v1312, %v1313
      %v1315 = vrot.slane %v585, 2
      %v1316 = vsel %vm1306, %v1313, %v1315
      %v1317 = vrot.slane %v570, 2
      %v1318 = vrot.slane %v496, 2
      %v1319 = vsel %vm1306, %v1317, %v1318
      %v1320 = vrot.slane %v586, 2
      %v1321 = vsel %vm1306, %v1318, %v1320
      %v1322 = vrot.slane %v571, 2
      %v1323 = vrot.slane %v499, 2
      %v1324 = vsel %vm1306, %v1322, %v1323
      %v1325 = vrot.slane %v587, 2
      %v1326 = vsel %vm1306, %v1323, %v1325
      %v1327 = vrot.slane %v572, 2
      %v1328 = vrot.slane %v502, 2
      %v1329 = vsel %vm1306, %v1327, %v1328
      %v1330 = vrot.slane %v588, 2
      %v1331 = vsel %vm1306, %v1328, %v1330
      %v1332 = vrot.slane %v573, 2
      %v1333 = vrot.slane %v505, 2
      %v1334 = vsel %vm1306, %v1332, %v1333
      %v1335 = vrot.slane %v589, 2
      %v1336 = vsel %vm1306, %v1333, %v1335
      %v1337 = vrot.slane %v574, 2
      %v1338 = vrot.slane %v508, 2
      %v1339 = vsel %vm1306, %v1337, %v1338
      %v1340 = vrot.slane %v590, 2
      %v1341 = vsel %vm1306, %v1338, %v1340
      %v1342 = vrot.slane %v575, 2
      %v1343 = vrot.slane %v511, 2
      %v1344 = vsel %vm1306, %v1342, %v1343
      %v1345 = vrot.slane %v591, 2
      %v1346 = vsel %vm1306, %v1343, %v1345
      %v1347 = vrot.slane %v576, 2
      %v1348 = vrot.slane %v514, 2
      %v1349 = vsel %vm1306, %v1347, %v1348
      %v1350 = vrot.slane %v592, 2
      %v1351 = vsel %vm1306, %v1348, %v1350
      %v1352 = vrot.slane %v577, 2
      %v1353 = vrot.slane %v517, 2
      %v1354 = vsel %vm1306, %v1352, %v1353
      %v1355 = vrot.slane %v593, 2
      %v1356 = vsel %vm1306, %v1353, %v1355
      %v1357 = vrot.slane %v578, 2
      %v1358 = vrot.slane %v520, 2
      %v1359 = vsel %vm1306, %v1357, %v1358
      %v1360 = vrot.slane %v594, 2
      %v1361 = vsel %vm1306, %v1358, %v1360
      %v1362 = vrot.slane %v579, 2
      %v1363 = vrot.slane %v523, 2
      %v1364 = vsel %vm1306, %v1362, %v1363
      %v1365 = vrot.slane %v595, 2
      %v1366 = vsel %vm1306, %v1363, %v1365
      %v1367 = vrot.slane %v580, 2
      %v1368 = vrot.slane %v526, 2
      %v1369 = vsel %vm1306, %v1367, %v1368
      %v1370 = vrot.slane %v596, 2
      %v1371 = vsel %vm1306, %v1368, %v1370
      %v1372 = vrot.slane %v581, 2
      %v1373 = vrot.slane %v529, 2
      %v1374 = vsel %vm1306, %v1372, %v1373
      %v1375 = vrot.slane %v597, 2
      %v1376 = vsel %vm1306, %v1373, %v1375
      %v1377 = vrot.slane %v582, 2
      %v1378 = vrot.slane %v532, 2
      %v1379 = vsel %vm1306, %v1377, %v1378
      %v1380 = vrot.slane %v598, 2
      %v1381 = vsel %vm1306, %v1378, %v1380
      %v1382 = vrot.slane %v583, 2
      %v1383 = vrot.slane %v535, 2
      %v1384 = vsel %vm1306, %v1382, %v1383
      %v1385 = vrot.slane %v599, 2
      %v1386 = vsel %vm1306, %v1383, %v1385
      %v1387 = vsel %vm720, %v1309, 0
      %v1389 = vsel %vm720, %v1311, 0
      %v1391 = vsel %vm720, %v1314, 0
      %v1393 = vsel %vm720, %v1316, 0
      %v1395 = vsel %vm720, %v1319, 0
      %v1397 = vsel %vm720, %v1321, 0
      %v1399 = vsel %vm720, %v1324, 0
      %v1401 = vsel %vm720, %v1326, 0
      %v1403 = vsel %vm720, %v1329, 0
      %v1405 = vsel %vm720, %v1331, 0
      %v1407 = vsel %vm720, %v1334, 0
      %v1409 = vsel %vm720, %v1336, 0
      %v1411 = vsel %vm720, %v1339, 0
      %v1413 = vsel %vm720, %v1341, 0
      %v1415 = vsel %vm720, %v1344, 0
      %v1417 = vsel %vm720, %v1346, 0
      %v1419 = vsel %vm720, %v1349, 0
      %v1421 = vsel %vm720, %v1351, 0
      %v1423 = vsel %vm720, %v1354, 0
      %v1425 = vsel %vm720, %v1356, 0
      %v1427 = vsel %vm720, %v1359, 0
      %v1429 = vsel %vm720, %v1361, 0
      %v1431 = vsel %vm720, %v1364, 0
      %v1433 = vsel %vm720, %v1366, 0
      %v1435 = vsel %vm720, %v1369, 0
      %v1437 = vsel %vm720, %v1371, 0
      %v1439 = vsel %vm720, %v1374, 0
      %v1441 = vsel %vm720, %v1376, 0
      %v1443 = vsel %vm720, %v1379, 0
      %v1445 = vsel %vm720, %v1381, 0
      %v1447 = vsel %vm720, %v1384, 0
      %v1449 = vsel %vm720, %v1386, 0
      %v1452 = vsel %vm785, %v602, 0
      %1454 = vmatprep.subr.mxu0 0.0
      %1455 = vmatpush1.msra.mxu0 %v1452
      %1456 = vmatprep.subr.mxu0 0.0
      %1457 = vmatpush1.msra.mxu0 0.0
      %1458 = vmatprep.subr.mxu0 0.0
      %1459 = vmatpush1.msra.mxu0 0.0
      %1460 = vmatprep.subr.mxu0 0.0
      %1461 = vmatpush1.msra.mxu0 0.0
      %1462 = vmatprep.subr.mxu0 0.0
      %1463 = vmatpush1.msra.mxu0 0.0
      %1464 = vmatprep.subr.mxu0 0.0
      %1465 = vmatpush1.msra.mxu0 0.0
      %1466 = vmatprep.subr.mxu0 0.0
      %1467 = vmatpush1.msra.mxu0 0.0
      %1468 = vmatprep.subr.mxu0 0.0
      %1469 = vmatpush1.msra.mxu0 0.0
      %1470 = vmatprep.subr.mxu0 0.0
      %1471 = vmatpush1.msra.mxu0 0.0
      %1472 = vmatprep.subr.mxu0 0.0
      %1473 = vmatpush1.msra.mxu0 0.0
      %1474 = vmatprep.subr.mxu0 0.0
      %1475 = vmatpush1.msra.mxu0 0.0
      %1476 = vmatprep.subr.mxu0 0.0
      %1477 = vmatpush1.msra.mxu0 0.0
      %1478 = vmatprep.subr.mxu0 0.0
      %1479 = vmatpush1.msra.mxu0 0.0
      %1480 = vmatprep.subr.mxu0 0.0
      %1481 = vmatpush1.msra.mxu0 0.0
      %1482 = vmatprep.subr.mxu0 0.0
      %1483 = vmatpush1.msra.mxu0 0.0
      %1484 = vmatprep.subr.mxu0 0.0
      %1485 = vmatpush1.msra.mxu0 0.0
      %1486 = vmatprep.subr.mxu0 0.0
      %1487 = vmatpush1.msra.mxu0 0.0
      %1488 = vmatprep.subr.mxu0 0.0
      %1489 = vmatpush1.msra.mxu0 0.0
      %1490 = vmatprep.subr.mxu0 0.0
      %1491 = vmatpush1.msra.mxu0 0.0
      %1492 = vmatprep.subr.mxu0 0.0
      %1493 = vmatpush1.msra.mxu0 0.0
      %1494 = vmatprep.subr.mxu0 0.0
      %1495 = vmatpush1.msra.mxu0 0.0
      %1496 = vmatprep.subr.mxu0 0.0
      %1497 = vmatpush1.msra.mxu0 0.0
      %1498 = vmatprep.subr.mxu0 0.0
      %1499 = vmatpush1.msra.mxu0 0.0
      %1500 = vmatprep.subr.mxu0 0.0
      %1501 = vmatpush1.msra.mxu0 0.0
      %1502 = vmatprep.subr.mxu0 0.0
      %1503 = vmatpush1.msra.mxu0 0.0
      %1504 = vmatprep.subr.mxu0 0.0
      %1505 = vmatpush1.msra.mxu0 0.0
      %1506 = vmatprep.subr.mxu0 0.0
      %1507 = vmatpush1.msra.mxu0 0.0
      %1508 = vmatprep.subr.mxu0 0.0
      %1509 = vmatpush1.msra.mxu0 0.0
      %1510 = vmatprep.subr.mxu0 0.0
      %1511 = vmatpush1.msra.mxu0 0.0
      %1512 = vmatprep.subr.mxu0 0.0
      %1513 = vmatpush1.msra.mxu0 0.0
      %1514 = vmatprep.subr.mxu0 0.0
      %1515 = vmatpush1.msra.mxu0 0.0
      %1516 = vmatprep.subr.mxu0 0.0
      %1517 = vmatpush1.msra.mxu0 0.0
      %1518 = vmatprep.mubr.f32.mxu0 0.0
      %1519 = vmatmul.mubr.f32.gmra.mrb[0].mxu0 %v1387
      %v1520 = vpop.f32.mrb[0].mxu0
      %v1521 = vadd.f32 0.0, %v1520
      %v1522 = vpop.f32.mrb[0].mxu0
      %1523 = vmatprep.mubr.f32.mxu0 0.0
      %1524 = vmatmul.mubr.f32.gmra.mrb[0].mxu0 %v1389
      %v1525 = vpop.f32.mrb[0].mxu0
      %v1526 = vadd.f32 0.0, %v1525
      %v1527 = vpop.f32.mrb[0].mxu0
      %1528 = vmatprep.mubr.f32.mxu0 0.0
      %1529 = vmatmul.mubr.f32.gmra.mrb[0].mxu0 %v1391
      %v1530 = vpop.f32.mrb[0].mxu0
      %v1531 = vadd.f32 0.0, %v1530
      %v1532 = vpop.f32.mrb[0].mxu0
      %1533 = vmatprep.mubr.f32.mxu0 0.0
      %1534 = vmatmul.mubr.f32.gmra.mrb[0].mxu0 %v1393
      %v1535 = vpop.f32.mrb[0].mxu0
      %v1536 = vadd.f32 0.0, %v1535
      %v1537 = vpop.f32.mrb[0].mxu0
      %1538 = vmatprep.mubr.f32.mxu0 0.0
      %1539 = vmatmul.mubr.f32.gmra.mrb[0].mxu0 %v1395
      %v1540 = vpop.f32.mrb[0].mxu0
      %v1541 = vadd.f32 0.0, %v1540
      %v1542 = vpop.f32.mrb[0].mxu0
      %1543 = vmatprep.mubr.f32.mxu0 0.0
      %1544 = vmatmul.mubr.f32.gmra.mrb[0].mxu0 %v1397
      %v1545 = vpop.f32.mrb[0].mxu0
      %v1546 = vadd.f32 0.0, %v1545
      %v1547 = vpop.f32.mrb[0].mxu0
      %1548 = vmatprep.mubr.f32.mxu0 0.0
      %1549 = vmatmul.mubr.f32.gmra.mrb[0].mxu0 %v1399
      %v1550 = vpop.f32.mrb[0].mxu0
      %v1551 = vadd.f32 0.0, %v1550
      %v1552 = vpop.f32.mrb[0].mxu0
      %1553 = vmatprep.mubr.f32.mxu0 0.0
      %1554 = vmatmul.mubr.f32.gmra.mrb[0].mxu0 %v1401
      %v1555 = vpop.f32.mrb[0].mxu0
      %v1556 = vadd.f32 0.0, %v1555
      %v1557 = vpop.f32.mrb[0].mxu0
      %1558 = vmatprep.mubr.f32.mxu0 0.0
      %1559 = vmatmul.mubr.f32.gmra.mrb[0].mxu0 %v1403
      %v1560 = vpop.f32.mrb[0].mxu0
      %v1561 = vadd.f32 0.0, %v1560
      %v1562 = vpop.f32.mrb[0].mxu0
      %1563 = vmatprep.mubr.f32.mxu0 0.0
      %1564 = vmatmul.mubr.f32.gmra.mrb[0].mxu0 %v1405
      %v1565 = vpop.f32.mrb[0].mxu0
      %v1566 = vadd.f32 0.0, %v1565
      %v1567 = vpop.f32.mrb[0].mxu0
      %1568 = vmatprep.mubr.f32.mxu0 0.0
      %1569 = vmatmul.mubr.f32.gmra.mrb[0].mxu0 %v1407
      %v1570 = vpop.f32.mrb[0].mxu0
      %v1571 = vadd.f32 0.0, %v1570
      %v1572 = vpop.f32.mrb[0].mxu0
      %1573 = vmatprep.mubr.f32.mxu0 0.0
      %1574 = vmatmul.mubr.f32.gmra.mrb[0].mxu0 %v1409
      %v1575 = vpop.f32.mrb[0].mxu0
      %v1576 = vadd.f32 0.0, %v1575
      %v1577 = vpop.f32.mrb[0].mxu0
      %1578 = vmatprep.mubr.f32.mxu0 0.0
      %1579 = vmatmul.mubr.f32.gmra.mrb[0].mxu0 %v1411
      %v1580 = vpop.f32.mrb[0].mxu0
      %v1581 = vadd.f32 0.0, %v1580
      %v1582 = vpop.f32.mrb[0].mxu0
      %1583 = vmatprep.mubr.f32.mxu0 0.0
      %1584 = vmatmul.mubr.f32.gmra.mrb[0].mxu0 %v1413
      %v1585 = vpop.f32.mrb[0].mxu0
      %v1586 = vadd.f32 0.0, %v1585
      %v1587 = vpop.f32.mrb[0].mxu0
      %1588 = vmatprep.mubr.f32.mxu0 0.0
      %1589 = vmatmul.mubr.f32.gmra.mrb[0].mxu0 %v1415
      %v1590 = vpop.f32.mrb[0].mxu0
      %v1591 = vadd.f32 0.0, %v1590
      %v1592 = vpop.f32.mrb[0].mxu0
      %1593 = vmatprep.mubr.f32.mxu0 0.0
      %1594 = vmatmul.mubr.f32.gmra.mrb[0].mxu0 %v1417
      %v1595 = vpop.f32.mrb[0].mxu0
      %v1596 = vadd.f32 0.0, %v1595
      %v1597 = vpop.f32.mrb[0].mxu0
      %1598 = vmatprep.mubr.f32.mxu0 0.0
      %1599 = vmatmul.mubr.f32.gmra.mrb[0].mxu0 %v1419
      %v1600 = vpop.f32.mrb[0].mxu0
      %v1601 = vadd.f32 0.0, %v1600
      %v1602 = vpop.f32.mrb[0].mxu0
      %1603 = vmatprep.mubr.f32.mxu0 0.0
      %1604 = vmatmul.mubr.f32.gmra.mrb[0].mxu0 %v1421
      %v1605 = vpop.f32.mrb[0].mxu0
      %v1606 = vadd.f32 0.0, %v1605
      %v1607 = vpop.f32.mrb[0].mxu0
      %1608 = vmatprep.mubr.f32.mxu0 0.0
      %1609 = vmatmul.mubr.f32.gmra.mrb[0].mxu0 %v1423
      %v1610 = vpop.f32.mrb[0].mxu0
      %v1611 = vadd.f32 0.0, %v1610
      %v1612 = vpop.f32.mrb[0].mxu0
      %1613 = vmatprep.mubr.f32.mxu0 0.0
      %1614 = vmatmul.mubr.f32.gmra.mrb[0].mxu0 %v1425
      %v1615 = vpop.f32.mrb[0].mxu0
      %v1616 = vadd.f32 0.0, %v1615
      %v1617 = vpop.f32.mrb[0].mxu0
      %1618 = vmatprep.mubr.f32.mxu0 0.0
      %1619 = vmatmul.mubr.f32.gmra.mrb[0].mxu0 %v1427
      %v1620 = vpop.f32.mrb[0].mxu0
      %v1621 = vadd.f32 0.0, %v1620
      %v1622 = vpop.f32.mrb[0].mxu0
      %1623 = vmatprep.mubr.f32.mxu0 0.0
      %1624 = vmatmul.mubr.f32.gmra.mrb[0].mxu0 %v1429
      %v1625 = vpop.f32.mrb[0].mxu0
      %v1626 = vadd.f32 0.0, %v1625
      %v1627 = vpop.f32.mrb[0].mxu0
      %1628 = vmatprep.mubr.f32.mxu0 0.0
      %1629 = vmatmul.mubr.f32.gmra.mrb[0].mxu0 %v1431
      %v1630 = vpop.f32.mrb[0].mxu0
      %v1631 = vadd.f32 0.0, %v1630
      %v1632 = vpop.f32.mrb[0].mxu0
      %1633 = vmatprep.mubr.f32.mxu0 0.0
      %1634 = vmatmul.mubr.f32.gmra.mrb[0].mxu0 %v1433
      %v1635 = vpop.f32.mrb[0].mxu0
      %v1636 = vadd.f32 0.0, %v1635
      %v1637 = vpop.f32.mrb[0].mxu0
      %1638 = vmatprep.mubr.f32.mxu0 0.0
      %1639 = vmatmul.mubr.f32.gmra.mrb[0].mxu0 %v1435
      %v1640 = vpop.f32.mrb[0].mxu0
      %v1641 = vadd.f32 0.0, %v1640
      %v1642 = vpop.f32.mrb[0].mxu0
      %1643 = vmatprep.mubr.f32.mxu0 0.0
      %1644 = vmatmul.mubr.f32.gmra.mrb[0].mxu0 %v1437
      %v1645 = vpop.f32.mrb[0].mxu0
      %v1646 = vadd.f32 0.0, %v1645
      %v1647 = vpop.f32.mrb[0].mxu0
      %1648 = vmatprep.mubr.f32.mxu0 0.0
      %1649 = vmatmul.mubr.f32.gmra.mrb[0].mxu0 %v1439
      %v1650 = vpop.f32.mrb[0].mxu0
      %v1651 = vadd.f32 0.0, %v1650
      %v1652 = vpop.f32.mrb[0].mxu0
      %1653 = vmatprep.mubr.f32.mxu0 0.0
      %1654 = vmatmul.mubr.f32.gmra.mrb[0].mxu0 %v1441
      %v1655 = vpop.f32.mrb[0].mxu0
      %v1656 = vadd.f32 0.0, %v1655
      %v1657 = vpop.f32.mrb[0].mxu0
      %1658 = vmatprep.mubr.f32.mxu0 0.0
      %1659 = vmatmul.mubr.f32.gmra.mrb[0].mxu0 %v1443
      %v1660 = vpop.f32.mrb[0].mxu0
      %v1661 = vadd.f32 0.0, %v1660
      %v1662 = vpop.f32.mrb[0].mxu0
      %1663 = vmatprep.mubr.f32.mxu0 0.0
      %1664 = vmatmul.mubr.f32.gmra.mrb[0].mxu0 %v1445
      %v1665 = vpop.f32.mrb[0].mxu0
      %v1666 = vadd.f32 0.0, %v1665
      %v1667 = vpop.f32.mrb[0].mxu0
      %1668 = vmatprep.mubr.f32.mxu0 0.0
      %1669 = vmatmul.mubr.f32.gmra.mrb[0].mxu0 %v1447
      %v1670 = vpop.f32.mrb[0].mxu0
      %v1671 = vadd.f32 0.0, %v1670
      %v1672 = vpop.f32.mrb[0].mxu0
      %1673 = vmatprep.mubr.f32.mxu0 0.0
      %1674 = vmatmul.mubr.f32.gmra.mrb[0].mxu0 %v1449
      %v1675 = vpop.f32.mrb[0].mxu0
      %v1676 = vadd.f32 0.0, %v1675
      %v1677 = vpop.f32.mrb[0].mxu0
      %1678 = vdwg.mxu0
      %v1679 = vadd.f32 %v1148, %v1521
      %v1680 = vadd.f32 %v1153, %v1526
      %v1681 = vadd.f32 %v1158, %v1531
      %v1682 = vadd.f32 %v1163, %v1536
      %v1683 = vadd.f32 %v1168, %v1541
      %v1684 = vadd.f32 %v1173, %v1546
      %v1685 = vadd.f32 %v1178, %v1551
      %v1686 = vadd.f32 %v1183, %v1556
      %v1687 = vadd.f32 %v1188, %v1561
      %v1688 = vadd.f32 %v1193, %v1566
      %v1689 = vadd.f32 %v1198, %v1571
      %v1690 = vadd.f32 %v1203, %v1576
      %v1691 = vadd.f32 %v1208, %v1581
      %v1692 = vadd.f32 %v1213, %v1586
      %v1693 = vadd.f32 %v1218, %v1591
      %v1694 = vadd.f32 %v1223, %v1596
      %v1695 = vadd.f32 %v1228, %v1601
      %v1696 = vadd.f32 %v1233, %v1606
      %v1697 = vadd.f32 %v1238, %v1611
      %v1698 = vadd.f32 %v1243, %v1616
      %v1699 = vadd.f32 %v1248, %v1621
      %v1700 = vadd.f32 %v1253, %v1626
      %v1701 = vadd.f32 %v1258, %v1631
      %v1702 = vadd.f32 %v1263, %v1636
      %v1703 = vadd.f32 %v1268, %v1641
      %v1704 = vadd.f32 %v1273, %v1646
      %v1705 = vadd.f32 %v1278, %v1651
      %v1706 = vadd.f32 %v1283, %v1656
      %v1707 = vadd.f32 %v1288, %v1661
      %v1708 = vadd.f32 %v1293, %v1666
      %v1709 = vadd.f32 %v1298, %v1671
      %v1710 = vadd.f32 %v1303, %v1676
      %vm1711 = vcmask 1044480
      %v1712 = vrot.slane %v568, 3
      %v1713 = vrot.slane %v490, 3
      %v1714 = vsel %vm1711, %v1712, %v1713
      %v1715 = vrot.slane %v584, 3
      %v1716 = vsel %vm1711, %v1713, %v1715
      %v1717 = vrot.slane %v569, 3
      %v1718 = vrot.slane %v493, 3
      %v1719 = vsel %vm1711, %v1717, %v1718
      %v1720 = vrot.slane %v585, 3
      %v1721 = vsel %vm1711, %v1718, %v1720
      %v1722 = vrot.slane %v570, 3
      %v1723 = vrot.slane %v496, 3
      %v1724 = vsel %vm1711, %v1722, %v1723
      %v1725 = vrot.slane %v586, 3
      %v1726 = vsel %vm1711, %v1723, %v1725
      %v1727 = vrot.slane %v571, 3
      %v1728 = vrot.slane %v499, 3
      %v1729 = vsel %vm1711, %v1727, %v1728
      %v1730 = vrot.slane %v587, 3
      %v1731 = vsel %vm1711, %v1728, %v1730
      %v1732 = vrot.slane %v572, 3
      %v1733 = vrot.slane %v502, 3
      %v1734 = vsel %vm1711, %v1732, %v1733
      %v1735 = vrot.slane %v588, 3
      %v1736 = vsel %vm1711, %v1733, %v1735
      %v1737 = vrot.slane %v573, 3
      %v1738 = vrot.slane %v505, 3
      %v1739 = vsel %vm1711, %v1737, %v1738
      %v1740 = vrot.slane %v589, 3
      %v1741 = vsel %vm1711, %v1738, %v1740
      %v1742 = vrot.slane %v574, 3
      %v1743 = vrot.slane %v508, 3
      %v1744 = vsel %vm1711, %v1742, %v1743
      %v1745 = vrot.slane %v590, 3
      %v1746 = vsel %vm1711, %v1743, %v1745
      %v1747 = vrot.slane %v575, 3
      %v1748 = vrot.slane %v511, 3
      %v1749 = vsel %vm1711, %v1747, %v1748
      %v1750 = vrot.slane %v591, 3
      %v1751 = vsel %vm1711, %v1748, %v1750
      %v1752 = vrot.slane %v576, 3
      %v1753 = vrot.slane %v514, 3
      %v1754 = vsel %vm1711, %v1752, %v1753
      %v1755 = vrot.slane %v592, 3
      %v1756 = vsel %vm1711, %v1753, %v1755
      %v1757 = vrot.slane %v577, 3
      %v1758 = vrot.slane %v517, 3
      %v1759 = vsel %vm1711, %v1757, %v1758
      %v1760 = vrot.slane %v593, 3
      %v1761 = vsel %vm1711, %v1758, %v1760
      %v1762 = vrot.slane %v578, 3
      %v1763 = vrot.slane %v520, 3
      %v1764 = vsel %vm1711, %v1762, %v1763
      %v1765 = vrot.slane %v594, 3
      %v1766 = vsel %vm1711, %v1763, %v1765
      %v1767 = vrot.slane %v579, 3
      %v1768 = vrot.slane %v523, 3
      %v1769 = vsel %vm1711, %v1767, %v1768
      %v1770 = vrot.slane %v595, 3
      %v1771 = vsel %vm1711, %v1768, %v1770
      %v1772 = vrot.slane %v580, 3
      %v1773 = vrot.slane %v526, 3
      %v1774 = vsel %vm1711, %v1772, %v1773
      %v1775 = vrot.slane %v596, 3
      %v1776 = vsel %vm1711, %v1773, %v1775
      %v1777 = vrot.slane %v581, 3
      %v1778 = vrot.slane %v529, 3
      %v1779 = vsel %vm1711, %v1777, %v1778
      %v1780 = vrot.slane %v597, 3
      %v1781 = vsel %vm1711, %v1778, %v1780
      %v1782 = vrot.slane %v582, 3
      %v1783 = vrot.slane %v532, 3
      %v1784 = vsel %vm1711, %v1782, %v1783
      %v1785 = vrot.slane %v598, 3
      %v1786 = vsel %vm1711, %v1783, %v1785
      %v1787 = vrot.slane %v583, 3
      %v1788 = vrot.slane %v535, 3
      %v1789 = vsel %vm1711, %v1787, %v1788
      %v1790 = vrot.slane %v599, 3
      %v1791 = vsel %vm1711, %v1788, %v1790
      %v1792 = vsel %vm720, %v1714, 0
      %v1794 = vsel %vm720, %v1716, 0
      %v1796 = vsel %vm720, %v1719, 0
      %v1798 = vsel %vm720, %v1721, 0
      %v1800 = vsel %vm720, %v1724, 0
      %v1802 = vsel %vm720, %v1726, 0
      %v1804 = vsel %vm720, %v1729, 0
      %v1806 = vsel %vm720, %v1731, 0
      %v1808 = vsel %vm720, %v1734, 0
      %v1810 = vsel %vm720, %v1736, 0
      %v1812 = vsel %vm720, %v1739, 0
      %v1814 = vsel %vm720, %v1741, 0
      %v1816 = vsel %vm720, %v1744, 0
      %v1818 = vsel %vm720, %v1746, 0
      %v1820 = vsel %vm720, %v1749, 0
      %v1822 = vsel %vm720, %v1751, 0
      %v1824 = vsel %vm720, %v1754, 0
      %v1826 = vsel %vm720, %v1756, 0
      %v1828 = vsel %vm720, %v1759, 0
      %v1830 = vsel %vm720, %v1761, 0
      %v1832 = vsel %vm720, %v1764, 0
      %v1834 = vsel %vm720, %v1766, 0
      %v1836 = vsel %vm720, %v1769, 0
      %v1838 = vsel %vm720, %v1771, 0
      %v1840 = vsel %vm720, %v1774, 0
      %v1842 = vsel %vm720, %v1776, 0
      %v1844 = vsel %vm720, %v1779, 0
      %v1846 = vsel %vm720, %v1781, 0
      %v1848 = vsel %vm720, %v1784, 0
      %v1850 = vsel %vm720, %v1786, 0
      %v1852 = vsel %vm720, %v1789, 0
      %v1854 = vsel %vm720, %v1791, 0
      %v1857 = vsel %vm785, %v603, 0
      %1859 = vmatprep.subr.mxu0 0.0
      %1860 = vmatpush1.msra.mxu0 %v1857
      %1861 = vmatprep.subr.mxu0 0.0
      %1862 = vmatpush1.msra.mxu0 0.0
      %1863 = vmatprep.subr.mxu0 0.0
      %1864 = vmatpush1.msra.mxu0 0.0
      %1865 = vmatprep.subr.mxu0 0.0
      %1866 = vmatpush1.msra.mxu0 0.0
      %1867 = vmatprep.subr.mxu0 0.0
      %1868 = vmatpush1.msra.mxu0 0.0
      %1869 = vmatprep.subr.mxu0 0.0
      %1870 = vmatpush1.msra.mxu0 0.0
      %1871 = vmatprep.subr.mxu0 0.0
      %1872 = vmatpush1.msra.mxu0 0.0
      %1873 = vmatprep.subr.mxu0 0.0
      %1874 = vmatpush1.msra.mxu0 0.0
      %1875 = vmatprep.subr.mxu0 0.0
      %1876 = vmatpush1.msra.mxu0 0.0
      %1877 = vmatprep.subr.mxu0 0.0
      %1878 = vmatpush1.msra.mxu0 0.0
      %1879 = vmatprep.subr.mxu0 0.0
      %1880 = vmatpush1.msra.mxu0 0.0
      %1881 = vmatprep.subr.mxu0 0.0
      %1882 = vmatpush1.msra.mxu0 0.0
      %1883 = vmatprep.subr.mxu0 0.0
      %1884 = vmatpush1.msra.mxu0 0.0
      %1885 = vmatprep.subr.mxu0 0.0
      %1886 = vmatpush1.msra.mxu0 0.0
      %1887 = vmatprep.subr.mxu0 0.0
      %1888 = vmatpush1.msra.mxu0 0.0
      %1889 = vmatprep.subr.mxu0 0.0
      %1890 = vmatpush1.msra.mxu0 0.0
      %1891 = vmatprep.subr.mxu0 0.0
      %1892 = vmatpush1.msra.mxu0 0.0
      %1893 = vmatprep.subr.mxu0 0.0
      %1894 = vmatpush1.msra.mxu0 0.0
      %1895 = vmatprep.subr.mxu0 0.0
      %1896 = vmatpush1.msra.mxu0 0.0
      %1897 = vmatprep.subr.mxu0 0.0
      %1898 = vmatpush1.msra.mxu0 0.0
      %1899 = vmatprep.subr.mxu0 0.0
      %1900 = vmatpush1.msra.mxu0 0.0
      %1901 = vmatprep.subr.mxu0 0.0
      %1902 = vmatpush1.msra.mxu0 0.0
      %1903 = vmatprep.subr.mxu0 0.0
      %1904 = vmatpush1.msra.mxu0 0.0
      %1905 = vmatprep.subr.mxu0 0.0
      %1906 = vmatpush1.msra.mxu0 0.0
      %1907 = vmatprep.subr.mxu0 0.0
      %1908 = vmatpush1.msra.mxu0 0.0
      %1909 = vmatprep.subr.mxu0 0.0
      %1910 = vmatpush1.msra.mxu0 0.0
      %1911 = vmatprep.subr.mxu0 0.0
      %1912 = vmatpush1.msra.mxu0 0.0
      %1913 = vmatprep.subr.mxu0 0.0
      %1914 = vmatpush1.msra.mxu0 0.0
      %1915 = vmatprep.subr.mxu0 0.0
      %1916 = vmatpush1.msra.mxu0 0.0
      %1917 = vmatprep.subr.mxu0 0.0
      %1918 = vmatpush1.msra.mxu0 0.0
      %1919 = vmatprep.subr.mxu0 0.0
      %1920 = vmatpush1.msra.mxu0 0.0
      %1921 = vmatprep.subr.mxu0 0.0
      %1922 = vmatpush1.msra.mxu0 0.0
      %1923 = vmatprep.mubr.f32.mxu0 0.0
      %1924 = vmatmul.mubr.f32.gmra.mrb[0].mxu0 %v1792
      %v1925 = vpop.f32.mrb[0].mxu0
      %v1926 = vadd.f32 0.0, %v1925
      %v1927 = vpop.f32.mrb[0].mxu0
      %1928 = vmatprep.mubr.f32.mxu0 0.0
      %1929 = vmatmul.mubr.f32.gmra.mrb[0].mxu0 %v1794
      %v1930 = vpop.f32.mrb[0].mxu0
      %v1931 = vadd.f32 0.0, %v1930
      %v1932 = vpop.f32.mrb[0].mxu0
      %1933 = vmatprep.mubr.f32.mxu0 0.0
      %1934 = vmatmul.mubr.f32.gmra.mrb[0].mxu0 %v1796
      %v1935 = vpop.f32.mrb[0].mxu0
      %v1936 = vadd.f32 0.0, %v1935
      %v1937 = vpop.f32.mrb[0].mxu0
      %1938 = vmatprep.mubr.f32.mxu0 0.0
      %1939 = vmatmul.mubr.f32.gmra.mrb[0].mxu0 %v1798
      %v1940 = vpop.f32.mrb[0].mxu0
      %v1941 = vadd.f32 0.0, %v1940
      %v1942 = vpop.f32.mrb[0].mxu0
      %1943 = vmatprep.mubr.f32.mxu0 0.0
      %1944 = vmatmul.mubr.f32.gmra.mrb[0].mxu0 %v1800
      %v1945 = vpop.f32.mrb[0].mxu0
      %v1946 = vadd.f32 0.0, %v1945
      %v1947 = vpop.f32.mrb[0].mxu0
      %1948 = vmatprep.mubr.f32.mxu0 0.0
      %1949 = vmatmul.mubr.f32.gmra.mrb[0].mxu0 %v1802
      %v1950 = vpop.f32.mrb[0].mxu0
      %v1951 = vadd.f32 0.0, %v1950
      %v1952 = vpop.f32.mrb[0].mxu0
      %1953 = vmatprep.mubr.f32.mxu0 0.0
      %1954 = vmatmul.mubr.f32.gmra.mrb[0].mxu0 %v1804
      %v1955 = vpop.f32.mrb[0].mxu0
      %v1956 = vadd.f32 0.0, %v1955
      %v1957 = vpop.f32.mrb[0].mxu0
      %1958 = vmatprep.mubr.f32.mxu0 0.0
      %1959 = vmatmul.mubr.f32.gmra.mrb[0].mxu0 %v1806
      %v1960 = vpop.f32.mrb[0].mxu0
      %v1961 = vadd.f32 0.0, %v1960
      %v1962 = vpop.f32.mrb[0].mxu0
      %1963 = vmatprep.mubr.f32.mxu0 0.0
      %1964 = vmatmul.mubr.f32.gmra.mrb[0].mxu0 %v1808
      %v1965 = vpop.f32.mrb[0].mxu0
      %v1966 = vadd.f32 0.0, %v1965
      %v1967 = vpop.f32.mrb[0].mxu0
      %1968 = vmatprep.mubr.f32.mxu0 0.0
      %1969 = vmatmul.mubr.f32.gmra.mrb[0].mxu0 %v1810
      %v1970 = vpop.f32.mrb[0].mxu0
      %v1971 = vadd.f32 0.0, %v1970
      %v1972 = vpop.f32.mrb[0].mxu0
      %1973 = vmatprep.mubr.f32.mxu0 0.0
      %1974 = vmatmul.mubr.f32.gmra.mrb[0].mxu0 %v1812
      %v1975 = vpop.f32.mrb[0].mxu0
      %v1976 = vadd.f32 0.0, %v1975
      %v1977 = vpop.f32.mrb[0].mxu0
      %1978 = vmatprep.mubr.f32.mxu0 0.0
      %1979 = vmatmul.mubr.f32.gmra.mrb[0].mxu0 %v1814
      %v1980 = vpop.f32.mrb[0].mxu0
      %v1981 = vadd.f32 0.0, %v1980
      %v1982 = vpop.f32.mrb[0].mxu0
      %1983 = vmatprep.mubr.f32.mxu0 0.0
      %1984 = vmatmul.mubr.f32.gmra.mrb[0].mxu0 %v1816
      %v1985 = vpop.f32.mrb[0].mxu0
      %v1986 = vadd.f32 0.0, %v1985
      %v1987 = vpop.f32.mrb[0].mxu0
      %1988 = vmatprep.mubr.f32.mxu0 0.0
      %1989 = vmatmul.mubr.f32.gmra.mrb[0].mxu0 %v1818
      %v1990 = vpop.f32.mrb[0].mxu0
      %v1991 = vadd.f32 0.0, %v1990
      %v1992 = vpop.f32.mrb[0].mxu0
      %1993 = vmatprep.mubr.f32.mxu0 0.0
      %1994 = vmatmul.mubr.f32.gmra.mrb[0].mxu0 %v1820
      %v1995 = vpop.f32.mrb[0].mxu0
      %v1996 = vadd.f32 0.0, %v1995
      %v1997 = vpop.f32.mrb[0].mxu0
      %1998 = vmatprep.mubr.f32.mxu0 0.0
      %1999 = vmatmul.mubr.f32.gmra.mrb[0].mxu0 %v1822
      %v2000 = vpop.f32.mrb[0].mxu0
      %v2001 = vadd.f32 0.0, %v2000
      %v2002 = vpop.f32.mrb[0].mxu0
      %2003 = vmatprep.mubr.f32.mxu0 0.0
      %2004 = vmatmul.mubr.f32.gmra.mrb[0].mxu0 %v1824
      %v2005 = vpop.f32.mrb[0].mxu0
      %v2006 = vadd.f32 0.0, %v2005
      %v2007 = vpop.f32.mrb[0].mxu0
      %2008 = vmatprep.mubr.f32.mxu0 0.0
      %2009 = vmatmul.mubr.f32.gmra.mrb[0].mxu0 %v1826
      %v2010 = vpop.f32.mrb[0].mxu0
      %v2011 = vadd.f32 0.0, %v2010
      %v2012 = vpop.f32.mrb[0].mxu0
      %2013 = vmatprep.mubr.f32.mxu0 0.0
      %2014 = vmatmul.mubr.f32.gmra.mrb[0].mxu0 %v1828
      %v2015 = vpop.f32.mrb[0].mxu0
      %v2016 = vadd.f32 0.0, %v2015
      %v2017 = vpop.f32.mrb[0].mxu0
      %2018 = vmatprep.mubr.f32.mxu0 0.0
      %2019 = vmatmul.mubr.f32.gmra.mrb[0].mxu0 %v1830
      %v2020 = vpop.f32.mrb[0].mxu0
      %v2021 = vadd.f32 0.0, %v2020
      %v2022 = vpop.f32.mrb[0].mxu0
      %2023 = vmatprep.mubr.f32.mxu0 0.0
      %2024 = vmatmul.mubr.f32.gmra.mrb[0].mxu0 %v1832
      %v2025 = vpop.f32.mrb[0].mxu0
      %v2026 = vadd.f32 0.0, %v2025
      %v2027 = vpop.f32.mrb[0].mxu0
      %2028 = vmatprep.mubr.f32.mxu0 0.0
      %2029 = vmatmul.mubr.f32.gmra.mrb[0].mxu0 %v1834
      %v2030 = vpop.f32.mrb[0].mxu0
      %v2031 = vadd.f32 0.0, %v2030
      %v2032 = vpop.f32.mrb[0].mxu0
      %2033 = vmatprep.mubr.f32.mxu0 0.0
      %2034 = vmatmul.mubr.f32.gmra.mrb[0].mxu0 %v1836
      %v2035 = vpop.f32.mrb[0].mxu0
      %v2036 = vadd.f32 0.0, %v2035
      %v2037 = vpop.f32.mrb[0].mxu0
      %2038 = vmatprep.mubr.f32.mxu0 0.0
      %2039 = vmatmul.mubr.f32.gmra.mrb[0].mxu0 %v1838
      %v2040 = vpop.f32.mrb[0].mxu0
      %v2041 = vadd.f32 0.0, %v2040
      %v2042 = vpop.f32.mrb[0].mxu0
      %2043 = vmatprep.mubr.f32.mxu0 0.0
      %2044 = vmatmul.mubr.f32.gmra.mrb[0].mxu0 %v1840
      %v2045 = vpop.f32.mrb[0].mxu0
      %v2046 = vadd.f32 0.0, %v2045
      %v2047 = vpop.f32.mrb[0].mxu0
      %2048 = vmatprep.mubr.f32.mxu0 0.0
      %2049 = vmatmul.mubr.f32.gmra.mrb[0].mxu0 %v1842
      %v2050 = vpop.f32.mrb[0].mxu0
      %v2051 = vadd.f32 0.0, %v2050
      %v2052 = vpop.f32.mrb[0].mxu0
      %2053 = vmatprep.mubr.f32.mxu0 0.0
      %2054 = vmatmul.mubr.f32.gmra.mrb[0].mxu0 %v1844
      %v2055 = vpop.f32.mrb[0].mxu0
      %v2056 = vadd.f32 0.0, %v2055
      %v2057 = vpop.f32.mrb[0].mxu0
      %2058 = vmatprep.mubr.f32.mxu0 0.0
      %2059 = vmatmul.mubr.f32.gmra.mrb[0].mxu0 %v1846
      %v2060 = vpop.f32.mrb[0].mxu0
      %v2061 = vadd.f32 0.0, %v2060
      %v2062 = vpop.f32.mrb[0].mxu0
      %2063 = vmatprep.mubr.f32.mxu0 0.0
      %2064 = vmatmul.mubr.f32.gmra.mrb[0].mxu0 %v1848
      %v2065 = vpop.f32.mrb[0].mxu0
      %v2066 = vadd.f32 0.0, %v2065
      %v2067 = vpop.f32.mrb[0].mxu0
      %2068 = vmatprep.mubr.f32.mxu0 0.0
      %2069 = vmatmul.mubr.f32.gmra.mrb[0].mxu0 %v1850
      %v2070 = vpop.f32.mrb[0].mxu0
      %v2071 = vadd.f32 0.0, %v2070
      %v2072 = vpop.f32.mrb[0].mxu0
      %2073 = vmatprep.mubr.f32.mxu0 0.0
      %2074 = vmatmul.mubr.f32.gmra.mrb[0].mxu0 %v1852
      %v2075 = vpop.f32.mrb[0].mxu0
      %v2076 = vadd.f32 0.0, %v2075
      %v2077 = vpop.f32.mrb[0].mxu0
      %2078 = vmatprep.mubr.f32.mxu0 0.0
      %2079 = vmatmul.mubr.f32.gmra.mrb[0].mxu0 %v1854
      %v2080 = vpop.f32.mrb[0].mxu0
      %v2081 = vadd.f32 0.0, %v2080
      %v2082 = vpop.f32.mrb[0].mxu0
      %2083 = vdwg.mxu0
      %v2084 = vadd.f32 %v1679, %v1926
      %v2085 = vadd.f32 %v1680, %v1931
      %v2086 = vadd.f32 %v1681, %v1936
      %v2087 = vadd.f32 %v1682, %v1941
      %v2088 = vadd.f32 %v1683, %v1946
      %v2089 = vadd.f32 %v1684, %v1951
      %v2090 = vadd.f32 %v1685, %v1956
      %v2091 = vadd.f32 %v1686, %v1961
      %v2092 = vadd.f32 %v1687, %v1966
      %v2093 = vadd.f32 %v1688, %v1971
      %v2094 = vadd.f32 %v1689, %v1976
      %v2095 = vadd.f32 %v1690, %v1981
      %v2096 = vadd.f32 %v1691, %v1986
      %v2097 = vadd.f32 %v1692, %v1991
      %v2098 = vadd.f32 %v1693, %v1996
      %v2099 = vadd.f32 %v1694, %v2001
      %v2100 = vadd.f32 %v1695, %v2006
      %v2101 = vadd.f32 %v1696, %v2011
      %v2102 = vadd.f32 %v1697, %v2016
      %v2103 = vadd.f32 %v1698, %v2021
      %v2104 = vadd.f32 %v1699, %v2026
      %v2105 = vadd.f32 %v1700, %v2031
      %v2106 = vadd.f32 %v1701, %v2036
      %v2107 = vadd.f32 %v1702, %v2041
      %v2108 = vadd.f32 %v1703, %v2046
      %v2109 = vadd.f32 %v1704, %v2051
      %v2110 = vadd.f32 %v1705, %v2056
      %v2111 = vadd.f32 %v1706, %v2061
      %v2112 = vadd.f32 %v1707, %v2066
      %v2113 = vadd.f32 %v1708, %v2071
      %v2114 = vadd.f32 %v1709, %v2076
      %v2115 = vadd.f32 %v1710, %v2081
      %vm2116 = vcmask 1043456
      %v2117 = vrot.slane %v568, 4
      %v2118 = vrot.slane %v490, 4
      %v2119 = vsel %vm2116, %v2117, %v2118
      %v2120 = vrot.slane %v584, 4
      %v2121 = vsel %vm2116, %v2118, %v2120
      %v2122 = vrot.slane %v569, 4
      %v2123 = vrot.slane %v493, 4
      %v2124 = vsel %vm2116, %v2122, %v2123
      %v2125 = vrot.slane %v585, 4
      %v2126 = vsel %vm2116, %v2123, %v2125
      %v2127 = vrot.slane %v570, 4
      %v2128 = vrot.slane %v496, 4
      %v2129 = vsel %vm2116, %v2127, %v2128
      %v2130 = vrot.slane %v586, 4
      %v2131 = vsel %vm2116, %v2128, %v2130
      %v2132 = vrot.slane %v571, 4
      %v2133 = vrot.slane %v499, 4
      %v2134 = vsel %vm2116, %v2132, %v2133
      %v2135 = vrot.slane %v587, 4
      %v2136 = vsel %vm2116, %v2133, %v2135
      %v2137 = vrot.slane %v572, 4
      %v2138 = vrot.slane %v502, 4
      %v2139 = vsel %vm2116, %v2137, %v2138
      %v2140 = vrot.slane %v588, 4
      %v2141 = vsel %vm2116, %v2138, %v2140
      %v2142 = vrot.slane %v573, 4
      %v2143 = vrot.slane %v505, 4
      %v2144 = vsel %vm2116, %v2142, %v2143
      %v2145 = vrot.slane %v589, 4
      %v2146 = vsel %vm2116, %v2143, %v2145
      %v2147 = vrot.slane %v574, 4
      %v2148 = vrot.slane %v508, 4
      %v2149 = vsel %vm2116, %v2147, %v2148
      %v2150 = vrot.slane %v590, 4
      %v2151 = vsel %vm2116, %v2148, %v2150
      %v2152 = vrot.slane %v575, 4
      %v2153 = vrot.slane %v511, 4
      %v2154 = vsel %vm2116, %v2152, %v2153
      %v2155 = vrot.slane %v591, 4
      %v2156 = vsel %vm2116, %v2153, %v2155
      %v2157 = vrot.slane %v576, 4
      %v2158 = vrot.slane %v514, 4
      %v2159 = vsel %vm2116, %v2157, %v2158
      %v2160 = vrot.slane %v592, 4
      %v2161 = vsel %vm2116, %v2158, %v2160
      %v2162 = vrot.slane %v577, 4
      %v2163 = vrot.slane %v517, 4
      %v2164 = vsel %vm2116, %v2162, %v2163
      %v2165 = vrot.slane %v593, 4
      %v2166 = vsel %vm2116, %v2163, %v2165
      %v2167 = vrot.slane %v578, 4
      %v2168 = vrot.slane %v520, 4
      %v2169 = vsel %vm2116, %v2167, %v2168
      %v2170 = vrot.slane %v594, 4
      %v2171 = vsel %vm2116, %v2168, %v2170
      %v2172 = vrot.slane %v579, 4
      %v2173 = vrot.slane %v523, 4
      %v2174 = vsel %vm2116, %v2172, %v2173
      %v2175 = vrot.slane %v595, 4
      %v2176 = vsel %vm2116, %v2173, %v2175
      %v2177 = vrot.slane %v580, 4
      %v2178 = vrot.slane %v526, 4
      %v2179 = vsel %vm2116, %v2177, %v2178
      %v2180 = vrot.slane %v596, 4
      %v2181 = vsel %vm2116, %v2178, %v2180
      %v2182 = vrot.slane %v581, 4
      %v2183 = vrot.slane %v529, 4
      %v2184 = vsel %vm2116, %v2182, %v2183
      %v2185 = vrot.slane %v597, 4
      %v2186 = vsel %vm2116, %v2183, %v2185
      %v2187 = vrot.slane %v582, 4
      %v2188 = vrot.slane %v532, 4
      %v2189 = vsel %vm2116, %v2187, %v2188
      %v2190 = vrot.slane %v598, 4
      %v2191 = vsel %vm2116, %v2188, %v2190
      %v2192 = vrot.slane %v583, 4
      %v2193 = vrot.slane %v535, 4
      %v2194 = vsel %vm2116, %v2192, %v2193
      %v2195 = vrot.slane %v599, 4
      %v2196 = vsel %vm2116, %v2193, %v2195
      %v2197 = vsel %vm720, %v2119, 0
      %v2199 = vsel %vm720, %v2121, 0
      %v2201 = vsel %vm720, %v2124, 0
      %v2203 = vsel %vm720, %v2126, 0
      %v2205 = vsel %vm720, %v2129, 0
      %v2207 = vsel %vm720, %v2131, 0
      %v2209 = vsel %vm720, %v2134, 0
      %v2211 = vsel %vm720, %v2136, 0
      %v2213 = vsel %vm720, %v2139, 0
      %v2215 = vsel %vm720, %v2141, 0
      %v2217 = vsel %vm720, %v2144, 0
      %v2219 = vsel %vm720, %v2146, 0
      %v2221 = vsel %vm720, %v2149, 0
      %v2223 = vsel %vm720, %v2151, 0
      %v2225 = vsel %vm720, %v2154, 0
      %v2227 = vsel %vm720, %v2156, 0
      %v2229 = vsel %vm720, %v2159, 0
      %v2231 = vsel %vm720, %v2161, 0
      %v2233 = vsel %vm720, %v2164, 0
      %v2235 = vsel %vm720, %v2166, 0
      %v2237 = vsel %vm720, %v2169, 0
      %v2239 = vsel %vm720, %v2171, 0
      %v2241 = vsel %vm720, %v2174, 0
      %v2243 = vsel %vm720, %v2176, 0
      %v2245 = vsel %vm720, %v2179, 0
      %v2247 = vsel %vm720, %v2181, 0
      %v2249 = vsel %vm720, %v2184, 0
      %v2251 = vsel %vm720, %v2186, 0
      %v2253 = vsel %vm720, %v2189, 0
      %v2255 = vsel %vm720, %v2191, 0
      %v2257 = vsel %vm720, %v2194, 0
      %v2259 = vsel %vm720, %v2196, 0
      %v2262 = vsel %vm785, %v604, 0
      %2264 = vmatprep.subr.mxu0 0.0
      %2265 = vmatpush1.msra.mxu0 %v2262
      %2266 = vmatprep.subr.mxu0 0.0
      %2267 = vmatpush1.msra.mxu0 0.0
      %2268 = vmatprep.subr.mxu0 0.0
      %2269 = vmatpush1.msra.mxu0 0.0
      %2270 = vmatprep.subr.mxu0 0.0
      %2271 = vmatpush1.msra.mxu0 0.0
      %2272 = vmatprep.subr.mxu0 0.0
      %2273 = vmatpush1.msra.mxu0 0.0
      %2274 = vmatprep.subr.mxu0 0.0
      %2275 = vmatpush1.msra.mxu0 0.0
      %2276 = vmatprep.subr.mxu0 0.0
      %2277 = vmatpush1.msra.mxu0 0.0
      %2278 = vmatprep.subr.mxu0 0.0
      %2279 = vmatpush1.msra.mxu0 0.0
      %2280 = vmatprep.subr.mxu0 0.0
      %2281 = vmatpush1.msra.mxu0 0.0
      %2282 = vmatprep.subr.mxu0 0.0
      %2283 = vmatpush1.msra.mxu0 0.0
      %2284 = vmatprep.subr.mxu0 0.0
      %2285 = vmatpush1.msra.mxu0 0.0
      %2286 = vmatprep.subr.mxu0 0.0
      %2287 = vmatpush1.msra.mxu0 0.0
      %2288 = vmatprep.subr.mxu0 0.0
      %2289 = vmatpush1.msra.mxu0 0.0
      %2290 = vmatprep.subr.mxu0 0.0
      %2291 = vmatpush1.msra.mxu0 0.0
      %2292 = vmatprep.subr.mxu0 0.0
      %2293 = vmatpush1.msra.mxu0 0.0
      %2294 = vmatprep.subr.mxu0 0.0
      %2295 = vmatpush1.msra.mxu0 0.0
      %2296 = vmatprep.subr.mxu0 0.0
      %2297 = vmatpush1.msra.mxu0 0.0
      %2298 = vmatprep.subr.mxu0 0.0
      %2299 = vmatpush1.msra.mxu0 0.0
      %2300 = vmatprep.subr.mxu0 0.0
      %2301 = vmatpush1.msra.mxu0 0.0
      %2302 = vmatprep.subr.mxu0 0.0
      %2303 = vmatpush1.msra.mxu0 0.0
      %2304 = vmatprep.subr.mxu0 0.0
      %2305 = vmatpush1.msra.mxu0 0.0
      %2306 = vmatprep.subr.mxu0 0.0
      %2307 = vmatpush1.msra.mxu0 0.0
      %2308 = vmatprep.subr.mxu0 0.0
      %2309 = vmatpush1.msra.mxu0 0.0
      %2310 = vmatprep.subr.mxu0 0.0
      %2311 = vmatpush1.msra.mxu0 0.0
      %2312 = vmatprep.subr.mxu0 0.0
      %2313 = vmatpush1.msra.mxu0 0.0
      %2314 = vmatprep.subr.mxu0 0.0
      %2315 = vmatpush1.msra.mxu0 0.0
      %2316 = vmatprep.subr.mxu0 0.0
      %2317 = vmatpush1.msra.mxu0 0.0
      %2318 = vmatprep.subr.mxu0 0.0
      %2319 = vmatpush1.msra.mxu0 0.0
      %2320 = vmatprep.subr.mxu0 0.0
      %2321 = vmatpush1.msra.mxu0 0.0
      %2322 = vmatprep.subr.mxu0 0.0
      %2323 = vmatpush1.msra.mxu0 0.0
      %2324 = vmatprep.subr.mxu0 0.0
      %2325 = vmatpush1.msra.mxu0 0.0
      %2326 = vmatprep.subr.mxu0 0.0
      %2327 = vmatpush1.msra.mxu0 0.0
      %2328 = vmatprep.mubr.f32.mxu0 0.0
      %2329 = vmatmul.mubr.f32.gmra.mrb[0].mxu0 %v2197
      %v2330 = vpop.f32.mrb[0].mxu0
      %v2331 = vadd.f32 0.0, %v2330
      %v2332 = vpop.f32.mrb[0].mxu0
      %2333 = vmatprep.mubr.f32.mxu0 0.0
      %2334 = vmatmul.mubr.f32.gmra.mrb[0].mxu0 %v2199
      %v2335 = vpop.f32.mrb[0].mxu0
      %v2336 = vadd.f32 0.0, %v2335
      %v2337 = vpop.f32.mrb[0].mxu0
      %2338 = vmatprep.mubr.f32.mxu0 0.0
      %2339 = vmatmul.mubr.f32.gmra.mrb[0].mxu0 %v2201
      %v2340 = vpop.f32.mrb[0].mxu0
      %v2341 = vadd.f32 0.0, %v2340
      %v2342 = vpop.f32.mrb[0].mxu0
      %2343 = vmatprep.mubr.f32.mxu0 0.0
      %2344 = vmatmul.mubr.f32.gmra.mrb[0].mxu0 %v2203
      %v2345 = vpop.f32.mrb[0].mxu0
      %v2346 = vadd.f32 0.0, %v2345
      %v2347 = vpop.f32.mrb[0].mxu0
      %2348 = vmatprep.mubr.f32.mxu0 0.0
      %2349 = vmatmul.mubr.f32.gmra.mrb[0].mxu0 %v2205
      %v2350 = vpop.f32.mrb[0].mxu0
      %v2351 = vadd.f32 0.0, %v2350
      %v2352 = vpop.f32.mrb[0].mxu0
      %2353 = vmatprep.mubr.f32.mxu0 0.0
      %2354 = vmatmul.mubr.f32.gmra.mrb[0].mxu0 %v2207
      %v2355 = vpop.f32.mrb[0].mxu0
      %v2356 = vadd.f32 0.0, %v2355
      %v2357 = vpop.f32.mrb[0].mxu0
      %2358 = vmatprep.mubr.f32.mxu0 0.0
      %2359 = vmatmul.mubr.f32.gmra.mrb[0].mxu0 %v2209
      %v2360 = vpop.f32.mrb[0].mxu0
      %v2361 = vadd.f32 0.0, %v2360
      %v2362 = vpop.f32.mrb[0].mxu0
      %2363 = vmatprep.mubr.f32.mxu0 0.0
      %2364 = vmatmul.mubr.f32.gmra.mrb[0].mxu0 %v2211
      %v2365 = vpop.f32.mrb[0].mxu0
      %v2366 = vadd.f32 0.0, %v2365
      %v2367 = vpop.f32.mrb[0].mxu0
      %2368 = vmatprep.mubr.f32.mxu0 0.0
      %2369 = vmatmul.mubr.f32.gmra.mrb[0].mxu0 %v2213
      %v2370 = vpop.f32.mrb[0].mxu0
      %v2371 = vadd.f32 0.0, %v2370
      %v2372 = vpop.f32.mrb[0].mxu0
      %2373 = vmatprep.mubr.f32.mxu0 0.0
      %2374 = vmatmul.mubr.f32.gmra.mrb[0].mxu0 %v2215
      %v2375 = vpop.f32.mrb[0].mxu0
      %v2376 = vadd.f32 0.0, %v2375
      %v2377 = vpop.f32.mrb[0].mxu0
      %2378 = vmatprep.mubr.f32.mxu0 0.0
      %2379 = vmatmul.mubr.f32.gmra.mrb[0].mxu0 %v2217
      %v2380 = vpop.f32.mrb[0].mxu0
      %v2381 = vadd.f32 0.0, %v2380
      %v2382 = vpop.f32.mrb[0].mxu0
      %2383 = vmatprep.mubr.f32.mxu0 0.0
      %2384 = vmatmul.mubr.f32.gmra.mrb[0].mxu0 %v2219
      %v2385 = vpop.f32.mrb[0].mxu0
      %v2386 = vadd.f32 0.0, %v2385
      %v2387 = vpop.f32.mrb[0].mxu0
      %2388 = vmatprep.mubr.f32.mxu0 0.0
      %2389 = vmatmul.mubr.f32.gmra.mrb[0].mxu0 %v2221
      %v2390 = vpop.f32.mrb[0].mxu0
      %v2391 = vadd.f32 0.0, %v2390
      %v2392 = vpop.f32.mrb[0].mxu0
      %2393 = vmatprep.mubr.f32.mxu0 0.0
      %2394 = vmatmul.mubr.f32.gmra.mrb[0].mxu0 %v2223
      %v2395 = vpop.f32.mrb[0].mxu0
      %v2396 = vadd.f32 0.0, %v2395
      %v2397 = vpop.f32.mrb[0].mxu0
      %2398 = vmatprep.mubr.f32.mxu0 0.0
      %2399 = vmatmul.mubr.f32.gmra.mrb[0].mxu0 %v2225
      %v2400 = vpop.f32.mrb[0].mxu0
      %v2401 = vadd.f32 0.0, %v2400
      %v2402 = vpop.f32.mrb[0].mxu0
      %2403 = vmatprep.mubr.f32.mxu0 0.0
      %2404 = vmatmul.mubr.f32.gmra.mrb[0].mxu0 %v2227
      %v2405 = vpop.f32.mrb[0].mxu0
      %v2406 = vadd.f32 0.0, %v2405
      %v2407 = vpop.f32.mrb[0].mxu0
      %2408 = vmatprep.mubr.f32.mxu0 0.0
      %2409 = vmatmul.mubr.f32.gmra.mrb[0].mxu0 %v2229
      %v2410 = vpop.f32.mrb[0].mxu0
      %v2411 = vadd.f32 0.0, %v2410
      %v2412 = vpop.f32.mrb[0].mxu0
      %2413 = vmatprep.mubr.f32.mxu0 0.0
      %2414 = vmatmul.mubr.f32.gmra.mrb[0].mxu0 %v2231
      %v2415 = vpop.f32.mrb[0].mxu0
      %v2416 = vadd.f32 0.0, %v2415
      %v2417 = vpop.f32.mrb[0].mxu0
      %2418 = vmatprep.mubr.f32.mxu0 0.0
      %2419 = vmatmul.mubr.f32.gmra.mrb[0].mxu0 %v2233
      %v2420 = vpop.f32.mrb[0].mxu0
      %v2421 = vadd.f32 0.0, %v2420
      %v2422 = vpop.f32.mrb[0].mxu0
      %2423 = vmatprep.mubr.f32.mxu0 0.0
      %2424 = vmatmul.mubr.f32.gmra.mrb[0].mxu0 %v2235
      %v2425 = vpop.f32.mrb[0].mxu0
      %v2426 = vadd.f32 0.0, %v2425
      %v2427 = vpop.f32.mrb[0].mxu0
      %2428 = vmatprep.mubr.f32.mxu0 0.0
      %2429 = vmatmul.mubr.f32.gmra.mrb[0].mxu0 %v2237
      %v2430 = vpop.f32.mrb[0].mxu0
      %v2431 = vadd.f32 0.0, %v2430
      %v2432 = vpop.f32.mrb[0].mxu0
      %2433 = vmatprep.mubr.f32.mxu0 0.0
      %2434 = vmatmul.mubr.f32.gmra.mrb[0].mxu0 %v2239
      %v2435 = vpop.f32.mrb[0].mxu0
      %v2436 = vadd.f32 0.0, %v2435
      %v2437 = vpop.f32.mrb[0].mxu0
      %2438 = vmatprep.mubr.f32.mxu0 0.0
      %2439 = vmatmul.mubr.f32.gmra.mrb[0].mxu0 %v2241
      %v2440 = vpop.f32.mrb[0].mxu0
      %v2441 = vadd.f32 0.0, %v2440
      %v2442 = vpop.f32.mrb[0].mxu0
      %2443 = vmatprep.mubr.f32.mxu0 0.0
      %2444 = vmatmul.mubr.f32.gmra.mrb[0].mxu0 %v2243
      %v2445 = vpop.f32.mrb[0].mxu0
      %v2446 = vadd.f32 0.0, %v2445
      %v2447 = vpop.f32.mrb[0].mxu0
      %2448 = vmatprep.mubr.f32.mxu0 0.0
      %2449 = vmatmul.mubr.f32.gmra.mrb[0].mxu0 %v2245
      %v2450 = vpop.f32.mrb[0].mxu0
      %v2451 = vadd.f32 0.0, %v2450
      %v2452 = vpop.f32.mrb[0].mxu0
      %2453 = vmatprep.mubr.f32.mxu0 0.0
      %2454 = vmatmul.mubr.f32.gmra.mrb[0].mxu0 %v2247
      %v2455 = vpop.f32.mrb[0].mxu0
      %v2456 = vadd.f32 0.0, %v2455
      %v2457 = vpop.f32.mrb[0].mxu0
      %2458 = vmatprep.mubr.f32.mxu0 0.0
      %2459 = vmatmul.mubr.f32.gmra.mrb[0].mxu0 %v2249
      %v2460 = vpop.f32.mrb[0].mxu0
      %v2461 = vadd.f32 0.0, %v2460
      %v2462 = vpop.f32.mrb[0].mxu0
      %2463 = vmatprep.mubr.f32.mxu0 0.0
      %2464 = vmatmul.mubr.f32.gmra.mrb[0].mxu0 %v2251
      %v2465 = vpop.f32.mrb[0].mxu0
      %v2466 = vadd.f32 0.0, %v2465
      %v2467 = vpop.f32.mrb[0].mxu0
      %2468 = vmatprep.mubr.f32.mxu0 0.0
      %2469 = vmatmul.mubr.f32.gmra.mrb[0].mxu0 %v2253
      %v2470 = vpop.f32.mrb[0].mxu0
      %v2471 = vadd.f32 0.0, %v2470
      %v2472 = vpop.f32.mrb[0].mxu0
      %2473 = vmatprep.mubr.f32.mxu0 0.0
      %2474 = vmatmul.mubr.f32.gmra.mrb[0].mxu0 %v2255
      %v2475 = vpop.f32.mrb[0].mxu0
      %v2476 = vadd.f32 0.0, %v2475
      %v2477 = vpop.f32.mrb[0].mxu0
      %2478 = vmatprep.mubr.f32.mxu0 0.0
      %2479 = vmatmul.mubr.f32.gmra.mrb[0].mxu0 %v2257
      %v2480 = vpop.f32.mrb[0].mxu0
      %v2481 = vadd.f32 0.0, %v2480
      %v2482 = vpop.f32.mrb[0].mxu0
      %2483 = vmatprep.mubr.f32.mxu0 0.0
      %2484 = vmatmul.mubr.f32.gmra.mrb[0].mxu0 %v2259
      %v2485 = vpop.f32.mrb[0].mxu0
      %v2486 = vadd.f32 0.0, %v2485
      %v2487 = vpop.f32.mrb[0].mxu0
      %2488 = vdwg.mxu0
      %v2489 = vadd.f32 %v2084, %v2331
      %v2490 = vadd.f32 %v2085, %v2336
      %v2491 = vadd.f32 %v2086, %v2341
      %v2492 = vadd.f32 %v2087, %v2346
      %v2493 = vadd.f32 %v2088, %v2351
      %v2494 = vadd.f32 %v2089, %v2356
      %v2495 = vadd.f32 %v2090, %v2361
      %v2496 = vadd.f32 %v2091, %v2366
      %v2497 = vadd.f32 %v2092, %v2371
      %v2498 = vadd.f32 %v2093, %v2376
      %v2499 = vadd.f32 %v2094, %v2381
      %v2500 = vadd.f32 %v2095, %v2386
      %v2501 = vadd.f32 %v2096, %v2391
      %v2502 = vadd.f32 %v2097, %v2396
      %v2503 = vadd.f32 %v2098, %v2401
      %v2504 = vadd.f32 %v2099, %v2406
      %v2505 = vadd.f32 %v2100, %v2411
      %v2506 = vadd.f32 %v2101, %v2416
      %v2507 = vadd.f32 %v2102, %v2421
      %v2508 = vadd.f32 %v2103, %v2426
      %v2509 = vadd.f32 %v2104, %v2431
      %v2510 = vadd.f32 %v2105, %v2436
      %v2511 = vadd.f32 %v2106, %v2441
      %v2512 = vadd.f32 %v2107, %v2446
      %v2513 = vadd.f32 %v2108, %v2451
      %v2514 = vadd.f32 %v2109, %v2456
      %v2515 = vadd.f32 %v2110, %v2461
      %v2516 = vadd.f32 %v2111, %v2466
      %v2517 = vadd.f32 %v2112, %v2471
      %v2518 = vadd.f32 %v2113, %v2476
      %v2519 = vadd.f32 %v2114, %v2481
      %v2520 = vadd.f32 %v2115, %v2486
      %v2521 = vrot.slane %v568, 5
      %v2522 = vrot.slane %v490, 5
      %v2523 = vsel %vm487, %v2521, %v2522
      %v2524 = vrot.slane %v584, 5
      %v2525 = vsel %vm487, %v2522, %v2524
      %v2526 = vrot.slane %v569, 5
      %v2527 = vrot.slane %v493, 5
      %v2528 = vsel %vm487, %v2526, %v2527
      %v2529 = vrot.slane %v585, 5
      %v2530 = vsel %vm487, %v2527, %v2529
      %v2531 = vrot.slane %v570, 5
      %v2532 = vrot.slane %v496, 5
      %v2533 = vsel %vm487, %v2531, %v2532
      %v2534 = vrot.slane %v586, 5
      %v2535 = vsel %vm487, %v2532, %v2534
      %v2536 = vrot.slane %v571, 5
      %v2537 = vrot.slane %v499, 5
      %v2538 = vsel %vm487, %v2536, %v2537
      %v2539 = vrot.slane %v587, 5
      %v2540 = vsel %vm487, %v2537, %v2539
      %v2541 = vrot.slane %v572, 5
      %v2542 = vrot.slane %v502, 5
      %v2543 = vsel %vm487, %v2541, %v2542
      %v2544 = vrot.slane %v588, 5
      %v2545 = vsel %vm487, %v2542, %v2544
      %v2546 = vrot.slane %v573, 5
      %v2547 = vrot.slane %v505, 5
      %v2548 = vsel %vm487, %v2546, %v2547
      %v2549 = vrot.slane %v589, 5
      %v2550 = vsel %vm487, %v2547, %v2549
      %v2551 = vrot.slane %v574, 5
      %v2552 = vrot.slane %v508, 5
      %v2553 = vsel %vm487, %v2551, %v2552
      %v2554 = vrot.slane %v590, 5
      %v2555 = vsel %vm487, %v2552, %v2554
      %v2556 = vrot.slane %v575, 5
      %v2557 = vrot.slane %v511, 5
      %v2558 = vsel %vm487, %v2556, %v2557
      %v2559 = vrot.slane %v591, 5
      %v2560 = vsel %vm487, %v2557, %v2559
      %v2561 = vrot.slane %v576, 5
      %v2562 = vrot.slane %v514, 5
      %v2563 = vsel %vm487, %v2561, %v2562
      %v2564 = vrot.slane %v592, 5
      %v2565 = vsel %vm487, %v2562, %v2564
      %v2566 = vrot.slane %v577, 5
      %v2567 = vrot.slane %v517, 5
      %v2568 = vsel %vm487, %v2566, %v2567
      %v2569 = vrot.slane %v593, 5
      %v2570 = vsel %vm487, %v2567, %v2569
      %v2571 = vrot.slane %v578, 5
      %v2572 = vrot.slane %v520, 5
      %v2573 = vsel %vm487, %v2571, %v2572
      %v2574 = vrot.slane %v594, 5
      %v2575 = vsel %vm487, %v2572, %v2574
      %v2576 = vrot.slane %v579, 5
      %v2577 = vrot.slane %v523, 5
      %v2578 = vsel %vm487, %v2576, %v2577
      %v2579 = vrot.slane %v595, 5
      %v2580 = vsel %vm487, %v2577, %v2579
      %v2581 = vrot.slane %v580, 5
      %v2582 = vrot.slane %v526, 5
      %v2583 = vsel %vm487, %v2581, %v2582
      %v2584 = vrot.slane %v596, 5
      %v2585 = vsel %vm487, %v2582, %v2584
      %v2586 = vrot.slane %v581, 5
      %v2587 = vrot.slane %v529, 5
      %v2588 = vsel %vm487, %v2586, %v2587
      %v2589 = vrot.slane %v597, 5
      %v2590 = vsel %vm487, %v2587, %v2589
      %v2591 = vrot.slane %v582, 5
      %v2592 = vrot.slane %v532, 5
      %v2593 = vsel %vm487, %v2591, %v2592
      %v2594 = vrot.slane %v598, 5
      %v2595 = vsel %vm487, %v2592, %v2594
      %v2596 = vrot.slane %v583, 5
      %v2597 = vrot.slane %v535, 5
      %v2598 = vsel %vm487, %v2596, %v2597
      %v2599 = vrot.slane %v599, 5
      %v2600 = vsel %vm487, %v2597, %v2599
      %v2601 = vsel %vm720, %v2523, 0
      %v2603 = vsel %vm720, %v2525, 0
      %v2605 = vsel %vm720, %v2528, 0
      %v2607 = vsel %vm720, %v2530, 0
      %v2609 = vsel %vm720, %v2533, 0
      %v2611 = vsel %vm720, %v2535, 0
      %v2613 = vsel %vm720, %v2538, 0
      %v2615 = vsel %vm720, %v2540, 0
      %v2617 = vsel %vm720, %v2543, 0
      %v2619 = vsel %vm720, %v2545, 0
      %v2621 = vsel %vm720, %v2548, 0
      %v2623 = vsel %vm720, %v2550, 0
      %v2625 = vsel %vm720, %v2553, 0
      %v2627 = vsel %vm720, %v2555, 0
      %v2629 = vsel %vm720, %v2558, 0
      %v2631 = vsel %vm720, %v2560, 0
      %v2633 = vsel %vm720, %v2563, 0
      %v2635 = vsel %vm720, %v2565, 0
      %v2637 = vsel %vm720, %v2568, 0
      %v2639 = vsel %vm720, %v2570, 0
      %v2641 = vsel %vm720, %v2573, 0
      %v2643 = vsel %vm720, %v2575, 0
      %v2645 = vsel %vm720, %v2578, 0
      %v2647 = vsel %vm720, %v2580, 0
      %v2649 = vsel %vm720, %v2583, 0
      %v2651 = vsel %vm720, %v2585, 0
      %v2653 = vsel %vm720, %v2588, 0
      %v2655 = vsel %vm720, %v2590, 0
      %v2657 = vsel %vm720, %v2593, 0
      %v2659 = vsel %vm720, %v2595, 0
      %v2661 = vsel %vm720, %v2598, 0
      %v2663 = vsel %vm720, %v2600, 0
      %v2666 = vsel %vm785, %v605, 0
      %2668 = vmatprep.subr.mxu0 0.0
      %2669 = vmatpush1.msra.mxu0 %v2666
      %2670 = vmatprep.subr.mxu0 0.0
      %2671 = vmatpush1.msra.mxu0 0.0
      %2672 = vmatprep.subr.mxu0 0.0
      %2673 = vmatpush1.msra.mxu0 0.0
      %2674 = vmatprep.subr.mxu0 0.0
      %2675 = vmatpush1.msra.mxu0 0.0
      %2676 = vmatprep.subr.mxu0 0.0
      %2677 = vmatpush1.msra.mxu0 0.0
      %2678 = vmatprep.subr.mxu0 0.0
      %2679 = vmatpush1.msra.mxu0 0.0
      %2680 = vmatprep.subr.mxu0 0.0
      %2681 = vmatpush1.msra.mxu0 0.0
      %2682 = vmatprep.subr.mxu0 0.0
      %2683 = vmatpush1.msra.mxu0 0.0
      %2684 = vmatprep.subr.mxu0 0.0
      %2685 = vmatpush1.msra.mxu0 0.0
      %2686 = vmatprep.subr.mxu0 0.0
      %2687 = vmatpush1.msra.mxu0 0.0
      %2688 = vmatprep.subr.mxu0 0.0
      %2689 = vmatpush1.msra.mxu0 0.0
      %2690 = vmatprep.subr.mxu0 0.0
      %2691 = vmatpush1.msra.mxu0 0.0
      %2692 = vmatprep.subr.mxu0 0.0
      %2693 = vmatpush1.msra.mxu0 0.0
      %2694 = vmatprep.subr.mxu0 0.0
      %2695 = vmatpush1.msra.mxu0 0.0
      %2696 = vmatprep.subr.mxu0 0.0
      %2697 = vmatpush1.msra.mxu0 0.0
      %2698 = vmatprep.subr.mxu0 0.0
      %2699 = vmatpush1.msra.mxu0 0.0
      %2700 = vmatprep.subr.mxu0 0.0
      %2701 = vmatpush1.msra.mxu0 0.0
      %2702 = vmatprep.subr.mxu0 0.0
      %2703 = vmatpush1.msra.mxu0 0.0
      %2704 = vmatprep.subr.mxu0 0.0
      %2705 = vmatpush1.msra.mxu0 0.0
      %2706 = vmatprep.subr.mxu0 0.0
      %2707 = vmatpush1.msra.mxu0 0.0
      %2708 = vmatprep.subr.mxu0 0.0
      %2709 = vmatpush1.msra.mxu0 0.0
      %2710 = vmatprep.subr.mxu0 0.0
      %2711 = vmatpush1.msra.mxu0 0.0
      %2712 = vmatprep.subr.mxu0 0.0
      %2713 = vmatpush1.msra.mxu0 0.0
      %2714 = vmatprep.subr.mxu0 0.0
      %2715 = vmatpush1.msra.mxu0 0.0
      %2716 = vmatprep.subr.mxu0 0.0
      %2717 = vmatpush1.msra.mxu0 0.0
      %2718 = vmatprep.subr.mxu0 0.0
      %2719 = vmatpush1.msra.mxu0 0.0
      %2720 = vmatprep.subr.mxu0 0.0
      %2721 = vmatpush1.msra.mxu0 0.0
      %2722 = vmatprep.subr.mxu0 0.0
      %2723 = vmatpush1.msra.mxu0 0.0
      %2724 = vmatprep.subr.mxu0 0.0
      %2725 = vmatpush1.msra.mxu0 0.0
      %2726 = vmatprep.subr.mxu0 0.0
      %2727 = vmatpush1.msra.mxu0 0.0
      %2728 = vmatprep.subr.mxu0 0.0
      %2729 = vmatpush1.msra.mxu0 0.0
      %2730 = vmatprep.subr.mxu0 0.0
      %2731 = vmatpush1.msra.mxu0 0.0
      %2732 = vmatprep.mubr.f32.mxu0 0.0
      %2733 = vmatmul.mubr.f32.gmra.mrb[0].mxu0 %v2601
      %v2734 = vpop.f32.mrb[0].mxu0
      %v2735 = vadd.f32 0.0, %v2734
      %v2736 = vpop.f32.mrb[0].mxu0
      %2737 = vmatprep.mubr.f32.mxu0 0.0
      %2738 = vmatmul.mubr.f32.gmra.mrb[0].mxu0 %v2603
      %v2739 = vpop.f32.mrb[0].mxu0
      %v2740 = vadd.f32 0.0, %v2739
      %v2741 = vpop.f32.mrb[0].mxu0
      %2742 = vmatprep.mubr.f32.mxu0 0.0
      %2743 = vmatmul.mubr.f32.gmra.mrb[0].mxu0 %v2605
      %v2744 = vpop.f32.mrb[0].mxu0
      %v2745 = vadd.f32 0.0, %v2744
      %v2746 = vpop.f32.mrb[0].mxu0
      %2747 = vmatprep.mubr.f32.mxu0 0.0
      %2748 = vmatmul.mubr.f32.gmra.mrb[0].mxu0 %v2607
      %v2749 = vpop.f32.mrb[0].mxu0
      %v2750 = vadd.f32 0.0, %v2749
      %v2751 = vpop.f32.mrb[0].mxu0
      %2752 = vmatprep.mubr.f32.mxu0 0.0
      %2753 = vmatmul.mubr.f32.gmra.mrb[0].mxu0 %v2609
      %v2754 = vpop.f32.mrb[0].mxu0
      %v2755 = vadd.f32 0.0, %v2754
      %v2756 = vpop.f32.mrb[0].mxu0
      %2757 = vmatprep.mubr.f32.mxu0 0.0
      %2758 = vmatmul.mubr.f32.gmra.mrb[0].mxu0 %v2611
      %v2759 = vpop.f32.mrb[0].mxu0
      %v2760 = vadd.f32 0.0, %v2759
      %v2761 = vpop.f32.mrb[0].mxu0
      %2762 = vmatprep.mubr.f32.mxu0 0.0
      %2763 = vmatmul.mubr.f32.gmra.mrb[0].mxu0 %v2613
      %v2764 = vpop.f32.mrb[0].mxu0
      %v2765 = vadd.f32 0.0, %v2764
      %v2766 = vpop.f32.mrb[0].mxu0
      %2767 = vmatprep.mubr.f32.mxu0 0.0
      %2768 = vmatmul.mubr.f32.gmra.mrb[0].mxu0 %v2615
      %v2769 = vpop.f32.mrb[0].mxu0
      %v2770 = vadd.f32 0.0, %v2769
      %v2771 = vpop.f32.mrb[0].mxu0
      %2772 = vmatprep.mubr.f32.mxu0 0.0
      %2773 = vmatmul.mubr.f32.gmra.mrb[0].mxu0 %v2617
      %v2774 = vpop.f32.mrb[0].mxu0
      %v2775 = vadd.f32 0.0, %v2774
      %v2776 = vpop.f32.mrb[0].mxu0
      %2777 = vmatprep.mubr.f32.mxu0 0.0
      %2778 = vmatmul.mubr.f32.gmra.mrb[0].mxu0 %v2619
      %v2779 = vpop.f32.mrb[0].mxu0
      %v2780 = vadd.f32 0.0, %v2779
      %v2781 = vpop.f32.mrb[0].mxu0
      %2782 = vmatprep.mubr.f32.mxu0 0.0
      %2783 = vmatmul.mubr.f32.gmra.mrb[0].mxu0 %v2621
      %v2784 = vpop.f32.mrb[0].mxu0
      %v2785 = vadd.f32 0.0, %v2784
      %v2786 = vpop.f32.mrb[0].mxu0
      %2787 = vmatprep.mubr.f32.mxu0 0.0
      %2788 = vmatmul.mubr.f32.gmra.mrb[0].mxu0 %v2623
      %v2789 = vpop.f32.mrb[0].mxu0
      %v2790 = vadd.f32 0.0, %v2789
      %v2791 = vpop.f32.mrb[0].mxu0
      %2792 = vmatprep.mubr.f32.mxu0 0.0
      %2793 = vmatmul.mubr.f32.gmra.mrb[0].mxu0 %v2625
      %v2794 = vpop.f32.mrb[0].mxu0
      %v2795 = vadd.f32 0.0, %v2794
      %v2796 = vpop.f32.mrb[0].mxu0
      %2797 = vmatprep.mubr.f32.mxu0 0.0
      %2798 = vmatmul.mubr.f32.gmra.mrb[0].mxu0 %v2627
      %v2799 = vpop.f32.mrb[0].mxu0
      %v2800 = vadd.f32 0.0, %v2799
      %v2801 = vpop.f32.mrb[0].mxu0
      %2802 = vmatprep.mubr.f32.mxu0 0.0
      %2803 = vmatmul.mubr.f32.gmra.mrb[0].mxu0 %v2629
      %v2804 = vpop.f32.mrb[0].mxu0
      %v2805 = vadd.f32 0.0, %v2804
      %v2806 = vpop.f32.mrb[0].mxu0
      %2807 = vmatprep.mubr.f32.mxu0 0.0
      %2808 = vmatmul.mubr.f32.gmra.mrb[0].mxu0 %v2631
      %v2809 = vpop.f32.mrb[0].mxu0
      %v2810 = vadd.f32 0.0, %v2809
      %v2811 = vpop.f32.mrb[0].mxu0
      %2812 = vmatprep.mubr.f32.mxu0 0.0
      %2813 = vmatmul.mubr.f32.gmra.mrb[0].mxu0 %v2633
      %v2814 = vpop.f32.mrb[0].mxu0
      %v2815 = vadd.f32 0.0, %v2814
      %v2816 = vpop.f32.mrb[0].mxu0
      %2817 = vmatprep.mubr.f32.mxu0 0.0
      %2818 = vmatmul.mubr.f32.gmra.mrb[0].mxu0 %v2635
      %v2819 = vpop.f32.mrb[0].mxu0
      %v2820 = vadd.f32 0.0, %v2819
      %v2821 = vpop.f32.mrb[0].mxu0
      %2822 = vmatprep.mubr.f32.mxu0 0.0
      %2823 = vmatmul.mubr.f32.gmra.mrb[0].mxu0 %v2637
      %v2824 = vpop.f32.mrb[0].mxu0
      %v2825 = vadd.f32 0.0, %v2824
      %v2826 = vpop.f32.mrb[0].mxu0
      %2827 = vmatprep.mubr.f32.mxu0 0.0
      %2828 = vmatmul.mubr.f32.gmra.mrb[0].mxu0 %v2639
      %v2829 = vpop.f32.mrb[0].mxu0
      %v2830 = vadd.f32 0.0, %v2829
      %v2831 = vpop.f32.mrb[0].mxu0
      %2832 = vmatprep.mubr.f32.mxu0 0.0
      %2833 = vmatmul.mubr.f32.gmra.mrb[0].mxu0 %v2641
      %v2834 = vpop.f32.mrb[0].mxu0
      %v2835 = vadd.f32 0.0, %v2834
      %v2836 = vpop.f32.mrb[0].mxu0
      %2837 = vmatprep.mubr.f32.mxu0 0.0
      %2838 = vmatmul.mubr.f32.gmra.mrb[0].mxu0 %v2643
      %v2839 = vpop.f32.mrb[0].mxu0
      %v2840 = vadd.f32 0.0, %v2839
      %v2841 = vpop.f32.mrb[0].mxu0
      %2842 = vmatprep.mubr.f32.mxu0 0.0
      %2843 = vmatmul.mubr.f32.gmra.mrb[0].mxu0 %v2645
      %v2844 = vpop.f32.mrb[0].mxu0
      %v2845 = vadd.f32 0.0, %v2844
      %v2846 = vpop.f32.mrb[0].mxu0
      %2847 = vmatprep.mubr.f32.mxu0 0.0
      %2848 = vmatmul.mubr.f32.gmra.mrb[0].mxu0 %v2647
      %v2849 = vpop.f32.mrb[0].mxu0
      %v2850 = vadd.f32 0.0, %v2849
      %v2851 = vpop.f32.mrb[0].mxu0
      %2852 = vmatprep.mubr.f32.mxu0 0.0
      %2853 = vmatmul.mubr.f32.gmra.mrb[0].mxu0 %v2649
      %v2854 = vpop.f32.mrb[0].mxu0
      %v2855 = vadd.f32 0.0, %v2854
      %v2856 = vpop.f32.mrb[0].mxu0
      %2857 = vmatprep.mubr.f32.mxu0 0.0
      %2858 = vmatmul.mubr.f32.gmra.mrb[0].mxu0 %v2651
      %v2859 = vpop.f32.mrb[0].mxu0
      %v2860 = vadd.f32 0.0, %v2859
      %v2861 = vpop.f32.mrb[0].mxu0
      %2862 = vmatprep.mubr.f32.mxu0 0.0
      %2863 = vmatmul.mubr.f32.gmra.mrb[0].mxu0 %v2653
      %v2864 = vpop.f32.mrb[0].mxu0
      %v2865 = vadd.f32 0.0, %v2864
      %v2866 = vpop.f32.mrb[0].mxu0
      %2867 = vmatprep.mubr.f32.mxu0 0.0
      %2868 = vmatmul.mubr.f32.gmra.mrb[0].mxu0 %v2655
      %v2869 = vpop.f32.mrb[0].mxu0
      %v2870 = vadd.f32 0.0, %v2869
      %v2871 = vpop.f32.mrb[0].mxu0
      %2872 = vmatprep.mubr.f32.mxu0 0.0
      %2873 = vmatmul.mubr.f32.gmra.mrb[0].mxu0 %v2657
      %v2874 = vpop.f32.mrb[0].mxu0
      %v2875 = vadd.f32 0.0, %v2874
      %v2876 = vpop.f32.mrb[0].mxu0
      %2877 = vmatprep.mubr.f32.mxu0 0.0
      %2878 = vmatmul.mubr.f32.gmra.mrb[0].mxu0 %v2659
      %v2879 = vpop.f32.mrb[0].mxu0
      %v2880 = vadd.f32 0.0, %v2879
      %v2881 = vpop.f32.mrb[0].mxu0
      %2882 = vmatprep.mubr.f32.mxu0 0.0
      %2883 = vmatmul.mubr.f32.gmra.mrb[0].mxu0 %v2661
      %v2884 = vpop.f32.mrb[0].mxu0
      %v2885 = vadd.f32 0.0, %v2884
      %v2886 = vpop.f32.mrb[0].mxu0
      %2887 = vmatprep.mubr.f32.mxu0 0.0
      %2888 = vmatmul.mubr.f32.gmra.mrb[0].mxu0 %v2663
      %v2889 = vpop.f32.mrb[0].mxu0
      %v2890 = vadd.f32 0.0, %v2889
      %v2891 = vpop.f32.mrb[0].mxu0
      %2892 = vdwg.mxu0
      %v2893 = vadd.f32 %v2489, %v2735
      %v2894 = vadd.f32 %v2490, %v2740
      %v2895 = vadd.f32 %v2491, %v2745
      %v2896 = vadd.f32 %v2492, %v2750
      %v2897 = vadd.f32 %v2493, %v2755
      %v2898 = vadd.f32 %v2494, %v2760
      %v2899 = vadd.f32 %v2495, %v2765
      %v2900 = vadd.f32 %v2496, %v2770
      %v2901 = vadd.f32 %v2497, %v2775
      %v2902 = vadd.f32 %v2498, %v2780
      %v2903 = vadd.f32 %v2499, %v2785
      %v2904 = vadd.f32 %v2500, %v2790
      %v2905 = vadd.f32 %v2501, %v2795
      %v2906 = vadd.f32 %v2502, %v2800
      %v2907 = vadd.f32 %v2503, %v2805
      %v2908 = vadd.f32 %v2504, %v2810
      %v2909 = vadd.f32 %v2505, %v2815
      %v2910 = vadd.f32 %v2506, %v2820
      %v2911 = vadd.f32 %v2507, %v2825
      %v2912 = vadd.f32 %v2508, %v2830
      %v2913 = vadd.f32 %v2509, %v2835
      %v2914 = vadd.f32 %v2510, %v2840
      %v2915 = vadd.f32 %v2511, %v2845
      %v2916 = vadd.f32 %v2512, %v2850
      %v2917 = vadd.f32 %v2513, %v2855
      %v2918 = vadd.f32 %v2514, %v2860
      %v2919 = vadd.f32 %v2515, %v2865
      %v2920 = vadd.f32 %v2516, %v2870
      %v2921 = vadd.f32 %v2517, %v2875
      %v2922 = vadd.f32 %v2518, %v2880
      %v2923 = vadd.f32 %v2519, %v2885
      %v2924 = vadd.f32 %v2520, %v2890
      %v2925 = vrot.slane %v568, 6
      %v2926 = vrot.slane %v490, 6
      %v2927 = vsel %vm785, %v2925, %v2926
      %v2928 = vrot.slane %v584, 6
      %v2929 = vsel %vm785, %v2926, %v2928
      %v2930 = vrot.slane %v569, 6
      %v2931 = vrot.slane %v493, 6
      %v2932 = vsel %vm785, %v2930, %v2931
      %v2933 = vrot.slane %v585, 6
      %v2934 = vsel %vm785, %v2931, %v2933
      %v2935 = vrot.slane %v570, 6
      %v2936 = vrot.slane %v496, 6
      %v2937 = vsel %vm785, %v2935, %v2936
      %v2938 = vrot.slane %v586, 6
      %v2939 = vsel %vm785, %v2936, %v2938
      %v2940 = vrot.slane %v571, 6
      %v2941 = vrot.slane %v499, 6
      %v2942 = vsel %vm785, %v2940, %v2941
      %v2943 = vrot.slane %v587, 6
      %v2944 = vsel %vm785, %v2941, %v2943
      %v2945 = vrot.slane %v572, 6
      %v2946 = vrot.slane %v502, 6
      %v2947 = vsel %vm785, %v2945, %v2946
      %v2948 = vrot.slane %v588, 6
      %v2949 = vsel %vm785, %v2946, %v2948
      %v2950 = vrot.slane %v573, 6
      %v2951 = vrot.slane %v505, 6
      %v2952 = vsel %vm785, %v2950, %v2951
      %v2953 = vrot.slane %v589, 6
      %v2954 = vsel %vm785, %v2951, %v2953
      %v2955 = vrot.slane %v574, 6
      %v2956 = vrot.slane %v508, 6
      %v2957 = vsel %vm785, %v2955, %v2956
      %v2958 = vrot.slane %v590, 6
      %v2959 = vsel %vm785, %v2956, %v2958
      %v2960 = vrot.slane %v575, 6
      %v2961 = vrot.slane %v511, 6
      %v2962 = vsel %vm785, %v2960, %v2961
      %v2963 = vrot.slane %v591, 6
      %v2964 = vsel %vm785, %v2961, %v2963
      %v2965 = vrot.slane %v576, 6
      %v2966 = vrot.slane %v514, 6
      %v2967 = vsel %vm785, %v2965, %v2966
      %v2968 = vrot.slane %v592, 6
      %v2969 = vsel %vm785, %v2966, %v2968
      %v2970 = vrot.slane %v577, 6
      %v2971 = vrot.slane %v517, 6
      %v2972 = vsel %vm785, %v2970, %v2971
      %v2973 = vrot.slane %v593, 6
      %v2974 = vsel %vm785, %v2971, %v2973
      %v2975 = vrot.slane %v578, 6
      %v2976 = vrot.slane %v520, 6
      %v2977 = vsel %vm785, %v2975, %v2976
      %v2978 = vrot.slane %v594, 6
      %v2979 = vsel %vm785, %v2976, %v2978
      %v2980 = vrot.slane %v579, 6
      %v2981 = vrot.slane %v523, 6
      %v2982 = vsel %vm785, %v2980, %v2981
      %v2983 = vrot.slane %v595, 6
      %v2984 = vsel %vm785, %v2981, %v2983
      %v2985 = vrot.slane %v580, 6
      %v2986 = vrot.slane %v526, 6
      %v2987 = vsel %vm785, %v2985, %v2986
      %v2988 = vrot.slane %v596, 6
      %v2989 = vsel %vm785, %v2986, %v2988
      %v2990 = vrot.slane %v581, 6
      %v2991 = vrot.slane %v529, 6
      %v2992 = vsel %vm785, %v2990, %v2991
      %v2993 = vrot.slane %v597, 6
      %v2994 = vsel %vm785, %v2991, %v2993
      %v2995 = vrot.slane %v582, 6
      %v2996 = vrot.slane %v532, 6
      %v2997 = vsel %vm785, %v2995, %v2996
      %v2998 = vrot.slane %v598, 6
      %v2999 = vsel %vm785, %v2996, %v2998
      %v3000 = vrot.slane %v583, 6
      %v3001 = vrot.slane %v535, 6
      %v3002 = vsel %vm785, %v3000, %v3001
      %v3003 = vrot.slane %v599, 6
      %v3004 = vsel %vm785, %v3001, %v3003
      %v3005 = vsel %vm720, %v2927, 0
      %v3007 = vsel %vm720, %v2929, 0
      %v3009 = vsel %vm720, %v2932, 0
      %v3011 = vsel %vm720, %v2934, 0
      %v3013 = vsel %vm720, %v2937, 0
      %v3015 = vsel %vm720, %v2939, 0
      %v3017 = vsel %vm720, %v2942, 0
      %v3019 = vsel %vm720, %v2944, 0
      %v3021 = vsel %vm720, %v2947, 0
      %v3023 = vsel %vm720, %v2949, 0
      %v3025 = vsel %vm720, %v2952, 0
      %v3027 = vsel %vm720, %v2954, 0
      %v3029 = vsel %vm720, %v2957, 0
      %v3031 = vsel %vm720, %v2959, 0
      %v3033 = vsel %vm720, %v2962, 0
      %v3035 = vsel %vm720, %v2964, 0
      %v3037 = vsel %vm720, %v2967, 0
      %v3039 = vsel %vm720, %v2969, 0
      %v3041 = vsel %vm720, %v2972, 0
      %v3043 = vsel %vm720, %v2974, 0
      %v3045 = vsel %vm720, %v2977, 0
      %v3047 = vsel %vm720, %v2979, 0
      %v3049 = vsel %vm720, %v2982, 0
      %v3051 = vsel %vm720, %v2984, 0
      %v3053 = vsel %vm720, %v2987, 0
      %v3055 = vsel %vm720, %v2989, 0
      %v3057 = vsel %vm720, %v2992, 0
      %v3059 = vsel %vm720, %v2994, 0
      %v3061 = vsel %vm720, %v2997, 0
      %v3063 = vsel %vm720, %v2999, 0
      %v3065 = vsel %vm720, %v3002, 0
      %v3067 = vsel %vm720, %v3004, 0
      %v3070 = vsel %vm785, %v606, 0
      %3072 = vmatprep.subr.mxu0 0.0
      %3073 = vmatpush1.msra.mxu0 %v3070
      %3074 = vmatprep.subr.mxu0 0.0
      %3075 = vmatpush1.msra.mxu0 0.0
      %3076 = vmatprep.subr.mxu0 0.0
      %3077 = vmatpush1.msra.mxu0 0.0
      %3078 = vmatprep.subr.mxu0 0.0
      %3079 = vmatpush1.msra.mxu0 0.0
      %3080 = vmatprep.subr.mxu0 0.0
      %3081 = vmatpush1.msra.mxu0 0.0
      %3082 = vmatprep.subr.mxu0 0.0
      %3083 = vmatpush1.msra.mxu0 0.0
      %3084 = vmatprep.subr.mxu0 0.0
      %3085 = vmatpush1.msra.mxu0 0.0
      %3086 = vmatprep.subr.mxu0 0.0
      %3087 = vmatpush1.msra.mxu0 0.0
      %3088 = vmatprep.subr.mxu0 0.0
      %3089 = vmatpush1.msra.mxu0 0.0
      %3090 = vmatprep.subr.mxu0 0.0
      %3091 = vmatpush1.msra.mxu0 0.0
      %3092 = vmatprep.subr.mxu0 0.0
      %3093 = vmatpush1.msra.mxu0 0.0
      %3094 = vmatprep.subr.mxu0 0.0
      %3095 = vmatpush1.msra.mxu0 0.0
      %3096 = vmatprep.subr.mxu0 0.0
      %3097 = vmatpush1.msra.mxu0 0.0
      %3098 = vmatprep.subr.mxu0 0.0
      %3099 = vmatpush1.msra.mxu0 0.0
      %3100 = vmatprep.subr.mxu0 0.0
      %3101 = vmatpush1.msra.mxu0 0.0
      %3102 = vmatprep.subr.mxu0 0.0
      %3103 = vmatpush1.msra.mxu0 0.0
      %3104 = vmatprep.subr.mxu0 0.0
      %3105 = vmatpush1.msra.mxu0 0.0
      %3106 = vmatprep.subr.mxu0 0.0
      %3107 = vmatpush1.msra.mxu0 0.0
      %3108 = vmatprep.subr.mxu0 0.0
      %3109 = vmatpush1.msra.mxu0 0.0
      %3110 = vmatprep.subr.mxu0 0.0
      %3111 = vmatpush1.msra.mxu0 0.0
      %3112 = vmatprep.subr.mxu0 0.0
      %3113 = vmatpush1.msra.mxu0 0.0
      %3114 = vmatprep.subr.mxu0 0.0
      %3115 = vmatpush1.msra.mxu0 0.0
      %3116 = vmatprep.subr.mxu0 0.0
      %3117 = vmatpush1.msra.mxu0 0.0
      %3118 = vmatprep.subr.mxu0 0.0
      %3119 = vmatpush1.msra.mxu0 0.0
      %3120 = vmatprep.subr.mxu0 0.0
      %3121 = vmatpush1.msra.mxu0 0.0
      %3122 = vmatprep.subr.mxu0 0.0
      %3123 = vmatpush1.msra.mxu0 0.0
      %3124 = vmatprep.subr.mxu0 0.0
      %3125 = vmatpush1.msra.mxu0 0.0
      %3126 = vmatprep.subr.mxu0 0.0
      %3127 = vmatpush1.msra.mxu0 0.0
      %3128 = vmatprep.subr.mxu0 0.0
      %3129 = vmatpush1.msra.mxu0 0.0
      %3130 = vmatprep.subr.mxu0 0.0
      %3131 = vmatpush1.msra.mxu0 0.0
      %3132 = vmatprep.subr.mxu0 0.0
      %3133 = vmatpush1.msra.mxu0 0.0
      %3134 = vmatprep.subr.mxu0 0.0
      %3135 = vmatpush1.msra.mxu0 0.0
      %3136 = vmatprep.mubr.f32.mxu0 0.0
      %3137 = vmatmul.mubr.f32.gmra.mrb[0].mxu0 %v3005
      %v3138 = vpop.f32.mrb[0].mxu0
      %v3139 = vadd.f32 0.0, %v3138
      %v3140 = vpop.f32.mrb[0].mxu0
      %3141 = vmatprep.mubr.f32.mxu0 0.0
      %3142 = vmatmul.mubr.f32.gmra.mrb[0].mxu0 %v3007
      %v3143 = vpop.f32.mrb[0].mxu0
      %v3144 = vadd.f32 0.0, %v3143
      %v3145 = vpop.f32.mrb[0].mxu0
      %3146 = vmatprep.mubr.f32.mxu0 0.0
      %3147 = vmatmul.mubr.f32.gmra.mrb[0].mxu0 %v3009
      %v3148 = vpop.f32.mrb[0].mxu0
      %v3149 = vadd.f32 0.0, %v3148
      %v3150 = vpop.f32.mrb[0].mxu0
      %3151 = vmatprep.mubr.f32.mxu0 0.0
      %3152 = vmatmul.mubr.f32.gmra.mrb[0].mxu0 %v3011
      %v3153 = vpop.f32.mrb[0].mxu0
      %v3154 = vadd.f32 0.0, %v3153
      %v3155 = vpop.f32.mrb[0].mxu0
      %3156 = vmatprep.mubr.f32.mxu0 0.0
      %3157 = vmatmul.mubr.f32.gmra.mrb[0].mxu0 %v3013
      %v3158 = vpop.f32.mrb[0].mxu0
      %v3159 = vadd.f32 0.0, %v3158
      %v3160 = vpop.f32.mrb[0].mxu0
      %3161 = vmatprep.mubr.f32.mxu0 0.0
      %3162 = vmatmul.mubr.f32.gmra.mrb[0].mxu0 %v3015
      %v3163 = vpop.f32.mrb[0].mxu0
      %v3164 = vadd.f32 0.0, %v3163
      %v3165 = vpop.f32.mrb[0].mxu0
      %3166 = vmatprep.mubr.f32.mxu0 0.0
      %3167 = vmatmul.mubr.f32.gmra.mrb[0].mxu0 %v3017
      %v3168 = vpop.f32.mrb[0].mxu0
      %v3169 = vadd.f32 0.0, %v3168
      %v3170 = vpop.f32.mrb[0].mxu0
      %3171 = vmatprep.mubr.f32.mxu0 0.0
      %3172 = vmatmul.mubr.f32.gmra.mrb[0].mxu0 %v3019
      %v3173 = vpop.f32.mrb[0].mxu0
      %v3174 = vadd.f32 0.0, %v3173
      %v3175 = vpop.f32.mrb[0].mxu0
      %3176 = vmatprep.mubr.f32.mxu0 0.0
      %3177 = vmatmul.mubr.f32.gmra.mrb[0].mxu0 %v3021
      %v3178 = vpop.f32.mrb[0].mxu0
      %v3179 = vadd.f32 0.0, %v3178
      %v3180 = vpop.f32.mrb[0].mxu0
      %3181 = vmatprep.mubr.f32.mxu0 0.0
      %3182 = vmatmul.mubr.f32.gmra.mrb[0].mxu0 %v3023
      %v3183 = vpop.f32.mrb[0].mxu0
      %v3184 = vadd.f32 0.0, %v3183
      %v3185 = vpop.f32.mrb[0].mxu0
      %3186 = vmatprep.mubr.f32.mxu0 0.0
      %3187 = vmatmul.mubr.f32.gmra.mrb[0].mxu0 %v3025
      %v3188 = vpop.f32.mrb[0].mxu0
      %v3189 = vadd.f32 0.0, %v3188
      %v3190 = vpop.f32.mrb[0].mxu0
      %3191 = vmatprep.mubr.f32.mxu0 0.0
      %3192 = vmatmul.mubr.f32.gmra.mrb[0].mxu0 %v3027
      %v3193 = vpop.f32.mrb[0].mxu0
      %v3194 = vadd.f32 0.0, %v3193
      %v3195 = vpop.f32.mrb[0].mxu0
      %3196 = vmatprep.mubr.f32.mxu0 0.0
      %3197 = vmatmul.mubr.f32.gmra.mrb[0].mxu0 %v3029
      %v3198 = vpop.f32.mrb[0].mxu0
      %v3199 = vadd.f32 0.0, %v3198
      %v3200 = vpop.f32.mrb[0].mxu0
      %3201 = vmatprep.mubr.f32.mxu0 0.0
      %3202 = vmatmul.mubr.f32.gmra.mrb[0].mxu0 %v3031
      %v3203 = vpop.f32.mrb[0].mxu0
      %v3204 = vadd.f32 0.0, %v3203
      %v3205 = vpop.f32.mrb[0].mxu0
      %3206 = vmatprep.mubr.f32.mxu0 0.0
      %3207 = vmatmul.mubr.f32.gmra.mrb[0].mxu0 %v3033
      %v3208 = vpop.f32.mrb[0].mxu0
      %v3209 = vadd.f32 0.0, %v3208
      %v3210 = vpop.f32.mrb[0].mxu0
      %3211 = vmatprep.mubr.f32.mxu0 0.0
      %3212 = vmatmul.mubr.f32.gmra.mrb[0].mxu0 %v3035
      %v3213 = vpop.f32.mrb[0].mxu0
      %v3214 = vadd.f32 0.0, %v3213
      %v3215 = vpop.f32.mrb[0].mxu0
      %3216 = vmatprep.mubr.f32.mxu0 0.0
      %3217 = vmatmul.mubr.f32.gmra.mrb[0].mxu0 %v3037
      %v3218 = vpop.f32.mrb[0].mxu0
      %v3219 = vadd.f32 0.0, %v3218
      %v3220 = vpop.f32.mrb[0].mxu0
      %3221 = vmatprep.mubr.f32.mxu0 0.0
      %3222 = vmatmul.mubr.f32.gmra.mrb[0].mxu0 %v3039
      %v3223 = vpop.f32.mrb[0].mxu0
      %v3224 = vadd.f32 0.0, %v3223
      %v3225 = vpop.f32.mrb[0].mxu0
      %3226 = vmatprep.mubr.f32.mxu0 0.0
      %3227 = vmatmul.mubr.f32.gmra.mrb[0].mxu0 %v3041
      %v3228 = vpop.f32.mrb[0].mxu0
      %v3229 = vadd.f32 0.0, %v3228
      %v3230 = vpop.f32.mrb[0].mxu0
      %3231 = vmatprep.mubr.f32.mxu0 0.0
      %3232 = vmatmul.mubr.f32.gmra.mrb[0].mxu0 %v3043
      %v3233 = vpop.f32.mrb[0].mxu0
      %v3234 = vadd.f32 0.0, %v3233
      %v3235 = vpop.f32.mrb[0].mxu0
      %3236 = vmatprep.mubr.f32.mxu0 0.0
      %3237 = vmatmul.mubr.f32.gmra.mrb[0].mxu0 %v3045
      %v3238 = vpop.f32.mrb[0].mxu0
      %v3239 = vadd.f32 0.0, %v3238
      %v3240 = vpop.f32.mrb[0].mxu0
      %3241 = vmatprep.mubr.f32.mxu0 0.0
      %3242 = vmatmul.mubr.f32.gmra.mrb[0].mxu0 %v3047
      %v3243 = vpop.f32.mrb[0].mxu0
      %v3244 = vadd.f32 0.0, %v3243
      %v3245 = vpop.f32.mrb[0].mxu0
      %3246 = vmatprep.mubr.f32.mxu0 0.0
      %3247 = vmatmul.mubr.f32.gmra.mrb[0].mxu0 %v3049
      %v3248 = vpop.f32.mrb[0].mxu0
      %v3249 = vadd.f32 0.0, %v3248
      %v3250 = vpop.f32.mrb[0].mxu0
      %3251 = vmatprep.mubr.f32.mxu0 0.0
      %3252 = vmatmul.mubr.f32.gmra.mrb[0].mxu0 %v3051
      %v3253 = vpop.f32.mrb[0].mxu0
      %v3254 = vadd.f32 0.0, %v3253
      %v3255 = vpop.f32.mrb[0].mxu0
      %3256 = vmatprep.mubr.f32.mxu0 0.0
      %3257 = vmatmul.mubr.f32.gmra.mrb[0].mxu0 %v3053
      %v3258 = vpop.f32.mrb[0].mxu0
      %v3259 = vadd.f32 0.0, %v3258
      %v3260 = vpop.f32.mrb[0].mxu0
      %3261 = vmatprep.mubr.f32.mxu0 0.0
      %3262 = vmatmul.mubr.f32.gmra.mrb[0].mxu0 %v3055
      %v3263 = vpop.f32.mrb[0].mxu0
      %v3264 = vadd.f32 0.0, %v3263
      %v3265 = vpop.f32.mrb[0].mxu0
      %3266 = vmatprep.mubr.f32.mxu0 0.0
      %3267 = vmatmul.mubr.f32.gmra.mrb[0].mxu0 %v3057
      %v3268 = vpop.f32.mrb[0].mxu0
      %v3269 = vadd.f32 0.0, %v3268
      %v3270 = vpop.f32.mrb[0].mxu0
      %3271 = vmatprep.mubr.f32.mxu0 0.0
      %3272 = vmatmul.mubr.f32.gmra.mrb[0].mxu0 %v3059
      %v3273 = vpop.f32.mrb[0].mxu0
      %v3274 = vadd.f32 0.0, %v3273
      %v3275 = vpop.f32.mrb[0].mxu0
      %3276 = vmatprep.mubr.f32.mxu0 0.0
      %3277 = vmatmul.mubr.f32.gmra.mrb[0].mxu0 %v3061
      %v3278 = vpop.f32.mrb[0].mxu0
      %v3279 = vadd.f32 0.0, %v3278
      %v3280 = vpop.f32.mrb[0].mxu0
      %3281 = vmatprep.mubr.f32.mxu0 0.0
      %3282 = vmatmul.mubr.f32.gmra.mrb[0].mxu0 %v3063
      %v3283 = vpop.f32.mrb[0].mxu0
      %v3284 = vadd.f32 0.0, %v3283
      %v3285 = vpop.f32.mrb[0].mxu0
      %3286 = vmatprep.mubr.f32.mxu0 0.0
      %3287 = vmatmul.mubr.f32.gmra.mrb[0].mxu0 %v3065
      %v3288 = vpop.f32.mrb[0].mxu0
      %v3289 = vadd.f32 0.0, %v3288
      %v3290 = vpop.f32.mrb[0].mxu0
      %3291 = vmatprep.mubr.f32.mxu0 0.0
      %3292 = vmatmul.mubr.f32.gmra.mrb[0].mxu0 %v3067
      %v3293 = vpop.f32.mrb[0].mxu0
      %v3294 = vadd.f32 0.0, %v3293
      %v3295 = vpop.f32.mrb[0].mxu0
      %3296 = vdwg.mxu0
      %v3297 = vadd.f32 %v2893, %v3139
      %v3298 = vadd.f32 %v2894, %v3144
      %v3299 = vadd.f32 %v2895, %v3149
      %v3300 = vadd.f32 %v2896, %v3154
      %v3301 = vadd.f32 %v2897, %v3159
      %v3302 = vadd.f32 %v2898, %v3164
      %v3303 = vadd.f32 %v2899, %v3169
      %v3304 = vadd.f32 %v2900, %v3174
      %v3305 = vadd.f32 %v2901, %v3179
      %v3306 = vadd.f32 %v2902, %v3184
      %v3307 = vadd.f32 %v2903, %v3189
      %v3308 = vadd.f32 %v2904, %v3194
      %v3309 = vadd.f32 %v2905, %v3199
      %v3310 = vadd.f32 %v2906, %v3204
      %v3311 = vadd.f32 %v2907, %v3209
      %v3312 = vadd.f32 %v2908, %v3214
      %v3313 = vadd.f32 %v2909, %v3219
      %v3314 = vadd.f32 %v2910, %v3224
      %v3315 = vadd.f32 %v2911, %v3229
      %v3316 = vadd.f32 %v2912, %v3234
      %v3317 = vadd.f32 %v2913, %v3239
      %v3318 = vadd.f32 %v2914, %v3244
      %v3319 = vadd.f32 %v2915, %v3249
      %v3320 = vadd.f32 %v2916, %v3254
      %v3321 = vadd.f32 %v2917, %v3259
      %v3322 = vadd.f32 %v2918, %v3264
      %v3323 = vadd.f32 %v2919, %v3269
      %v3324 = vadd.f32 %v2920, %v3274
      %v3325 = vadd.f32 %v2921, %v3279
      %v3326 = vadd.f32 %v2922, %v3284
      %v3327 = vadd.f32 %v2923, %v3289
      %v3328 = vadd.f32 %v2924, %v3294
      %v3329 = vpack.c.bf16 %v3298, %v3297
      %v3330 = vpack.c.bf16 %v3300, %v3299
      %v3331 = vpack.c.bf16 %v3302, %v3301
      %v3332 = vpack.c.bf16 %v3304, %v3303
      %v3333 = vpack.c.bf16 %v3306, %v3305
      %v3334 = vpack.c.bf16 %v3308, %v3307
      %v3335 = vpack.c.bf16 %v3310, %v3309
      %v3336 = vpack.c.bf16 %v3312, %v3311
      %v3337 = vpack.c.bf16 %v3314, %v3313
      %v3338 = vpack.c.bf16 %v3316, %v3315
      %v3339 = vpack.c.bf16 %v3318, %v3317
      %v3340 = vpack.c.bf16 %v3320, %v3319
      %v3341 = vpack.c.bf16 %v3322, %v3321
      %v3342 = vpack.c.bf16 %v3324, %v3323
      %v3343 = vpack.c.bf16 %v3326, %v3325
      %v3344 = vpack.c.bf16 %v3328, %v3327
      %v3361 = vunpack.c.l.b16 %v3329
      %v3362 = vunpack.c.h.b16 %v3329
      %v3363 = vunpack.c.l.b16 %v3330
      %v3364 = vunpack.c.h.b16 %v3330
      %v3365 = vunpack.c.l.b16 %v3331
      %v3366 = vunpack.c.h.b16 %v3331
      %v3367 = vunpack.c.l.b16 %v3332
      %v3368 = vunpack.c.h.b16 %v3332
      %v3369 = vunpack.c.l.b16 %v3333
      %v3370 = vunpack.c.h.b16 %v3333
      %v3371 = vunpack.c.l.b16 %v3334
      %v3372 = vunpack.c.h.b16 %v3334
      %v3373 = vunpack.c.l.b16 %v3335
      %v3374 = vunpack.c.h.b16 %v3335
      %v3375 = vunpack.c.l.b16 %v3336
      %v3376 = vunpack.c.h.b16 %v3336
      %v3377 = vunpack.c.l.b16 %v3337
      %v3378 = vunpack.c.h.b16 %v3337
      %v3379 = vunpack.c.l.b16 %v3338
      %v3380 = vunpack.c.h.b16 %v3338
      %v3381 = vunpack.c.l.b16 %v3339
      %v3382 = vunpack.c.h.b16 %v3339
      %v3383 = vunpack.c.l.b16 %v3340
      %v3384 = vunpack.c.h.b16 %v3340
      %v3385 = vunpack.c.l.b16 %v3341
      %v3386 = vunpack.c.h.b16 %v3341
      %v3387 = vunpack.c.l.b16 %v3342
      %v3388 = vunpack.c.h.b16 %v3342
      %v3389 = vunpack.c.l.b16 %v3343
      %v3390 = vunpack.c.h.b16 %v3343
      %v3391 = vunpack.c.l.b16 %v3344
      %v3392 = vunpack.c.h.b16 %v3344
      %v3393 = vpack.c.b16 %v3361, %v3361
      %v3394 = vpack.c.b16 %v3362, %v3362
      %v3395 = vpack.c.b16 %v3363, %v3363
      %v3396 = vpack.c.b16 %v3364, %v3364
      %v3397 = vpack.c.b16 %v3365, %v3365
      %v3398 = vpack.c.b16 %v3366, %v3366
      %v3399 = vpack.c.b16 %v3367, %v3367
      %v3400 = vpack.c.b16 %v3368, %v3368
      %v3401 = vpack.c.b16 %v3369, %v3369
      %v3402 = vpack.c.b16 %v3370, %v3370
      %v3403 = vpack.c.b16 %v3371, %v3371
      %v3404 = vpack.c.b16 %v3372, %v3372
      %v3405 = vpack.c.b16 %v3373, %v3373
      %v3406 = vpack.c.b16 %v3374, %v3374
      %v3407 = vpack.c.b16 %v3375, %v3375
      %v3408 = vpack.c.b16 %v3376, %v3376
      %v3409 = vpack.c.b16 %v3377, %v3377
      %v3410 = vpack.c.b16 %v3378, %v3378
      %v3411 = vpack.c.b16 %v3379, %v3379
      %v3412 = vpack.c.b16 %v3380, %v3380
      %v3413 = vpack.c.b16 %v3381, %v3381
      %v3414 = vpack.c.b16 %v3382, %v3382
      %v3415 = vpack.c.b16 %v3383, %v3383
      %v3416 = vpack.c.b16 %v3384, %v3384
      %v3417 = vpack.c.b16 %v3385, %v3385
      %v3418 = vpack.c.b16 %v3386, %v3386
      %v3419 = vpack.c.b16 %v3387, %v3387
      %v3420 = vpack.c.b16 %v3388, %v3388
      %v3421 = vpack.c.b16 %v3389, %v3389
      %v3422 = vpack.c.b16 %v3390, %v3390
      %v3423 = vpack.c.b16 %v3391, %v3391
      %v3424 = vpack.c.b16 %v3392, %v3392
      %vm3457 = vcmask 11264
      %3458 = vst.msk [vmem:[%s271] sm:$0xf] %vm3457, %v3393
      %3459 = vst.msk [vmem:[%s271 + $0x4] sm:$0xf] %vm3457, %v3394
      %3460 = vst.msk [vmem:[%s271 + $0x8] sm:$0xf] %vm3457, %v3395
      %3461 = vst.msk [vmem:[%s271 + $0xc] sm:$0xf] %vm3457, %v3396
      %3462 = vst.msk [vmem:[%s271 + $0x10] sm:$0xf] %vm3457, %v3397
      %3463 = vst.msk [vmem:[%s271 + $0x14] sm:$0xf] %vm3457, %v3398
      %3464 = vst.msk [vmem:[%s271 + $0x18] sm:$0xf] %vm3457, %v3399
      %3465 = vst.msk [vmem:[%s271 + $0x1c] sm:$0xf] %vm3457, %v3400
      %3466 = vst.msk [vmem:[%s271 + $0x20] sm:$0xf] %vm3457, %v3401
      %3467 = vst.msk [vmem:[%s271 + $0x24] sm:$0xf] %vm3457, %v3402
      %3468 = vst.msk [vmem:[%s271 + $0x28] sm:$0xf] %vm3457, %v3403
      %3469 = vst.msk [vmem:[%s271 + $0x2c] sm:$0xf] %vm3457, %v3404
      %3470 = vst.msk [vmem:[%s271 + $0x30] sm:$0xf] %vm3457, %v3405
      %3471 = vst.msk [vmem:[%s271 + $0x34] sm:$0xf] %vm3457, %v3406
      %3472 = vst.msk [vmem:[%s271 + $0x38] sm:$0xf] %vm3457, %v3407
      %3473 = vst.msk [vmem:[%s271 + $0x3c] sm:$0xf] %vm3457, %v3408
      %3474 = vst.msk [vmem:[%s271 + $0x40] sm:$0xf] %vm3457, %v3409
      %3475 = vst.msk [vmem:[%s271 + $0x44] sm:$0xf] %vm3457, %v3410
      %3476 = vst.msk [vmem:[%s271 + $0x48] sm:$0xf] %vm3457, %v3411
      %3477 = vst.msk [vmem:[%s271 + $0x4c] sm:$0xf] %vm3457, %v3412
      %3478 = vst.msk [vmem:[%s271 + $0x50] sm:$0xf] %vm3457, %v3413
      %3479 = vst.msk [vmem:[%s271 + $0x54] sm:$0xf] %vm3457, %v3414
      %3480 = vst.msk [vmem:[%s271 + $0x58] sm:$0xf] %vm3457, %v3415
      %3481 = vst.msk [vmem:[%s271 + $0x5c] sm:$0xf] %vm3457, %v3416
      %3482 = vst.msk [vmem:[%s271 + $0x60] sm:$0xf] %vm3457, %v3417
      %3483 = vst.msk [vmem:[%s271 + $0x64] sm:$0xf] %vm3457, %v3418
      %3484 = vst.msk [vmem:[%s271 + $0x68] sm:$0xf] %vm3457, %v3419
      %3485 = vst.msk [vmem:[%s271 + $0x6c] sm:$0xf] %vm3457, %v3420
      %3486 = vst.msk [vmem:[%s271 + $0x70] sm:$0xf] %vm3457, %v3421
      %3487 = vst.msk [vmem:[%s271 + $0x74] sm:$0xf] %vm3457, %v3422
      %3488 = vst.msk [vmem:[%s271 + $0x78] sm:$0xf] %vm3457, %v3423
      %3489 = vst.msk [vmem:[%s271 + $0x7c] sm:$0xf] %vm3457, %v3424
      %v3490 = vsel %vm720, %v3297, 0.0
      %v3491 = vsel %vm720, %v3298, 0.0
      %v3492 = vadd.f32 %v3490, %v3491
      %v3493 = vsel %vm720, %v3299, 0.0
      %v3494 = vadd.f32 %v3492, %v3493
      %v3495 = vsel %vm720, %v3300, 0.0
      %v3496 = vadd.f32 %v3494, %v3495
      %v3497 = vsel %vm720, %v3301, 0.0
      %v3498 = vadd.f32 %v3496, %v3497
      %v3499 = vsel %vm720, %v3302, 0.0
      %v3500 = vadd.f32 %v3498, %v3499
      %v3501 = vsel %vm720, %v3303, 0.0
      %v3502 = vadd.f32 %v3500, %v3501
      %v3503 = vsel %vm720, %v3304, 0.0
      %v3504 = vadd.f32 %v3502, %v3503
      %v3505 = vsel %vm720, %v3305, 0.0
      %v3506 = vadd.f32 %v3504, %v3505
      %v3507 = vsel %vm720, %v3306, 0.0
      %v3508 = vadd.f32 %v3506, %v3507
      %v3509 = vsel %vm720, %v3307, 0.0
      %v3510 = vadd.f32 %v3508, %v3509
      %v3511 = vsel %vm720, %v3308, 0.0
      %v3512 = vadd.f32 %v3510, %v3511
      %v3513 = vsel %vm720, %v3309, 0.0
      %v3514 = vadd.f32 %v3512, %v3513
      %v3515 = vsel %vm720, %v3310, 0.0
      %v3516 = vadd.f32 %v3514, %v3515
      %v3517 = vsel %vm720, %v3311, 0.0
      %v3518 = vadd.f32 %v3516, %v3517
      %v3519 = vsel %vm720, %v3312, 0.0
      %v3520 = vadd.f32 %v3518, %v3519
      %v3521 = vsel %vm720, %v3313, 0.0
      %v3522 = vadd.f32 %v3520, %v3521
      %v3523 = vsel %vm720, %v3314, 0.0
      %v3524 = vadd.f32 %v3522, %v3523
      %v3525 = vsel %vm720, %v3315, 0.0
      %v3526 = vadd.f32 %v3524, %v3525
      %v3527 = vsel %vm720, %v3316, 0.0
      %v3528 = vadd.f32 %v3526, %v3527
      %v3529 = vsel %vm720, %v3317, 0.0
      %v3530 = vadd.f32 %v3528, %v3529
      %v3531 = vsel %vm720, %v3318, 0.0
      %v3532 = vadd.f32 %v3530, %v3531
      %v3533 = vsel %vm720, %v3319, 0.0
      %v3534 = vadd.f32 %v3532, %v3533
      %v3535 = vsel %vm720, %v3320, 0.0
      %v3536 = vadd.f32 %v3534, %v3535
      %v3537 = vsel %vm720, %v3321, 0.0
      %v3538 = vadd.f32 %v3536, %v3537
      %v3539 = vsel %vm720, %v3322, 0.0
      %v3540 = vadd.f32 %v3538, %v3539
      %v3541 = vsel %vm720, %v3323, 0.0
      %v3542 = vadd.f32 %v3540, %v3541
      %v3543 = vsel %vm720, %v3324, 0.0
      %v3544 = vadd.f32 %v3542, %v3543
      %v3545 = vsel %vm720, %v3325, 0.0
      %v3546 = vadd.f32 %v3544, %v3545
      %v3547 = vsel %vm720, %v3326, 0.0
      %v3548 = vadd.f32 %v3546, %v3547
      %v3549 = vsel %vm720, %v3327, 0.0
      %v3550 = vadd.f32 %v3548, %v3549
      %v3551 = vsel %vm720, %v3328, 0.0
      %v3552 = vadd.f32 %v3550, %v3551
      %v3553 = vmul.f32 %v3297, %v3297
      %v3554 = vmul.f32 %v3298, %v3298
      %v3555 = vmul.f32 %v3299, %v3299
      %v3556 = vmul.f32 %v3300, %v3300
      %v3557 = vmul.f32 %v3301, %v3301
      %v3558 = vmul.f32 %v3302, %v3302
      %v3559 = vmul.f32 %v3303, %v3303
      %v3560 = vmul.f32 %v3304, %v3304
      %v3561 = vmul.f32 %v3305, %v3305
      %v3562 = vmul.f32 %v3306, %v3306
      %v3563 = vmul.f32 %v3307, %v3307
      %v3564 = vmul.f32 %v3308, %v3308
      %v3565 = vmul.f32 %v3309, %v3309
      %v3566 = vmul.f32 %v3310, %v3310
      %v3567 = vmul.f32 %v3311, %v3311
      %v3568 = vmul.f32 %v3312, %v3312
      %v3569 = vmul.f32 %v3313, %v3313
      %v3570 = vmul.f32 %v3314, %v3314
      %v3571 = vmul.f32 %v3315, %v3315
      %v3572 = vmul.f32 %v3316, %v3316
      %v3573 = vmul.f32 %v3317, %v3317
      %v3574 = vmul.f32 %v3318, %v3318
      %v3575 = vmul.f32 %v3319, %v3319
      %v3576 = vmul.f32 %v3320, %v3320
      %v3577 = vmul.f32 %v3321, %v3321
      %v3578 = vmul.f32 %v3322, %v3322
      %v3579 = vmul.f32 %v3323, %v3323
      %v3580 = vmul.f32 %v3324, %v3324
      %v3581 = vmul.f32 %v3325, %v3325
      %v3582 = vmul.f32 %v3326, %v3326
      %v3583 = vmul.f32 %v3327, %v3327
      %v3584 = vmul.f32 %v3328, %v3328
      %v3585 = vsel %vm720, %v3553, 0.0
      %v3586 = vsel %vm720, %v3554, 0.0
      %v3587 = vadd.f32 %v3585, %v3586
      %v3588 = vsel %vm720, %v3555, 0.0
      %v3589 = vadd.f32 %v3587, %v3588
      %v3590 = vsel %vm720, %v3556, 0.0
      %v3591 = vadd.f32 %v3589, %v3590
      %v3592 = vsel %vm720, %v3557, 0.0
      %v3593 = vadd.f32 %v3591, %v3592
      %v3594 = vsel %vm720, %v3558, 0.0
      %v3595 = vadd.f32 %v3593, %v3594
      %v3596 = vsel %vm720, %v3559, 0.0
      %v3597 = vadd.f32 %v3595, %v3596
      %v3598 = vsel %vm720, %v3560, 0.0
      %v3599 = vadd.f32 %v3597, %v3598
      %v3600 = vsel %vm720, %v3561, 0.0
      %v3601 = vadd.f32 %v3599, %v3600
      %v3602 = vsel %vm720, %v3562, 0.0
      %v3603 = vadd.f32 %v3601, %v3602
      %v3604 = vsel %vm720, %v3563, 0.0
      %v3605 = vadd.f32 %v3603, %v3604
      %v3606 = vsel %vm720, %v3564, 0.0
      %v3607 = vadd.f32 %v3605, %v3606
      %v3608 = vsel %vm720, %v3565, 0.0
      %v3609 = vadd.f32 %v3607, %v3608
      %v3610 = vsel %vm720, %v3566, 0.0
      %v3611 = vadd.f32 %v3609, %v3610
      %v3612 = vsel %vm720, %v3567, 0.0
      %v3613 = vadd.f32 %v3611, %v3612
      %v3614 = vsel %vm720, %v3568, 0.0
      %v3615 = vadd.f32 %v3613, %v3614
      %v3616 = vsel %vm720, %v3569, 0.0
      %v3617 = vadd.f32 %v3615, %v3616
      %v3618 = vsel %vm720, %v3570, 0.0
      %v3619 = vadd.f32 %v3617, %v3618
      %v3620 = vsel %vm720, %v3571, 0.0
      %v3621 = vadd.f32 %v3619, %v3620
      %v3622 = vsel %vm720, %v3572, 0.0
      %v3623 = vadd.f32 %v3621, %v3622
      %v3624 = vsel %vm720, %v3573, 0.0
      %v3625 = vadd.f32 %v3623, %v3624
      %v3626 = vsel %vm720, %v3574, 0.0
      %v3627 = vadd.f32 %v3625, %v3626
      %v3628 = vsel %vm720, %v3575, 0.0
      %v3629 = vadd.f32 %v3627, %v3628
      %v3630 = vsel %vm720, %v3576, 0.0
      %v3631 = vadd.f32 %v3629, %v3630
      %v3632 = vsel %vm720, %v3577, 0.0
      %v3633 = vadd.f32 %v3631, %v3632
      %v3634 = vsel %vm720, %v3578, 0.0
      %v3635 = vadd.f32 %v3633, %v3634
      %v3636 = vsel %vm720, %v3579, 0.0
      %v3637 = vadd.f32 %v3635, %v3636
      %v3638 = vsel %vm720, %v3580, 0.0
      %v3639 = vadd.f32 %v3637, %v3638
      %v3640 = vsel %vm720, %v3581, 0.0
      %v3641 = vadd.f32 %v3639, %v3640
      %v3642 = vsel %vm720, %v3582, 0.0
      %v3643 = vadd.f32 %v3641, %v3642
      %v3644 = vsel %vm720, %v3583, 0.0
      %v3645 = vadd.f32 %v3643, %v3644
      %v3646 = vsel %vm720, %v3584, 0.0
      %v3647 = vadd.f32 %v3645, %v3646
      %3648 = vst.msk [vmem:[%s276] sm:$0xff] %vm720, %v3552
      %3649 = vst.msk [vmem:[%s280] sm:$0xff] %vm720, %v3647
      %s3650 = smul.u32 16, %s18
      %p3651 = scmp.lt.s32.totalorder %s3650, 31
      %s3652 = scalar_select %p3651, %s3650, 31
      %s3653 = smul.addr %s3652, 2
      %s3654 = smul.addr %s3653, 4
      %s3655 = scalar_lea.vmem %s4, %s3654
      %p3656 = scmp.lt.s32.totalorder %s18, 1
      %s3657 = scalar_select %p3656, %s18, 1
      %s3658 = smul.addr %s3657, 8
      %s3659 = scalar_lea.vmem %s5, %s3658
      %p3660 = scmp.lt.s32.totalorder %s18, 1
      %s3661 = scalar_select %p3660, %s18, 1
      %s3662 = smul.addr %s3661, 8
      %s3663 = scalar_lea.vmem %s6, %s3662
      // Predicated region
      $region37: #{inception_resnet_b_pallas.6} parent=35 // pred_check
        %p3664 = pneg %p125
      $region38: #{inception_resnet_b_pallas.6} parent=35 // pred_check_branch
        %3666 = sbr.rel (%p3664) target = $region40
      $region39: #{inception_resnet_b_pallas.6} parent=35 // pred_region
        %s3667 = smul.u32 16, %s18
      $region40: #{inception_resnet_b_pallas.6} parent=35 // pred_fallthru
        _
      // Predicated region
      $region41: #{inception_resnet_b_pallas.6} parent=35 // pred_check
        %p3668 = pneg %p151
      $region42: #{inception_resnet_b_pallas.6} parent=35 // pred_check_branch
        %3670 = sbr.rel (%p3668) target = $region44
      $region43: #{inception_resnet_b_pallas.6} parent=35 // pred_region
        _
      $region44: #{inception_resnet_b_pallas.6} parent=35 // pred_fallthru
        _
      // Predicated region
      $region45: #{inception_resnet_b_pallas.6} parent=35 // pred_check
        %p3671 = pneg %p177
      $region46: #{inception_resnet_b_pallas.6} parent=35 // pred_check_branch
        %3673 = sbr.rel (%p3671) target = $region48
      $region47: #{inception_resnet_b_pallas.6} parent=35 // pred_region
        _
      $region48: #{inception_resnet_b_pallas.6} parent=35 // pred_fallthru
        _
    $region36: #{inception_resnet_b_pallas.6} parent=5 // pred_fallthru
      _
    %p3674 = scmp.le.s32.totalorder 2, %s13
    // Predicated region
    $region49: #{inception_resnet_b_pallas.6} parent=5 // pred_check
      %p3675 = pneg %p3674
    $region50: #{inception_resnet_b_pallas.6} parent=5 // pred_check_branch
      %3677 = sbr.rel (%p3675) target = $region52
    $region51: #{inception_resnet_b_pallas.6} parent=5 // pred_region
      %s3678 = ssub.s32 %s13, 2
      // Predicated region
      $region53: #{inception_resnet_b_pallas.6} parent=51 // pred_check
        %p3679 = pneg %p131
      $region54: #{inception_resnet_b_pallas.6} parent=51 // pred_check_branch
        %3681 = sbr.rel (%p3679) target = $region56
      $region55: #{inception_resnet_b_pallas.6} parent=51 // pred_region
        %s3682 = smul.u32 16, %s19
        %p3683 = scmp.lt.s32.totalorder %s3682, 31
        %s3684 = scalar_select %p3683, %s3682, 31
        %s3685 = smul.addr %s3684, 2
        %s3686 = smul.addr %s3685, 4
        %s3687 = scalar_lea.vmem %s4, %s3686
      $region56: #{inception_resnet_b_pallas.6} parent=51 // pred_fallthru
        _
      // Predicated region
      $region57: #{inception_resnet_b_pallas.6} parent=51 // pred_check
        %p3688 = pneg %p157
      $region58: #{inception_resnet_b_pallas.6} parent=51 // pred_check_branch
        %3690 = sbr.rel (%p3688) target = $region60
      $region59: #{inception_resnet_b_pallas.6} parent=51 // pred_region
        %p3691 = scmp.lt.s32.totalorder %s19, 1
        %s3692 = scalar_select %p3691, %s19, 1
        %s3693 = smul.addr %s3692, 8
        %s3694 = scalar_lea.vmem %s5, %s3693
      $region60: #{inception_resnet_b_pallas.6} parent=51 // pred_fallthru
        _
      // Predicated region
      $region61: #{inception_resnet_b_pallas.6} parent=51 // pred_check
        %p3695 = pneg %p183
      $region62: #{inception_resnet_b_pallas.6} parent=51 // pred_check_branch
        %3697 = sbr.rel (%p3695) target = $region64
      $region63: #{inception_resnet_b_pallas.6} parent=51 // pred_region
        %p3698 = scmp.lt.s32.totalorder %s19, 1
        %s3699 = scalar_select %p3698, %s19, 1
        %s3700 = smul.addr %s3699, 8
        %s3701 = scalar_lea.vmem %s6, %s3700
      $region64: #{inception_resnet_b_pallas.6} parent=51 // pred_fallthru
        _
    $region52: #{inception_resnet_b_pallas.6} parent=5 // pred_fallthru
      _
  $region6: #{inception_resnet_b_pallas.6} parent=0 // loop_footer
    %s17 = sadd.s32 1, %s13
  $region7: #{inception_resnet_b_pallas.6} parent=0 // loop_footer_branch
    %12 = sbr.rel target = $region3
  $region8: #{inception_resnet_b_pallas.6} parent=0 // loop_exit
    _

// kernel: inception_resnet_b_pallas.8
$region0: #{inception_resnet_b_pallas.8}
  #allocation0 [shape = 'u32[]', space=smem, size = 0x4, offset = 0x4, fixed_abs, tag = 'smem constant byte address 0x4 - core index']
  #allocation1 [shape = 'u32[144,128]{1,0:T(1,128)}', space=vmem, size = 0x12000, scoped, tag = 'internal scratch']
  %s0 = inlined_call_operand.vmem [shape: bf16[512,4], index: 0, kind: input, shape index: {}]
  %s1 = inlined_call_operand.vmem [shape: bf16[512,4], index: 1, kind: input, shape index: {}]
  %s2 = inlined_call_operand.vmem [shape: bf16[512,16], index: 2, kind: input, shape index: {}]
  %s3 = inlined_call_operand.vmem [shape: f32[1,4], index: 3, kind: input, shape index: {}]
  %s4 = inlined_call_operand.vmem [shape: f32[1,4], index: 4, kind: input, shape index: {}]
  %s5 = inlined_call_operand.vmem [shape: f32[1,4], index: 5, kind: input, shape index: {}]
  %s6 = inlined_call_operand.vmem [shape: f32[1,4], index: 6, kind: input, shape index: {}]
  %s7 = inlined_call_operand.vmem [shape: f32[4,16], index: 7, kind: input, shape index: {}]
  %s8 = inlined_call_operand.vmem [shape: f32[4,16], index: 8, kind: input, shape index: {}]
  %s9 = inlined_call_operand.vmem [shape: f32[1,16], index: 9, kind: input, shape index: {}]
  %s10 = inlined_call_operand.vmem [shape: bf16[512,16], index: 10, kind: output, shape index: {0}]
  %s11 = inlined_call_operand.vmem [shape: f32[2,8,16], index: 11, kind: output, shape index: {1}]
  %s12 = inlined_call_operand.vmem [shape: f32[2,8,16], index: 12, kind: output, shape index: {2}]
  %13 = xla_tuple %s10, %s11, %s12
  %s14 = sld [smem:[#allocation0]]
  $region89: #{inception_resnet_b_pallas.8} parent=0
    _
  %s16 = ssub.s32 1, %s14
  %s17 = scalar_select 0, %s16, %s14
  loop: start=0, step=1, limit=4
  $region2: #{inception_resnet_b_pallas.8} parent=0 // loop_pre_header
    _
  $region3: #{inception_resnet_b_pallas.8} parent=0 // loop_header
    %s19 = sphi 0, %s23
    %p20 = scmp.ge.s32.totalorder %s19, 4
    %s29 = sphi 0, %s31
    %s32 = sphi 0, %s29
    %s33 = sphi 0, %s32
    %s49 = sphi 0, %s33
    %s55 = sphi 0, %s57
    %s58 = sphi 0, %s55
    %s59 = sphi 0, %s58
    %s75 = sphi 0, %s59
    %s81 = sphi 0, %s83
    %s84 = sphi 0, %s81
    %s85 = sphi 0, %s84
    %s101 = sphi 0, %s85
    %s105 = sphi 0, %s105
    %s107 = sphi 0, %s105
    %s108 = sphi 0, %s107
    %s122 = sphi 0, %s108
    %s126 = sphi 0, %s126
    %s128 = sphi 0, %s126
    %s129 = sphi 0, %s128
    %s143 = sphi 0, %s129
    %s147 = sphi 0, %s147
    %s149 = sphi 0, %s147
    %s150 = sphi 0, %s149
    %s164 = sphi 0, %s150
    %s168 = sphi 0, %s168
    %s170 = sphi 0, %s168
    %s171 = sphi 0, %s170
    %s185 = sphi 0, %s171
    %s189 = sphi 0, %s189
    %s191 = sphi 0, %s189
    %s192 = sphi 0, %s191
    %s206 = sphi 0, %s192
    %s210 = sphi 0, %s210
    %s212 = sphi 0, %s210
    %s213 = sphi 0, %s212
    %s227 = sphi 0, %s213
    %s231 = sphi 0, %s231
    %s233 = sphi 0, %s231
    %s234 = sphi 0, %s233
    %s248 = sphi 0, %s234
    %s254 = sphi 0, %s256
    %s257 = sphi 0, %s254
    %s258 = sphi 0, %s257
    %s274 = sphi 0, %s258
    %s280 = sphi 0, %s282
    %s283 = sphi 0, %s280
    %s284 = sphi 0, %s283
    %s300 = sphi 0, %s284
    %s306 = sphi 0, %s308
    %s309 = sphi 0, %s306
    %s310 = sphi 0, %s309
    %s326 = sphi 0, %s310
  $region4: #{inception_resnet_b_pallas.8} parent=0 // loop_header_branch
    %22 = sbr.rel (%p20) target = $region8
  $region5: #{inception_resnet_b_pallas.8} parent=0 // loop_body
    %s24 = ssub.s32 %s19, 1
    %s25 = ssub.s32 %s19, 2
    %s26 = sadd.s32 %s19, 1
    %s27 = ssub.s32 %s19, %s26
    %p28 = scmp.eq.s32.totalorder %s27, 0
    %s30 = sadd.s32 %s29, 1
    %s31 = scalar_select %p28, %s29, %s30
    %p34 = pneg %p28
    %p35 = scmp.eq.s32.totalorder %s19, 1
    %p36 = por %p34, %p35
    %p37 = scmp.ne.s32.totalorder %s29, %s32
    %p38 = scmp.eq.s32.totalorder %s19, 0
    %p39 = por %p37, %p38
    %p40 = scmp.ne.s32.totalorder %s29, %s32
    %p41 = scmp.eq.s32.totalorder %s24, 1
    %p42 = por %p40, %p41
    %p43 = scmp.ne.s32.totalorder %s32, %s33
    %p44 = scmp.eq.s32.totalorder %s24, 0
    %p45 = por %p43, %p44
    %p46 = scmp.ne.s32.totalorder %s32, %s33
    %p47 = scmp.eq.s32.totalorder %s25, 1
    %p48 = por %p46, %p47
    %p50 = scmp.ne.s32.totalorder %s33, %s49
    %p51 = scmp.eq.s32.totalorder %s25, 0
    %p52 = por %p50, %p51
    %s53 = ssub.s32 %s19, %s26
    %p54 = scmp.eq.s32.totalorder %s53, 0
    %s56 = sadd.s32 %s55, 1
    %s57 = scalar_select %p54, %s55, %s56
    %p60 = pneg %p54
    %p61 = scmp.eq.s32.totalorder %s19, 1
    %p62 = por %p60, %p61
    %p63 = scmp.ne.s32.totalorder %s55, %s58
    %p64 = scmp.eq.s32.totalorder %s19, 0
    %p65 = por %p63, %p64
    %p66 = scmp.ne.s32.totalorder %s55, %s58
    %p67 = scmp.eq.s32.totalorder %s24, 1
    %p68 = por %p66, %p67
    %p69 = scmp.ne.s32.totalorder %s58, %s59
    %p70 = scmp.eq.s32.totalorder %s24, 0
    %p71 = por %p69, %p70
    %p72 = scmp.ne.s32.totalorder %s58, %s59
    %p73 = scmp.eq.s32.totalorder %s25, 1
    %p74 = por %p72, %p73
    %p76 = scmp.ne.s32.totalorder %s59, %s75
    %p77 = scmp.eq.s32.totalorder %s25, 0
    %p78 = por %p76, %p77
    %s79 = ssub.s32 %s19, %s26
    %p80 = scmp.eq.s32.totalorder %s79, 0
    %s82 = sadd.s32 %s81, 1
    %s83 = scalar_select %p80, %s81, %s82
    %p86 = pneg %p80
    %p87 = scmp.eq.s32.totalorder %s19, 1
    %p88 = por %p86, %p87
    %p89 = scmp.ne.s32.totalorder %s81, %s84
    %p90 = scmp.eq.s32.totalorder %s19, 0
    %p91 = por %p89, %p90
    %p92 = scmp.ne.s32.totalorder %s81, %s84
    %p93 = scmp.eq.s32.totalorder %s24, 1
    %p94 = por %p92, %p93
    %p95 = scmp.ne.s32.totalorder %s84, %s85
    %p96 = scmp.eq.s32.totalorder %s24, 0
    %p97 = por %p95, %p96
    %p98 = scmp.ne.s32.totalorder %s84, %s85
    %p99 = scmp.eq.s32.totalorder %s25, 1
    %p100 = por %p98, %p99
    %p102 = scmp.ne.s32.totalorder %s85, %s101
    %p103 = scmp.eq.s32.totalorder %s25, 0
    %p104 = por %p102, %p103
    %s106 = sadd.s32 %s105, 1
    %p109 = scmp.eq.s32.totalorder %s19, 1
    %p110 = scmp.ne.s32.totalorder %s105, %s107
    %p111 = scmp.eq.s32.totalorder %s19, 0
    %p112 = por %p110, %p111
    %p113 = scmp.ne.s32.totalorder %s105, %s107
    %p114 = scmp.eq.s32.totalorder %s24, 1
    %p115 = por %p113, %p114
    %p116 = scmp.ne.s32.totalorder %s107, %s108
    %p117 = scmp.eq.s32.totalorder %s24, 0
    %p118 = por %p116, %p117
    %p119 = scmp.ne.s32.totalorder %s107, %s108
    %p120 = scmp.eq.s32.totalorder %s25, 1
    %p121 = por %p119, %p120
    %p123 = scmp.ne.s32.totalorder %s108, %s122
    %p124 = scmp.eq.s32.totalorder %s25, 0
    %p125 = por %p123, %p124
    %s127 = sadd.s32 %s126, 1
    %p130 = scmp.eq.s32.totalorder %s19, 1
    %p131 = scmp.ne.s32.totalorder %s126, %s128
    %p132 = scmp.eq.s32.totalorder %s19, 0
    %p133 = por %p131, %p132
    %p134 = scmp.ne.s32.totalorder %s126, %s128
    %p135 = scmp.eq.s32.totalorder %s24, 1
    %p136 = por %p134, %p135
    %p137 = scmp.ne.s32.totalorder %s128, %s129
    %p138 = scmp.eq.s32.totalorder %s24, 0
    %p139 = por %p137, %p138
    %p140 = scmp.ne.s32.totalorder %s128, %s129
    %p141 = scmp.eq.s32.totalorder %s25, 1
    %p142 = por %p140, %p141
    %p144 = scmp.ne.s32.totalorder %s129, %s143
    %p145 = scmp.eq.s32.totalorder %s25, 0
    %p146 = por %p144, %p145
    %s148 = sadd.s32 %s147, 1
    %p151 = scmp.eq.s32.totalorder %s19, 1
    %p152 = scmp.ne.s32.totalorder %s147, %s149
    %p153 = scmp.eq.s32.totalorder %s19, 0
    %p154 = por %p152, %p153
    %p155 = scmp.ne.s32.totalorder %s147, %s149
    %p156 = scmp.eq.s32.totalorder %s24, 1
    %p157 = por %p155, %p156
    %p158 = scmp.ne.s32.totalorder %s149, %s150
    %p159 = scmp.eq.s32.totalorder %s24, 0
    %p160 = por %p158, %p159
    %p161 = scmp.ne.s32.totalorder %s149, %s150
    %p162 = scmp.eq.s32.totalorder %s25, 1
    %p163 = por %p161, %p162
    %p165 = scmp.ne.s32.totalorder %s150, %s164
    %p166 = scmp.eq.s32.totalorder %s25, 0
    %p167 = por %p165, %p166
    %s169 = sadd.s32 %s168, 1
    %p172 = scmp.eq.s32.totalorder %s19, 1
    %p173 = scmp.ne.s32.totalorder %s168, %s170
    %p174 = scmp.eq.s32.totalorder %s19, 0
    %p175 = por %p173, %p174
    %p176 = scmp.ne.s32.totalorder %s168, %s170
    %p177 = scmp.eq.s32.totalorder %s24, 1
    %p178 = por %p176, %p177
    %p179 = scmp.ne.s32.totalorder %s170, %s171
    %p180 = scmp.eq.s32.totalorder %s24, 0
    %p181 = por %p179, %p180
    %p182 = scmp.ne.s32.totalorder %s170, %s171
    %p183 = scmp.eq.s32.totalorder %s25, 1
    %p184 = por %p182, %p183
    %p186 = scmp.ne.s32.totalorder %s171, %s185
    %p187 = scmp.eq.s32.totalorder %s25, 0
    %p188 = por %p186, %p187
    %s190 = sadd.s32 %s189, 1
    %p193 = scmp.eq.s32.totalorder %s19, 1
    %p194 = scmp.ne.s32.totalorder %s189, %s191
    %p195 = scmp.eq.s32.totalorder %s19, 0
    %p196 = por %p194, %p195
    %p197 = scmp.ne.s32.totalorder %s189, %s191
    %p198 = scmp.eq.s32.totalorder %s24, 1
    %p199 = por %p197, %p198
    %p200 = scmp.ne.s32.totalorder %s191, %s192
    %p201 = scmp.eq.s32.totalorder %s24, 0
    %p202 = por %p200, %p201
    %p203 = scmp.ne.s32.totalorder %s191, %s192
    %p204 = scmp.eq.s32.totalorder %s25, 1
    %p205 = por %p203, %p204
    %p207 = scmp.ne.s32.totalorder %s192, %s206
    %p208 = scmp.eq.s32.totalorder %s25, 0
    %p209 = por %p207, %p208
    %s211 = sadd.s32 %s210, 1
    %p214 = scmp.eq.s32.totalorder %s19, 1
    %p215 = scmp.ne.s32.totalorder %s210, %s212
    %p216 = scmp.eq.s32.totalorder %s19, 0
    %p217 = por %p215, %p216
    %p218 = scmp.ne.s32.totalorder %s210, %s212
    %p219 = scmp.eq.s32.totalorder %s24, 1
    %p220 = por %p218, %p219
    %p221 = scmp.ne.s32.totalorder %s212, %s213
    %p222 = scmp.eq.s32.totalorder %s24, 0
    %p223 = por %p221, %p222
    %p224 = scmp.ne.s32.totalorder %s212, %s213
    %p225 = scmp.eq.s32.totalorder %s25, 1
    %p226 = por %p224, %p225
    %p228 = scmp.ne.s32.totalorder %s213, %s227
    %p229 = scmp.eq.s32.totalorder %s25, 0
    %p230 = por %p228, %p229
    %s232 = sadd.s32 %s231, 1
    %p235 = scmp.eq.s32.totalorder %s19, 1
    %p236 = scmp.ne.s32.totalorder %s231, %s233
    %p237 = scmp.eq.s32.totalorder %s19, 0
    %p238 = por %p236, %p237
    %p239 = scmp.ne.s32.totalorder %s231, %s233
    %p240 = scmp.eq.s32.totalorder %s24, 1
    %p241 = por %p239, %p240
    %p242 = scmp.ne.s32.totalorder %s233, %s234
    %p243 = scmp.eq.s32.totalorder %s24, 0
    %p244 = por %p242, %p243
    %p245 = scmp.ne.s32.totalorder %s233, %s234
    %p246 = scmp.eq.s32.totalorder %s25, 1
    %p247 = por %p245, %p246
    %p249 = scmp.ne.s32.totalorder %s234, %s248
    %p250 = scmp.eq.s32.totalorder %s25, 0
    %p251 = por %p249, %p250
    %s252 = ssub.s32 %s19, %s26
    %p253 = scmp.eq.s32.totalorder %s252, 0
    %s255 = sadd.s32 %s254, 1
    %s256 = scalar_select %p253, %s254, %s255
    %p259 = pneg %p253
    %p260 = scmp.eq.s32.totalorder %s19, 1
    %p261 = por %p259, %p260
    %p262 = scmp.ne.s32.totalorder %s254, %s257
    %p263 = scmp.eq.s32.totalorder %s19, 0
    %p264 = por %p262, %p263
    %p265 = scmp.ne.s32.totalorder %s254, %s257
    %p266 = scmp.eq.s32.totalorder %s24, 1
    %p267 = por %p265, %p266
    %p268 = scmp.ne.s32.totalorder %s257, %s258
    %p269 = scmp.eq.s32.totalorder %s24, 0
    %p270 = por %p268, %p269
    %p271 = scmp.ne.s32.totalorder %s257, %s258
    %p272 = scmp.eq.s32.totalorder %s25, 1
    %p273 = por %p271, %p272
    %p275 = scmp.ne.s32.totalorder %s258, %s274
    %p276 = scmp.eq.s32.totalorder %s25, 0
    %p277 = por %p275, %p276
    %s278 = ssub.s32 %s19, %s26
    %p279 = scmp.eq.s32.totalorder %s278, 0
    %s281 = sadd.s32 %s280, 1
    %s282 = scalar_select %p279, %s280, %s281
    %p285 = pneg %p279
    %p286 = scmp.eq.s32.totalorder %s19, 1
    %p287 = por %p285, %p286
    %p288 = scmp.ne.s32.totalorder %s280, %s283
    %p289 = scmp.eq.s32.totalorder %s19, 0
    %p290 = por %p288, %p289
    %p291 = scmp.ne.s32.totalorder %s280, %s283
    %p292 = scmp.eq.s32.totalorder %s24, 1
    %p293 = por %p291, %p292
    %p294 = scmp.ne.s32.totalorder %s283, %s284
    %p295 = scmp.eq.s32.totalorder %s24, 0
    %p296 = por %p294, %p295
    %p297 = scmp.ne.s32.totalorder %s283, %s284
    %p298 = scmp.eq.s32.totalorder %s25, 1
    %p299 = por %p297, %p298
    %p301 = scmp.ne.s32.totalorder %s284, %s300
    %p302 = scmp.eq.s32.totalorder %s25, 0
    %p303 = por %p301, %p302
    %s304 = ssub.s32 %s19, %s26
    %p305 = scmp.eq.s32.totalorder %s304, 0
    %s307 = sadd.s32 %s306, 1
    %s308 = scalar_select %p305, %s306, %s307
    %p311 = pneg %p305
    %p312 = scmp.eq.s32.totalorder %s19, 1
    %p313 = por %p311, %p312
    %p314 = scmp.ne.s32.totalorder %s306, %s309
    %p315 = scmp.eq.s32.totalorder %s19, 0
    %p316 = por %p314, %p315
    %p317 = scmp.ne.s32.totalorder %s306, %s309
    %p318 = scmp.eq.s32.totalorder %s24, 1
    %p319 = por %p317, %p318
    %p320 = scmp.ne.s32.totalorder %s309, %s310
    %p321 = scmp.eq.s32.totalorder %s24, 0
    %p322 = por %p320, %p321
    %p323 = scmp.ne.s32.totalorder %s309, %s310
    %p324 = scmp.eq.s32.totalorder %s25, 1
    %p325 = por %p323, %p324
    %p327 = scmp.ne.s32.totalorder %s310, %s326
    %p328 = scmp.eq.s32.totalorder %s25, 0
    %p329 = por %p327, %p328
    %p330 = scmp.le.s32.totalorder 1, %s19
    %p331 = scmp.lt.s32.totalorder %s19, 3
    %p332 = pnand %p330, %p331
    %p333 = pneg %p332
    // Predicated region
    $region9: #{inception_resnet_b_pallas.8} parent=5 // pred_check
      _
    $region10: #{inception_resnet_b_pallas.8} parent=5 // pred_check_branch
      %335 = sbr.rel (%p332) target = $region12
    $region11: #{inception_resnet_b_pallas.8} parent=5 // pred_region
      %s336 = ssub.s32 %s19, 1
      // Predicated region
      $region13: #{inception_resnet_b_pallas.8} parent=11 // pred_check
        %p337 = pneg %p118
      $region14: #{inception_resnet_b_pallas.8} parent=11 // pred_check_branch
        %339 = sbr.rel (%p337) target = $region16
      $region15: #{inception_resnet_b_pallas.8} parent=11 // pred_region
        _
      $region16: #{inception_resnet_b_pallas.8} parent=11 // pred_fallthru
        _
      // Predicated region
      $region17: #{inception_resnet_b_pallas.8} parent=11 // pred_check
        %p340 = pneg %p139
      $region18: #{inception_resnet_b_pallas.8} parent=11 // pred_check_branch
        %342 = sbr.rel (%p340) target = $region20
      $region19: #{inception_resnet_b_pallas.8} parent=11 // pred_region
        _
      $region20: #{inception_resnet_b_pallas.8} parent=11 // pred_fallthru
        _
      // Predicated region
      $region21: #{inception_resnet_b_pallas.8} parent=11 // pred_check
        %p343 = pneg %p160
      $region22: #{inception_resnet_b_pallas.8} parent=11 // pred_check_branch
        %345 = sbr.rel (%p343) target = $region24
      $region23: #{inception_resnet_b_pallas.8} parent=11 // pred_region
        _
      $region24: #{inception_resnet_b_pallas.8} parent=11 // pred_fallthru
        _
      // Predicated region
      $region25: #{inception_resnet_b_pallas.8} parent=11 // pred_check
        %p346 = pneg %p181
      $region26: #{inception_resnet_b_pallas.8} parent=11 // pred_check_branch
        %348 = sbr.rel (%p346) target = $region28
      $region27: #{inception_resnet_b_pallas.8} parent=11 // pred_region
        _
      $region28: #{inception_resnet_b_pallas.8} parent=11 // pred_fallthru
        _
      // Predicated region
      $region29: #{inception_resnet_b_pallas.8} parent=11 // pred_check
        %p349 = pneg %p202
      $region30: #{inception_resnet_b_pallas.8} parent=11 // pred_check_branch
        %351 = sbr.rel (%p349) target = $region32
      $region31: #{inception_resnet_b_pallas.8} parent=11 // pred_region
        _
      $region32: #{inception_resnet_b_pallas.8} parent=11 // pred_fallthru
        _
      // Predicated region
      $region33: #{inception_resnet_b_pallas.8} parent=11 // pred_check
        %p352 = pneg %p223
      $region34: #{inception_resnet_b_pallas.8} parent=11 // pred_check_branch
        %354 = sbr.rel (%p352) target = $region36
      $region35: #{inception_resnet_b_pallas.8} parent=11 // pred_region
        _
      $region36: #{inception_resnet_b_pallas.8} parent=11 // pred_fallthru
        _
      // Predicated region
      $region37: #{inception_resnet_b_pallas.8} parent=11 // pred_check
        %p355 = pneg %p244
      $region38: #{inception_resnet_b_pallas.8} parent=11 // pred_check_branch
        %357 = sbr.rel (%p355) target = $region40
      $region39: #{inception_resnet_b_pallas.8} parent=11 // pred_region
        _
      $region40: #{inception_resnet_b_pallas.8} parent=11 // pred_fallthru
        _
    $region12: #{inception_resnet_b_pallas.8} parent=5 // pred_fallthru
      _
    %p358 = scmp.lt.s32.totalorder %s19, 2
    // Predicated region
    $region41: #{inception_resnet_b_pallas.8} parent=5 // pred_check
      %p359 = pneg %p358
    $region42: #{inception_resnet_b_pallas.8} parent=5 // pred_check_branch
      %361 = sbr.rel (%p359) target = $region44
    $region43: #{inception_resnet_b_pallas.8} parent=5 // pred_region
      // Predicated region
      $region45: #{inception_resnet_b_pallas.8} parent=43 // pred_check
        %p362 = pneg %p39
      $region46: #{inception_resnet_b_pallas.8} parent=43 // pred_check_branch
        %364 = sbr.rel (%p362) target = $region48
      $region47: #{inception_resnet_b_pallas.8} parent=43 // pred_region
        %s365 = smul.u32 32, %s19
        %p366 = scmp.lt.s32.totalorder %s365, 63
        %s367 = scalar_select %p366, %s365, 63
        %s368 = smul.addr %s367, 4
        %s369 = scalar_lea.vmem %s0, %s368
        %s370 = smul.u32 32, %s19
      $region48: #{inception_resnet_b_pallas.8} parent=43 // pred_fallthru
        _
      // Predicated region
      $region49: #{inception_resnet_b_pallas.8} parent=43 // pred_check
        %p371 = pneg %p65
      $region50: #{inception_resnet_b_pallas.8} parent=43 // pred_check_branch
        %373 = sbr.rel (%p371) target = $region52
      $region51: #{inception_resnet_b_pallas.8} parent=43 // pred_region
        %s374 = smul.u32 32, %s19
        %p375 = scmp.lt.s32.totalorder %s374, 63
        %s376 = scalar_select %p375, %s374, 63
        %s377 = smul.addr %s376, 4
        %s378 = scalar_lea.vmem %s1, %s377
        %s379 = smul.u32 32, %s19
      $region52: #{inception_resnet_b_pallas.8} parent=43 // pred_fallthru
        _
      // Predicated region
      $region53: #{inception_resnet_b_pallas.8} parent=43 // pred_check
        %p380 = pneg %p91
      $region54: #{inception_resnet_b_pallas.8} parent=43 // pred_check_branch
        %382 = sbr.rel (%p380) target = $region56
      $region55: #{inception_resnet_b_pallas.8} parent=43 // pred_region
        %s383 = smul.u32 32, %s19
        %p384 = scmp.lt.s32.totalorder %s383, 63
        %s385 = scalar_select %p384, %s383, 63
        %s386 = smul.addr %s385, 4
        %s387 = scalar_lea.vmem %s2, %s386
        %s388 = smul.u32 32, %s19
      $region56: #{inception_resnet_b_pallas.8} parent=43 // pred_fallthru
        _
    $region44: #{inception_resnet_b_pallas.8} parent=5 // pred_fallthru
      _
    %p389 = scmp.le.s32.totalorder 1, %s19
    %p390 = scmp.lt.s32.totalorder %s19, 3
    %p391 = pnand %p389, %p390
    %p392 = pneg %p391
    // Predicated region
    $region57: #{inception_resnet_b_pallas.8} parent=5 // pred_check
      _
    $region58: #{inception_resnet_b_pallas.8} parent=5 // pred_check_branch
      %394 = sbr.rel (%p391) target = $region60
    $region59: #{inception_resnet_b_pallas.8} parent=5 // pred_region
      %s395 = ssub.s32 %s19, 1
      %s396 = smul.u32 32, %s24
      %p397 = scmp.lt.s32.totalorder %s396, 63
      %s398 = scalar_select %p397, %s396, 63
      %s399 = smul.addr %s398, 4
      %s400 = scalar_lea.vmem %s0, %s399
      %p401 = pneg %p45
      %p402 = pneg %p42
      %s403 = smul.u32 32, %s24
      %p404 = scmp.lt.s32.totalorder %s403, 63
      %s405 = scalar_select %p404, %s403, 63
      %s406 = smul.addr %s405, 4
      %s407 = scalar_lea.vmem %s1, %s406
      %p408 = pneg %p71
      %p409 = pneg %p68
      %s410 = smul.u32 32, %s24
      %p411 = scmp.lt.s32.totalorder %s410, 63
      %s412 = scalar_select %p411, %s410, 63
      %s413 = smul.addr %s412, 4
      %s414 = scalar_lea.vmem %s2, %s413
      %p415 = pneg %p97
      %p416 = pneg %p94
      %p417 = pneg %p118
      %p418 = pneg %p115
      %p419 = pneg %p139
      %p420 = pneg %p136
      %p421 = pneg %p160
      %p422 = pneg %p157
      %p423 = pneg %p181
      %p424 = pneg %p178
      %p425 = pneg %p202
      %p426 = pneg %p199
      %p427 = pneg %p223
      %p428 = pneg %p220
      %p429 = pneg %p244
      %p430 = pneg %p241
      %p431 = pneg %p270
      %p432 = pneg %p267
      %s433 = smul.u32 32, %s24
      %p434 = scmp.lt.s32.totalorder %s433, 63
      %s435 = scalar_select %p434, %s433, 63
      %s436 = smul.addr %s435, 4
      %s437 = scalar_lea.vmem %s10, %s436
      %p438 = pneg %p296
      %p439 = pneg %p293
      %p440 = scmp.lt.s32.totalorder %s24, 1
      %s441 = scalar_select %p440, %s24, 1
      %s442 = smul.addr %s441, 8
      %s443 = scalar_lea.vmem %s11, %s442
      %p444 = pneg %p322
      %p445 = pneg %p319
      %p446 = scmp.lt.s32.totalorder %s24, 1
      %s447 = scalar_select %p446, %s24, 1
      %s448 = smul.addr %s447, 8
      %s449 = scalar_lea.vmem %s12, %s448
      %s450 = smul.u32 32, %s24
      %p451 = scmp.lt.s32.totalorder %s450, 63
      %s452 = scalar_select %p451, %s450, 63
      %s453 = smul.addr %s452, 4
      %s454 = scalar_lea.vmem %s0, %s453
      %s455 = smul.u32 32, %s24
      %s456 = smul.u32 32, %s24
      %p457 = scmp.lt.s32.totalorder %s456, 63
      %s458 = scalar_select %p457, %s456, 63
      %s459 = smul.addr %s458, 4
      %s460 = scalar_lea.vmem %s1, %s459
      %s461 = smul.u32 32, %s24
      %s462 = smul.u32 32, %s24
      %p463 = scmp.lt.s32.totalorder %s462, 63
      %s464 = scalar_select %p463, %s462, 63
      %s465 = smul.addr %s464, 4
      %s466 = scalar_lea.vmem %s2, %s465
      %s467 = smul.u32 32, %s24
      %s468 = smul.u32 32, %s24
      %p469 = scmp.lt.s32.totalorder %s468, 63
      %s470 = scalar_select %p469, %s468, 63
      %s471 = smul.addr %s470, 4
      %s472 = scalar_lea.vmem %s10, %s471
      %s473 = smul.u32 32, %s24
      %p474 = scmp.lt.s32.totalorder %s24, 1
      %s475 = scalar_select %p474, %s24, 1
      %s476 = smul.addr %s475, 8
      %s477 = scalar_lea.vmem %s11, %s476
      %p478 = scmp.lt.s32.totalorder %s24, 1
      %s479 = scalar_select %p478, %s24, 1
      %s480 = smul.addr %s479, 8
      %s481 = scalar_lea.vmem %s12, %s480
      %v482 = vld [vmem:[%s454] sm:$0xf]
      %v483 = vld [vmem:[%s454 + $0x4] sm:$0xf]
      %v484 = vld [vmem:[%s454 + $0x8] sm:$0xf]
      %v485 = vld [vmem:[%s454 + $0xc] sm:$0xf]
      %v486 = vld [vmem:[%s454 + $0x10] sm:$0xf]
      %v487 = vld [vmem:[%s454 + $0x14] sm:$0xf]
      %v488 = vld [vmem:[%s454 + $0x18] sm:$0xf]
      %v489 = vld [vmem:[%s454 + $0x1c] sm:$0xf]
      %v490 = vld [vmem:[%s454 + $0x20] sm:$0xf]
      %v491 = vld [vmem:[%s454 + $0x24] sm:$0xf]
      %v492 = vld [vmem:[%s454 + $0x28] sm:$0xf]
      %v493 = vld [vmem:[%s454 + $0x2c] sm:$0xf]
      %v494 = vld [vmem:[%s454 + $0x30] sm:$0xf]
      %v495 = vld [vmem:[%s454 + $0x34] sm:$0xf]
      %v496 = vld [vmem:[%s454 + $0x38] sm:$0xf]
      %v497 = vld [vmem:[%s454 + $0x3c] sm:$0xf]
      %v498 = vld [vmem:[%s454 + $0x40] sm:$0xf]
      %v499 = vld [vmem:[%s454 + $0x44] sm:$0xf]
      %v500 = vld [vmem:[%s454 + $0x48] sm:$0xf]
      %v501 = vld [vmem:[%s454 + $0x4c] sm:$0xf]
      %v502 = vld [vmem:[%s454 + $0x50] sm:$0xf]
      %v503 = vld [vmem:[%s454 + $0x54] sm:$0xf]
      %v504 = vld [vmem:[%s454 + $0x58] sm:$0xf]
      %v505 = vld [vmem:[%s454 + $0x5c] sm:$0xf]
      %v506 = vld [vmem:[%s454 + $0x60] sm:$0xf]
      %v507 = vld [vmem:[%s454 + $0x64] sm:$0xf]
      %v508 = vld [vmem:[%s454 + $0x68] sm:$0xf]
      %v509 = vld [vmem:[%s454 + $0x6c] sm:$0xf]
      %v510 = vld [vmem:[%s454 + $0x70] sm:$0xf]
      %v511 = vld [vmem:[%s454 + $0x74] sm:$0xf]
      %v512 = vld [vmem:[%s454 + $0x78] sm:$0xf]
      %v513 = vld [vmem:[%s454 + $0x7c] sm:$0xf]
      %v514 = vunpack.c.l.bf16 %v482
      %v515 = vunpack.c.l.bf16 %v483
      %v516 = vunpack.c.l.bf16 %v484
      %v517 = vunpack.c.l.bf16 %v485
      %v518 = vunpack.c.l.bf16 %v486
      %v519 = vunpack.c.l.bf16 %v487
      %v520 = vunpack.c.l.bf16 %v488
      %v521 = vunpack.c.l.bf16 %v489
      %v522 = vunpack.c.l.bf16 %v490
      %v523 = vunpack.c.l.bf16 %v491
      %v524 = vunpack.c.l.bf16 %v492
      %v525 = vunpack.c.l.bf16 %v493
      %v526 = vunpack.c.l.bf16 %v494
      %v527 = vunpack.c.l.bf16 %v495
      %v528 = vunpack.c.l.bf16 %v496
      %v529 = vunpack.c.l.bf16 %v497
      %v530 = vunpack.c.l.bf16 %v498
      %v531 = vunpack.c.l.bf16 %v499
      %v532 = vunpack.c.l.bf16 %v500
      %v533 = vunpack.c.l.bf16 %v501
      %v534 = vunpack.c.l.bf16 %v502
      %v535 = vunpack.c.l.bf16 %v503
      %v536 = vunpack.c.l.bf16 %v504
      %v537 = vunpack.c.l.bf16 %v505
      %v538 = vunpack.c.l.bf16 %v506
      %v539 = vunpack.c.l.bf16 %v507
      %v540 = vunpack.c.l.bf16 %v508
      %v541 = vunpack.c.l.bf16 %v509
      %v542 = vunpack.c.l.bf16 %v510
      %v543 = vunpack.c.l.bf16 %v511
      %v544 = vunpack.c.l.bf16 %v512
      %v545 = vunpack.c.l.bf16 %v513
      %v546 = vld [vmem:[%s3] sm:$0x1]
      %v548 = vlaneseq
      %v549 = vshrl.u32 %v548, 7
      %v550 = vsub.s32 0, %v549
      %v551 = vrot.slane %v546, %v550
      %v553 = vmul.f32 %v514, %v551
      %v554 = vmul.f32 %v515, %v551
      %v555 = vmul.f32 %v516, %v551
      %v556 = vmul.f32 %v517, %v551
      %v557 = vmul.f32 %v518, %v551
      %v558 = vmul.f32 %v519, %v551
      %v559 = vmul.f32 %v520, %v551
      %v560 = vmul.f32 %v521, %v551
      %v561 = vmul.f32 %v522, %v551
      %v562 = vmul.f32 %v523, %v551
      %v563 = vmul.f32 %v524, %v551
      %v564 = vmul.f32 %v525, %v551
      %v565 = vmul.f32 %v526, %v551
      %v566 = vmul.f32 %v527, %v551
      %v567 = vmul.f32 %v528, %v551
      %v568 = vmul.f32 %v529, %v551
      %v569 = vmul.f32 %v530, %v551
      %v570 = vmul.f32 %v531, %v551
      %v571 = vmul.f32 %v532, %v551
      %v572 = vmul.f32 %v533, %v551
      %v573 = vmul.f32 %v534, %v551
      %v574 = vmul.f32 %v535, %v551
      %v575 = vmul.f32 %v536, %v551
      %v576 = vmul.f32 %v537, %v551
      %v577 = vmul.f32 %v538, %v551
      %v578 = vmul.f32 %v539, %v551
      %v579 = vmul.f32 %v540, %v551
      %v580 = vmul.f32 %v541, %v551
      %v581 = vmul.f32 %v542, %v551
      %v582 = vmul.f32 %v543, %v551
      %v583 = vmul.f32 %v544, %v551
      %v584 = vmul.f32 %v545, %v551
      %v585 = vld [vmem:[%s4] sm:$0x1]
      %v587 = vlaneseq
      %v588 = vshrl.u32 %v587, 7
      %v589 = vsub.s32 0, %v588
      %v590 = vrot.slane %v585, %v589
      %v592 = vadd.f32 %v553, %v590
      %v593 = vadd.f32 %v554, %v590
      %v594 = vadd.f32 %v555, %v590
      %v595 = vadd.f32 %v556, %v590
      %v596 = vadd.f32 %v557, %v590
      %v597 = vadd.f32 %v558, %v590
      %v598 = vadd.f32 %v559, %v590
      %v599 = vadd.f32 %v560, %v590
      %v600 = vadd.f32 %v561, %v590
      %v601 = vadd.f32 %v562, %v590
      %v602 = vadd.f32 %v563, %v590
      %v603 = vadd.f32 %v564, %v590
      %v604 = vadd.f32 %v565, %v590
      %v605 = vadd.f32 %v566, %v590
      %v606 = vadd.f32 %v567, %v590
      %v607 = vadd.f32 %v568, %v590
      %v608 = vadd.f32 %v569, %v590
      %v609 = vadd.f32 %v570, %v590
      %v610 = vadd.f32 %v571, %v590
      %v611 = vadd.f32 %v572, %v590
      %v612 = vadd.f32 %v573, %v590
      %v613 = vadd.f32 %v574, %v590
      %v614 = vadd.f32 %v575, %v590
      %v615 = vadd.f32 %v576, %v590
      %v616 = vadd.f32 %v577, %v590
      %v617 = vadd.f32 %v578, %v590
      %v618 = vadd.f32 %v579, %v590
      %v619 = vadd.f32 %v580, %v590
      %v620 = vadd.f32 %v581, %v590
      %v621 = vadd.f32 %v582, %v590
      %v622 = vadd.f32 %v583, %v590
      %v623 = vadd.f32 %v584, %v590
      %v624 = vmax.f32 %v592, 0.0
      %v625 = vmax.f32 %v593, 0.0
      %v626 = vmax.f32 %v594, 0.0
      %v627 = vmax.f32 %v595, 0.0
      %v628 = vmax.f32 %v596, 0.0
      %v629 = vmax.f32 %v597, 0.0
      %v630 = vmax.f32 %v598, 0.0
      %v631 = vmax.f32 %v599, 0.0
      %v632 = vmax.f32 %v600, 0.0
      %v633 = vmax.f32 %v601, 0.0
      %v634 = vmax.f32 %v602, 0.0
      %v635 = vmax.f32 %v603, 0.0
      %v636 = vmax.f32 %v604, 0.0
      %v637 = vmax.f32 %v605, 0.0
      %v638 = vmax.f32 %v606, 0.0
      %v639 = vmax.f32 %v607, 0.0
      %v640 = vmax.f32 %v608, 0.0
      %v641 = vmax.f32 %v609, 0.0
      %v642 = vmax.f32 %v610, 0.0
      %v643 = vmax.f32 %v611, 0.0
      %v644 = vmax.f32 %v612, 0.0
      %v645 = vmax.f32 %v613, 0.0
      %v646 = vmax.f32 %v614, 0.0
      %v647 = vmax.f32 %v615, 0.0
      %v648 = vmax.f32 %v616, 0.0
      %v649 = vmax.f32 %v617, 0.0
      %v650 = vmax.f32 %v618, 0.0
      %v651 = vmax.f32 %v619, 0.0
      %v652 = vmax.f32 %v620, 0.0
      %v653 = vmax.f32 %v621, 0.0
      %v654 = vmax.f32 %v622, 0.0
      %v655 = vmax.f32 %v623, 0.0
      %v656 = vld [vmem:[%s460] sm:$0xf]
      %v657 = vld [vmem:[%s460 + $0x4] sm:$0xf]
      %v658 = vld [vmem:[%s460 + $0x8] sm:$0xf]
      %v659 = vld [vmem:[%s460 + $0xc] sm:$0xf]
      %v660 = vld [vmem:[%s460 + $0x10] sm:$0xf]
      %v661 = vld [vmem:[%s460 + $0x14] sm:$0xf]
      %v662 = vld [vmem:[%s460 + $0x18] sm:$0xf]
      %v663 = vld [vmem:[%s460 + $0x1c] sm:$0xf]
      %v664 = vld [vmem:[%s460 + $0x20] sm:$0xf]
      %v665 = vld [vmem:[%s460 + $0x24] sm:$0xf]
      %v666 = vld [vmem:[%s460 + $0x28] sm:$0xf]
      %v667 = vld [vmem:[%s460 + $0x2c] sm:$0xf]
      %v668 = vld [vmem:[%s460 + $0x30] sm:$0xf]
      %v669 = vld [vmem:[%s460 + $0x34] sm:$0xf]
      %v670 = vld [vmem:[%s460 + $0x38] sm:$0xf]
      %v671 = vld [vmem:[%s460 + $0x3c] sm:$0xf]
      %v672 = vld [vmem:[%s460 + $0x40] sm:$0xf]
      %v673 = vld [vmem:[%s460 + $0x44] sm:$0xf]
      %v674 = vld [vmem:[%s460 + $0x48] sm:$0xf]
      %v675 = vld [vmem:[%s460 + $0x4c] sm:$0xf]
      %v676 = vld [vmem:[%s460 + $0x50] sm:$0xf]
      %v677 = vld [vmem:[%s460 + $0x54] sm:$0xf]
      %v678 = vld [vmem:[%s460 + $0x58] sm:$0xf]
      %v679 = vld [vmem:[%s460 + $0x5c] sm:$0xf]
      %v680 = vld [vmem:[%s460 + $0x60] sm:$0xf]
      %v681 = vld [vmem:[%s460 + $0x64] sm:$0xf]
      %v682 = vld [vmem:[%s460 + $0x68] sm:$0xf]
      %v683 = vld [vmem:[%s460 + $0x6c] sm:$0xf]
      %v684 = vld [vmem:[%s460 + $0x70] sm:$0xf]
      %v685 = vld [vmem:[%s460 + $0x74] sm:$0xf]
      %v686 = vld [vmem:[%s460 + $0x78] sm:$0xf]
      %v687 = vld [vmem:[%s460 + $0x7c] sm:$0xf]
      %v688 = vunpack.c.l.bf16 %v656
      %v689 = vunpack.c.l.bf16 %v657
      %v690 = vunpack.c.l.bf16 %v658
      %v691 = vunpack.c.l.bf16 %v659
      %v692 = vunpack.c.l.bf16 %v660
      %v693 = vunpack.c.l.bf16 %v661
      %v694 = vunpack.c.l.bf16 %v662
      %v695 = vunpack.c.l.bf16 %v663
      %v696 = vunpack.c.l.bf16 %v664
      %v697 = vunpack.c.l.bf16 %v665
      %v698 = vunpack.c.l.bf16 %v666
      %v699 = vunpack.c.l.bf16 %v667
      %v700 = vunpack.c.l.bf16 %v668
      %v701 = vunpack.c.l.bf16 %v669
      %v702 = vunpack.c.l.bf16 %v670
      %v703 = vunpack.c.l.bf16 %v671
      %v704 = vunpack.c.l.bf16 %v672
      %v705 = vunpack.c.l.bf16 %v673
      %v706 = vunpack.c.l.bf16 %v674
      %v707 = vunpack.c.l.bf16 %v675
      %v708 = vunpack.c.l.bf16 %v676
      %v709 = vunpack.c.l.bf16 %v677
      %v710 = vunpack.c.l.bf16 %v678
      %v711 = vunpack.c.l.bf16 %v679
      %v712 = vunpack.c.l.bf16 %v680
      %v713 = vunpack.c.l.bf16 %v681
      %v714 = vunpack.c.l.bf16 %v682
      %v715 = vunpack.c.l.bf16 %v683
      %v716 = vunpack.c.l.bf16 %v684
      %v717 = vunpack.c.l.bf16 %v685
      %v718 = vunpack.c.l.bf16 %v686
      %v719 = vunpack.c.l.bf16 %v687
      %v720 = vld [vmem:[%s5] sm:$0x1]
      %v722 = vlaneseq
      %v723 = vshrl.u32 %v722, 7
      %v724 = vsub.s32 0, %v723
      %v725 = vrot.slane %v720, %v724
      %v727 = vmul.f32 %v688, %v725
      %v728 = vmul.f32 %v689, %v725
      %v729 = vmul.f32 %v690, %v725
      %v730 = vmul.f32 %v691, %v725
      %v731 = vmul.f32 %v692, %v725
      %v732 = vmul.f32 %v693, %v725
      %v733 = vmul.f32 %v694, %v725
      %v734 = vmul.f32 %v695, %v725
      %v735 = vmul.f32 %v696, %v725
      %v736 = vmul.f32 %v697, %v725
      %v737 = vmul.f32 %v698, %v725
      %v738 = vmul.f32 %v699, %v725
      %v739 = vmul.f32 %v700, %v725
      %v740 = vmul.f32 %v701, %v725
      %v741 = vmul.f32 %v702, %v725
      %v742 = vmul.f32 %v703, %v725
      %v743 = vmul.f32 %v704, %v725
      %v744 = vmul.f32 %v705, %v725
      %v745 = vmul.f32 %v706, %v725
      %v746 = vmul.f32 %v707, %v725
      %v747 = vmul.f32 %v708, %v725
      %v748 = vmul.f32 %v709, %v725
      %v749 = vmul.f32 %v710, %v725
      %v750 = vmul.f32 %v711, %v725
      %v751 = vmul.f32 %v712, %v725
      %v752 = vmul.f32 %v713, %v725
      %v753 = vmul.f32 %v714, %v725
      %v754 = vmul.f32 %v715, %v725
      %v755 = vmul.f32 %v716, %v725
      %v756 = vmul.f32 %v717, %v725
      %v757 = vmul.f32 %v718, %v725
      %v758 = vmul.f32 %v719, %v725
      %v759 = vld [vmem:[%s6] sm:$0x1]
      %v761 = vlaneseq
      %v762 = vshrl.u32 %v761, 7
      %v763 = vsub.s32 0, %v762
      %v764 = vrot.slane %v759, %v763
      %v766 = vadd.f32 %v727, %v764
      %v767 = vadd.f32 %v728, %v764
      %v768 = vadd.f32 %v729, %v764
      %v769 = vadd.f32 %v730, %v764
      %v770 = vadd.f32 %v731, %v764
      %v771 = vadd.f32 %v732, %v764
      %v772 = vadd.f32 %v733, %v764
      %v773 = vadd.f32 %v734, %v764
      %v774 = vadd.f32 %v735, %v764
      %v775 = vadd.f32 %v736, %v764
      %v776 = vadd.f32 %v737, %v764
      %v777 = vadd.f32 %v738, %v764
      %v778 = vadd.f32 %v739, %v764
      %v779 = vadd.f32 %v740, %v764
      %v780 = vadd.f32 %v741, %v764
      %v781 = vadd.f32 %v742, %v764
      %v782 = vadd.f32 %v743, %v764
      %v783 = vadd.f32 %v744, %v764
      %v784 = vadd.f32 %v745, %v764
      %v785 = vadd.f32 %v746, %v764
      %v786 = vadd.f32 %v747, %v764
      %v787 = vadd.f32 %v748, %v764
      %v788 = vadd.f32 %v749, %v764
      %v789 = vadd.f32 %v750, %v764
      %v790 = vadd.f32 %v751, %v764
      %v791 = vadd.f32 %v752, %v764
      %v792 = vadd.f32 %v753, %v764
      %v793 = vadd.f32 %v754, %v764
      %v794 = vadd.f32 %v755, %v764
      %v795 = vadd.f32 %v756, %v764
      %v796 = vadd.f32 %v757, %v764
      %v797 = vadd.f32 %v758, %v764
      %v798 = vmax.f32 %v766, 0.0
      %v799 = vmax.f32 %v767, 0.0
      %v800 = vmax.f32 %v768, 0.0
      %v801 = vmax.f32 %v769, 0.0
      %v802 = vmax.f32 %v770, 0.0
      %v803 = vmax.f32 %v771, 0.0
      %v804 = vmax.f32 %v772, 0.0
      %v805 = vmax.f32 %v773, 0.0
      %v806 = vmax.f32 %v774, 0.0
      %v807 = vmax.f32 %v775, 0.0
      %v808 = vmax.f32 %v776, 0.0
      %v809 = vmax.f32 %v777, 0.0
      %v810 = vmax.f32 %v778, 0.0
      %v811 = vmax.f32 %v779, 0.0
      %v812 = vmax.f32 %v780, 0.0
      %v813 = vmax.f32 %v781, 0.0
      %v814 = vmax.f32 %v782, 0.0
      %v815 = vmax.f32 %v783, 0.0
      %v816 = vmax.f32 %v784, 0.0
      %v817 = vmax.f32 %v785, 0.0
      %v818 = vmax.f32 %v786, 0.0
      %v819 = vmax.f32 %v787, 0.0
      %v820 = vmax.f32 %v788, 0.0
      %v821 = vmax.f32 %v789, 0.0
      %v822 = vmax.f32 %v790, 0.0
      %v823 = vmax.f32 %v791, 0.0
      %v824 = vmax.f32 %v792, 0.0
      %v825 = vmax.f32 %v793, 0.0
      %v826 = vmax.f32 %v794, 0.0
      %v827 = vmax.f32 %v795, 0.0
      %v828 = vmax.f32 %v796, 0.0
      %v829 = vmax.f32 %v797, 0.0
      %v830 = vld [vmem:[%s7] sm:$0xf]
      %v831 = vld [vmem:[%s8] sm:$0xf]
      %vm832 = vcmask 31744
      %v834 = vsel %vm832, %v798, 0
      %v837 = vsel %vm832, %v799, 0
      %v840 = vsel %vm832, %v800, 0
      %v843 = vsel %vm832, %v801, 0
      %v846 = vsel %vm832, %v802, 0
      %v849 = vsel %vm832, %v803, 0
      %v852 = vsel %vm832, %v804, 0
      %v855 = vsel %vm832, %v805, 0
      %v858 = vsel %vm832, %v806, 0
      %v861 = vsel %vm832, %v807, 0
      %v864 = vsel %vm832, %v808, 0
      %v867 = vsel %vm832, %v809, 0
      %v870 = vsel %vm832, %v810, 0
      %v873 = vsel %vm832, %v811, 0
      %v876 = vsel %vm832, %v812, 0
      %v879 = vsel %vm832, %v813, 0
      %v882 = vsel %vm832, %v814, 0
      %v885 = vsel %vm832, %v815, 0
      %v888 = vsel %vm832, %v816, 0
      %v891 = vsel %vm832, %v817, 0
      %v894 = vsel %vm832, %v818, 0
      %v897 = vsel %vm832, %v819, 0
      %v900 = vsel %vm832, %v820, 0
      %v903 = vsel %vm832, %v821, 0
      %v906 = vsel %vm832, %v822, 0
      %v909 = vsel %vm832, %v823, 0
      %v912 = vsel %vm832, %v824, 0
      %v915 = vsel %vm832, %v825, 0
      %v918 = vsel %vm832, %v826, 0
      %v921 = vsel %vm832, %v827, 0
      %v924 = vsel %vm832, %v828, 0
      %v927 = vsel %vm832, %v829, 0
      %vm929 = vcmask 1043456
      %v931 = vsel %vm929, %v831, 0
      %933 = vmatprep.subr.mxu0 0.0
      %934 = vmatpush1.msra.mxu0 %v931
      %935 = vmatprep.subr.mxu0 0.0
      %936 = vmatpush1.msra.mxu0 0.0
      %937 = vmatprep.subr.mxu0 0.0
      %938 = vmatpush1.msra.mxu0 0.0
      %939 = vmatprep.subr.mxu0 0.0
      %940 = vmatpush1.msra.mxu0 0.0
      %941 = vmatprep.subr.mxu0 0.0
      %942 = vmatpush1.msra.mxu0 0.0
      %943 = vmatprep.subr.mxu0 0.0
      %944 = vmatpush1.msra.mxu0 0.0
      %945 = vmatprep.subr.mxu0 0.0
      %946 = vmatpush1.msra.mxu0 0.0
      %947 = vmatprep.subr.mxu0 0.0
      %948 = vmatpush1.msra.mxu0 0.0
      %949 = vmatprep.subr.mxu0 0.0
      %950 = vmatpush1.msra.mxu0 0.0
      %951 = vmatprep.subr.mxu0 0.0
      %952 = vmatpush1.msra.mxu0 0.0
      %953 = vmatprep.subr.mxu0 0.0
      %954 = vmatpush1.msra.mxu0 0.0
      %955 = vmatprep.subr.mxu0 0.0
      %956 = vmatpush1.msra.mxu0 0.0
      %957 = vmatprep.subr.mxu0 0.0
      %958 = vmatpush1.msra.mxu0 0.0
      %959 = vmatprep.subr.mxu0 0.0
      %960 = vmatpush1.msra.mxu0 0.0
      %961 = vmatprep.subr.mxu0 0.0
      %962 = vmatpush1.msra.mxu0 0.0
      %963 = vmatprep.subr.mxu0 0.0
      %964 = vmatpush1.msra.mxu0 0.0
      %965 = vmatprep.subr.mxu0 0.0
      %966 = vmatpush1.msra.mxu0 0.0
      %967 = vmatprep.subr.mxu0 0.0
      %968 = vmatpush1.msra.mxu0 0.0
      %969 = vmatprep.subr.mxu0 0.0
      %970 = vmatpush1.msra.mxu0 0.0
      %971 = vmatprep.subr.mxu0 0.0
      %972 = vmatpush1.msra.mxu0 0.0
      %973 = vmatprep.subr.mxu0 0.0
      %974 = vmatpush1.msra.mxu0 0.0
      %975 = vmatprep.subr.mxu0 0.0
      %976 = vmatpush1.msra.mxu0 0.0
      %977 = vmatprep.subr.mxu0 0.0
      %978 = vmatpush1.msra.mxu0 0.0
      %979 = vmatprep.subr.mxu0 0.0
      %980 = vmatpush1.msra.mxu0 0.0
      %981 = vmatprep.subr.mxu0 0.0
      %982 = vmatpush1.msra.mxu0 0.0
      %983 = vmatprep.subr.mxu0 0.0
      %984 = vmatpush1.msra.mxu0 0.0
      %985 = vmatprep.subr.mxu0 0.0
      %986 = vmatpush1.msra.mxu0 0.0
      %987 = vmatprep.subr.mxu0 0.0
      %988 = vmatpush1.msra.mxu0 0.0
      %989 = vmatprep.subr.mxu0 0.0
      %990 = vmatpush1.msra.mxu0 0.0
      %991 = vmatprep.subr.mxu0 0.0
      %992 = vmatpush1.msra.mxu0 0.0
      %993 = vmatprep.subr.mxu0 0.0
      %994 = vmatpush1.msra.mxu0 0.0
      %995 = vmatprep.subr.mxu0 0.0
      %996 = vmatpush1.msra.mxu0 0.0
      %997 = vmatprep.mubr.f32.mxu0 0.0
      %998 = vmatmul.mubr.f32.gmra.mrb[0].mxu0 %v834
      %v999 = vpop.f32.mrb[0].mxu0
      %v1000 = vadd.f32 0.0, %v999
      %v1001 = vpop.f32.mrb[0].mxu0
      %1002 = vmatprep.mubr.f32.mxu0 0.0
      %1003 = vmatmul.mubr.f32.gmra.mrb[0].mxu0 %v837
      %v1004 = vpop.f32.mrb[0].mxu0
      %v1005 = vadd.f32 0.0, %v1004
      %v1006 = vpop.f32.mrb[0].mxu0
      %1007 = vmatprep.mubr.f32.mxu0 0.0
      %1008 = vmatmul.mubr.f32.gmra.mrb[0].mxu0 %v840
      %v1009 = vpop.f32.mrb[0].mxu0
      %v1010 = vadd.f32 0.0, %v1009
      %v1011 = vpop.f32.mrb[0].mxu0
      %1012 = vmatprep.mubr.f32.mxu0 0.0
      %1013 = vmatmul.mubr.f32.gmra.mrb[0].mxu0 %v843
      %v1014 = vpop.f32.mrb[0].mxu0
      %v1015 = vadd.f32 0.0, %v1014
      %v1016 = vpop.f32.mrb[0].mxu0
      %1017 = vmatprep.mubr.f32.mxu0 0.0
      %1018 = vmatmul.mubr.f32.gmra.mrb[0].mxu0 %v846
      %v1019 = vpop.f32.mrb[0].mxu0
      %v1020 = vadd.f32 0.0, %v1019
      %v1021 = vpop.f32.mrb[0].mxu0
      %1022 = vmatprep.mubr.f32.mxu0 0.0
      %1023 = vmatmul.mubr.f32.gmra.mrb[0].mxu0 %v849
      %v1024 = vpop.f32.mrb[0].mxu0
      %v1025 = vadd.f32 0.0, %v1024
      %v1026 = vpop.f32.mrb[0].mxu0
      %1027 = vmatprep.mubr.f32.mxu0 0.0
      %1028 = vmatmul.mubr.f32.gmra.mrb[0].mxu0 %v852
      %v1029 = vpop.f32.mrb[0].mxu0
      %v1030 = vadd.f32 0.0, %v1029
      %v1031 = vpop.f32.mrb[0].mxu0
      %1032 = vmatprep.mubr.f32.mxu0 0.0
      %1033 = vmatmul.mubr.f32.gmra.mrb[0].mxu0 %v855
      %v1034 = vpop.f32.mrb[0].mxu0
      %v1035 = vadd.f32 0.0, %v1034
      %v1036 = vpop.f32.mrb[0].mxu0
      %1037 = vmatprep.mubr.f32.mxu0 0.0
      %1038 = vmatmul.mubr.f32.gmra.mrb[0].mxu0 %v858
      %v1039 = vpop.f32.mrb[0].mxu0
      %v1040 = vadd.f32 0.0, %v1039
      %v1041 = vpop.f32.mrb[0].mxu0
      %1042 = vmatprep.mubr.f32.mxu0 0.0
      %1043 = vmatmul.mubr.f32.gmra.mrb[0].mxu0 %v861
      %v1044 = vpop.f32.mrb[0].mxu0
      %v1045 = vadd.f32 0.0, %v1044
      %v1046 = vpop.f32.mrb[0].mxu0
      %1047 = vmatprep.mubr.f32.mxu0 0.0
      %1048 = vmatmul.mubr.f32.gmra.mrb[0].mxu0 %v864
      %v1049 = vpop.f32.mrb[0].mxu0
      %v1050 = vadd.f32 0.0, %v1049
      %v1051 = vpop.f32.mrb[0].mxu0
      %1052 = vmatprep.mubr.f32.mxu0 0.0
      %1053 = vmatmul.mubr.f32.gmra.mrb[0].mxu0 %v867
      %v1054 = vpop.f32.mrb[0].mxu0
      %v1055 = vadd.f32 0.0, %v1054
      %v1056 = vpop.f32.mrb[0].mxu0
      %1057 = vmatprep.mubr.f32.mxu0 0.0
      %1058 = vmatmul.mubr.f32.gmra.mrb[0].mxu0 %v870
      %v1059 = vpop.f32.mrb[0].mxu0
      %v1060 = vadd.f32 0.0, %v1059
      %v1061 = vpop.f32.mrb[0].mxu0
      %1062 = vmatprep.mubr.f32.mxu0 0.0
      %1063 = vmatmul.mubr.f32.gmra.mrb[0].mxu0 %v873
      %v1064 = vpop.f32.mrb[0].mxu0
      %v1065 = vadd.f32 0.0, %v1064
      %v1066 = vpop.f32.mrb[0].mxu0
      %1067 = vmatprep.mubr.f32.mxu0 0.0
      %1068 = vmatmul.mubr.f32.gmra.mrb[0].mxu0 %v876
      %v1069 = vpop.f32.mrb[0].mxu0
      %v1070 = vadd.f32 0.0, %v1069
      %v1071 = vpop.f32.mrb[0].mxu0
      %1072 = vmatprep.mubr.f32.mxu0 0.0
      %1073 = vmatmul.mubr.f32.gmra.mrb[0].mxu0 %v879
      %v1074 = vpop.f32.mrb[0].mxu0
      %v1075 = vadd.f32 0.0, %v1074
      %v1076 = vpop.f32.mrb[0].mxu0
      %1077 = vmatprep.mubr.f32.mxu0 0.0
      %1078 = vmatmul.mubr.f32.gmra.mrb[0].mxu0 %v882
      %v1079 = vpop.f32.mrb[0].mxu0
      %v1080 = vadd.f32 0.0, %v1079
      %v1081 = vpop.f32.mrb[0].mxu0
      %1082 = vmatprep.mubr.f32.mxu0 0.0
      %1083 = vmatmul.mubr.f32.gmra.mrb[0].mxu0 %v885
      %v1084 = vpop.f32.mrb[0].mxu0
      %v1085 = vadd.f32 0.0, %v1084
      %v1086 = vpop.f32.mrb[0].mxu0
      %1087 = vmatprep.mubr.f32.mxu0 0.0
      %1088 = vmatmul.mubr.f32.gmra.mrb[0].mxu0 %v888
      %v1089 = vpop.f32.mrb[0].mxu0
      %v1090 = vadd.f32 0.0, %v1089
      %v1091 = vpop.f32.mrb[0].mxu0
      %1092 = vmatprep.mubr.f32.mxu0 0.0
      %1093 = vmatmul.mubr.f32.gmra.mrb[0].mxu0 %v891
      %v1094 = vpop.f32.mrb[0].mxu0
      %v1095 = vadd.f32 0.0, %v1094
      %v1096 = vpop.f32.mrb[0].mxu0
      %1097 = vmatprep.mubr.f32.mxu0 0.0
      %1098 = vmatmul.mubr.f32.gmra.mrb[0].mxu0 %v894
      %v1099 = vpop.f32.mrb[0].mxu0
      %v1100 = vadd.f32 0.0, %v1099
      %v1101 = vpop.f32.mrb[0].mxu0
      %1102 = vmatprep.mubr.f32.mxu0 0.0
      %1103 = vmatmul.mubr.f32.gmra.mrb[0].mxu0 %v897
      %v1104 = vpop.f32.mrb[0].mxu0
      %v1105 = vadd.f32 0.0, %v1104
      %v1106 = vpop.f32.mrb[0].mxu0
      %1107 = vmatprep.mubr.f32.mxu0 0.0
      %1108 = vmatmul.mubr.f32.gmra.mrb[0].mxu0 %v900
      %v1109 = vpop.f32.mrb[0].mxu0
      %v1110 = vadd.f32 0.0, %v1109
      %v1111 = vpop.f32.mrb[0].mxu0
      %1112 = vmatprep.mubr.f32.mxu0 0.0
      %1113 = vmatmul.mubr.f32.gmra.mrb[0].mxu0 %v903
      %v1114 = vpop.f32.mrb[0].mxu0
      %v1115 = vadd.f32 0.0, %v1114
      %v1116 = vpop.f32.mrb[0].mxu0
      %1117 = vmatprep.mubr.f32.mxu0 0.0
      %1118 = vmatmul.mubr.f32.gmra.mrb[0].mxu0 %v906
      %v1119 = vpop.f32.mrb[0].mxu0
      %v1120 = vadd.f32 0.0, %v1119
      %v1121 = vpop.f32.mrb[0].mxu0
      %1122 = vmatprep.mubr.f32.mxu0 0.0
      %1123 = vmatmul.mubr.f32.gmra.mrb[0].mxu0 %v909
      %v1124 = vpop.f32.mrb[0].mxu0
      %v1125 = vadd.f32 0.0, %v1124
      %v1126 = vpop.f32.mrb[0].mxu0
      %1127 = vmatprep.mubr.f32.mxu0 0.0
      %1128 = vmatmul.mubr.f32.gmra.mrb[0].mxu0 %v912
      %v1129 = vpop.f32.mrb[0].mxu0
      %v1130 = vadd.f32 0.0, %v1129
      %v1131 = vpop.f32.mrb[0].mxu0
      %1132 = vmatprep.mubr.f32.mxu0 0.0
      %1133 = vmatmul.mubr.f32.gmra.mrb[0].mxu0 %v915
      %v1134 = vpop.f32.mrb[0].mxu0
      %v1135 = vadd.f32 0.0, %v1134
      %v1136 = vpop.f32.mrb[0].mxu0
      %1137 = vmatprep.mubr.f32.mxu0 0.0
      %1138 = vmatmul.mubr.f32.gmra.mrb[0].mxu0 %v918
      %v1139 = vpop.f32.mrb[0].mxu0
      %v1140 = vadd.f32 0.0, %v1139
      %v1141 = vpop.f32.mrb[0].mxu0
      %1142 = vmatprep.mubr.f32.mxu0 0.0
      %1143 = vmatmul.mubr.f32.gmra.mrb[0].mxu0 %v921
      %v1144 = vpop.f32.mrb[0].mxu0
      %v1145 = vadd.f32 0.0, %v1144
      %v1146 = vpop.f32.mrb[0].mxu0
      %1147 = vmatprep.mubr.f32.mxu0 0.0
      %1148 = vmatmul.mubr.f32.gmra.mrb[0].mxu0 %v924
      %v1149 = vpop.f32.mrb[0].mxu0
      %v1150 = vadd.f32 0.0, %v1149
      %v1151 = vpop.f32.mrb[0].mxu0
      %1152 = vmatprep.mubr.f32.mxu0 0.0
      %1153 = vmatmul.mubr.f32.gmra.mrb[0].mxu0 %v927
      %v1154 = vpop.f32.mrb[0].mxu0
      %v1155 = vadd.f32 0.0, %v1154
      %v1156 = vpop.f32.mrb[0].mxu0
      %1157 = vdwg.mxu0
      %v1159 = vsel %vm832, %v624, 0
      %v1162 = vsel %vm832, %v625, 0
      %v1165 = vsel %vm832, %v626, 0
      %v1168 = vsel %vm832, %v627, 0
      %v1171 = vsel %vm832, %v628, 0
      %v1174 = vsel %vm832, %v629, 0
      %v1177 = vsel %vm832, %v630, 0
      %v1180 = vsel %vm832, %v631, 0
      %v1183 = vsel %vm832, %v632, 0
      %v1186 = vsel %vm832, %v633, 0
      %v1189 = vsel %vm832, %v634, 0
      %v1192 = vsel %vm832, %v635, 0
      %v1195 = vsel %vm832, %v636, 0
      %v1198 = vsel %vm832, %v637, 0
      %v1201 = vsel %vm832, %v638, 0
      %v1204 = vsel %vm832, %v639, 0
      %v1207 = vsel %vm832, %v640, 0
      %v1210 = vsel %vm832, %v641, 0
      %v1213 = vsel %vm832, %v642, 0
      %v1216 = vsel %vm832, %v643, 0
      %v1219 = vsel %vm832, %v644, 0
      %v1222 = vsel %vm832, %v645, 0
      %v1225 = vsel %vm832, %v646, 0
      %v1228 = vsel %vm832, %v647, 0
      %v1231 = vsel %vm832, %v648, 0
      %v1234 = vsel %vm832, %v649, 0
      %v1237 = vsel %vm832, %v650, 0
      %v1240 = vsel %vm832, %v651, 0
      %v1243 = vsel %vm832, %v652, 0
      %v1246 = vsel %vm832, %v653, 0
      %v1249 = vsel %vm832, %v654, 0
      %v1252 = vsel %vm832, %v655, 0
      %v1255 = vsel %vm929, %v830, 0
      %1257 = vmatprep.subr.mxu0 0.0
      %1258 = vmatpush1.msra.mxu0 %v1255
      %1259 = vmatprep.subr.mxu0 0.0
      %1260 = vmatpush1.msra.mxu0 0.0
      %1261 = vmatprep.subr.mxu0 0.0
      %1262 = vmatpush1.msra.mxu0 0.0
      %1263 = vmatprep.subr.mxu0 0.0
      %1264 = vmatpush1.msra.mxu0 0.0
      %1265 = vmatprep.subr.mxu0 0.0
      %1266 = vmatpush1.msra.mxu0 0.0
      %1267 = vmatprep.subr.mxu0 0.0
      %1268 = vmatpush1.msra.mxu0 0.0
      %1269 = vmatprep.subr.mxu0 0.0
      %1270 = vmatpush1.msra.mxu0 0.0
      %1271 = vmatprep.subr.mxu0 0.0
      %1272 = vmatpush1.msra.mxu0 0.0
      %1273 = vmatprep.subr.mxu0 0.0
      %1274 = vmatpush1.msra.mxu0 0.0
      %1275 = vmatprep.subr.mxu0 0.0
      %1276 = vmatpush1.msra.mxu0 0.0
      %1277 = vmatprep.subr.mxu0 0.0
      %1278 = vmatpush1.msra.mxu0 0.0
      %1279 = vmatprep.subr.mxu0 0.0
      %1280 = vmatpush1.msra.mxu0 0.0
      %1281 = vmatprep.subr.mxu0 0.0
      %1282 = vmatpush1.msra.mxu0 0.0
      %1283 = vmatprep.subr.mxu0 0.0
      %1284 = vmatpush1.msra.mxu0 0.0
      %1285 = vmatprep.subr.mxu0 0.0
      %1286 = vmatpush1.msra.mxu0 0.0
      %1287 = vmatprep.subr.mxu0 0.0
      %1288 = vmatpush1.msra.mxu0 0.0
      %1289 = vmatprep.subr.mxu0 0.0
      %1290 = vmatpush1.msra.mxu0 0.0
      %1291 = vmatprep.subr.mxu0 0.0
      %1292 = vmatpush1.msra.mxu0 0.0
      %1293 = vmatprep.subr.mxu0 0.0
      %1294 = vmatpush1.msra.mxu0 0.0
      %1295 = vmatprep.subr.mxu0 0.0
      %1296 = vmatpush1.msra.mxu0 0.0
      %1297 = vmatprep.subr.mxu0 0.0
      %1298 = vmatpush1.msra.mxu0 0.0
      %1299 = vmatprep.subr.mxu0 0.0
      %1300 = vmatpush1.msra.mxu0 0.0
      %1301 = vmatprep.subr.mxu0 0.0
      %1302 = vmatpush1.msra.mxu0 0.0
      %1303 = vmatprep.subr.mxu0 0.0
      %1304 = vmatpush1.msra.mxu0 0.0
      %1305 = vmatprep.subr.mxu0 0.0
      %1306 = vmatpush1.msra.mxu0 0.0
      %1307 = vmatprep.subr.mxu0 0.0
      %1308 = vmatpush1.msra.mxu0 0.0
      %1309 = vmatprep.subr.mxu0 0.0
      %1310 = vmatpush1.msra.mxu0 0.0
      %1311 = vmatprep.subr.mxu0 0.0
      %1312 = vmatpush1.msra.mxu0 0.0
      %1313 = vmatprep.subr.mxu0 0.0
      %1314 = vmatpush1.msra.mxu0 0.0
      %1315 = vmatprep.subr.mxu0 0.0
      %1316 = vmatpush1.msra.mxu0 0.0
      %1317 = vmatprep.subr.mxu0 0.0
      %1318 = vmatpush1.msra.mxu0 0.0
      %1319 = vmatprep.subr.mxu0 0.0
      %1320 = vmatpush1.msra.mxu0 0.0
      %1321 = vmatprep.mubr.f32.mxu0 0.0
      %1322 = vmatmul.mubr.f32.gmra.mrb[0].mxu0 %v1159
      %v1323 = vpop.f32.mrb[0].mxu0
      %v1324 = vadd.f32 %v1000, %v1323
      %v1325 = vpop.f32.mrb[0].mxu0
      %1326 = vmatprep.mubr.f32.mxu0 0.0
      %1327 = vmatmul.mubr.f32.gmra.mrb[0].mxu0 %v1162
      %v1328 = vpop.f32.mrb[0].mxu0
      %v1329 = vadd.f32 %v1005, %v1328
      %v1330 = vpop.f32.mrb[0].mxu0
      %1331 = vmatprep.mubr.f32.mxu0 0.0
      %1332 = vmatmul.mubr.f32.gmra.mrb[0].mxu0 %v1165
      %v1333 = vpop.f32.mrb[0].mxu0
      %v1334 = vadd.f32 %v1010, %v1333
      %v1335 = vpop.f32.mrb[0].mxu0
      %1336 = vmatprep.mubr.f32.mxu0 0.0
      %1337 = vmatmul.mubr.f32.gmra.mrb[0].mxu0 %v1168
      %v1338 = vpop.f32.mrb[0].mxu0
      %v1339 = vadd.f32 %v1015, %v1338
      %v1340 = vpop.f32.mrb[0].mxu0
      %1341 = vmatprep.mubr.f32.mxu0 0.0
      %1342 = vmatmul.mubr.f32.gmra.mrb[0].mxu0 %v1171
      %v1343 = vpop.f32.mrb[0].mxu0
      %v1344 = vadd.f32 %v1020, %v1343
      %v1345 = vpop.f32.mrb[0].mxu0
      %1346 = vmatprep.mubr.f32.mxu0 0.0
      %1347 = vmatmul.mubr.f32.gmra.mrb[0].mxu0 %v1174
      %v1348 = vpop.f32.mrb[0].mxu0
      %v1349 = vadd.f32 %v1025, %v1348
      %v1350 = vpop.f32.mrb[0].mxu0
      %1351 = vmatprep.mubr.f32.mxu0 0.0
      %1352 = vmatmul.mubr.f32.gmra.mrb[0].mxu0 %v1177
      %v1353 = vpop.f32.mrb[0].mxu0
      %v1354 = vadd.f32 %v1030, %v1353
      %v1355 = vpop.f32.mrb[0].mxu0
      %1356 = vmatprep.mubr.f32.mxu0 0.0
      %1357 = vmatmul.mubr.f32.gmra.mrb[0].mxu0 %v1180
      %v1358 = vpop.f32.mrb[0].mxu0
      %v1359 = vadd.f32 %v1035, %v1358
      %v1360 = vpop.f32.mrb[0].mxu0
      %1361 = vmatprep.mubr.f32.mxu0 0.0
      %1362 = vmatmul.mubr.f32.gmra.mrb[0].mxu0 %v1183
      %v1363 = vpop.f32.mrb[0].mxu0
      %v1364 = vadd.f32 %v1040, %v1363
      %v1365 = vpop.f32.mrb[0].mxu0
      %1366 = vmatprep.mubr.f32.mxu0 0.0
      %1367 = vmatmul.mubr.f32.gmra.mrb[0].mxu0 %v1186
      %v1368 = vpop.f32.mrb[0].mxu0
      %v1369 = vadd.f32 %v1045, %v1368
      %v1370 = vpop.f32.mrb[0].mxu0
      %1371 = vmatprep.mubr.f32.mxu0 0.0
      %1372 = vmatmul.mubr.f32.gmra.mrb[0].mxu0 %v1189
      %v1373 = vpop.f32.mrb[0].mxu0
      %v1374 = vadd.f32 %v1050, %v1373
      %v1375 = vpop.f32.mrb[0].mxu0
      %1376 = vmatprep.mubr.f32.mxu0 0.0
      %1377 = vmatmul.mubr.f32.gmra.mrb[0].mxu0 %v1192
      %v1378 = vpop.f32.mrb[0].mxu0
      %v1379 = vadd.f32 %v1055, %v1378
      %v1380 = vpop.f32.mrb[0].mxu0
      %1381 = vmatprep.mubr.f32.mxu0 0.0
      %1382 = vmatmul.mubr.f32.gmra.mrb[0].mxu0 %v1195
      %v1383 = vpop.f32.mrb[0].mxu0
      %v1384 = vadd.f32 %v1060, %v1383
      %v1385 = vpop.f32.mrb[0].mxu0
      %1386 = vmatprep.mubr.f32.mxu0 0.0
      %1387 = vmatmul.mubr.f32.gmra.mrb[0].mxu0 %v1198
      %v1388 = vpop.f32.mrb[0].mxu0
      %v1389 = vadd.f32 %v1065, %v1388
      %v1390 = vpop.f32.mrb[0].mxu0
      %1391 = vmatprep.mubr.f32.mxu0 0.0
      %1392 = vmatmul.mubr.f32.gmra.mrb[0].mxu0 %v1201
      %v1393 = vpop.f32.mrb[0].mxu0
      %v1394 = vadd.f32 %v1070, %v1393
      %v1395 = vpop.f32.mrb[0].mxu0
      %1396 = vmatprep.mubr.f32.mxu0 0.0
      %1397 = vmatmul.mubr.f32.gmra.mrb[0].mxu0 %v1204
      %v1398 = vpop.f32.mrb[0].mxu0
      %v1399 = vadd.f32 %v1075, %v1398
      %v1400 = vpop.f32.mrb[0].mxu0
      %1401 = vmatprep.mubr.f32.mxu0 0.0
      %1402 = vmatmul.mubr.f32.gmra.mrb[0].mxu0 %v1207
      %v1403 = vpop.f32.mrb[0].mxu0
      %v1404 = vadd.f32 %v1080, %v1403
      %v1405 = vpop.f32.mrb[0].mxu0
      %1406 = vmatprep.mubr.f32.mxu0 0.0
      %1407 = vmatmul.mubr.f32.gmra.mrb[0].mxu0 %v1210
      %v1408 = vpop.f32.mrb[0].mxu0
      %v1409 = vadd.f32 %v1085, %v1408
      %v1410 = vpop.f32.mrb[0].mxu0
      %1411 = vmatprep.mubr.f32.mxu0 0.0
      %1412 = vmatmul.mubr.f32.gmra.mrb[0].mxu0 %v1213
      %v1413 = vpop.f32.mrb[0].mxu0
      %v1414 = vadd.f32 %v1090, %v1413
      %v1415 = vpop.f32.mrb[0].mxu0
      %1416 = vmatprep.mubr.f32.mxu0 0.0
      %1417 = vmatmul.mubr.f32.gmra.mrb[0].mxu0 %v1216
      %v1418 = vpop.f32.mrb[0].mxu0
      %v1419 = vadd.f32 %v1095, %v1418
      %v1420 = vpop.f32.mrb[0].mxu0
      %1421 = vmatprep.mubr.f32.mxu0 0.0
      %1422 = vmatmul.mubr.f32.gmra.mrb[0].mxu0 %v1219
      %v1423 = vpop.f32.mrb[0].mxu0
      %v1424 = vadd.f32 %v1100, %v1423
      %v1425 = vpop.f32.mrb[0].mxu0
      %1426 = vmatprep.mubr.f32.mxu0 0.0
      %1427 = vmatmul.mubr.f32.gmra.mrb[0].mxu0 %v1222
      %v1428 = vpop.f32.mrb[0].mxu0
      %v1429 = vadd.f32 %v1105, %v1428
      %v1430 = vpop.f32.mrb[0].mxu0
      %1431 = vmatprep.mubr.f32.mxu0 0.0
      %1432 = vmatmul.mubr.f32.gmra.mrb[0].mxu0 %v1225
      %v1433 = vpop.f32.mrb[0].mxu0
      %v1434 = vadd.f32 %v1110, %v1433
      %v1435 = vpop.f32.mrb[0].mxu0
      %1436 = vmatprep.mubr.f32.mxu0 0.0
      %1437 = vmatmul.mubr.f32.gmra.mrb[0].mxu0 %v1228
      %v1438 = vpop.f32.mrb[0].mxu0
      %v1439 = vadd.f32 %v1115, %v1438
      %v1440 = vpop.f32.mrb[0].mxu0
      %1441 = vmatprep.mubr.f32.mxu0 0.0
      %1442 = vmatmul.mubr.f32.gmra.mrb[0].mxu0 %v1231
      %v1443 = vpop.f32.mrb[0].mxu0
      %v1444 = vadd.f32 %v1120, %v1443
      %v1445 = vpop.f32.mrb[0].mxu0
      %1446 = vmatprep.mubr.f32.mxu0 0.0
      %1447 = vmatmul.mubr.f32.gmra.mrb[0].mxu0 %v1234
      %v1448 = vpop.f32.mrb[0].mxu0
      %v1449 = vadd.f32 %v1125, %v1448
      %v1450 = vpop.f32.mrb[0].mxu0
      %1451 = vmatprep.mubr.f32.mxu0 0.0
      %1452 = vmatmul.mubr.f32.gmra.mrb[0].mxu0 %v1237
      %v1453 = vpop.f32.mrb[0].mxu0
      %v1454 = vadd.f32 %v1130, %v1453
      %v1455 = vpop.f32.mrb[0].mxu0
      %1456 = vmatprep.mubr.f32.mxu0 0.0
      %1457 = vmatmul.mubr.f32.gmra.mrb[0].mxu0 %v1240
      %v1458 = vpop.f32.mrb[0].mxu0
      %v1459 = vadd.f32 %v1135, %v1458
      %v1460 = vpop.f32.mrb[0].mxu0
      %1461 = vmatprep.mubr.f32.mxu0 0.0
      %1462 = vmatmul.mubr.f32.gmra.mrb[0].mxu0 %v1243
      %v1463 = vpop.f32.mrb[0].mxu0
      %v1464 = vadd.f32 %v1140, %v1463
      %v1465 = vpop.f32.mrb[0].mxu0
      %1466 = vmatprep.mubr.f32.mxu0 0.0
      %1467 = vmatmul.mubr.f32.gmra.mrb[0].mxu0 %v1246
      %v1468 = vpop.f32.mrb[0].mxu0
      %v1469 = vadd.f32 %v1145, %v1468
      %v1470 = vpop.f32.mrb[0].mxu0
      %1471 = vmatprep.mubr.f32.mxu0 0.0
      %1472 = vmatmul.mubr.f32.gmra.mrb[0].mxu0 %v1249
      %v1473 = vpop.f32.mrb[0].mxu0
      %v1474 = vadd.f32 %v1150, %v1473
      %v1475 = vpop.f32.mrb[0].mxu0
      %1476 = vmatprep.mubr.f32.mxu0 0.0
      %1477 = vmatmul.mubr.f32.gmra.mrb[0].mxu0 %v1252
      %v1478 = vpop.f32.mrb[0].mxu0
      %v1479 = vadd.f32 %v1155, %v1478
      %v1480 = vpop.f32.mrb[0].mxu0
      %1481 = vdwg.mxu0
      %v1482 = vmul.f32 %v1324, 0.1
      %v1483 = vmul.f32 %v1329, 0.1
      %v1484 = vmul.f32 %v1334, 0.1
      %v1485 = vmul.f32 %v1339, 0.1
      %v1486 = vmul.f32 %v1344, 0.1
      %v1487 = vmul.f32 %v1349, 0.1
      %v1488 = vmul.f32 %v1354, 0.1
      %v1489 = vmul.f32 %v1359, 0.1
      %v1490 = vmul.f32 %v1364, 0.1
      %v1491 = vmul.f32 %v1369, 0.1
      %v1492 = vmul.f32 %v1374, 0.1
      %v1493 = vmul.f32 %v1379, 0.1
      %v1494 = vmul.f32 %v1384, 0.1
      %v1495 = vmul.f32 %v1389, 0.1
      %v1496 = vmul.f32 %v1394, 0.1
      %v1497 = vmul.f32 %v1399, 0.1
      %v1498 = vmul.f32 %v1404, 0.1
      %v1499 = vmul.f32 %v1409, 0.1
      %v1500 = vmul.f32 %v1414, 0.1
      %v1501 = vmul.f32 %v1419, 0.1
      %v1502 = vmul.f32 %v1424, 0.1
      %v1503 = vmul.f32 %v1429, 0.1
      %v1504 = vmul.f32 %v1434, 0.1
      %v1505 = vmul.f32 %v1439, 0.1
      %v1506 = vmul.f32 %v1444, 0.1
      %v1507 = vmul.f32 %v1449, 0.1
      %v1508 = vmul.f32 %v1454, 0.1
      %v1509 = vmul.f32 %v1459, 0.1
      %v1510 = vmul.f32 %v1464, 0.1
      %v1511 = vmul.f32 %v1469, 0.1
      %v1512 = vmul.f32 %v1474, 0.1
      %v1513 = vmul.f32 %v1479, 0.1
      %v1514 = vld [vmem:[%s466] sm:$0xf]
      %v1515 = vld [vmem:[%s466 + $0x4] sm:$0xf]
      %v1516 = vld [vmem:[%s466 + $0x8] sm:$0xf]
      %v1517 = vld [vmem:[%s466 + $0xc] sm:$0xf]
      %v1518 = vld [vmem:[%s466 + $0x10] sm:$0xf]
      %v1519 = vld [vmem:[%s466 + $0x14] sm:$0xf]
      %v1520 = vld [vmem:[%s466 + $0x18] sm:$0xf]
      %v1521 = vld [vmem:[%s466 + $0x1c] sm:$0xf]
      %v1522 = vld [vmem:[%s466 + $0x20] sm:$0xf]
      %v1523 = vld [vmem:[%s466 + $0x24] sm:$0xf]
      %v1524 = vld [vmem:[%s466 + $0x28] sm:$0xf]
      %v1525 = vld [vmem:[%s466 + $0x2c] sm:$0xf]
      %v1526 = vld [vmem:[%s466 + $0x30] sm:$0xf]
      %v1527 = vld [vmem:[%s466 + $0x34] sm:$0xf]
      %v1528 = vld [vmem:[%s466 + $0x38] sm:$0xf]
      %v1529 = vld [vmem:[%s466 + $0x3c] sm:$0xf]
      %v1530 = vld [vmem:[%s466 + $0x40] sm:$0xf]
      %v1531 = vld [vmem:[%s466 + $0x44] sm:$0xf]
      %v1532 = vld [vmem:[%s466 + $0x48] sm:$0xf]
      %v1533 = vld [vmem:[%s466 + $0x4c] sm:$0xf]
      %v1534 = vld [vmem:[%s466 + $0x50] sm:$0xf]
      %v1535 = vld [vmem:[%s466 + $0x54] sm:$0xf]
      %v1536 = vld [vmem:[%s466 + $0x58] sm:$0xf]
      %v1537 = vld [vmem:[%s466 + $0x5c] sm:$0xf]
      %v1538 = vld [vmem:[%s466 + $0x60] sm:$0xf]
      %v1539 = vld [vmem:[%s466 + $0x64] sm:$0xf]
      %v1540 = vld [vmem:[%s466 + $0x68] sm:$0xf]
      %v1541 = vld [vmem:[%s466 + $0x6c] sm:$0xf]
      %v1542 = vld [vmem:[%s466 + $0x70] sm:$0xf]
      %v1543 = vld [vmem:[%s466 + $0x74] sm:$0xf]
      %v1544 = vld [vmem:[%s466 + $0x78] sm:$0xf]
      %v1545 = vld [vmem:[%s466 + $0x7c] sm:$0xf]
      %v1546 = vunpack.c.l.bf16 %v1514
      %v1547 = vunpack.c.l.bf16 %v1515
      %v1548 = vunpack.c.l.bf16 %v1516
      %v1549 = vunpack.c.l.bf16 %v1517
      %v1550 = vunpack.c.l.bf16 %v1518
      %v1551 = vunpack.c.l.bf16 %v1519
      %v1552 = vunpack.c.l.bf16 %v1520
      %v1553 = vunpack.c.l.bf16 %v1521
      %v1554 = vunpack.c.l.bf16 %v1522
      %v1555 = vunpack.c.l.bf16 %v1523
      %v1556 = vunpack.c.l.bf16 %v1524
      %v1557 = vunpack.c.l.bf16 %v1525
      %v1558 = vunpack.c.l.bf16 %v1526
      %v1559 = vunpack.c.l.bf16 %v1527
      %v1560 = vunpack.c.l.bf16 %v1528
      %v1561 = vunpack.c.l.bf16 %v1529
      %v1562 = vunpack.c.l.bf16 %v1530
      %v1563 = vunpack.c.l.bf16 %v1531
      %v1564 = vunpack.c.l.bf16 %v1532
      %v1565 = vunpack.c.l.bf16 %v1533
      %v1566 = vunpack.c.l.bf16 %v1534
      %v1567 = vunpack.c.l.bf16 %v1535
      %v1568 = vunpack.c.l.bf16 %v1536
      %v1569 = vunpack.c.l.bf16 %v1537
      %v1570 = vunpack.c.l.bf16 %v1538
      %v1571 = vunpack.c.l.bf16 %v1539
      %v1572 = vunpack.c.l.bf16 %v1540
      %v1573 = vunpack.c.l.bf16 %v1541
      %v1574 = vunpack.c.l.bf16 %v1542
      %v1575 = vunpack.c.l.bf16 %v1543
      %v1576 = vunpack.c.l.bf16 %v1544
      %v1577 = vunpack.c.l.bf16 %v1545
      %v1578 = vadd.f32 %v1482, %v1546
      %v1579 = vadd.f32 %v1483, %v1547
      %v1580 = vadd.f32 %v1484, %v1548
      %v1581 = vadd.f32 %v1485, %v1549
      %v1582 = vadd.f32 %v1486, %v1550
      %v1583 = vadd.f32 %v1487, %v1551
      %v1584 = vadd.f32 %v1488, %v1552
      %v1585 = vadd.f32 %v1489, %v1553
      %v1586 = vadd.f32 %v1490, %v1554
      %v1587 = vadd.f32 %v1491, %v1555
      %v1588 = vadd.f32 %v1492, %v1556
      %v1589 = vadd.f32 %v1493, %v1557
      %v1590 = vadd.f32 %v1494, %v1558
      %v1591 = vadd.f32 %v1495, %v1559
      %v1592 = vadd.f32 %v1496, %v1560
      %v1593 = vadd.f32 %v1497, %v1561
      %v1594 = vadd.f32 %v1498, %v1562
      %v1595 = vadd.f32 %v1499, %v1563
      %v1596 = vadd.f32 %v1500, %v1564
      %v1597 = vadd.f32 %v1501, %v1565
      %v1598 = vadd.f32 %v1502, %v1566
      %v1599 = vadd.f32 %v1503, %v1567
      %v1600 = vadd.f32 %v1504, %v1568
      %v1601 = vadd.f32 %v1505, %v1569
      %v1602 = vadd.f32 %v1506, %v1570
      %v1603 = vadd.f32 %v1507, %v1571
      %v1604 = vadd.f32 %v1508, %v1572
      %v1605 = vadd.f32 %v1509, %v1573
      %v1606 = vadd.f32 %v1510, %v1574
      %v1607 = vadd.f32 %v1511, %v1575
      %v1608 = vadd.f32 %v1512, %v1576
      %v1609 = vadd.f32 %v1513, %v1577
      %v1610 = vld [vmem:[%s9] sm:$0x1]
      %v1612 = vlaneseq
      %v1613 = vshrl.u32 %v1612, 7
      %v1614 = vsub.s32 0, %v1613
      %v1615 = vrot.slane %v1610, %v1614
      %v1617 = vadd.f32 %v1578, %v1615
      %v1618 = vadd.f32 %v1579, %v1615
      %v1619 = vadd.f32 %v1580, %v1615
      %v1620 = vadd.f32 %v1581, %v1615
      %v1621 = vadd.f32 %v1582, %v1615
      %v1622 = vadd.f32 %v1583, %v1615
      %v1623 = vadd.f32 %v1584, %v1615
      %v1624 = vadd.f32 %v1585, %v1615
      %v1625 = vadd.f32 %v1586, %v1615
      %v1626 = vadd.f32 %v1587, %v1615
      %v1627 = vadd.f32 %v1588, %v1615
      %v1628 = vadd.f32 %v1589, %v1615
      %v1629 = vadd.f32 %v1590, %v1615
      %v1630 = vadd.f32 %v1591, %v1615
      %v1631 = vadd.f32 %v1592, %v1615
      %v1632 = vadd.f32 %v1593, %v1615
      %v1633 = vadd.f32 %v1594, %v1615
      %v1634 = vadd.f32 %v1595, %v1615
      %v1635 = vadd.f32 %v1596, %v1615
      %v1636 = vadd.f32 %v1597, %v1615
      %v1637 = vadd.f32 %v1598, %v1615
      %v1638 = vadd.f32 %v1599, %v1615
      %v1639 = vadd.f32 %v1600, %v1615
      %v1640 = vadd.f32 %v1601, %v1615
      %v1641 = vadd.f32 %v1602, %v1615
      %v1642 = vadd.f32 %v1603, %v1615
      %v1643 = vadd.f32 %v1604, %v1615
      %v1644 = vadd.f32 %v1605, %v1615
      %v1645 = vadd.f32 %v1606, %v1615
      %v1646 = vadd.f32 %v1607, %v1615
      %v1647 = vadd.f32 %v1608, %v1615
      %v1648 = vadd.f32 %v1609, %v1615
      %v1649 = vpack.c.bf16 %v1618, %v1617
      %v1650 = vpack.c.bf16 %v1620, %v1619
      %v1651 = vpack.c.bf16 %v1622, %v1621
      %v1652 = vpack.c.bf16 %v1624, %v1623
      %v1653 = vpack.c.bf16 %v1626, %v1625
      %v1654 = vpack.c.bf16 %v1628, %v1627
      %v1655 = vpack.c.bf16 %v1630, %v1629
      %v1656 = vpack.c.bf16 %v1632, %v1631
      %v1657 = vpack.c.bf16 %v1634, %v1633
      %v1658 = vpack.c.bf16 %v1636, %v1635
      %v1659 = vpack.c.bf16 %v1638, %v1637
      %v1660 = vpack.c.bf16 %v1640, %v1639
      %v1661 = vpack.c.bf16 %v1642, %v1641
      %v1662 = vpack.c.bf16 %v1644, %v1643
      %v1663 = vpack.c.bf16 %v1646, %v1645
      %v1664 = vpack.c.bf16 %v1648, %v1647
      %v1681 = vunpack.c.l.b16 %v1649
      %v1682 = vunpack.c.h.b16 %v1649
      %v1683 = vunpack.c.l.b16 %v1650
      %v1684 = vunpack.c.h.b16 %v1650
      %v1685 = vunpack.c.l.b16 %v1651
      %v1686 = vunpack.c.h.b16 %v1651
      %v1687 = vunpack.c.l.b16 %v1652
      %v1688 = vunpack.c.h.b16 %v1652
      %v1689 = vunpack.c.l.b16 %v1653
      %v1690 = vunpack.c.h.b16 %v1653
      %v1691 = vunpack.c.l.b16 %v1654
      %v1692 = vunpack.c.h.b16 %v1654
      %v1693 = vunpack.c.l.b16 %v1655
      %v1694 = vunpack.c.h.b16 %v1655
      %v1695 = vunpack.c.l.b16 %v1656
      %v1696 = vunpack.c.h.b16 %v1656
      %v1697 = vunpack.c.l.b16 %v1657
      %v1698 = vunpack.c.h.b16 %v1657
      %v1699 = vunpack.c.l.b16 %v1658
      %v1700 = vunpack.c.h.b16 %v1658
      %v1701 = vunpack.c.l.b16 %v1659
      %v1702 = vunpack.c.h.b16 %v1659
      %v1703 = vunpack.c.l.b16 %v1660
      %v1704 = vunpack.c.h.b16 %v1660
      %v1705 = vunpack.c.l.b16 %v1661
      %v1706 = vunpack.c.h.b16 %v1661
      %v1707 = vunpack.c.l.b16 %v1662
      %v1708 = vunpack.c.h.b16 %v1662
      %v1709 = vunpack.c.l.b16 %v1663
      %v1710 = vunpack.c.h.b16 %v1663
      %v1711 = vunpack.c.l.b16 %v1664
      %v1712 = vunpack.c.h.b16 %v1664
      %v1713 = vpack.c.b16 %v1681, %v1681
      %v1714 = vpack.c.b16 %v1682, %v1682
      %v1715 = vpack.c.b16 %v1683, %v1683
      %v1716 = vpack.c.b16 %v1684, %v1684
      %v1717 = vpack.c.b16 %v1685, %v1685
      %v1718 = vpack.c.b16 %v1686, %v1686
      %v1719 = vpack.c.b16 %v1687, %v1687
      %v1720 = vpack.c.b16 %v1688, %v1688
      %v1721 = vpack.c.b16 %v1689, %v1689
      %v1722 = vpack.c.b16 %v1690, %v1690
      %v1723 = vpack.c.b16 %v1691, %v1691
      %v1724 = vpack.c.b16 %v1692, %v1692
      %v1725 = vpack.c.b16 %v1693, %v1693
      %v1726 = vpack.c.b16 %v1694, %v1694
      %v1727 = vpack.c.b16 %v1695, %v1695
      %v1728 = vpack.c.b16 %v1696, %v1696
      %v1729 = vpack.c.b16 %v1697, %v1697
      %v1730 = vpack.c.b16 %v1698, %v1698
      %v1731 = vpack.c.b16 %v1699, %v1699
      %v1732 = vpack.c.b16 %v1700, %v1700
      %v1733 = vpack.c.b16 %v1701, %v1701
      %v1734 = vpack.c.b16 %v1702, %v1702
      %v1735 = vpack.c.b16 %v1703, %v1703
      %v1736 = vpack.c.b16 %v1704, %v1704
      %v1737 = vpack.c.b16 %v1705, %v1705
      %v1738 = vpack.c.b16 %v1706, %v1706
      %v1739 = vpack.c.b16 %v1707, %v1707
      %v1740 = vpack.c.b16 %v1708, %v1708
      %v1741 = vpack.c.b16 %v1709, %v1709
      %v1742 = vpack.c.b16 %v1710, %v1710
      %v1743 = vpack.c.b16 %v1711, %v1711
      %v1744 = vpack.c.b16 %v1712, %v1712
      %vm1777 = vcmask 125952
      %1778 = vst.msk [vmem:[%s472] sm:$0xf] %vm1777, %v1713
      %1779 = vst.msk [vmem:[%s472 + $0x4] sm:$0xf] %vm1777, %v1714
      %1780 = vst.msk [vmem:[%s472 + $0x8] sm:$0xf] %vm1777, %v1715
      %1781 = vst.msk [vmem:[%s472 + $0xc] sm:$0xf] %vm1777, %v1716
      %1782 = vst.msk [vmem:[%s472 + $0x10] sm:$0xf] %vm1777, %v1717
      %1783 = vst.msk [vmem:[%s472 + $0x14] sm:$0xf] %vm1777, %v1718
      %1784 = vst.msk [vmem:[%s472 + $0x18] sm:$0xf] %vm1777, %v1719
      %1785 = vst.msk [vmem:[%s472 + $0x1c] sm:$0xf] %vm1777, %v1720
      %1786 = vst.msk [vmem:[%s472 + $0x20] sm:$0xf] %vm1777, %v1721
      %1787 = vst.msk [vmem:[%s472 + $0x24] sm:$0xf] %vm1777, %v1722
      %1788 = vst.msk [vmem:[%s472 + $0x28] sm:$0xf] %vm1777, %v1723
      %1789 = vst.msk [vmem:[%s472 + $0x2c] sm:$0xf] %vm1777, %v1724
      %1790 = vst.msk [vmem:[%s472 + $0x30] sm:$0xf] %vm1777, %v1725
      %1791 = vst.msk [vmem:[%s472 + $0x34] sm:$0xf] %vm1777, %v1726
      %1792 = vst.msk [vmem:[%s472 + $0x38] sm:$0xf] %vm1777, %v1727
      %1793 = vst.msk [vmem:[%s472 + $0x3c] sm:$0xf] %vm1777, %v1728
      %1794 = vst.msk [vmem:[%s472 + $0x40] sm:$0xf] %vm1777, %v1729
      %1795 = vst.msk [vmem:[%s472 + $0x44] sm:$0xf] %vm1777, %v1730
      %1796 = vst.msk [vmem:[%s472 + $0x48] sm:$0xf] %vm1777, %v1731
      %1797 = vst.msk [vmem:[%s472 + $0x4c] sm:$0xf] %vm1777, %v1732
      %1798 = vst.msk [vmem:[%s472 + $0x50] sm:$0xf] %vm1777, %v1733
      %1799 = vst.msk [vmem:[%s472 + $0x54] sm:$0xf] %vm1777, %v1734
      %1800 = vst.msk [vmem:[%s472 + $0x58] sm:$0xf] %vm1777, %v1735
      %1801 = vst.msk [vmem:[%s472 + $0x5c] sm:$0xf] %vm1777, %v1736
      %1802 = vst.msk [vmem:[%s472 + $0x60] sm:$0xf] %vm1777, %v1737
      %1803 = vst.msk [vmem:[%s472 + $0x64] sm:$0xf] %vm1777, %v1738
      %1804 = vst.msk [vmem:[%s472 + $0x68] sm:$0xf] %vm1777, %v1739
      %1805 = vst.msk [vmem:[%s472 + $0x6c] sm:$0xf] %vm1777, %v1740
      %1806 = vst.msk [vmem:[%s472 + $0x70] sm:$0xf] %vm1777, %v1741
      %1807 = vst.msk [vmem:[%s472 + $0x74] sm:$0xf] %vm1777, %v1742
      %1808 = vst.msk [vmem:[%s472 + $0x78] sm:$0xf] %vm1777, %v1743
      %1809 = vst.msk [vmem:[%s472 + $0x7c] sm:$0xf] %vm1777, %v1744
      %vm1810 = vcmask 130048
      %v1811 = vsel %vm1810, %v1617, 0.0
      %v1812 = vsel %vm1810, %v1618, 0.0
      %v1813 = vadd.f32 %v1811, %v1812
      %v1814 = vsel %vm1810, %v1619, 0.0
      %v1815 = vadd.f32 %v1813, %v1814
      %v1816 = vsel %vm1810, %v1620, 0.0
      %v1817 = vadd.f32 %v1815, %v1816
      %v1818 = vsel %vm1810, %v1621, 0.0
      %v1819 = vadd.f32 %v1817, %v1818
      %v1820 = vsel %vm1810, %v1622, 0.0
      %v1821 = vadd.f32 %v1819, %v1820
      %v1822 = vsel %vm1810, %v1623, 0.0
      %v1823 = vadd.f32 %v1821, %v1822
      %v1824 = vsel %vm1810, %v1624, 0.0
      %v1825 = vadd.f32 %v1823, %v1824
      %v1826 = vsel %vm1810, %v1625, 0.0
      %v1827 = vadd.f32 %v1825, %v1826
      %v1828 = vsel %vm1810, %v1626, 0.0
      %v1829 = vadd.f32 %v1827, %v1828
      %v1830 = vsel %vm1810, %v1627, 0.0
      %v1831 = vadd.f32 %v1829, %v1830
      %v1832 = vsel %vm1810, %v1628, 0.0
      %v1833 = vadd.f32 %v1831, %v1832
      %v1834 = vsel %vm1810, %v1629, 0.0
      %v1835 = vadd.f32 %v1833, %v1834
      %v1836 = vsel %vm1810, %v1630, 0.0
      %v1837 = vadd.f32 %v1835, %v1836
      %v1838 = vsel %vm1810, %v1631, 0.0
      %v1839 = vadd.f32 %v1837, %v1838
      %v1840 = vsel %vm1810, %v1632, 0.0
      %v1841 = vadd.f32 %v1839, %v1840
      %v1842 = vsel %vm1810, %v1633, 0.0
      %v1843 = vadd.f32 %v1841, %v1842
      %v1844 = vsel %vm1810, %v1634, 0.0
      %v1845 = vadd.f32 %v1843, %v1844
      %v1846 = vsel %vm1810, %v1635, 0.0
      %v1847 = vadd.f32 %v1845, %v1846
      %v1848 = vsel %vm1810, %v1636, 0.0
      %v1849 = vadd.f32 %v1847, %v1848
      %v1850 = vsel %vm1810, %v1637, 0.0
      %v1851 = vadd.f32 %v1849, %v1850
      %v1852 = vsel %vm1810, %v1638, 0.0
      %v1853 = vadd.f32 %v1851, %v1852
      %v1854 = vsel %vm1810, %v1639, 0.0
      %v1855 = vadd.f32 %v1853, %v1854
      %v1856 = vsel %vm1810, %v1640, 0.0
      %v1857 = vadd.f32 %v1855, %v1856
      %v1858 = vsel %vm1810, %v1641, 0.0
      %v1859 = vadd.f32 %v1857, %v1858
      %v1860 = vsel %vm1810, %v1642, 0.0
      %v1861 = vadd.f32 %v1859, %v1860
      %v1862 = vsel %vm1810, %v1643, 0.0
      %v1863 = vadd.f32 %v1861, %v1862
      %v1864 = vsel %vm1810, %v1644, 0.0
      %v1865 = vadd.f32 %v1863, %v1864
      %v1866 = vsel %vm1810, %v1645, 0.0
      %v1867 = vadd.f32 %v1865, %v1866
      %v1868 = vsel %vm1810, %v1646, 0.0
      %v1869 = vadd.f32 %v1867, %v1868
      %v1870 = vsel %vm1810, %v1647, 0.0
      %v1871 = vadd.f32 %v1869, %v1870
      %v1872 = vsel %vm1810, %v1648, 0.0
      %v1873 = vadd.f32 %v1871, %v1872
      %v1874 = vmul.f32 %v1617, %v1617
      %v1875 = vmul.f32 %v1618, %v1618
      %v1876 = vmul.f32 %v1619, %v1619
      %v1877 = vmul.f32 %v1620, %v1620
      %v1878 = vmul.f32 %v1621, %v1621
      %v1879 = vmul.f32 %v1622, %v1622
      %v1880 = vmul.f32 %v1623, %v1623
      %v1881 = vmul.f32 %v1624, %v1624
      %v1882 = vmul.f32 %v1625, %v1625
      %v1883 = vmul.f32 %v1626, %v1626
      %v1884 = vmul.f32 %v1627, %v1627
      %v1885 = vmul.f32 %v1628, %v1628
      %v1886 = vmul.f32 %v1629, %v1629
      %v1887 = vmul.f32 %v1630, %v1630
      %v1888 = vmul.f32 %v1631, %v1631
      %v1889 = vmul.f32 %v1632, %v1632
      %v1890 = vmul.f32 %v1633, %v1633
      %v1891 = vmul.f32 %v1634, %v1634
      %v1892 = vmul.f32 %v1635, %v1635
      %v1893 = vmul.f32 %v1636, %v1636
      %v1894 = vmul.f32 %v1637, %v1637
      %v1895 = vmul.f32 %v1638, %v1638
      %v1896 = vmul.f32 %v1639, %v1639
      %v1897 = vmul.f32 %v1640, %v1640
      %v1898 = vmul.f32 %v1641, %v1641
      %v1899 = vmul.f32 %v1642, %v1642
      %v1900 = vmul.f32 %v1643, %v1643
      %v1901 = vmul.f32 %v1644, %v1644
      %v1902 = vmul.f32 %v1645, %v1645
      %v1903 = vmul.f32 %v1646, %v1646
      %v1904 = vmul.f32 %v1647, %v1647
      %v1905 = vmul.f32 %v1648, %v1648
      %v1906 = vsel %vm1810, %v1874, 0.0
      %v1907 = vsel %vm1810, %v1875, 0.0
      %v1908 = vadd.f32 %v1906, %v1907
      %v1909 = vsel %vm1810, %v1876, 0.0
      %v1910 = vadd.f32 %v1908, %v1909
      %v1911 = vsel %vm1810, %v1877, 0.0
      %v1912 = vadd.f32 %v1910, %v1911
      %v1913 = vsel %vm1810, %v1878, 0.0
      %v1914 = vadd.f32 %v1912, %v1913
      %v1915 = vsel %vm1810, %v1879, 0.0
      %v1916 = vadd.f32 %v1914, %v1915
      %v1917 = vsel %vm1810, %v1880, 0.0
      %v1918 = vadd.f32 %v1916, %v1917
      %v1919 = vsel %vm1810, %v1881, 0.0
      %v1920 = vadd.f32 %v1918, %v1919
      %v1921 = vsel %vm1810, %v1882, 0.0
      %v1922 = vadd.f32 %v1920, %v1921
      %v1923 = vsel %vm1810, %v1883, 0.0
      %v1924 = vadd.f32 %v1922, %v1923
      %v1925 = vsel %vm1810, %v1884, 0.0
      %v1926 = vadd.f32 %v1924, %v1925
      %v1927 = vsel %vm1810, %v1885, 0.0
      %v1928 = vadd.f32 %v1926, %v1927
      %v1929 = vsel %vm1810, %v1886, 0.0
      %v1930 = vadd.f32 %v1928, %v1929
      %v1931 = vsel %vm1810, %v1887, 0.0
      %v1932 = vadd.f32 %v1930, %v1931
      %v1933 = vsel %vm1810, %v1888, 0.0
      %v1934 = vadd.f32 %v1932, %v1933
      %v1935 = vsel %vm1810, %v1889, 0.0
      %v1936 = vadd.f32 %v1934, %v1935
      %v1937 = vsel %vm1810, %v1890, 0.0
      %v1938 = vadd.f32 %v1936, %v1937
      %v1939 = vsel %vm1810, %v1891, 0.0
      %v1940 = vadd.f32 %v1938, %v1939
      %v1941 = vsel %vm1810, %v1892, 0.0
      %v1942 = vadd.f32 %v1940, %v1941
      %v1943 = vsel %vm1810, %v1893, 0.0
      %v1944 = vadd.f32 %v1942, %v1943
      %v1945 = vsel %vm1810, %v1894, 0.0
      %v1946 = vadd.f32 %v1944, %v1945
      %v1947 = vsel %vm1810, %v1895, 0.0
      %v1948 = vadd.f32 %v1946, %v1947
      %v1949 = vsel %vm1810, %v1896, 0.0
      %v1950 = vadd.f32 %v1948, %v1949
      %v1951 = vsel %vm1810, %v1897, 0.0
      %v1952 = vadd.f32 %v1950, %v1951
      %v1953 = vsel %vm1810, %v1898, 0.0
      %v1954 = vadd.f32 %v1952, %v1953
      %v1955 = vsel %vm1810, %v1899, 0.0
      %v1956 = vadd.f32 %v1954, %v1955
      %v1957 = vsel %vm1810, %v1900, 0.0
      %v1958 = vadd.f32 %v1956, %v1957
      %v1959 = vsel %vm1810, %v1901, 0.0
      %v1960 = vadd.f32 %v1958, %v1959
      %v1961 = vsel %vm1810, %v1902, 0.0
      %v1962 = vadd.f32 %v1960, %v1961
      %v1963 = vsel %vm1810, %v1903, 0.0
      %v1964 = vadd.f32 %v1962, %v1963
      %v1965 = vsel %vm1810, %v1904, 0.0
      %v1966 = vadd.f32 %v1964, %v1965
      %v1967 = vsel %vm1810, %v1905, 0.0
      %v1968 = vadd.f32 %v1966, %v1967
      %1969 = vst.msk [vmem:[%s477] sm:$0xff] %vm1810, %v1873
      %1970 = vst.msk [vmem:[%s481] sm:$0xff] %vm1810, %v1968
      %s1971 = smul.u32 32, %s24
      %p1972 = scmp.lt.s32.totalorder %s1971, 63
      %s1973 = scalar_select %p1972, %s1971, 63
      %s1974 = smul.addr %s1973, 4
      %s1975 = scalar_lea.vmem %s10, %s1974
      %p1976 = scmp.lt.s32.totalorder %s24, 1
      %s1977 = scalar_select %p1976, %s24, 1
      %s1978 = smul.addr %s1977, 8
      %s1979 = scalar_lea.vmem %s11, %s1978
      %p1980 = scmp.lt.s32.totalorder %s24, 1
      %s1981 = scalar_select %p1980, %s24, 1
      %s1982 = smul.addr %s1981, 8
      %s1983 = scalar_lea.vmem %s12, %s1982
      // Predicated region
      $region61: #{inception_resnet_b_pallas.8} parent=59 // pred_check
        %p1984 = pneg %p267
      $region62: #{inception_resnet_b_pallas.8} parent=59 // pred_check_branch
        %1986 = sbr.rel (%p1984) target = $region64
      $region63: #{inception_resnet_b_pallas.8} parent=59 // pred_region
        %s1987 = smul.u32 32, %s24
      $region64: #{inception_resnet_b_pallas.8} parent=59 // pred_fallthru
        _
      // Predicated region
      $region65: #{inception_resnet_b_pallas.8} parent=59 // pred_check
        %p1988 = pneg %p293
      $region66: #{inception_resnet_b_pallas.8} parent=59 // pred_check_branch
        %1990 = sbr.rel (%p1988) target = $region68
      $region67: #{inception_resnet_b_pallas.8} parent=59 // pred_region
        _
      $region68: #{inception_resnet_b_pallas.8} parent=59 // pred_fallthru
        _
      // Predicated region
      $region69: #{inception_resnet_b_pallas.8} parent=59 // pred_check
        %p1991 = pneg %p319
      $region70: #{inception_resnet_b_pallas.8} parent=59 // pred_check_branch
        %1993 = sbr.rel (%p1991) target = $region72
      $region71: #{inception_resnet_b_pallas.8} parent=59 // pred_region
        _
      $region72: #{inception_resnet_b_pallas.8} parent=59 // pred_fallthru
        _
    $region60: #{inception_resnet_b_pallas.8} parent=5 // pred_fallthru
      _
    %p1994 = scmp.le.s32.totalorder 2, %s19
    // Predicated region
    $region73: #{inception_resnet_b_pallas.8} parent=5 // pred_check
      %p1995 = pneg %p1994
    $region74: #{inception_resnet_b_pallas.8} parent=5 // pred_check_branch
      %1997 = sbr.rel (%p1995) target = $region76
    $region75: #{inception_resnet_b_pallas.8} parent=5 // pred_region
      %s1998 = ssub.s32 %s19, 2
      // Predicated region
      $region77: #{inception_resnet_b_pallas.8} parent=75 // pred_check
        %p1999 = pneg %p273
      $region78: #{inception_resnet_b_pallas.8} parent=75 // pred_check_branch
        %2001 = sbr.rel (%p1999) target = $region80
      $region79: #{inception_resnet_b_pallas.8} parent=75 // pred_region
        %s2002 = smul.u32 32, %s25
        %p2003 = scmp.lt.s32.totalorder %s2002, 63
        %s2004 = scalar_select %p2003, %s2002, 63
        %s2005 = smul.addr %s2004, 4
        %s2006 = scalar_lea.vmem %s10, %s2005
      $region80: #{inception_resnet_b_pallas.8} parent=75 // pred_fallthru
        _
      // Predicated region
      $region81: #{inception_resnet_b_pallas.8} parent=75 // pred_check
        %p2007 = pneg %p299
      $region82: #{inception_resnet_b_pallas.8} parent=75 // pred_check_branch
        %2009 = sbr.rel (%p2007) target = $region84
      $region83: #{inception_resnet_b_pallas.8} parent=75 // pred_region
        %p2010 = scmp.lt.s32.totalorder %s25, 1
        %s2011 = scalar_select %p2010, %s25, 1
        %s2012 = smul.addr %s2011, 8
        %s2013 = scalar_lea.vmem %s11, %s2012
      $region84: #{inception_resnet_b_pallas.8} parent=75 // pred_fallthru
        _
      // Predicated region
      $region85: #{inception_resnet_b_pallas.8} parent=75 // pred_check
        %p2014 = pneg %p325
      $region86: #{inception_resnet_b_pallas.8} parent=75 // pred_check_branch
        %2016 = sbr.rel (%p2014) target = $region88
      $region87: #{inception_resnet_b_pallas.8} parent=75 // pred_region
        %p2017 = scmp.lt.s32.totalorder %s25, 1
        %s2018 = scalar_select %p2017, %s25, 1
        %s2019 = smul.addr %s2018, 8
        %s2020 = scalar_lea.vmem %s12, %s2019
      $region88: #{inception_resnet_b_pallas.8} parent=75 // pred_fallthru
        _
    $region76: #{inception_resnet_b_pallas.8} parent=5 // pred_fallthru
      _
  $region6: #{inception_resnet_b_pallas.8} parent=0 // loop_footer
    %s23 = sadd.s32 1, %s19
  $region7: #{inception_resnet_b_pallas.8} parent=0 // loop_footer_branch
    %18 = sbr.rel target = $region3
  $region8: #{inception_resnet_b_pallas.8} parent=0 // loop_exit
    _

// kernel: inception_resnet_b_pallas.9
$region0: #{inception_resnet_b_pallas.9}
  #allocation0 [shape = 'u32[]', space=smem, size = 0x4, offset = 0x4, fixed_abs, tag = 'smem constant byte address 0x4 - core index']
  #allocation1 [shape = 'u32[144,128]{1,0:T(1,128)}', space=vmem, size = 0x12000, scoped, tag = 'internal scratch']
  %s0 = inlined_call_operand.vmem [shape: bf16[512,16], index: 0, kind: input, shape index: {}]
  %s1 = inlined_call_operand.vmem [shape: f32[1,16], index: 1, kind: input, shape index: {}]
  %s2 = inlined_call_operand.vmem [shape: f32[1,16], index: 2, kind: input, shape index: {}]
  %s3 = inlined_call_operand.vmem [shape: f32[512,16], index: 3, kind: output, shape index: {}]
  %s4 = sld [smem:[#allocation0]]
  $region45: #{inception_resnet_b_pallas.9} parent=0
    _
  %s6 = ssub.s32 1, %s4
  %s7 = scalar_select 0, %s6, %s4
  loop: start=0, step=1, limit=4
  $region2: #{inception_resnet_b_pallas.9} parent=0 // loop_pre_header
    _
  $region3: #{inception_resnet_b_pallas.9} parent=0 // loop_header
    %s9 = sphi 0, %s13
    %p10 = scmp.ge.s32.totalorder %s9, 4
    %s19 = sphi 0, %s21
    %s22 = sphi 0, %s19
    %s23 = sphi 0, %s22
    %s39 = sphi 0, %s23
    %s43 = sphi 0, %s43
    %s45 = sphi 0, %s43
    %s46 = sphi 0, %s45
    %s60 = sphi 0, %s46
    %s64 = sphi 0, %s64
    %s66 = sphi 0, %s64
    %s67 = sphi 0, %s66
    %s81 = sphi 0, %s67
    %s87 = sphi 0, %s89
    %s90 = sphi 0, %s87
    %s91 = sphi 0, %s90
    %s107 = sphi 0, %s91
  $region4: #{inception_resnet_b_pallas.9} parent=0 // loop_header_branch
    %12 = sbr.rel (%p10) target = $region8
  $region5: #{inception_resnet_b_pallas.9} parent=0 // loop_body
    %s14 = ssub.s32 %s9, 1
    %s15 = ssub.s32 %s9, 2
    %s16 = sadd.s32 %s9, 1
    %s17 = ssub.s32 %s9, %s16
    %p18 = scmp.eq.s32.totalorder %s17, 0
    %s20 = sadd.s32 %s19, 1
    %s21 = scalar_select %p18, %s19, %s20
    %p24 = pneg %p18
    %p25 = scmp.eq.s32.totalorder %s9, 1
    %p26 = por %p24, %p25
    %p27 = scmp.ne.s32.totalorder %s19, %s22
    %p28 = scmp.eq.s32.totalorder %s9, 0
    %p29 = por %p27, %p28
    %p30 = scmp.ne.s32.totalorder %s19, %s22
    %p31 = scmp.eq.s32.totalorder %s14, 1
    %p32 = por %p30, %p31
    %p33 = scmp.ne.s32.totalorder %s22, %s23
    %p34 = scmp.eq.s32.totalorder %s14, 0
    %p35 = por %p33, %p34
    %p36 = scmp.ne.s32.totalorder %s22, %s23
    %p37 = scmp.eq.s32.totalorder %s15, 1
    %p38 = por %p36, %p37
    %p40 = scmp.ne.s32.totalorder %s23, %s39
    %p41 = scmp.eq.s32.totalorder %s15, 0
    %p42 = por %p40, %p41
    %s44 = sadd.s32 %s43, 1
    %p47 = scmp.eq.s32.totalorder %s9, 1
    %p48 = scmp.ne.s32.totalorder %s43, %s45
    %p49 = scmp.eq.s32.totalorder %s9, 0
    %p50 = por %p48, %p49
    %p51 = scmp.ne.s32.totalorder %s43, %s45
    %p52 = scmp.eq.s32.totalorder %s14, 1
    %p53 = por %p51, %p52
    %p54 = scmp.ne.s32.totalorder %s45, %s46
    %p55 = scmp.eq.s32.totalorder %s14, 0
    %p56 = por %p54, %p55
    %p57 = scmp.ne.s32.totalorder %s45, %s46
    %p58 = scmp.eq.s32.totalorder %s15, 1
    %p59 = por %p57, %p58
    %p61 = scmp.ne.s32.totalorder %s46, %s60
    %p62 = scmp.eq.s32.totalorder %s15, 0
    %p63 = por %p61, %p62
    %s65 = sadd.s32 %s64, 1
    %p68 = scmp.eq.s32.totalorder %s9, 1
    %p69 = scmp.ne.s32.totalorder %s64, %s66
    %p70 = scmp.eq.s32.totalorder %s9, 0
    %p71 = por %p69, %p70
    %p72 = scmp.ne.s32.totalorder %s64, %s66
    %p73 = scmp.eq.s32.totalorder %s14, 1
    %p74 = por %p72, %p73
    %p75 = scmp.ne.s32.totalorder %s66, %s67
    %p76 = scmp.eq.s32.totalorder %s14, 0
    %p77 = por %p75, %p76
    %p78 = scmp.ne.s32.totalorder %s66, %s67
    %p79 = scmp.eq.s32.totalorder %s15, 1
    %p80 = por %p78, %p79
    %p82 = scmp.ne.s32.totalorder %s67, %s81
    %p83 = scmp.eq.s32.totalorder %s15, 0
    %p84 = por %p82, %p83
    %s85 = ssub.s32 %s9, %s16
    %p86 = scmp.eq.s32.totalorder %s85, 0
    %s88 = sadd.s32 %s87, 1
    %s89 = scalar_select %p86, %s87, %s88
    %p92 = pneg %p86
    %p93 = scmp.eq.s32.totalorder %s9, 1
    %p94 = por %p92, %p93
    %p95 = scmp.ne.s32.totalorder %s87, %s90
    %p96 = scmp.eq.s32.totalorder %s9, 0
    %p97 = por %p95, %p96
    %p98 = scmp.ne.s32.totalorder %s87, %s90
    %p99 = scmp.eq.s32.totalorder %s14, 1
    %p100 = por %p98, %p99
    %p101 = scmp.ne.s32.totalorder %s90, %s91
    %p102 = scmp.eq.s32.totalorder %s14, 0
    %p103 = por %p101, %p102
    %p104 = scmp.ne.s32.totalorder %s90, %s91
    %p105 = scmp.eq.s32.totalorder %s15, 1
    %p106 = por %p104, %p105
    %p108 = scmp.ne.s32.totalorder %s91, %s107
    %p109 = scmp.eq.s32.totalorder %s15, 0
    %p110 = por %p108, %p109
    %p111 = scmp.le.s32.totalorder 1, %s9
    %p112 = scmp.lt.s32.totalorder %s9, 3
    %p113 = pnand %p111, %p112
    %p114 = pneg %p113
    // Predicated region
    $region9: #{inception_resnet_b_pallas.9} parent=5 // pred_check
      _
    $region10: #{inception_resnet_b_pallas.9} parent=5 // pred_check_branch
      %116 = sbr.rel (%p113) target = $region12
    $region11: #{inception_resnet_b_pallas.9} parent=5 // pred_region
      %s117 = ssub.s32 %s9, 1
      // Predicated region
      $region13: #{inception_resnet_b_pallas.9} parent=11 // pred_check
        %p118 = pneg %p56
      $region14: #{inception_resnet_b_pallas.9} parent=11 // pred_check_branch
        %120 = sbr.rel (%p118) target = $region16
      $region15: #{inception_resnet_b_pallas.9} parent=11 // pred_region
        _
      $region16: #{inception_resnet_b_pallas.9} parent=11 // pred_fallthru
        _
      // Predicated region
      $region17: #{inception_resnet_b_pallas.9} parent=11 // pred_check
        %p121 = pneg %p77
      $region18: #{inception_resnet_b_pallas.9} parent=11 // pred_check_branch
        %123 = sbr.rel (%p121) target = $region20
      $region19: #{inception_resnet_b_pallas.9} parent=11 // pred_region
        _
      $region20: #{inception_resnet_b_pallas.9} parent=11 // pred_fallthru
        _
    $region12: #{inception_resnet_b_pallas.9} parent=5 // pred_fallthru
      _
    %p124 = scmp.lt.s32.totalorder %s9, 2
    // Predicated region
    $region21: #{inception_resnet_b_pallas.9} parent=5 // pred_check
      %p125 = pneg %p124
    $region22: #{inception_resnet_b_pallas.9} parent=5 // pred_check_branch
      %127 = sbr.rel (%p125) target = $region24
    $region23: #{inception_resnet_b_pallas.9} parent=5 // pred_region
      // Predicated region
      $region25: #{inception_resnet_b_pallas.9} parent=23 // pred_check
        %p128 = pneg %p29
      $region26: #{inception_resnet_b_pallas.9} parent=23 // pred_check_branch
        %130 = sbr.rel (%p128) target = $region28
      $region27: #{inception_resnet_b_pallas.9} parent=23 // pred_region
        %s131 = smul.u32 32, %s9
        %p132 = scmp.lt.s32.totalorder %s131, 63
        %s133 = scalar_select %p132, %s131, 63
        %s134 = smul.addr %s133, 4
        %s135 = scalar_lea.vmem %s0, %s134
        %s136 = smul.u32 32, %s9
      $region28: #{inception_resnet_b_pallas.9} parent=23 // pred_fallthru
        _
    $region24: #{inception_resnet_b_pallas.9} parent=5 // pred_fallthru
      _
    %p137 = scmp.le.s32.totalorder 1, %s9
    %p138 = scmp.lt.s32.totalorder %s9, 3
    %p139 = pnand %p137, %p138
    %p140 = pneg %p139
    // Predicated region
    $region29: #{inception_resnet_b_pallas.9} parent=5 // pred_check
      _
    $region30: #{inception_resnet_b_pallas.9} parent=5 // pred_check_branch
      %142 = sbr.rel (%p139) target = $region32
    $region31: #{inception_resnet_b_pallas.9} parent=5 // pred_region
      %s143 = ssub.s32 %s9, 1
      %s144 = smul.u32 32, %s14
      %p145 = scmp.lt.s32.totalorder %s144, 63
      %s146 = scalar_select %p145, %s144, 63
      %s147 = smul.addr %s146, 4
      %s148 = scalar_lea.vmem %s0, %s147
      %p149 = pneg %p35
      %p150 = pneg %p32
      %p151 = pneg %p56
      %p152 = pneg %p53
      %p153 = pneg %p77
      %p154 = pneg %p74
      %p155 = pneg %p103
      %p156 = pneg %p100
      %s157 = smul.u32 32, %s14
      %p158 = scmp.lt.s32.totalorder %s157, 63
      %s159 = scalar_select %p158, %s157, 63
      %s160 = smul.addr %s159, 8
      %s161 = scalar_lea.vmem %s3, %s160
      %s162 = smul.u32 32, %s14
      %p163 = scmp.lt.s32.totalorder %s162, 63
      %s164 = scalar_select %p163, %s162, 63
      %s165 = smul.addr %s164, 4
      %s166 = scalar_lea.vmem %s0, %s165
      %s167 = smul.u32 32, %s14
      %s168 = smul.u32 32, %s14
      %p169 = scmp.lt.s32.totalorder %s168, 63
      %s170 = scalar_select %p169, %s168, 63
      %s171 = smul.addr %s170, 8
      %s172 = scalar_lea.vmem %s3, %s171
      %s173 = smul.u32 32, %s14
      %v174 = vld [vmem:[%s166] sm:$0xf]
      %v175 = vld [vmem:[%s166 + $0x4] sm:$0xf]
      %v176 = vld [vmem:[%s166 + $0x8] sm:$0xf]
      %v177 = vld [vmem:[%s166 + $0xc] sm:$0xf]
      %v178 = vld [vmem:[%s166 + $0x10] sm:$0xf]
      %v179 = vld [vmem:[%s166 + $0x14] sm:$0xf]
      %v180 = vld [vmem:[%s166 + $0x18] sm:$0xf]
      %v181 = vld [vmem:[%s166 + $0x1c] sm:$0xf]
      %v182 = vld [vmem:[%s166 + $0x20] sm:$0xf]
      %v183 = vld [vmem:[%s166 + $0x24] sm:$0xf]
      %v184 = vld [vmem:[%s166 + $0x28] sm:$0xf]
      %v185 = vld [vmem:[%s166 + $0x2c] sm:$0xf]
      %v186 = vld [vmem:[%s166 + $0x30] sm:$0xf]
      %v187 = vld [vmem:[%s166 + $0x34] sm:$0xf]
      %v188 = vld [vmem:[%s166 + $0x38] sm:$0xf]
      %v189 = vld [vmem:[%s166 + $0x3c] sm:$0xf]
      %v190 = vld [vmem:[%s166 + $0x40] sm:$0xf]
      %v191 = vld [vmem:[%s166 + $0x44] sm:$0xf]
      %v192 = vld [vmem:[%s166 + $0x48] sm:$0xf]
      %v193 = vld [vmem:[%s166 + $0x4c] sm:$0xf]
      %v194 = vld [vmem:[%s166 + $0x50] sm:$0xf]
      %v195 = vld [vmem:[%s166 + $0x54] sm:$0xf]
      %v196 = vld [vmem:[%s166 + $0x58] sm:$0xf]
      %v197 = vld [vmem:[%s166 + $0x5c] sm:$0xf]
      %v198 = vld [vmem:[%s166 + $0x60] sm:$0xf]
      %v199 = vld [vmem:[%s166 + $0x64] sm:$0xf]
      %v200 = vld [vmem:[%s166 + $0x68] sm:$0xf]
      %v201 = vld [vmem:[%s166 + $0x6c] sm:$0xf]
      %v202 = vld [vmem:[%s166 + $0x70] sm:$0xf]
      %v203 = vld [vmem:[%s166 + $0x74] sm:$0xf]
      %v204 = vld [vmem:[%s166 + $0x78] sm:$0xf]
      %v205 = vld [vmem:[%s166 + $0x7c] sm:$0xf]
      %v206 = vunpack.c.l.bf16 %v174
      %v207 = vunpack.c.l.bf16 %v175
      %v208 = vunpack.c.l.bf16 %v176
      %v209 = vunpack.c.l.bf16 %v177
      %v210 = vunpack.c.l.bf16 %v178
      %v211 = vunpack.c.l.bf16 %v179
      %v212 = vunpack.c.l.bf16 %v180
      %v213 = vunpack.c.l.bf16 %v181
      %v214 = vunpack.c.l.bf16 %v182
      %v215 = vunpack.c.l.bf16 %v183
      %v216 = vunpack.c.l.bf16 %v184
      %v217 = vunpack.c.l.bf16 %v185
      %v218 = vunpack.c.l.bf16 %v186
      %v219 = vunpack.c.l.bf16 %v187
      %v220 = vunpack.c.l.bf16 %v188
      %v221 = vunpack.c.l.bf16 %v189
      %v222 = vunpack.c.l.bf16 %v190
      %v223 = vunpack.c.l.bf16 %v191
      %v224 = vunpack.c.l.bf16 %v192
      %v225 = vunpack.c.l.bf16 %v193
      %v226 = vunpack.c.l.bf16 %v194
      %v227 = vunpack.c.l.bf16 %v195
      %v228 = vunpack.c.l.bf16 %v196
      %v229 = vunpack.c.l.bf16 %v197
      %v230 = vunpack.c.l.bf16 %v198
      %v231 = vunpack.c.l.bf16 %v199
      %v232 = vunpack.c.l.bf16 %v200
      %v233 = vunpack.c.l.bf16 %v201
      %v234 = vunpack.c.l.bf16 %v202
      %v235 = vunpack.c.l.bf16 %v203
      %v236 = vunpack.c.l.bf16 %v204
      %v237 = vunpack.c.l.bf16 %v205
      %v238 = vld [vmem:[%s1] sm:$0x1]
      %v240 = vlaneseq
      %v241 = vshrl.u32 %v240, 7
      %v242 = vsub.s32 0, %v241
      %v243 = vrot.slane %v238, %v242
      %v245 = vmul.f32 %v206, %v243
      %v246 = vmul.f32 %v207, %v243
      %v247 = vmul.f32 %v208, %v243
      %v248 = vmul.f32 %v209, %v243
      %v249 = vmul.f32 %v210, %v243
      %v250 = vmul.f32 %v211, %v243
      %v251 = vmul.f32 %v212, %v243
      %v252 = vmul.f32 %v213, %v243
      %v253 = vmul.f32 %v214, %v243
      %v254 = vmul.f32 %v215, %v243
      %v255 = vmul.f32 %v216, %v243
      %v256 = vmul.f32 %v217, %v243
      %v257 = vmul.f32 %v218, %v243
      %v258 = vmul.f32 %v219, %v243
      %v259 = vmul.f32 %v220, %v243
      %v260 = vmul.f32 %v221, %v243
      %v261 = vmul.f32 %v222, %v243
      %v262 = vmul.f32 %v223, %v243
      %v263 = vmul.f32 %v224, %v243
      %v264 = vmul.f32 %v225, %v243
      %v265 = vmul.f32 %v226, %v243
      %v266 = vmul.f32 %v227, %v243
      %v267 = vmul.f32 %v228, %v243
      %v268 = vmul.f32 %v229, %v243
      %v269 = vmul.f32 %v230, %v243
      %v270 = vmul.f32 %v231, %v243
      %v271 = vmul.f32 %v232, %v243
      %v272 = vmul.f32 %v233, %v243
      %v273 = vmul.f32 %v234, %v243
      %v274 = vmul.f32 %v235, %v243
      %v275 = vmul.f32 %v236, %v243
      %v276 = vmul.f32 %v237, %v243
      %v277 = vld [vmem:[%s2] sm:$0x1]
      %v279 = vlaneseq
      %v280 = vshrl.u32 %v279, 7
      %v281 = vsub.s32 0, %v280
      %v282 = vrot.slane %v277, %v281
      %v284 = vadd.f32 %v245, %v282
      %v285 = vadd.f32 %v246, %v282
      %v286 = vadd.f32 %v247, %v282
      %v287 = vadd.f32 %v248, %v282
      %v288 = vadd.f32 %v249, %v282
      %v289 = vadd.f32 %v250, %v282
      %v290 = vadd.f32 %v251, %v282
      %v291 = vadd.f32 %v252, %v282
      %v292 = vadd.f32 %v253, %v282
      %v293 = vadd.f32 %v254, %v282
      %v294 = vadd.f32 %v255, %v282
      %v295 = vadd.f32 %v256, %v282
      %v296 = vadd.f32 %v257, %v282
      %v297 = vadd.f32 %v258, %v282
      %v298 = vadd.f32 %v259, %v282
      %v299 = vadd.f32 %v260, %v282
      %v300 = vadd.f32 %v261, %v282
      %v301 = vadd.f32 %v262, %v282
      %v302 = vadd.f32 %v263, %v282
      %v303 = vadd.f32 %v264, %v282
      %v304 = vadd.f32 %v265, %v282
      %v305 = vadd.f32 %v266, %v282
      %v306 = vadd.f32 %v267, %v282
      %v307 = vadd.f32 %v268, %v282
      %v308 = vadd.f32 %v269, %v282
      %v309 = vadd.f32 %v270, %v282
      %v310 = vadd.f32 %v271, %v282
      %v311 = vadd.f32 %v272, %v282
      %v312 = vadd.f32 %v273, %v282
      %v313 = vadd.f32 %v274, %v282
      %v314 = vadd.f32 %v275, %v282
      %v315 = vadd.f32 %v276, %v282
      %v316 = vmax.f32 %v284, 0.0
      %v317 = vmax.f32 %v285, 0.0
      %v318 = vmax.f32 %v286, 0.0
      %v319 = vmax.f32 %v287, 0.0
      %v320 = vmax.f32 %v288, 0.0
      %v321 = vmax.f32 %v289, 0.0
      %v322 = vmax.f32 %v290, 0.0
      %v323 = vmax.f32 %v291, 0.0
      %v324 = vmax.f32 %v292, 0.0
      %v325 = vmax.f32 %v293, 0.0
      %v326 = vmax.f32 %v294, 0.0
      %v327 = vmax.f32 %v295, 0.0
      %v328 = vmax.f32 %v296, 0.0
      %v329 = vmax.f32 %v297, 0.0
      %v330 = vmax.f32 %v298, 0.0
      %v331 = vmax.f32 %v299, 0.0
      %v332 = vmax.f32 %v300, 0.0
      %v333 = vmax.f32 %v301, 0.0
      %v334 = vmax.f32 %v302, 0.0
      %v335 = vmax.f32 %v303, 0.0
      %v336 = vmax.f32 %v304, 0.0
      %v337 = vmax.f32 %v305, 0.0
      %v338 = vmax.f32 %v306, 0.0
      %v339 = vmax.f32 %v307, 0.0
      %v340 = vmax.f32 %v308, 0.0
      %v341 = vmax.f32 %v309, 0.0
      %v342 = vmax.f32 %v310, 0.0
      %v343 = vmax.f32 %v311, 0.0
      %v344 = vmax.f32 %v312, 0.0
      %v345 = vmax.f32 %v313, 0.0
      %v346 = vmax.f32 %v314, 0.0
      %v347 = vmax.f32 %v315, 0.0
      %vm348 = vcmask 130048
      %349 = vst.msk [vmem:[%s172] sm:$0xff] %vm348, %v316
      %350 = vst.msk [vmem:[%s172 + $0x8] sm:$0xff] %vm348, %v317
      %351 = vst.msk [vmem:[%s172 + $0x10] sm:$0xff] %vm348, %v318
      %352 = vst.msk [vmem:[%s172 + $0x18] sm:$0xff] %vm348, %v319
      %353 = vst.msk [vmem:[%s172 + $0x20] sm:$0xff] %vm348, %v320
      %354 = vst.msk [vmem:[%s172 + $0x28] sm:$0xff] %vm348, %v321
      %355 = vst.msk [vmem:[%s172 + $0x30] sm:$0xff] %vm348, %v322
      %356 = vst.msk [vmem:[%s172 + $0x38] sm:$0xff] %vm348, %v323
      %357 = vst.msk [vmem:[%s172 + $0x40] sm:$0xff] %vm348, %v324
      %358 = vst.msk [vmem:[%s172 + $0x48] sm:$0xff] %vm348, %v325
      %359 = vst.msk [vmem:[%s172 + $0x50] sm:$0xff] %vm348, %v326
      %360 = vst.msk [vmem:[%s172 + $0x58] sm:$0xff] %vm348, %v327
      %361 = vst.msk [vmem:[%s172 + $0x60] sm:$0xff] %vm348, %v328
      %362 = vst.msk [vmem:[%s172 + $0x68] sm:$0xff] %vm348, %v329
      %363 = vst.msk [vmem:[%s172 + $0x70] sm:$0xff] %vm348, %v330
      %364 = vst.msk [vmem:[%s172 + $0x78] sm:$0xff] %vm348, %v331
      %365 = vst.msk [vmem:[%s172 + $0x80] sm:$0xff] %vm348, %v332
      %366 = vst.msk [vmem:[%s172 + $0x88] sm:$0xff] %vm348, %v333
      %367 = vst.msk [vmem:[%s172 + $0x90] sm:$0xff] %vm348, %v334
      %368 = vst.msk [vmem:[%s172 + $0x98] sm:$0xff] %vm348, %v335
      %369 = vst.msk [vmem:[%s172 + $0xa0] sm:$0xff] %vm348, %v336
      %370 = vst.msk [vmem:[%s172 + $0xa8] sm:$0xff] %vm348, %v337
      %371 = vst.msk [vmem:[%s172 + $0xb0] sm:$0xff] %vm348, %v338
      %372 = vst.msk [vmem:[%s172 + $0xb8] sm:$0xff] %vm348, %v339
      %373 = vst.msk [vmem:[%s172 + $0xc0] sm:$0xff] %vm348, %v340
      %374 = vst.msk [vmem:[%s172 + $0xc8] sm:$0xff] %vm348, %v341
      %375 = vst.msk [vmem:[%s172 + $0xd0] sm:$0xff] %vm348, %v342
      %376 = vst.msk [vmem:[%s172 + $0xd8] sm:$0xff] %vm348, %v343
      %377 = vst.msk [vmem:[%s172 + $0xe0] sm:$0xff] %vm348, %v344
      %378 = vst.msk [vmem:[%s172 + $0xe8] sm:$0xff] %vm348, %v345
      %379 = vst.msk [vmem:[%s172 + $0xf0] sm:$0xff] %vm348, %v346
      %380 = vst.msk [vmem:[%s172 + $0xf8] sm:$0xff] %vm348, %v347
      %s381 = smul.u32 32, %s14
      %p382 = scmp.lt.s32.totalorder %s381, 63
      %s383 = scalar_select %p382, %s381, 63
      %s384 = smul.addr %s383, 8
      %s385 = scalar_lea.vmem %s3, %s384
      // Predicated region
      $region33: #{inception_resnet_b_pallas.9} parent=31 // pred_check
        %p386 = pneg %p100
      $region34: #{inception_resnet_b_pallas.9} parent=31 // pred_check_branch
        %388 = sbr.rel (%p386) target = $region36
      $region35: #{inception_resnet_b_pallas.9} parent=31 // pred_region
        %s389 = smul.u32 32, %s14
      $region36: #{inception_resnet_b_pallas.9} parent=31 // pred_fallthru
        _
    $region32: #{inception_resnet_b_pallas.9} parent=5 // pred_fallthru
      _
    %p390 = scmp.le.s32.totalorder 2, %s9
    // Predicated region
    $region37: #{inception_resnet_b_pallas.9} parent=5 // pred_check
      %p391 = pneg %p390
    $region38: #{inception_resnet_b_pallas.9} parent=5 // pred_check_branch
      %393 = sbr.rel (%p391) target = $region40
    $region39: #{inception_resnet_b_pallas.9} parent=5 // pred_region
      %s394 = ssub.s32 %s9, 2
      // Predicated region
      $region41: #{inception_resnet_b_pallas.9} parent=39 // pred_check
        %p395 = pneg %p106
      $region42: #{inception_resnet_b_pallas.9} parent=39 // pred_check_branch
        %397 = sbr.rel (%p395) target = $region44
      $region43: #{inception_resnet_b_pallas.9} parent=39 // pred_region
        %s398 = smul.u32 32, %s15
        %p399 = scmp.lt.s32.totalorder %s398, 63
        %s400 = scalar_select %p399, %s398, 63
        %s401 = smul.addr %s400, 8
        %s402 = scalar_lea.vmem %s3, %s401
      $region44: #{inception_resnet_b_pallas.9} parent=39 // pred_fallthru
        _
    $region40: #{inception_resnet_b_pallas.9} parent=5 // pred_fallthru
      _
  $region6: #{inception_resnet_b_pallas.9} parent=0 // loop_footer
    %s13 = sadd.s32 1, %s9
  $region7: #{inception_resnet_b_pallas.9} parent=0 // loop_footer_branch
    %8 = sbr.rel target = $region3
  $region8: #{inception_resnet_b_pallas.9} parent=0 // loop_exit
    _

</llo_original>
